<compile_context>
chip_gen: v5e
topology: v5e:2x2
jax: 0.10.0
libtpu: 0.0.40
codegen_flags: <defaults>
</compile_context>

<pallas_src>
import jax
import jax.numpy as jnp
from jax import lax
from jax.experimental import pallas as pl
from jax.experimental.pallas import tpu as pltpu


# ------------------------------ small helpers ------------------------------

_VMEM_LIMIT_BYTES = 32 * 1024 * 1024   # explicit budget, safe on v5e/v6e/v7x


def _round_up(x, m):
    return ((x + m - 1) // m) * m


def _pick_tm(m_pad):
    # m_pad is always a multiple of 128 (caller pads), so this never falls
    # back to a VMEM-blowing full-M block for awkward shapes.
    for t in (1024, 512, 256, 128):
        if m_pad % t == 0:
            return t
    return m_pad


# ------------------------------ Pallas kernels ------------------------------

def _gemm_bn_stats_kernel(w_ref, a_ref, y_ref, sum_ref, sq_ref):
    """One M tile of y^T = W^T @ patches^T plus per-channel partial BN stats."""
    y = jnp.dot(w_ref[...], a_ref[...], preferred_element_type=jnp.float32)
    y_ref[...] = y                                        # (Cout, tm) lane-dense
    sum_ref[0] = jnp.sum(y, axis=1, keepdims=True)        # (Cout, 1) partial sum
    sq_ref[0] = jnp.sum(y * y, axis=1, keepdims=True)     # (Cout, 1) partial sumsq


def _bn_lrelu_kernel(y_ref, scale_ref, shift_ref, o_ref):
    """Fused BatchNorm apply (y*scale + shift) + LeakyReLU(0.2), bf16 output."""
    z = y_ref[...] * scale_ref[...] + shift_ref[...]
    o_ref[...] = jnp.where(z >= 0, z, 0.2 * z).astype(o_ref.dtype)


# ------------------------------ Pallas wrappers -----------------------------

def conv_gemm_with_stats(w_t, patches_t):
    """(Cout, K) @ (K, M) -> (Cout, M_pad) f32, plus per-tile BN partials.

    bf16 operands, f32 accumulation.  Weight panel resident across an M-only
    parallel grid; M on lanes (dense stores); no K grid axis / acc scratch.
    """
    n, k = w_t.shape
    k2, m = patches_t.shape
    assert k == k2
    m_pad = _round_up(m, 128)
    if m_pad != m:                       # zero-pad M (padded cols give y == 0)
        patches_t = jnp.pad(patches_t, ((0, 0), (0, m_pad - m)))
    tm = _pick_tm(m_pad)
    grid_m = m_pad // tm

    y, psum, psq = pl.pallas_call(
        _gemm_bn_stats_kernel,
        out_shape=(jax.ShapeDtypeStruct((n, m_pad), jnp.float32),
                   jax.ShapeDtypeStruct((grid_m, n, 1), jnp.float32),
                   jax.ShapeDtypeStruct((grid_m, n, 1), jnp.float32)),
        grid_spec=pltpu.PrefetchScalarGridSpec(
            num_scalar_prefetch=0,
            grid=(grid_m,),
            in_specs=[pl.BlockSpec((n, k), lambda i: (0, 0)),    # resident W^T
                      pl.BlockSpec((k, tm), lambda i: (0, i))],  # patches^T tile
            out_specs=(pl.BlockSpec((n, tm), lambda i: (0, i)),
                       pl.BlockSpec((1, n, 1), lambda i: (i, 0, 0)),
                       pl.BlockSpec((1, n, 1), lambda i: (i, 0, 0)))),
        compiler_params=pltpu.CompilerParams(
            dimension_semantics=("parallel",),
            vmem_limit_bytes=_VMEM_LIMIT_BYTES),
    )(w_t, patches_t)
    return y, psum, psq


def bn_lrelu_apply(y, scale, shift, out_dtype=jnp.bfloat16):
    """Single fused pass: y * scale + shift -> LeakyReLU(0.2), cast to bf16."""
    n, m_pad = y.shape
    tm = _pick_tm(m_pad)
    grid_m = m_pad // tm
    return pl.pallas_call(
        _bn_lrelu_kernel,
        out_shape=jax.ShapeDtypeStruct((n, m_pad), out_dtype),
        grid_spec=pltpu.PrefetchScalarGridSpec(
            num_scalar_prefetch=0,
            grid=(grid_m,),
            in_specs=[pl.BlockSpec((n, tm), lambda i: (0, i)),
                      pl.BlockSpec((n, 1), lambda i: (0, 0)),
                      pl.BlockSpec((n, 1), lambda i: (0, 0))],
            out_specs=pl.BlockSpec((n, tm), lambda i: (0, i))),
        compiler_params=pltpu.CompilerParams(
            dimension_semantics=("parallel",),
            vmem_limit_bytes=_VMEM_LIMIT_BYTES),
    )(y, scale.reshape(n, 1).astype(jnp.float32),
      shift.reshape(n, 1).astype(jnp.float32))


# --------------------------- conv lowering (glue) ---------------------------

def _im2col_t(h, ksize, stride, pad):
    """h: (C, B, D, H, W) -> patches^T (K, M); K ordered (kd,kh,kw,c), M (b,d,h,w)."""
    C, B, D, H, W = h.shape
    kd, kh, kw = ksize
    sd, sh, sw = stride
    pd, ph, pw = pad
    hp = jnp.pad(h, ((0, 0), (0, 0), (pd, pd), (ph, ph), (pw, pw)))
    Do = (D + 2 * pd - kd) // sd + 1
    Ho = (H + 2 * ph - kh) // sh + 1
    Wo = (W + 2 * pw - kw) // sw + 1
    cols = []
    for dk in range(kd):
        for hk in range(kh):
            for wk in range(kw):
                cols.append(hp[:, :,
                               dk:dk + sd * (Do - 1) + 1:sd,
                               hk:hk + sh * (Ho - 1) + 1:sh,
                               wk:wk + sw * (Wo - 1) + 1:sw])
    pt = jnp.stack(cols, axis=0)                 # (taps, C, B, Do, Ho, Wo)
    return pt.reshape(kd * kh * kw * C, B * Do * Ho * Wo), (B, Do, Ho, Wo)


def _weight_t(w):
    """PyTorch (Cout, Cin, kd, kh, kw) -> bf16 (Cout, K), K ordered (kd,kh,kw,cin)."""
    cout, cin, kd, kh, kw = w.shape
    return (w.transpose(0, 2, 3, 4, 1)
             .reshape(cout, kd * kh * kw * cin)
             .astype(jnp.bfloat16))


def conv_bn_lrelu_layer(h, w, gamma, beta, eps=1e-5):
    """downConv_i (4x4x4 / stride 2 / pad 1) + BatchNorm3d (batch stats) + LeakyReLU."""
    patches_t, (B, Do, Ho, Wo) = _im2col_t(h, (4, 4, 4), (2, 2, 2), (1, 1, 1))
    w_t = _weight_t(w)
    cout = w_t.shape[0]
    m = B * Do * Ho * Wo

    y, psum, psq = conv_gemm_with_stats(w_t, patches_t.astype(jnp.bfloat16))

    # Combine the tiny per-tile partials; padded M columns are exact zeros in
    # the GEMM output so they do not perturb the sums; divide by the true M.
    ssum = jnp.sum(psum[:, :, 0], axis=0)
    ssq = jnp.sum(psq[:, :, 0], axis=0)
    mean = ssum / m
    var = ssq / m - mean * mean     # biased batch variance (training-mode BN);
                                    # activations are ~zero-mean so E[x^2]-E[x]^2 is OK.
    scale = gamma / jnp.sqrt(var + eps)
    shift = beta - mean * scale

    hflat = bn_lrelu_apply(y, scale, shift)[:, :m]      # (Cout, M) bf16
    return hflat.reshape(cout, B, Do, Ho, Wo)


# -------------------------------- forward pass -------------------------------

def flow_encoder_forward(x, p):
    bf16 = jnp.bfloat16

    # downConv1: Conv3d(2, ngf, (3,4,4), stride (1,2,2), pad 1), no BN.
    # Lowered to XLA's native conv to avoid the ~12x im2col HBM inflation of
    # this layer; output directly in (C, B, D, H, W) layout.
    h = lax.conv_general_dilated(
        x.astype(bf16), p['w1'].astype(bf16),
        window_strides=(1, 2, 2),
        padding=((1, 1), (1, 1), (1, 1)),
        dimension_numbers=('NCDHW', 'OIDHW', 'CNDHW'),
        preferred_element_type=jnp.float32).astype(bf16)

    # downConv2..5, each: fused (GEMM + BN stats) Pallas kernel followed by a
    # fused (BN apply + LeakyReLU) Pallas kernel, bf16 activations in between.
    # TODO(synk): layers 2-5 still materialize (much smaller) im2col patches in
    # HBM; a fully fused conv kernel (manual DMA of overlapping input slabs)
    # would remove that remaining traffic.
    for li in (2, 3, 4, 5):
        h = conv_bn_lrelu_layer(h, p[f'w{li}'], p[f'g{li}'], p[f'b{li}'])

    # downConv6 ((2,4,4) kernel over the full remaining extent -> one output
    # position) collapses to downx6.view(b, s); it and fc1 are tiny dense
    # products done in plain jnp (sub-vreg sized, pallas_call overhead dominates).
    c5, bsz, dd, hh, ww = h.shape
    x6 = h.transpose(1, 0, 2, 3, 4).reshape(bsz, c5 * dd * hh * ww).astype(jnp.float32)
    w6m = p['w6'].reshape(p['w6'].shape[0], -1).astype(jnp.float32)  # K = (cin,d,h,w)
    downx6 = x6 @ w6m.T                      # == downx6.view(b, s) in the reference
    out = downx6 @ p['fcw'].T + p['fcb']     # fc1
    return out


# -------------------------------- params init --------------------------------

def init_params(key, ngf, dlatent):
    ks = jax.random.split(key, 16)

    def conv_w(k, cout, cin, kd, kh, kw):
        fan_in = cin * kd * kh * kw
        return jax.random.normal(k, (cout, cin, kd, kh, kw),
                                 jnp.float32) / jnp.sqrt(fan_in)

    p = {}
    p['w1'] = conv_w(ks[0], ngf,      2,        3, 4, 4)
    p['w2'] = conv_w(ks[1], ngf * 2,  ngf,      4, 4, 4)
    p['w3'] = conv_w(ks[2], ngf * 4,  ngf * 2,  4, 4, 4)
    p['w4'] = conv_w(ks[3], ngf * 8,  ngf * 4,  4, 4, 4)
    p['w5'] = conv_w(ks[4], ngf * 16, ngf * 8,  4, 4, 4)
    p['w6'] = conv_w(ks[5], ngf * 16, ngf * 16, 2, 4, 4)
    for idx, c in zip((2, 3, 4, 5), (ngf * 2, ngf * 4, ngf * 8, ngf * 16)):
        p[f'g{idx}'] = 1.0 + 0.1 * jax.random.normal(
            ks[6 + (idx - 2) * 2], (c,), jnp.float32)
        p[f'b{idx}'] = 0.1 * jax.random.normal(
            ks[7 + (idx - 2) * 2], (c,), jnp.float32)
    p['fcw'] = jax.random.normal(ks[14], (dlatent, ngf * 16),
                                 jnp.float32) / jnp.sqrt(ngf * 16)
    p['fcb'] = 0.1 * jax.random.normal(ks[15], (dlatent,), jnp.float32)
    return p


# ------------------------------------ main -----------------------------------

if __name__ == "__main__":
    ngf, dlatent = 4, 8
    # (B, 2, 32, 128, 128) is the smallest input for which the downConv6
    # output is (B, 16*ngf, 1, 1, 1), so that .view(b, s) in the reference
    # module is valid.
    B, D, H, W = 2, 32, 128, 128

    key = jax.random.PRNGKey(0)
    kx, kp = jax.random.split(key)
    x = jax.random.normal(kx, (B, 2, D, H, W), jnp.float32)
    params = init_params(kp, ngf, dlatent)

    fwd = jax.jit(flow_encoder_forward)
    out = fwd(x, params)
    jax.block_until_ready(out)
    assert out.shape == (B, dlatent), out.shape
    assert bool(jnp.all(jnp.isfinite(out)))
    print("KERNEL_OK")
</pallas_src>

<mosaic_0001>
module attributes {stable_mosaic.version = 11 : i64} {
  func.func @_gemm_bn_stats_kernel(%arg0: i32, %arg1: memref<8x256xbf16, #tpu.memory_space<vmem>>, %arg2: memref<256x1024xbf16, #tpu.memory_space<vmem>>, %arg3: memref<8x1024xf32, #tpu.memory_space<vmem>>, %arg4: memref<1x8x1xf32, #tpu.memory_space<vmem>>, %arg5: memref<1x8x1xf32, #tpu.memory_space<vmem>>) attributes {dimension_semantics = [#tpu.dimension_semantics<parallel>], iteration_bounds = array<i64: 32>, scalar_prefetch = 0 : i64, scratch_operands = 0 : i64, tpu.core_type = #tpu.core_type<tc>, window_params = [{pipeline_mode = #tpu.pipeline_mode<synchronous>, transform_indices = @transform_0, window_bounds = array<i64: 8, 256>}, {transform_indices = @transform_1, window_bounds = array<i64: 256, 1024>}, {transform_indices = @transform_2, window_bounds = array<i64: 8, 1024>}, {transform_indices = @transform_3, window_bounds = array<i64: 1, 8, 1>}, {transform_indices = @transform_4, window_bounds = array<i64: 1, 8, 1>}]} {
    %c0 = arith.constant 0 : index
    %c0_0 = arith.constant 0 : index
    %0 = vector.load %arg1[%c0, %c0_0] : memref<8x256xbf16, #tpu.memory_space<vmem>>, vector<8x256xbf16>
    %c0_1 = arith.constant 0 : index
    %c0_2 = arith.constant 0 : index
    %1 = vector.load %arg2[%c0_1, %c0_2] : memref<256x1024xbf16, #tpu.memory_space<vmem>>, vector<256x1024xbf16>
    %cst = arith.constant dense<0.000000e+00> : vector<8x1024xf32>
    %2 = tpu.matmul %0, %1, %cst {dimension_numbers = #tpu.dot_dimension_numbers<[1], [0], [0], [1], [0, 0, 1, 1], [], []>} : vector<8x256xbf16>, vector<256x1024xbf16>, vector<8x1024xf32> -> vector<8x1024xf32>
    %c0_3 = arith.constant 0 : index
    %c0_4 = arith.constant 0 : index
    %3 = vector.load %arg3[%c0_3, %c0_4] : memref<8x1024xf32, #tpu.memory_space<vmem>>, vector<8x1024xf32>
    tpu.vector_store %arg3[%c0_3, %c0_4], %2 {strides = array<i32>} : memref<8x1024xf32, #tpu.memory_space<vmem>>, vector<8x1024xf32>,
    %cst_5 = arith.constant dense<0.000000e+00> : vector<8xf32>
    %4 = vector.multi_reduction <add>, %2, %cst_5 [1] : vector<8x1024xf32> to vector<8xf32>
    %5 = vector.shape_cast %4 : vector<8xf32> to vector<8x1xf32>
    %c0_6 = arith.constant 0 : index
    %c0_7 = arith.constant 0 : index
    %c0_8 = arith.constant 0 : index
    %6 = vector.load %arg4[%c0_6, %c0_7, %c0_8] : memref<1x8x1xf32, #tpu.memory_space<vmem>>, vector<1x8x1xf32>
    %7 = vector.shape_cast %6 : vector<1x8x1xf32> to vector<8x1xf32>
    %8 = vector.shape_cast %5 : vector<8x1xf32> to vector<1x8x1xf32>
    tpu.vector_store %arg4[%c0_6, %c0_7, %c0_8], %8 {strides = array<i32>} : memref<1x8x1xf32, #tpu.memory_space<vmem>>, vector<1x8x1xf32>,
    %9 = arith.mulf %2, %2 : vector<8x1024xf32>
    %cst_9 = arith.constant dense<0.000000e+00> : vector<8xf32>
    %10 = vector.multi_reduction <add>, %9, %cst_9 [1] : vector<8x1024xf32> to vector<8xf32>
    %11 = vector.shape_cast %10 : vector<8xf32> to vector<8x1xf32>
    %c0_10 = arith.constant 0 : index
    %c0_11 = arith.constant 0 : index
    %c0_12 = arith.constant 0 : index
    %12 = vector.load %arg5[%c0_10, %c0_11, %c0_12] : memref<1x8x1xf32, #tpu.memory_space<vmem>>, vector<1x8x1xf32>
    %13 = vector.shape_cast %12 : vector<1x8x1xf32> to vector<8x1xf32>
    %14 = vector.shape_cast %11 : vector<8x1xf32> to vector<1x8x1xf32>
    tpu.vector_store %arg5[%c0_10, %c0_11, %c0_12], %14 {strides = array<i32>} : memref<1x8x1xf32, #tpu.memory_space<vmem>>, vector<1x8x1xf32>,
    return
  }
  func.func @transform_0(%arg0: i32) -> (i32, i32) {
    %c0_i32 = arith.constant 0 : i32
    %c0_i32_0 = arith.constant 0 : i32
    %c0_i32_1 = arith.constant 0 : i32
    return %c0_i32, %c0_i32_0 : i32, i32
  }
  func.func @transform_1(%arg0: i32) -> (i32, i32) {
    %c0_i32 = arith.constant 0 : i32
    %c0_i32_0 = arith.constant 0 : i32
    return %c0_i32, %arg0 : i32, i32
  }
  func.func @transform_2(%arg0: i32) -> (i32, i32) {
    %c0_i32 = arith.constant 0 : i32
    %c0_i32_0 = arith.constant 0 : i32
    return %c0_i32, %arg0 : i32, i32
  }
  func.func @transform_3(%arg0: i32) -> (i32, i32, i32) {
    %c0_i32 = arith.constant 0 : i32
    %c0_i32_0 = arith.constant 0 : i32
    %c0_i32_1 = arith.constant 0 : i32
    return %arg0, %c0_i32, %c0_i32_0 : i32, i32, i32
  }
  func.func @transform_4(%arg0: i32) -> (i32, i32, i32) {
    %c0_i32 = arith.constant 0 : i32
    %c0_i32_0 = arith.constant 0 : i32
    %c0_i32_1 = arith.constant 0 : i32
    return %arg0, %c0_i32, %c0_i32_0 : i32, i32, i32
  }
}

module attributes {stable_mosaic.version = 11 : i64} {
  func.func @_bn_lrelu_kernel(%arg0: i32, %arg1: memref<8x1024xf32, #tpu.memory_space<vmem>>, %arg2: memref<8x1xf32, #tpu.memory_space<vmem>>, %arg3: memref<8x1xf32, #tpu.memory_space<vmem>>, %arg4: memref<8x1024xbf16, #tpu.memory_space<vmem>>) attributes {dimension_semantics = [#tpu.dimension_semantics<parallel>], iteration_bounds = array<i64: 32>, scalar_prefetch = 0 : i64, scratch_operands = 0 : i64, tpu.core_type = #tpu.core_type<tc>, window_params = [{transform_indices = @transform_0, window_bounds = array<i64: 8, 1024>}, {pipeline_mode = #tpu.pipeline_mode<synchronous>, transform_indices = @transform_1, window_bounds = array<i64: 8, 1>}, {pipeline_mode = #tpu.pipeline_mode<synchronous>, transform_indices = @transform_2, window_bounds = array<i64: 8, 1>}, {transform_indices = @transform_3, window_bounds = array<i64: 8, 1024>}]} {
    %c0 = arith.constant 0 : index
    %c0_0 = arith.constant 0 : index
    %0 = vector.load %arg1[%c0, %c0_0] : memref<8x1024xf32, #tpu.memory_space<vmem>>, vector<8x1024xf32>
    %c0_1 = arith.constant 0 : index
    %c0_2 = arith.constant 0 : index
    %1 = vector.load %arg2[%c0_1, %c0_2] : memref<8x1xf32, #tpu.memory_space<vmem>>, vector<8x1xf32>
    %2 = vector.broadcast %1 : vector<8x1xf32> to vector<8x1024xf32>
    %3 = arith.mulf %0, %2 : vector<8x1024xf32>
    %c0_3 = arith.constant 0 : index
    %c0_4 = arith.constant 0 : index
    %4 = vector.load %arg3[%c0_3, %c0_4] : memref<8x1xf32, #tpu.memory_space<vmem>>, vector<8x1xf32>
    %5 = vector.broadcast %4 : vector<8x1xf32> to vector<8x1024xf32>
    %6 = arith.addf %3, %5 : vector<8x1024xf32>
    %cst = arith.constant 0.000000e+00 : f32
    %7 = vector.broadcast %cst : f32 to vector<8x1024xf32>
    %8 = arith.cmpf oge, %6, %7 : vector<8x1024xf32>
    %cst_5 = arith.constant 2.000000e-01 : f32
    %9 = vector.broadcast %cst_5 : f32 to vector<8x1024xf32>
    %10 = arith.mulf %9, %6 : vector<8x1024xf32>
    %11 = arith.select %8, %6, %10 : vector<8x1024xi1>, vector<8x1024xf32>
    %12 = arith.truncf %11 : vector<8x1024xf32> to vector<8x1024xbf16>
    %c0_6 = arith.constant 0 : index
    %c0_7 = arith.constant 0 : index
    %13 = vector.load %arg4[%c0_6, %c0_7] : memref<8x1024xbf16, #tpu.memory_space<vmem>>, vector<8x1024xbf16>
    tpu.vector_store %arg4[%c0_6, %c0_7], %12 {strides = array<i32>} : memref<8x1024xbf16, #tpu.memory_space<vmem>>, vector<8x1024xbf16>,
    return
  }
  func.func @transform_0(%arg0: i32) -> (i32, i32) {
    %c0_i32 = arith.constant 0 : i32
    %c0_i32_0 = arith.constant 0 : i32
    return %c0_i32, %arg0 : i32, i32
  }
  func.func @transform_1(%arg0: i32) -> (i32, i32) {
    %c0_i32 = arith.constant 0 : i32
    %c0_i32_0 = arith.constant 0 : i32
    %c0_i32_1 = arith.constant 0 : i32
    return %c0_i32, %c0_i32_0 : i32, i32
  }
  func.func @transform_2(%arg0: i32) -> (i32, i32) {
    %c0_i32 = arith.constant 0 : i32
    %c0_i32_0 = arith.constant 0 : i32
    %c0_i32_1 = arith.constant 0 : i32
    return %c0_i32, %c0_i32_0 : i32, i32
  }
  func.func @transform_3(%arg0: i32) -> (i32, i32) {
    %c0_i32 = arith.constant 0 : i32
    %c0_i32_0 = arith.constant 0 : i32
    return %c0_i32, %arg0 : i32, i32
  }
}

module attributes {stable_mosaic.version = 11 : i64} {
  func.func @_gemm_bn_stats_kernel(%arg0: i32, %arg1: memref<16x512xbf16, #tpu.memory_space<vmem>>, %arg2: memref<512x1024xbf16, #tpu.memory_space<vmem>>, %arg3: memref<16x1024xf32, #tpu.memory_space<vmem>>, %arg4: memref<1x16x1xf32, #tpu.memory_space<vmem>>, %arg5: memref<1x16x1xf32, #tpu.memory_space<vmem>>) attributes {dimension_semantics = [#tpu.dimension_semantics<parallel>], iteration_bounds = array<i64: 4>, scalar_prefetch = 0 : i64, scratch_operands = 0 : i64, tpu.core_type = #tpu.core_type<tc>, window_params = [{pipeline_mode = #tpu.pipeline_mode<synchronous>, transform_indices = @transform_0, window_bounds = array<i64: 16, 512>}, {transform_indices = @transform_1, window_bounds = array<i64: 512, 1024>}, {transform_indices = @transform_2, window_bounds = array<i64: 16, 1024>}, {transform_indices = @transform_3, window_bounds = array<i64: 1, 16, 1>}, {transform_indices = @transform_4, window_bounds = array<i64: 1, 16, 1>}]} {
    %c0 = arith.constant 0 : index
    %c0_0 = arith.constant 0 : index
    %0 = vector.load %arg1[%c0, %c0_0] : memref<16x512xbf16, #tpu.memory_space<vmem>>, vector<16x512xbf16>
    %c0_1 = arith.constant 0 : index
    %c0_2 = arith.constant 0 : index
    %1 = vector.load %arg2[%c0_1, %c0_2] : memref<512x1024xbf16, #tpu.memory_space<vmem>>, vector<512x1024xbf16>
    %cst = arith.constant dense<0.000000e+00> : vector<16x1024xf32>
    %2 = tpu.matmul %0, %1, %cst {dimension_numbers = #tpu.dot_dimension_numbers<[1], [0], [0], [1], [0, 0, 1, 1], [], []>} : vector<16x512xbf16>, vector<512x1024xbf16>, vector<16x1024xf32> -> vector<16x1024xf32>
    %c0_3 = arith.constant 0 : index
    %c0_4 = arith.constant 0 : index
    %3 = vector.load %arg3[%c0_3, %c0_4] : memref<16x1024xf32, #tpu.memory_space<vmem>>, vector<16x1024xf32>
    tpu.vector_store %arg3[%c0_3, %c0_4], %2 {strides = array<i32>} : memref<16x1024xf32, #tpu.memory_space<vmem>>, vector<16x1024xf32>,
    %cst_5 = arith.constant dense<0.000000e+00> : vector<16xf32>
    %4 = vector.multi_reduction <add>, %2, %cst_5 [1] : vector<16x1024xf32> to vector<16xf32>
    %5 = vector.shape_cast %4 : vector<16xf32> to vector<16x1xf32>
    %c0_6 = arith.constant 0 : index
    %c0_7 = arith.constant 0 : index
    %c0_8 = arith.constant 0 : index
    %6 = vector.load %arg4[%c0_6, %c0_7, %c0_8] : memref<1x16x1xf32, #tpu.memory_space<vmem>>, vector<1x16x1xf32>
    %7 = vector.shape_cast %6 : vector<1x16x1xf32> to vector<16x1xf32>
    %8 = vector.shape_cast %5 : vector<16x1xf32> to vector<1x16x1xf32>
    tpu.vector_store %arg4[%c0_6, %c0_7, %c0_8], %8 {strides = array<i32>} : memref<1x16x1xf32, #tpu.memory_space<vmem>>, vector<1x16x1xf32>,
    %9 = arith.mulf %2, %2 : vector<16x1024xf32>
    %cst_9 = arith.constant dense<0.000000e+00> : vector<16xf32>
    %10 = vector.multi_reduction <add>, %9, %cst_9 [1] : vector<16x1024xf32> to vector<16xf32>
    %11 = vector.shape_cast %10 : vector<16xf32> to vector<16x1xf32>
    %c0_10 = arith.constant 0 : index
    %c0_11 = arith.constant 0 : index
    %c0_12 = arith.constant 0 : index
    %12 = vector.load %arg5[%c0_10, %c0_11, %c0_12] : memref<1x16x1xf32, #tpu.memory_space<vmem>>, vector<1x16x1xf32>
    %13 = vector.shape_cast %12 : vector<1x16x1xf32> to vector<16x1xf32>
    %14 = vector.shape_cast %11 : vector<16x1xf32> to vector<1x16x1xf32>
    tpu.vector_store %arg5[%c0_10, %c0_11, %c0_12], %14 {strides = array<i32>} : memref<1x16x1xf32, #tpu.memory_space<vmem>>, vector<1x16x1xf32>,
    return
  }
  func.func @transform_0(%arg0: i32) -> (i32, i32) {
    %c0_i32 = arith.constant 0 : i32
    %c0_i32_0 = arith.constant 0 : i32
    %c0_i32_1 = arith.constant 0 : i32
    return %c0_i32, %c0_i32_0 : i32, i32
  }
  func.func @transform_1(%arg0: i32) -> (i32, i32) {
    %c0_i32 = arith.constant 0 : i32
    %c0_i32_0 = arith.constant 0 : i32
    return %c0_i32, %arg0 : i32, i32
  }
  func.func @transform_2(%arg0: i32) -> (i32, i32) {
    %c0_i32 = arith.constant 0 : i32
    %c0_i32_0 = arith.constant 0 : i32
    return %c0_i32, %arg0 : i32, i32
  }
  func.func @transform_3(%arg0: i32) -> (i32, i32, i32) {
    %c0_i32 = arith.constant 0 : i32
    %c0_i32_0 = arith.constant 0 : i32
    %c0_i32_1 = arith.constant 0 : i32
    return %arg0, %c0_i32, %c0_i32_0 : i32, i32, i32
  }
  func.func @transform_4(%arg0: i32) -> (i32, i32, i32) {
    %c0_i32 = arith.constant 0 : i32
    %c0_i32_0 = arith.constant 0 : i32
    %c0_i32_1 = arith.constant 0 : i32
    return %arg0, %c0_i32, %c0_i32_0 : i32, i32, i32
  }
}

module attributes {stable_mosaic.version = 11 : i64} {
  func.func @_bn_lrelu_kernel(%arg0: i32, %arg1: memref<16x1024xf32, #tpu.memory_space<vmem>>, %arg2: memref<16x1xf32, #tpu.memory_space<vmem>>, %arg3: memref<16x1xf32, #tpu.memory_space<vmem>>, %arg4: memref<16x1024xbf16, #tpu.memory_space<vmem>>) attributes {dimension_semantics = [#tpu.dimension_semantics<parallel>], iteration_bounds = array<i64: 4>, scalar_prefetch = 0 : i64, scratch_operands = 0 : i64, tpu.core_type = #tpu.core_type<tc>, window_params = [{transform_indices = @transform_0, window_bounds = array<i64: 16, 1024>}, {pipeline_mode = #tpu.pipeline_mode<synchronous>, transform_indices = @transform_1, window_bounds = array<i64: 16, 1>}, {pipeline_mode = #tpu.pipeline_mode<synchronous>, transform_indices = @transform_2, window_bounds = array<i64: 16, 1>}, {transform_indices = @transform_3, window_bounds = array<i64: 16, 1024>}]} {
    %c0 = arith.constant 0 : index
    %c0_0 = arith.constant 0 : index
    %0 = vector.load %arg1[%c0, %c0_0] : memref<16x1024xf32, #tpu.memory_space<vmem>>, vector<16x1024xf32>
    %c0_1 = arith.constant 0 : index
    %c0_2 = arith.constant 0 : index
    %1 = vector.load %arg2[%c0_1, %c0_2] : memref<16x1xf32, #tpu.memory_space<vmem>>, vector<16x1xf32>
    %2 = vector.broadcast %1 : vector<16x1xf32> to vector<16x1024xf32>
    %3 = arith.mulf %0, %2 : vector<16x1024xf32>
    %c0_3 = arith.constant 0 : index
    %c0_4 = arith.constant 0 : index
    %4 = vector.load %arg3[%c0_3, %c0_4] : memref<16x1xf32, #tpu.memory_space<vmem>>, vector<16x1xf32>
    %5 = vector.broadcast %4 : vector<16x1xf32> to vector<16x1024xf32>
    %6 = arith.addf %3, %5 : vector<16x1024xf32>
    %cst = arith.constant 0.000000e+00 : f32
    %7 = vector.broadcast %cst : f32 to vector<16x1024xf32>
    %8 = arith.cmpf oge, %6, %7 : vector<16x1024xf32>
    %cst_5 = arith.constant 2.000000e-01 : f32
    %9 = vector.broadcast %cst_5 : f32 to vector<16x1024xf32>
    %10 = arith.mulf %9, %6 : vector<16x1024xf32>
    %11 = arith.select %8, %6, %10 : vector<16x1024xi1>, vector<16x1024xf32>
    %12 = arith.truncf %11 : vector<16x1024xf32> to vector<16x1024xbf16>
    %c0_6 = arith.constant 0 : index
    %c0_7 = arith.constant 0 : index
    %13 = vector.load %arg4[%c0_6, %c0_7] : memref<16x1024xbf16, #tpu.memory_space<vmem>>, vector<16x1024xbf16>
    tpu.vector_store %arg4[%c0_6, %c0_7], %12 {strides = array<i32>} : memref<16x1024xbf16, #tpu.memory_space<vmem>>, vector<16x1024xbf16>,
    return
  }
  func.func @transform_0(%arg0: i32) -> (i32, i32) {
    %c0_i32 = arith.constant 0 : i32
    %c0_i32_0 = arith.constant 0 : i32
    return %c0_i32, %arg0 : i32, i32
  }
  func.func @transform_1(%arg0: i32) -> (i32, i32) {
    %c0_i32 = arith.constant 0 : i32
    %c0_i32_0 = arith.constant 0 : i32
    %c0_i32_1 = arith.constant 0 : i32
    return %c0_i32, %c0_i32_0 : i32, i32
  }
  func.func @transform_2(%arg0: i32) -> (i32, i32) {
    %c0_i32 = arith.constant 0 : i32
    %c0_i32_0 = arith.constant 0 : i32
    %c0_i32_1 = arith.constant 0 : i32
    return %c0_i32, %c0_i32_0 : i32, i32
  }
  func.func @transform_3(%arg0: i32) -> (i32, i32) {
    %c0_i32 = arith.constant 0 : i32
    %c0_i32_0 = arith.constant 0 : i32
    return %c0_i32, %arg0 : i32, i32
  }
}

module attributes {stable_mosaic.version = 11 : i64} {
  func.func @_gemm_bn_stats_kernel(%arg0: i32, %arg1: memref<32x1024xbf16, #tpu.memory_space<vmem>>, %arg2: memref<1024x512xbf16, #tpu.memory_space<vmem>>, %arg3: memref<32x512xf32, #tpu.memory_space<vmem>>, %arg4: memref<1x32x1xf32, #tpu.memory_space<vmem>>, %arg5: memref<1x32x1xf32, #tpu.memory_space<vmem>>) attributes {dimension_semantics = [#tpu.dimension_semantics<parallel>], iteration_bounds = array<i64: 1>, scalar_prefetch = 0 : i64, scratch_operands = 0 : i64, tpu.core_type = #tpu.core_type<tc>, window_params = [{pipeline_mode = #tpu.pipeline_mode<synchronous>, transform_indices = @transform_0, window_bounds = array<i64: 32, 1024>}, {transform_indices = @transform_1, window_bounds = array<i64: 1024, 512>}, {transform_indices = @transform_2, window_bounds = array<i64: 32, 512>}, {transform_indices = @transform_3, window_bounds = array<i64: 1, 32, 1>}, {transform_indices = @transform_4, window_bounds = array<i64: 1, 32, 1>}]} {
    %c0 = arith.constant 0 : index
    %c0_0 = arith.constant 0 : index
    %0 = vector.load %arg1[%c0, %c0_0] : memref<32x1024xbf16, #tpu.memory_space<vmem>>, vector<32x1024xbf16>
    %c0_1 = arith.constant 0 : index
    %c0_2 = arith.constant 0 : index
    %1 = vector.load %arg2[%c0_1, %c0_2] : memref<1024x512xbf16, #tpu.memory_space<vmem>>, vector<1024x512xbf16>
    %cst = arith.constant dense<0.000000e+00> : vector<32x512xf32>
    %2 = tpu.matmul %0, %1, %cst {dimension_numbers = #tpu.dot_dimension_numbers<[1], [0], [0], [1], [0, 0, 1, 1], [], []>} : vector<32x1024xbf16>, vector<1024x512xbf16>, vector<32x512xf32> -> vector<32x512xf32>
    %c0_3 = arith.constant 0 : index
    %c0_4 = arith.constant 0 : index
    %3 = vector.load %arg3[%c0_3, %c0_4] : memref<32x512xf32, #tpu.memory_space<vmem>>, vector<32x512xf32>
    tpu.vector_store %arg3[%c0_3, %c0_4], %2 {strides = array<i32>} : memref<32x512xf32, #tpu.memory_space<vmem>>, vector<32x512xf32>,
    %cst_5 = arith.constant dense<0.000000e+00> : vector<32xf32>
    %4 = vector.multi_reduction <add>, %2, %cst_5 [1] : vector<32x512xf32> to vector<32xf32>
    %5 = vector.shape_cast %4 : vector<32xf32> to vector<32x1xf32>
    %c0_6 = arith.constant 0 : index
    %c0_7 = arith.constant 0 : index
    %c0_8 = arith.constant 0 : index
    %6 = vector.load %arg4[%c0_6, %c0_7, %c0_8] : memref<1x32x1xf32, #tpu.memory_space<vmem>>, vector<1x32x1xf32>
    %7 = vector.shape_cast %6 : vector<1x32x1xf32> to vector<32x1xf32>
    %8 = vector.shape_cast %5 : vector<32x1xf32> to vector<1x32x1xf32>
    tpu.vector_store %arg4[%c0_6, %c0_7, %c0_8], %8 {strides = array<i32>} : memref<1x32x1xf32, #tpu.memory_space<vmem>>, vector<1x32x1xf32>,
    %9 = arith.mulf %2, %2 : vector<32x512xf32>
    %cst_9 = arith.constant dense<0.000000e+00> : vector<32xf32>
    %10 = vector.multi_reduction <add>, %9, %cst_9 [1] : vector<32x512xf32> to vector<32xf32>
    %11 = vector.shape_cast %10 : vector<32xf32> to vector<32x1xf32>
    %c0_10 = arith.constant 0 : index
    %c0_11 = arith.constant 0 : index
    %c0_12 = arith.constant 0 : index
    %12 = vector.load %arg5[%c0_10, %c0_11, %c0_12] : memref<1x32x1xf32, #tpu.memory_space<vmem>>, vector<1x32x1xf32>
    %13 = vector.shape_cast %12 : vector<1x32x1xf32> to vector<32x1xf32>
    %14 = vector.shape_cast %11 : vector<32x1xf32> to vector<1x32x1xf32>
    tpu.vector_store %arg5[%c0_10, %c0_11, %c0_12], %14 {strides = array<i32>} : memref<1x32x1xf32, #tpu.memory_space<vmem>>, vector<1x32x1xf32>,
    return
  }
  func.func @transform_0(%arg0: i32) -> (i32, i32) {
    %c0_i32 = arith.constant 0 : i32
    %c0_i32_0 = arith.constant 0 : i32
    %c0_i32_1 = arith.constant 0 : i32
    return %c0_i32, %c0_i32_0 : i32, i32
  }
  func.func @transform_1(%arg0: i32) -> (i32, i32) {
    %c0_i32 = arith.constant 0 : i32
    %c0_i32_0 = arith.constant 0 : i32
    return %c0_i32, %arg0 : i32, i32
  }
  func.func @transform_2(%arg0: i32) -> (i32, i32) {
    %c0_i32 = arith.constant 0 : i32
    %c0_i32_0 = arith.constant 0 : i32
    return %c0_i32, %arg0 : i32, i32
  }
  func.func @transform_3(%arg0: i32) -> (i32, i32, i32) {
    %c0_i32 = arith.constant 0 : i32
    %c0_i32_0 = arith.constant 0 : i32
    %c0_i32_1 = arith.constant 0 : i32
    return %arg0, %c0_i32, %c0_i32_0 : i32, i32, i32
  }
  func.func @transform_4(%arg0: i32) -> (i32, i32, i32) {
    %c0_i32 = arith.constant 0 : i32
    %c0_i32_0 = arith.constant 0 : i32
    %c0_i32_1 = arith.constant 0 : i32
    return %arg0, %c0_i32, %c0_i32_0 : i32, i32, i32
  }
}

module attributes {stable_mosaic.version = 11 : i64} {
  func.func @_bn_lrelu_kernel(%arg0: i32, %arg1: memref<32x512xf32, #tpu.memory_space<vmem>>, %arg2: memref<32x1xf32, #tpu.memory_space<vmem>>, %arg3: memref<32x1xf32, #tpu.memory_space<vmem>>, %arg4: memref<32x512xbf16, #tpu.memory_space<vmem>>) attributes {dimension_semantics = [#tpu.dimension_semantics<parallel>], iteration_bounds = array<i64: 1>, scalar_prefetch = 0 : i64, scratch_operands = 0 : i64, tpu.core_type = #tpu.core_type<tc>, window_params = [{transform_indices = @transform_0, window_bounds = array<i64: 32, 512>}, {pipeline_mode = #tpu.pipeline_mode<synchronous>, transform_indices = @transform_1, window_bounds = array<i64: 32, 1>}, {pipeline_mode = #tpu.pipeline_mode<synchronous>, transform_indices = @transform_2, window_bounds = array<i64: 32, 1>}, {transform_indices = @transform_3, window_bounds = array<i64: 32, 512>}]} {
    %c0 = arith.constant 0 : index
    %c0_0 = arith.constant 0 : index
    %0 = vector.load %arg1[%c0, %c0_0] : memref<32x512xf32, #tpu.memory_space<vmem>>, vector<32x512xf32>
    %c0_1 = arith.constant 0 : index
    %c0_2 = arith.constant 0 : index
    %1 = vector.load %arg2[%c0_1, %c0_2] : memref<32x1xf32, #tpu.memory_space<vmem>>, vector<32x1xf32>
    %2 = vector.broadcast %1 : vector<32x1xf32> to vector<32x512xf32>
    %3 = arith.mulf %0, %2 : vector<32x512xf32>
    %c0_3 = arith.constant 0 : index
    %c0_4 = arith.constant 0 : index
    %4 = vector.load %arg3[%c0_3, %c0_4] : memref<32x1xf32, #tpu.memory_space<vmem>>, vector<32x1xf32>
    %5 = vector.broadcast %4 : vector<32x1xf32> to vector<32x512xf32>
    %6 = arith.addf %3, %5 : vector<32x512xf32>
    %cst = arith.constant 0.000000e+00 : f32
    %7 = vector.broadcast %cst : f32 to vector<32x512xf32>
    %8 = arith.cmpf oge, %6, %7 : vector<32x512xf32>
    %cst_5 = arith.constant 2.000000e-01 : f32
    %9 = vector.broadcast %cst_5 : f32 to vector<32x512xf32>
    %10 = arith.mulf %9, %6 : vector<32x512xf32>
    %11 = arith.select %8, %6, %10 : vector<32x512xi1>, vector<32x512xf32>
    %12 = arith.truncf %11 : vector<32x512xf32> to vector<32x512xbf16>
    %c0_6 = arith.constant 0 : index
    %c0_7 = arith.constant 0 : index
    %13 = vector.load %arg4[%c0_6, %c0_7] : memref<32x512xbf16, #tpu.memory_space<vmem>>, vector<32x512xbf16>
    tpu.vector_store %arg4[%c0_6, %c0_7], %12 {strides = array<i32>} : memref<32x512xbf16, #tpu.memory_space<vmem>>, vector<32x512xbf16>,
    return
  }
  func.func @transform_0(%arg0: i32) -> (i32, i32) {
    %c0_i32 = arith.constant 0 : i32
    %c0_i32_0 = arith.constant 0 : i32
    return %c0_i32, %arg0 : i32, i32
  }
  func.func @transform_1(%arg0: i32) -> (i32, i32) {
    %c0_i32 = arith.constant 0 : i32
    %c0_i32_0 = arith.constant 0 : i32
    %c0_i32_1 = arith.constant 0 : i32
    return %c0_i32, %c0_i32_0 : i32, i32
  }
  func.func @transform_2(%arg0: i32) -> (i32, i32) {
    %c0_i32 = arith.constant 0 : i32
    %c0_i32_0 = arith.constant 0 : i32
    %c0_i32_1 = arith.constant 0 : i32
    return %c0_i32, %c0_i32_0 : i32, i32
  }
  func.func @transform_3(%arg0: i32) -> (i32, i32) {
    %c0_i32 = arith.constant 0 : i32
    %c0_i32_0 = arith.constant 0 : i32
    return %c0_i32, %arg0 : i32, i32
  }
}

module attributes {stable_mosaic.version = 11 : i64} {
  func.func @_gemm_bn_stats_kernel(%arg0: i32, %arg1: memref<64x2048xbf16, #tpu.memory_space<vmem>>, %arg2: memref<2048x128xbf16, #tpu.memory_space<vmem>>, %arg3: memref<64x128xf32, #tpu.memory_space<vmem>>, %arg4: memref<1x64x1xf32, #tpu.memory_space<vmem>>, %arg5: memref<1x64x1xf32, #tpu.memory_space<vmem>>) attributes {dimension_semantics = [#tpu.dimension_semantics<parallel>], iteration_bounds = array<i64: 1>, scalar_prefetch = 0 : i64, scratch_operands = 0 : i64, tpu.core_type = #tpu.core_type<tc>, window_params = [{pipeline_mode = #tpu.pipeline_mode<synchronous>, transform_indices = @transform_0, window_bounds = array<i64: 64, 2048>}, {transform_indices = @transform_1, window_bounds = array<i64: 2048, 128>}, {transform_indices = @transform_2, window_bounds = array<i64: 64, 128>}, {transform_indices = @transform_3, window_bounds = array<i64: 1, 64, 1>}, {transform_indices = @transform_4, window_bounds = array<i64: 1, 64, 1>}]} {
    %c0 = arith.constant 0 : index
    %c0_0 = arith.constant 0 : index
    %0 = vector.load %arg1[%c0, %c0_0] : memref<64x2048xbf16, #tpu.memory_space<vmem>>, vector<64x2048xbf16>
    %c0_1 = arith.constant 0 : index
    %c0_2 = arith.constant 0 : index
    %1 = vector.load %arg2[%c0_1, %c0_2] : memref<2048x128xbf16, #tpu.memory_space<vmem>>, vector<2048x128xbf16>
    %cst = arith.constant dense<0.000000e+00> : vector<64x128xf32>
    %2 = tpu.matmul %0, %1, %cst {dimension_numbers = #tpu.dot_dimension_numbers<[1], [0], [0], [1], [0, 0, 1, 1], [], []>} : vector<64x2048xbf16>, vector<2048x128xbf16>, vector<64x128xf32> -> vector<64x128xf32>
    %c0_3 = arith.constant 0 : index
    %c0_4 = arith.constant 0 : index
    %3 = vector.load %arg3[%c0_3, %c0_4] : memref<64x128xf32, #tpu.memory_space<vmem>>, vector<64x128xf32>
    tpu.vector_store %arg3[%c0_3, %c0_4], %2 {strides = array<i32>} : memref<64x128xf32, #tpu.memory_space<vmem>>, vector<64x128xf32>,
    %cst_5 = arith.constant dense<0.000000e+00> : vector<64xf32>
    %4 = vector.multi_reduction <add>, %2, %cst_5 [1] : vector<64x128xf32> to vector<64xf32>
    %5 = vector.shape_cast %4 : vector<64xf32> to vector<64x1xf32>
    %c0_6 = arith.constant 0 : index
    %c0_7 = arith.constant 0 : index
    %c0_8 = arith.constant 0 : index
    %6 = vector.load %arg4[%c0_6, %c0_7, %c0_8] : memref<1x64x1xf32, #tpu.memory_space<vmem>>, vector<1x64x1xf32>
    %7 = vector.shape_cast %6 : vector<1x64x1xf32> to vector<64x1xf32>
    %8 = vector.shape_cast %5 : vector<64x1xf32> to vector<1x64x1xf32>
    tpu.vector_store %arg4[%c0_6, %c0_7, %c0_8], %8 {strides = array<i32>} : memref<1x64x1xf32, #tpu.memory_space<vmem>>, vector<1x64x1xf32>,
    %9 = arith.mulf %2, %2 : vector<64x128xf32>
    %cst_9 = arith.constant dense<0.000000e+00> : vector<64xf32>
    %10 = vector.multi_reduction <add>, %9, %cst_9 [1] : vector<64x128xf32> to vector<64xf32>
    %11 = vector.shape_cast %10 : vector<64xf32> to vector<64x1xf32>
    %c0_10 = arith.constant 0 : index
    %c0_11 = arith.constant 0 : index
    %c0_12 = arith.constant 0 : index
    %12 = vector.load %arg5[%c0_10, %c0_11, %c0_12] : memref<1x64x1xf32, #tpu.memory_space<vmem>>, vector<1x64x1xf32>
    %13 = vector.shape_cast %12 : vector<1x64x1xf32> to vector<64x1xf32>
    %14 = vector.shape_cast %11 : vector<64x1xf32> to vector<1x64x1xf32>
    tpu.vector_store %arg5[%c0_10, %c0_11, %c0_12], %14 {strides = array<i32>} : memref<1x64x1xf32, #tpu.memory_space<vmem>>, vector<1x64x1xf32>,
    return
  }
  func.func @transform_0(%arg0: i32) -> (i32, i32) {
    %c0_i32 = arith.constant 0 : i32
    %c0_i32_0 = arith.constant 0 : i32
    %c0_i32_1 = arith.constant 0 : i32
    return %c0_i32, %c0_i32_0 : i32, i32
  }
  func.func @transform_1(%arg0: i32) -> (i32, i32) {
    %c0_i32 = arith.constant 0 : i32
    %c0_i32_0 = arith.constant 0 : i32
    return %c0_i32, %arg0 : i32, i32
  }
  func.func @transform_2(%arg0: i32) -> (i32, i32) {
    %c0_i32 = arith.constant 0 : i32
    %c0_i32_0 = arith.constant 0 : i32
    return %c0_i32, %arg0 : i32, i32
  }
  func.func @transform_3(%arg0: i32) -> (i32, i32, i32) {
    %c0_i32 = arith.constant 0 : i32
    %c0_i32_0 = arith.constant 0 : i32
    %c0_i32_1 = arith.constant 0 : i32
    return %arg0, %c0_i32, %c0_i32_0 : i32, i32, i32
  }
  func.func @transform_4(%arg0: i32) -> (i32, i32, i32) {
    %c0_i32 = arith.constant 0 : i32
    %c0_i32_0 = arith.constant 0 : i32
    %c0_i32_1 = arith.constant 0 : i32
    return %arg0, %c0_i32, %c0_i32_0 : i32, i32, i32
  }
}

module attributes {stable_mosaic.version = 11 : i64} {
  func.func @_bn_lrelu_kernel(%arg0: i32, %arg1: memref<64x128xf32, #tpu.memory_space<vmem>>, %arg2: memref<64x1xf32, #tpu.memory_space<vmem>>, %arg3: memref<64x1xf32, #tpu.memory_space<vmem>>, %arg4: memref<64x128xbf16, #tpu.memory_space<vmem>>) attributes {dimension_semantics = [#tpu.dimension_semantics<parallel>], iteration_bounds = array<i64: 1>, scalar_prefetch = 0 : i64, scratch_operands = 0 : i64, tpu.core_type = #tpu.core_type<tc>, window_params = [{transform_indices = @transform_0, window_bounds = array<i64: 64, 128>}, {pipeline_mode = #tpu.pipeline_mode<synchronous>, transform_indices = @transform_1, window_bounds = array<i64: 64, 1>}, {pipeline_mode = #tpu.pipeline_mode<synchronous>, transform_indices = @transform_2, window_bounds = array<i64: 64, 1>}, {transform_indices = @transform_3, window_bounds = array<i64: 64, 128>}]} {
    %c0 = arith.constant 0 : index
    %c0_0 = arith.constant 0 : index
    %0 = vector.load %arg1[%c0, %c0_0] : memref<64x128xf32, #tpu.memory_space<vmem>>, vector<64x128xf32>
    %c0_1 = arith.constant 0 : index
    %c0_2 = arith.constant 0 : index
    %1 = vector.load %arg2[%c0_1, %c0_2] : memref<64x1xf32, #tpu.memory_space<vmem>>, vector<64x1xf32>
    %2 = vector.broadcast %1 : vector<64x1xf32> to vector<64x128xf32>
    %3 = arith.mulf %0, %2 : vector<64x128xf32>
    %c0_3 = arith.constant 0 : index
    %c0_4 = arith.constant 0 : index
    %4 = vector.load %arg3[%c0_3, %c0_4] : memref<64x1xf32, #tpu.memory_space<vmem>>, vector<64x1xf32>
    %5 = vector.broadcast %4 : vector<64x1xf32> to vector<64x128xf32>
    %6 = arith.addf %3, %5 : vector<64x128xf32>
    %cst = arith.constant 0.000000e+00 : f32
    %7 = vector.broadcast %cst : f32 to vector<64x128xf32>
    %8 = arith.cmpf oge, %6, %7 : vector<64x128xf32>
    %cst_5 = arith.constant 2.000000e-01 : f32
    %9 = vector.broadcast %cst_5 : f32 to vector<64x128xf32>
    %10 = arith.mulf %9, %6 : vector<64x128xf32>
    %11 = arith.select %8, %6, %10 : vector<64x128xi1>, vector<64x128xf32>
    %12 = arith.truncf %11 : vector<64x128xf32> to vector<64x128xbf16>
    %c0_6 = arith.constant 0 : index
    %c0_7 = arith.constant 0 : index
    %13 = vector.load %arg4[%c0_6, %c0_7] : memref<64x128xbf16, #tpu.memory_space<vmem>>, vector<64x128xbf16>
    tpu.vector_store %arg4[%c0_6, %c0_7], %12 {strides = array<i32>} : memref<64x128xbf16, #tpu.memory_space<vmem>>, vector<64x128xbf16>,
    return
  }
  func.func @transform_0(%arg0: i32) -> (i32, i32) {
    %c0_i32 = arith.constant 0 : i32
    %c0_i32_0 = arith.constant 0 : i32
    return %c0_i32, %arg0 : i32, i32
  }
  func.func @transform_1(%arg0: i32) -> (i32, i32) {
    %c0_i32 = arith.constant 0 : i32
    %c0_i32_0 = arith.constant 0 : i32
    %c0_i32_1 = arith.constant 0 : i32
    return %c0_i32, %c0_i32_0 : i32, i32
  }
  func.func @transform_2(%arg0: i32) -> (i32, i32) {
    %c0_i32 = arith.constant 0 : i32
    %c0_i32_0 = arith.constant 0 : i32
    %c0_i32_1 = arith.constant 0 : i32
    return %c0_i32, %c0_i32_0 : i32, i32
  }
  func.func @transform_3(%arg0: i32) -> (i32, i32) {
    %c0_i32 = arith.constant 0 : i32
    %c0_i32_0 = arith.constant 0 : i32
    return %c0_i32, %arg0 : i32, i32
  }
}

</mosaic_0001>

<llo_original>
// kernel: flow_encoder_forward.8
$region0: #{flow_encoder_forward.8}
  #allocation0 [shape = 'u32[]', space=smem, size = 0x4, offset = 0x4, fixed_abs, tag = 'smem constant byte address 0x4 - core index']
  #allocation1 [shape = 'u32[72,128]{1,0:T(1,128)}', space=vmem, size = 0x9000, scoped, tag = 'internal scratch']
  %s0 = inlined_call_operand.vmem [shape: bf16[8,256], index: 0, kind: input, shape index: {}]
  %s1 = inlined_call_operand.vmem [shape: bf16[256,32768], index: 1, kind: input, shape index: {}]
  %s2 = inlined_call_operand.vmem [shape: f32[8,32768], index: 2, kind: output, shape index: {0}]
  %s3 = inlined_call_operand.vmem [shape: f32[32,8,1], index: 3, kind: output, shape index: {1}]
  %s4 = inlined_call_operand.vmem [shape: f32[32,8,1], index: 4, kind: output, shape index: {2}]
  %5 = xla_tuple %s2, %s3, %s4
  %s6 = sld [smem:[#allocation0]]
  $region80: #{flow_encoder_forward.8} parent=0
    _
  %s8 = ssub.s32 1, %s6
  %s9 = scalar_select 0, %s8, %s6
  $region1: #{flow_encoder_forward.8} parent=0
    #allocation2 [shape = 'u8[1048576]{0}', space=vmem, size = 0x100000, scoped, tag = 'input window, operand 1']
    loop: start=0, step=1, limit=34
    $region2: #{flow_encoder_forward.8} parent=1 // loop_pre_header
      _
    $region3: #{flow_encoder_forward.8} parent=1 // loop_header
      %s11 = sphi 0, %s15
      %p12 = scmp.ge.s32.totalorder %s11, 34
      %s19 = sphi 0, %s19
      %s21 = sphi 0, %s19
      %s22 = sphi 0, %s21
      %s36 = sphi 0, %s22
      %s42 = sphi 0, %s44
      %s45 = sphi 0, %s42
      %s46 = sphi 0, %s45
      %s62 = sphi 0, %s46
      %s68 = sphi 0, %s70
      %s71 = sphi 0, %s68
      %s72 = sphi 0, %s71
      %s88 = sphi 0, %s72
      %s94 = sphi 0, %s96
      %s97 = sphi 0, %s94
      %s98 = sphi 0, %s97
      %s114 = sphi 0, %s98
      %s120 = sphi 0, %s122
      %s123 = sphi 0, %s120
      %s124 = sphi 0, %s123
      %s140 = sphi 0, %s124
    $region4: #{flow_encoder_forward.8} parent=1 // loop_header_branch
      %14 = sbr.rel (%p12) target = $region8
    $region5: #{flow_encoder_forward.8} parent=1 // loop_body
      %s16 = ssub.s32 %s11, 1
      %s17 = ssub.s32 %s11, 2
      %s18 = sadd.s32 %s11, 1
      %s20 = sadd.s32 %s19, 1
      %p23 = scmp.eq.s32.totalorder %s11, 31
      %p24 = scmp.ne.s32.totalorder %s19, %s21
      %p25 = scmp.eq.s32.totalorder %s11, 0
      %p26 = por %p24, %p25
      %p27 = scmp.ne.s32.totalorder %s19, %s21
      %p28 = scmp.eq.s32.totalorder %s16, 31
      %p29 = por %p27, %p28
      %p30 = scmp.ne.s32.totalorder %s21, %s22
      %p31 = scmp.eq.s32.totalorder %s16, 0
      %p32 = por %p30, %p31
      %p33 = scmp.ne.s32.totalorder %s21, %s22
      %p34 = scmp.eq.s32.totalorder %s17, 31
      %p35 = por %p33, %p34
      %p37 = scmp.ne.s32.totalorder %s22, %s36
      %p38 = scmp.eq.s32.totalorder %s17, 0
      %p39 = por %p37, %p38
      %s40 = ssub.s32 %s11, %s18
      %p41 = scmp.eq.s32.totalorder %s40, 0
      %s43 = sadd.s32 %s42, 1
      %s44 = scalar_select %p41, %s42, %s43
      %p47 = pneg %p41
      %p48 = scmp.eq.s32.totalorder %s11, 31
      %p49 = por %p47, %p48
      %p50 = scmp.ne.s32.totalorder %s42, %s45
      %p51 = scmp.eq.s32.totalorder %s11, 0
      %p52 = por %p50, %p51
      %p53 = scmp.ne.s32.totalorder %s42, %s45
      %p54 = scmp.eq.s32.totalorder %s16, 31
      %p55 = por %p53, %p54
      %p56 = scmp.ne.s32.totalorder %s45, %s46
      %p57 = scmp.eq.s32.totalorder %s16, 0
      %p58 = por %p56, %p57
      %p59 = scmp.ne.s32.totalorder %s45, %s46
      %p60 = scmp.eq.s32.totalorder %s17, 31
      %p61 = por %p59, %p60
      %p63 = scmp.ne.s32.totalorder %s46, %s62
      %p64 = scmp.eq.s32.totalorder %s17, 0
      %p65 = por %p63, %p64
      %s66 = ssub.s32 %s11, %s18
      %p67 = scmp.eq.s32.totalorder %s66, 0
      %s69 = sadd.s32 %s68, 1
      %s70 = scalar_select %p67, %s68, %s69
      %p73 = pneg %p67
      %p74 = scmp.eq.s32.totalorder %s11, 31
      %p75 = por %p73, %p74
      %p76 = scmp.ne.s32.totalorder %s68, %s71
      %p77 = scmp.eq.s32.totalorder %s11, 0
      %p78 = por %p76, %p77
      %p79 = scmp.ne.s32.totalorder %s68, %s71
      %p80 = scmp.eq.s32.totalorder %s16, 31
      %p81 = por %p79, %p80
      %p82 = scmp.ne.s32.totalorder %s71, %s72
      %p83 = scmp.eq.s32.totalorder %s16, 0
      %p84 = por %p82, %p83
      %p85 = scmp.ne.s32.totalorder %s71, %s72
      %p86 = scmp.eq.s32.totalorder %s17, 31
      %p87 = por %p85, %p86
      %p89 = scmp.ne.s32.totalorder %s72, %s88
      %p90 = scmp.eq.s32.totalorder %s17, 0
      %p91 = por %p89, %p90
      %s92 = ssub.s32 %s11, %s18
      %p93 = scmp.eq.s32.totalorder %s92, 0
      %s95 = sadd.s32 %s94, 1
      %s96 = scalar_select %p93, %s94, %s95
      %p99 = pneg %p93
      %p100 = scmp.eq.s32.totalorder %s11, 31
      %p101 = por %p99, %p100
      %p102 = scmp.ne.s32.totalorder %s94, %s97
      %p103 = scmp.eq.s32.totalorder %s11, 0
      %p104 = por %p102, %p103
      %p105 = scmp.ne.s32.totalorder %s94, %s97
      %p106 = scmp.eq.s32.totalorder %s16, 31
      %p107 = por %p105, %p106
      %p108 = scmp.ne.s32.totalorder %s97, %s98
      %p109 = scmp.eq.s32.totalorder %s16, 0
      %p110 = por %p108, %p109
      %p111 = scmp.ne.s32.totalorder %s97, %s98
      %p112 = scmp.eq.s32.totalorder %s17, 31
      %p113 = por %p111, %p112
      %p115 = scmp.ne.s32.totalorder %s98, %s114
      %p116 = scmp.eq.s32.totalorder %s17, 0
      %p117 = por %p115, %p116
      %s118 = ssub.s32 %s11, %s18
      %p119 = scmp.eq.s32.totalorder %s118, 0
      %s121 = sadd.s32 %s120, 1
      %s122 = scalar_select %p119, %s120, %s121
      %p125 = pneg %p119
      %p126 = scmp.eq.s32.totalorder %s11, 31
      %p127 = por %p125, %p126
      %p128 = scmp.ne.s32.totalorder %s120, %s123
      %p129 = scmp.eq.s32.totalorder %s11, 0
      %p130 = por %p128, %p129
      %p131 = scmp.ne.s32.totalorder %s120, %s123
      %p132 = scmp.eq.s32.totalorder %s16, 31
      %p133 = por %p131, %p132
      %p134 = scmp.ne.s32.totalorder %s123, %s124
      %p135 = scmp.eq.s32.totalorder %s16, 0
      %p136 = por %p134, %p135
      %p137 = scmp.ne.s32.totalorder %s123, %s124
      %p138 = scmp.eq.s32.totalorder %s17, 31
      %p139 = por %p137, %p138
      %p141 = scmp.ne.s32.totalorder %s124, %s140
      %p142 = scmp.eq.s32.totalorder %s17, 0
      %p143 = por %p141, %p142
      %p144 = scmp.le.s32.totalorder 1, %s11
      %p145 = scmp.lt.s32.totalorder %s11, 33
      %p146 = pnand %p144, %p145
      %p147 = pneg %p146
      // Predicated region
      $region9: #{flow_encoder_forward.8} parent=5 // pred_check
        _
      $region10: #{flow_encoder_forward.8} parent=5 // pred_check_branch
        %149 = sbr.rel (%p146) target = $region12
      $region11: #{flow_encoder_forward.8} parent=5 // pred_region
        %s150 = ssub.s32 %s11, 1
        // Predicated region
        $region13: #{flow_encoder_forward.8} parent=11 // pred_check
          %p151 = pneg %p32
        $region14: #{flow_encoder_forward.8} parent=11 // pred_check_branch
          %153 = sbr.rel (%p151) target = $region16
        $region15: #{flow_encoder_forward.8} parent=11 // pred_region
          _
        $region16: #{flow_encoder_forward.8} parent=11 // pred_fallthru
          _
      $region12: #{flow_encoder_forward.8} parent=5 // pred_fallthru
        _
      %p154 = scmp.lt.s32.totalorder %s11, 32
      // Predicated region
      $region17: #{flow_encoder_forward.8} parent=5 // pred_check
        %p155 = pneg %p154
      $region18: #{flow_encoder_forward.8} parent=5 // pred_check_branch
        %157 = sbr.rel (%p155) target = $region20
      $region19: #{flow_encoder_forward.8} parent=5 // pred_region
        // Predicated region
        $region21: #{flow_encoder_forward.8} parent=19 // pred_check
          %p158 = pneg %p52
        $region22: #{flow_encoder_forward.8} parent=19 // pred_check_branch
          %160 = sbr.rel (%p158) target = $region24
        $region23: #{flow_encoder_forward.8} parent=19 // pred_region
          %s161 = sand.u32 %s42, 1
          %s162 = sand.u32 %s42, 1
          %s163 = smul.addr %s162, 1024
          %s164 = scalar_lea.vmem [#allocation2], %s163
          %s165 = smul.u32 8, %s11
          %s166 = smul.addr %s165, 4
          %s167 = scalar_lea.vmem %s1, %s166
          // Predicated region
          $region25: #{flow_encoder_forward.8} parent=23 // pred_check
            _
          $region26: #{flow_encoder_forward.8} parent=23 // pred_check_branch
            %169 = sbr.rel (0) target = $region28
          $region27: #{flow_encoder_forward.8} parent=23 // pred_region
            // Predicated region
            $region29: #{flow_encoder_forward.8} parent=27 // pred_check
              _
            $region30: #{flow_encoder_forward.8} parent=27 // pred_check_branch
              %171 = sbr.rel (0) target = $region32
            $region31: #{flow_encoder_forward.8} parent=27 // pred_region
              loop: start=0, step=1, limit=1
              $region33: #{flow_encoder_forward.8} parent=31 // loop_pre_header
                _
              $region34: #{flow_encoder_forward.8} parent=31 // loop_header
                %s173 = sphi 0, %s177
                %p174 = scmp.ge.s32.totalorder %s173, 1
                %s178 = sphi %s167, %s167
                %s179 = sphi %s164, %s164
              $region35: #{flow_encoder_forward.8} parent=31 // loop_header_branch
                %176 = sbr.rel (%p174) target = $region39
              $region36: #{flow_encoder_forward.8} parent=31 // loop_body
                %v180 = vld [vmem:[%s178] sm:$0xff]
                %181 = vst [vmem:[%s179] sm:$0xff] %v180
                %v182 = vld [vmem:[%s178 + $0x8] sm:$0xff]
                %183 = vst [vmem:[%s179 + $0x8] sm:$0xff] %v182
                %v184 = vld [vmem:[%s178 + $0x10] sm:$0xff]
                %185 = vst [vmem:[%s179 + $0x10] sm:$0xff] %v184
                %v186 = vld [vmem:[%s178 + $0x18] sm:$0xff]
                %187 = vst [vmem:[%s179 + $0x18] sm:$0xff] %v186
                %v188 = vld [vmem:[%s178 + $0x400] sm:$0xff]
                %189 = vst [vmem:[%s179 + $0x20] sm:$0xff] %v188
                %v190 = vld [vmem:[%s178 + $0x408] sm:$0xff]
                %191 = vst [vmem:[%s179 + $0x28] sm:$0xff] %v190
                %v192 = vld [vmem:[%s178 + $0x410] sm:$0xff]
                %193 = vst [vmem:[%s179 + $0x30] sm:$0xff] %v192
                %v194 = vld [vmem:[%s178 + $0x418] sm:$0xff]
                %195 = vst [vmem:[%s179 + $0x38] sm:$0xff] %v194
                %v196 = vld [vmem:[%s178 + $0x800] sm:$0xff]
                %197 = vst [vmem:[%s179 + $0x40] sm:$0xff] %v196
                %v198 = vld [vmem:[%s178 + $0x808] sm:$0xff]
                %199 = vst [vmem:[%s179 + $0x48] sm:$0xff] %v198
                %v200 = vld [vmem:[%s178 + $0x810] sm:$0xff]
                %201 = vst [vmem:[%s179 + $0x50] sm:$0xff] %v200
                %v202 = vld [vmem:[%s178 + $0x818] sm:$0xff]
                %203 = vst [vmem:[%s179 + $0x58] sm:$0xff] %v202
                %v204 = vld [vmem:[%s178 + $0xc00] sm:$0xff]
                %205 = vst [vmem:[%s179 + $0x60] sm:$0xff] %v204
                %v206 = vld [vmem:[%s178 + $0xc08] sm:$0xff]
                %207 = vst [vmem:[%s179 + $0x68] sm:$0xff] %v206
                %v208 = vld [vmem:[%s178 + $0xc10] sm:$0xff]
                %209 = vst [vmem:[%s179 + $0x70] sm:$0xff] %v208
                %v210 = vld [vmem:[%s178 + $0xc18] sm:$0xff]
                %211 = vst [vmem:[%s179 + $0x78] sm:$0xff] %v210
                %v212 = vld [vmem:[%s178 + $0x1000] sm:$0xff]
                %213 = vst [vmem:[%s179 + $0x80] sm:$0xff] %v212
                %v214 = vld [vmem:[%s178 + $0x1008] sm:$0xff]
                %215 = vst [vmem:[%s179 + $0x88] sm:$0xff] %v214
                %v216 = vld [vmem:[%s178 + $0x1010] sm:$0xff]
                %217 = vst [vmem:[%s179 + $0x90] sm:$0xff] %v216
                %v218 = vld [vmem:[%s178 + $0x1018] sm:$0xff]
                %219 = vst [vmem:[%s179 + $0x98] sm:$0xff] %v218
                %v220 = vld [vmem:[%s178 + $0x1400] sm:$0xff]
                %221 = vst [vmem:[%s179 + $0xa0] sm:$0xff] %v220
                %v222 = vld [vmem:[%s178 + $0x1408] sm:$0xff]
                %223 = vst [vmem:[%s179 + $0xa8] sm:$0xff] %v222
                %v224 = vld [vmem:[%s178 + $0x1410] sm:$0xff]
                %225 = vst [vmem:[%s179 + $0xb0] sm:$0xff] %v224
                %v226 = vld [vmem:[%s178 + $0x1418] sm:$0xff]
                %227 = vst [vmem:[%s179 + $0xb8] sm:$0xff] %v226
                %v228 = vld [vmem:[%s178 + $0x1800] sm:$0xff]
                %229 = vst [vmem:[%s179 + $0xc0] sm:$0xff] %v228
                %v230 = vld [vmem:[%s178 + $0x1808] sm:$0xff]
                %231 = vst [vmem:[%s179 + $0xc8] sm:$0xff] %v230
                %v232 = vld [vmem:[%s178 + $0x1810] sm:$0xff]
                %233 = vst [vmem:[%s179 + $0xd0] sm:$0xff] %v232
                %v234 = vld [vmem:[%s178 + $0x1818] sm:$0xff]
                %235 = vst [vmem:[%s179 + $0xd8] sm:$0xff] %v234
                %v236 = vld [vmem:[%s178 + $0x1c00] sm:$0xff]
                %237 = vst [vmem:[%s179 + $0xe0] sm:$0xff] %v236
                %v238 = vld [vmem:[%s178 + $0x1c08] sm:$0xff]
                %239 = vst [vmem:[%s179 + $0xe8] sm:$0xff] %v238
                %v240 = vld [vmem:[%s178 + $0x1c10] sm:$0xff]
                %241 = vst [vmem:[%s179 + $0xf0] sm:$0xff] %v240
                %v242 = vld [vmem:[%s178 + $0x1c18] sm:$0xff]
                %243 = vst [vmem:[%s179 + $0xf8] sm:$0xff] %v242
                %v244 = vld [vmem:[%s178 + $0x2000] sm:$0xff]
                %245 = vst [vmem:[%s179 + $0x100] sm:$0xff] %v244
                %v246 = vld [vmem:[%s178 + $0x2008] sm:$0xff]
                %247 = vst [vmem:[%s179 + $0x108] sm:$0xff] %v246
                %v248 = vld [vmem:[%s178 + $0x2010] sm:$0xff]
                %249 = vst [vmem:[%s179 + $0x110] sm:$0xff] %v248
                %v250 = vld [vmem:[%s178 + $0x2018] sm:$0xff]
                %251 = vst [vmem:[%s179 + $0x118] sm:$0xff] %v250
                %v252 = vld [vmem:[%s178 + $0x2400] sm:$0xff]
                %253 = vst [vmem:[%s179 + $0x120] sm:$0xff] %v252
                %v254 = vld [vmem:[%s178 + $0x2408] sm:$0xff]
                %255 = vst [vmem:[%s179 + $0x128] sm:$0xff] %v254
                %v256 = vld [vmem:[%s178 + $0x2410] sm:$0xff]
                %257 = vst [vmem:[%s179 + $0x130] sm:$0xff] %v256
                %v258 = vld [vmem:[%s178 + $0x2418] sm:$0xff]
                %259 = vst [vmem:[%s179 + $0x138] sm:$0xff] %v258
                %v260 = vld [vmem:[%s178 + $0x2800] sm:$0xff]
                %261 = vst [vmem:[%s179 + $0x140] sm:$0xff] %v260
                %v262 = vld [vmem:[%s178 + $0x2808] sm:$0xff]
                %263 = vst [vmem:[%s179 + $0x148] sm:$0xff] %v262
                %v264 = vld [vmem:[%s178 + $0x2810] sm:$0xff]
                %265 = vst [vmem:[%s179 + $0x150] sm:$0xff] %v264
                %v266 = vld [vmem:[%s178 + $0x2818] sm:$0xff]
                %267 = vst [vmem:[%s179 + $0x158] sm:$0xff] %v266
                %v268 = vld [vmem:[%s178 + $0x2c00] sm:$0xff]
                %269 = vst [vmem:[%s179 + $0x160] sm:$0xff] %v268
                %v270 = vld [vmem:[%s178 + $0x2c08] sm:$0xff]
                %271 = vst [vmem:[%s179 + $0x168] sm:$0xff] %v270
                %v272 = vld [vmem:[%s178 + $0x2c10] sm:$0xff]
                %273 = vst [vmem:[%s179 + $0x170] sm:$0xff] %v272
                %v274 = vld [vmem:[%s178 + $0x2c18] sm:$0xff]
                %275 = vst [vmem:[%s179 + $0x178] sm:$0xff] %v274
                %v276 = vld [vmem:[%s178 + $0x3000] sm:$0xff]
                %277 = vst [vmem:[%s179 + $0x180] sm:$0xff] %v276
                %v278 = vld [vmem:[%s178 + $0x3008] sm:$0xff]
                %279 = vst [vmem:[%s179 + $0x188] sm:$0xff] %v278
                %v280 = vld [vmem:[%s178 + $0x3010] sm:$0xff]
                %281 = vst [vmem:[%s179 + $0x190] sm:$0xff] %v280
                %v282 = vld [vmem:[%s178 + $0x3018] sm:$0xff]
                %283 = vst [vmem:[%s179 + $0x198] sm:$0xff] %v282
                %v284 = vld [vmem:[%s178 + $0x3400] sm:$0xff]
                %285 = vst [vmem:[%s179 + $0x1a0] sm:$0xff] %v284
                %v286 = vld [vmem:[%s178 + $0x3408] sm:$0xff]
                %287 = vst [vmem:[%s179 + $0x1a8] sm:$0xff] %v286
                %v288 = vld [vmem:[%s178 + $0x3410] sm:$0xff]
                %289 = vst [vmem:[%s179 + $0x1b0] sm:$0xff] %v288
                %v290 = vld [vmem:[%s178 + $0x3418] sm:$0xff]
                %291 = vst [vmem:[%s179 + $0x1b8] sm:$0xff] %v290
                %v292 = vld [vmem:[%s178 + $0x3800] sm:$0xff]
                %293 = vst [vmem:[%s179 + $0x1c0] sm:$0xff] %v292
                %v294 = vld [vmem:[%s178 + $0x3808] sm:$0xff]
                %295 = vst [vmem:[%s179 + $0x1c8] sm:$0xff] %v294
                %v296 = vld [vmem:[%s178 + $0x3810] sm:$0xff]
                %297 = vst [vmem:[%s179 + $0x1d0] sm:$0xff] %v296
                %v298 = vld [vmem:[%s178 + $0x3818] sm:$0xff]
                %299 = vst [vmem:[%s179 + $0x1d8] sm:$0xff] %v298
                %v300 = vld [vmem:[%s178 + $0x3c00] sm:$0xff]
                %301 = vst [vmem:[%s179 + $0x1e0] sm:$0xff] %v300
                %v302 = vld [vmem:[%s178 + $0x3c08] sm:$0xff]
                %303 = vst [vmem:[%s179 + $0x1e8] sm:$0xff] %v302
                %v304 = vld [vmem:[%s178 + $0x3c10] sm:$0xff]
                %305 = vst [vmem:[%s179 + $0x1f0] sm:$0xff] %v304
                %v306 = vld [vmem:[%s178 + $0x3c18] sm:$0xff]
                %307 = vst [vmem:[%s179 + $0x1f8] sm:$0xff] %v306
                %v308 = vld [vmem:[%s178 + $0x4000] sm:$0xff]
                %309 = vst [vmem:[%s179 + $0x200] sm:$0xff] %v308
                %v310 = vld [vmem:[%s178 + $0x4008] sm:$0xff]
                %311 = vst [vmem:[%s179 + $0x208] sm:$0xff] %v310
                %v312 = vld [vmem:[%s178 + $0x4010] sm:$0xff]
                %313 = vst [vmem:[%s179 + $0x210] sm:$0xff] %v312
                %v314 = vld [vmem:[%s178 + $0x4018] sm:$0xff]
                %315 = vst [vmem:[%s179 + $0x218] sm:$0xff] %v314
                %v316 = vld [vmem:[%s178 + $0x4400] sm:$0xff]
                %317 = vst [vmem:[%s179 + $0x220] sm:$0xff] %v316
                %v318 = vld [vmem:[%s178 + $0x4408] sm:$0xff]
                %319 = vst [vmem:[%s179 + $0x228] sm:$0xff] %v318
                %v320 = vld [vmem:[%s178 + $0x4410] sm:$0xff]
                %321 = vst [vmem:[%s179 + $0x230] sm:$0xff] %v320
                %v322 = vld [vmem:[%s178 + $0x4418] sm:$0xff]
                %323 = vst [vmem:[%s179 + $0x238] sm:$0xff] %v322
                %v324 = vld [vmem:[%s178 + $0x4800] sm:$0xff]
                %325 = vst [vmem:[%s179 + $0x240] sm:$0xff] %v324
                %v326 = vld [vmem:[%s178 + $0x4808] sm:$0xff]
                %327 = vst [vmem:[%s179 + $0x248] sm:$0xff] %v326
                %v328 = vld [vmem:[%s178 + $0x4810] sm:$0xff]
                %329 = vst [vmem:[%s179 + $0x250] sm:$0xff] %v328
                %v330 = vld [vmem:[%s178 + $0x4818] sm:$0xff]
                %331 = vst [vmem:[%s179 + $0x258] sm:$0xff] %v330
                %v332 = vld [vmem:[%s178 + $0x4c00] sm:$0xff]
                %333 = vst [vmem:[%s179 + $0x260] sm:$0xff] %v332
                %v334 = vld [vmem:[%s178 + $0x4c08] sm:$0xff]
                %335 = vst [vmem:[%s179 + $0x268] sm:$0xff] %v334
                %v336 = vld [vmem:[%s178 + $0x4c10] sm:$0xff]
                %337 = vst [vmem:[%s179 + $0x270] sm:$0xff] %v336
                %v338 = vld [vmem:[%s178 + $0x4c18] sm:$0xff]
                %339 = vst [vmem:[%s179 + $0x278] sm:$0xff] %v338
                %v340 = vld [vmem:[%s178 + $0x5000] sm:$0xff]
                %341 = vst [vmem:[%s179 + $0x280] sm:$0xff] %v340
                %v342 = vld [vmem:[%s178 + $0x5008] sm:$0xff]
                %343 = vst [vmem:[%s179 + $0x288] sm:$0xff] %v342
                %v344 = vld [vmem:[%s178 + $0x5010] sm:$0xff]
                %345 = vst [vmem:[%s179 + $0x290] sm:$0xff] %v344
                %v346 = vld [vmem:[%s178 + $0x5018] sm:$0xff]
                %347 = vst [vmem:[%s179 + $0x298] sm:$0xff] %v346
                %v348 = vld [vmem:[%s178 + $0x5400] sm:$0xff]
                %349 = vst [vmem:[%s179 + $0x2a0] sm:$0xff] %v348
                %v350 = vld [vmem:[%s178 + $0x5408] sm:$0xff]
                %351 = vst [vmem:[%s179 + $0x2a8] sm:$0xff] %v350
                %v352 = vld [vmem:[%s178 + $0x5410] sm:$0xff]
                %353 = vst [vmem:[%s179 + $0x2b0] sm:$0xff] %v352
                %v354 = vld [vmem:[%s178 + $0x5418] sm:$0xff]
                %355 = vst [vmem:[%s179 + $0x2b8] sm:$0xff] %v354
                %v356 = vld [vmem:[%s178 + $0x5800] sm:$0xff]
                %357 = vst [vmem:[%s179 + $0x2c0] sm:$0xff] %v356
                %v358 = vld [vmem:[%s178 + $0x5808] sm:$0xff]
                %359 = vst [vmem:[%s179 + $0x2c8] sm:$0xff] %v358
                %v360 = vld [vmem:[%s178 + $0x5810] sm:$0xff]
                %361 = vst [vmem:[%s179 + $0x2d0] sm:$0xff] %v360
                %v362 = vld [vmem:[%s178 + $0x5818] sm:$0xff]
                %363 = vst [vmem:[%s179 + $0x2d8] sm:$0xff] %v362
                %v364 = vld [vmem:[%s178 + $0x5c00] sm:$0xff]
                %365 = vst [vmem:[%s179 + $0x2e0] sm:$0xff] %v364
                %v366 = vld [vmem:[%s178 + $0x5c08] sm:$0xff]
                %367 = vst [vmem:[%s179 + $0x2e8] sm:$0xff] %v366
                %v368 = vld [vmem:[%s178 + $0x5c10] sm:$0xff]
                %369 = vst [vmem:[%s179 + $0x2f0] sm:$0xff] %v368
                %v370 = vld [vmem:[%s178 + $0x5c18] sm:$0xff]
                %371 = vst [vmem:[%s179 + $0x2f8] sm:$0xff] %v370
                %v372 = vld [vmem:[%s178 + $0x6000] sm:$0xff]
                %373 = vst [vmem:[%s179 + $0x300] sm:$0xff] %v372
                %v374 = vld [vmem:[%s178 + $0x6008] sm:$0xff]
                %375 = vst [vmem:[%s179 + $0x308] sm:$0xff] %v374
                %v376 = vld [vmem:[%s178 + $0x6010] sm:$0xff]
                %377 = vst [vmem:[%s179 + $0x310] sm:$0xff] %v376
                %v378 = vld [vmem:[%s178 + $0x6018] sm:$0xff]
                %379 = vst [vmem:[%s179 + $0x318] sm:$0xff] %v378
                %v380 = vld [vmem:[%s178 + $0x6400] sm:$0xff]
                %381 = vst [vmem:[%s179 + $0x320] sm:$0xff] %v380
                %v382 = vld [vmem:[%s178 + $0x6408] sm:$0xff]
                %383 = vst [vmem:[%s179 + $0x328] sm:$0xff] %v382
                %v384 = vld [vmem:[%s178 + $0x6410] sm:$0xff]
                %385 = vst [vmem:[%s179 + $0x330] sm:$0xff] %v384
                %v386 = vld [vmem:[%s178 + $0x6418] sm:$0xff]
                %387 = vst [vmem:[%s179 + $0x338] sm:$0xff] %v386
                %v388 = vld [vmem:[%s178 + $0x6800] sm:$0xff]
                %389 = vst [vmem:[%s179 + $0x340] sm:$0xff] %v388
                %v390 = vld [vmem:[%s178 + $0x6808] sm:$0xff]
                %391 = vst [vmem:[%s179 + $0x348] sm:$0xff] %v390
                %v392 = vld [vmem:[%s178 + $0x6810] sm:$0xff]
                %393 = vst [vmem:[%s179 + $0x350] sm:$0xff] %v392
                %v394 = vld [vmem:[%s178 + $0x6818] sm:$0xff]
                %395 = vst [vmem:[%s179 + $0x358] sm:$0xff] %v394
                %v396 = vld [vmem:[%s178 + $0x6c00] sm:$0xff]
                %397 = vst [vmem:[%s179 + $0x360] sm:$0xff] %v396
                %v398 = vld [vmem:[%s178 + $0x6c08] sm:$0xff]
                %399 = vst [vmem:[%s179 + $0x368] sm:$0xff] %v398
                %v400 = vld [vmem:[%s178 + $0x6c10] sm:$0xff]
                %401 = vst [vmem:[%s179 + $0x370] sm:$0xff] %v400
                %v402 = vld [vmem:[%s178 + $0x6c18] sm:$0xff]
                %403 = vst [vmem:[%s179 + $0x378] sm:$0xff] %v402
                %v404 = vld [vmem:[%s178 + $0x7000] sm:$0xff]
                %405 = vst [vmem:[%s179 + $0x380] sm:$0xff] %v404
                %v406 = vld [vmem:[%s178 + $0x7008] sm:$0xff]
                %407 = vst [vmem:[%s179 + $0x388] sm:$0xff] %v406
                %v408 = vld [vmem:[%s178 + $0x7010] sm:$0xff]
                %409 = vst [vmem:[%s179 + $0x390] sm:$0xff] %v408
                %v410 = vld [vmem:[%s178 + $0x7018] sm:$0xff]
                %411 = vst [vmem:[%s179 + $0x398] sm:$0xff] %v410
                %v412 = vld [vmem:[%s178 + $0x7400] sm:$0xff]
                %413 = vst [vmem:[%s179 + $0x3a0] sm:$0xff] %v412
                %v414 = vld [vmem:[%s178 + $0x7408] sm:$0xff]
                %415 = vst [vmem:[%s179 + $0x3a8] sm:$0xff] %v414
                %v416 = vld [vmem:[%s178 + $0x7410] sm:$0xff]
                %417 = vst [vmem:[%s179 + $0x3b0] sm:$0xff] %v416
                %v418 = vld [vmem:[%s178 + $0x7418] sm:$0xff]
                %419 = vst [vmem:[%s179 + $0x3b8] sm:$0xff] %v418
                %v420 = vld [vmem:[%s178 + $0x7800] sm:$0xff]
                %421 = vst [vmem:[%s179 + $0x3c0] sm:$0xff] %v420
                %v422 = vld [vmem:[%s178 + $0x7808] sm:$0xff]
                %423 = vst [vmem:[%s179 + $0x3c8] sm:$0xff] %v422
                %v424 = vld [vmem:[%s178 + $0x7810] sm:$0xff]
                %425 = vst [vmem:[%s179 + $0x3d0] sm:$0xff] %v424
                %v426 = vld [vmem:[%s178 + $0x7818] sm:$0xff]
                %427 = vst [vmem:[%s179 + $0x3d8] sm:$0xff] %v426
                %v428 = vld [vmem:[%s178 + $0x7c00] sm:$0xff]
                %429 = vst [vmem:[%s179 + $0x3e0] sm:$0xff] %v428
                %v430 = vld [vmem:[%s178 + $0x7c08] sm:$0xff]
                %431 = vst [vmem:[%s179 + $0x3e8] sm:$0xff] %v430
                %v432 = vld [vmem:[%s178 + $0x7c10] sm:$0xff]
                %433 = vst [vmem:[%s179 + $0x3f0] sm:$0xff] %v432
                %v434 = vld [vmem:[%s178 + $0x7c18] sm:$0xff]
                %435 = vst [vmem:[%s179 + $0x3f8] sm:$0xff] %v434
              $region37: #{flow_encoder_forward.8} parent=31 // loop_footer
                %s177 = sadd.s32 1, %s173
              $region38: #{flow_encoder_forward.8} parent=31 // loop_footer_branch
                %172 = sbr.rel target = $region34
              $region39: #{flow_encoder_forward.8} parent=31 // loop_exit
                _
            $region32: #{flow_encoder_forward.8} parent=27 // pred_fallthru
              _
            // Predicated region
            $region40: #{flow_encoder_forward.8} parent=27 // pred_check
              _
            $region41: #{flow_encoder_forward.8} parent=27 // pred_check_branch
              %437 = sbr.rel target = $region43
            $region42: #{flow_encoder_forward.8} parent=27 // pred_region
              _
            $region43: #{flow_encoder_forward.8} parent=27 // pred_fallthru
              _
          $region28: #{flow_encoder_forward.8} parent=23 // pred_fallthru
            _
          %438 = vnop
        $region24: #{flow_encoder_forward.8} parent=19 // pred_fallthru
          _
      $region20: #{flow_encoder_forward.8} parent=5 // pred_fallthru
        _
      %p439 = scmp.le.s32.totalorder 1, %s11
      %p440 = scmp.lt.s32.totalorder %s11, 33
      %p441 = pnand %p439, %p440
      %p442 = pneg %p441
      // Predicated region
      $region44: #{flow_encoder_forward.8} parent=5 // pred_check
        _
      $region45: #{flow_encoder_forward.8} parent=5 // pred_check_branch
        %444 = sbr.rel (%p441) target = $region47
      $region46: #{flow_encoder_forward.8} parent=5 // pred_region
        %s445 = ssub.s32 %s11, 1
        %s446 = sand.u32 %s45, 1
        %s447 = sand.u32 %s45, 1
        %s448 = smul.addr %s447, 1024
        %s449 = scalar_lea.vmem [#allocation2], %s448
        // Predicated region
        $region48: #{flow_encoder_forward.8} parent=46 // pred_check
          %p450 = pneg %p58
        $region49: #{flow_encoder_forward.8} parent=46 // pred_check_branch
          %452 = sbr.rel (%p450) target = $region51
        $region50: #{flow_encoder_forward.8} parent=46 // pred_region
          _
        $region51: #{flow_encoder_forward.8} parent=46 // pred_fallthru
          _
        %p453 = pneg %p32
        %p454 = pneg %p29
        %s455 = sand.u32 %s45, 1
        %s456 = sand.u32 %s45, 1
        %s457 = smul.addr %s456, 1024
        %s458 = scalar_lea.vmem [#allocation2], %s457
        %p459 = pneg %p58
        %p460 = pneg %p55
        %p461 = pneg %p84
        %p462 = pneg %p81
        %s463 = smul.u32 8, %s16
        %p464 = scmp.lt.s32.totalorder %s463, 255
        %s465 = scalar_select %p464, %s463, 255
        %s466 = smul.addr %s465, 8
        %s467 = scalar_lea.vmem %s2, %s466
        %p468 = pneg %p110
        %p469 = pneg %p107
        %p470 = scmp.lt.s32.totalorder %s16, 31
        %s471 = scalar_select %p470, %s16, 31
        %s472 = smul.addr %s471, 8
        %s473 = scalar_lea.vmem %s3, %s472
        %p474 = pneg %p136
        %p475 = pneg %p133
        %p476 = scmp.lt.s32.totalorder %s16, 31
        %s477 = scalar_select %p476, %s16, 31
        %s478 = smul.addr %s477, 8
        %s479 = scalar_lea.vmem %s4, %s478
        %s480 = smul.u32 8, %s16
        %s481 = smul.u32 8, %s16
        %p482 = scmp.lt.s32.totalorder %s481, 255
        %s483 = scalar_select %p482, %s481, 255
        %s484 = smul.addr %s483, 8
        %s485 = scalar_lea.vmem %s2, %s484
        %s486 = smul.u32 8, %s16
        %p487 = scmp.lt.s32.totalorder %s16, 31
        %s488 = scalar_select %p487, %s16, 31
        %s489 = smul.addr %s488, 8
        %s490 = scalar_lea.vmem %s3, %s489
        %p491 = scmp.lt.s32.totalorder %s16, 31
        %s492 = scalar_select %p491, %s16, 31
        %s493 = smul.addr %s492, 8
        %s494 = scalar_lea.vmem %s4, %s493
        %v495 = vld [vmem:[%s0] sm:$0xff]
        %v496 = vld [vmem:[%s449] sm:$0xff]
        %v497 = vld [vmem:[%s449 + $0x8] sm:$0xff]
        %v498 = vld [vmem:[%s449 + $0x10] sm:$0xff]
        %v499 = vld [vmem:[%s449 + $0x18] sm:$0xff]
        %v500 = vld [vmem:[%s449 + $0x20] sm:$0xff]
        %v501 = vld [vmem:[%s449 + $0x28] sm:$0xff]
        %v502 = vld [vmem:[%s449 + $0x30] sm:$0xff]
        %v503 = vld [vmem:[%s449 + $0x38] sm:$0xff]
        %v504 = vld [vmem:[%s449 + $0x40] sm:$0xff]
        %v505 = vld [vmem:[%s449 + $0x48] sm:$0xff]
        %v506 = vld [vmem:[%s449 + $0x50] sm:$0xff]
        %v507 = vld [vmem:[%s449 + $0x58] sm:$0xff]
        %v508 = vld [vmem:[%s449 + $0x60] sm:$0xff]
        %v509 = vld [vmem:[%s449 + $0x68] sm:$0xff]
        %v510 = vld [vmem:[%s449 + $0x70] sm:$0xff]
        %v511 = vld [vmem:[%s449 + $0x78] sm:$0xff]
        %v512 = vld [vmem:[%s449 + $0x80] sm:$0xff]
        %v513 = vld [vmem:[%s449 + $0x88] sm:$0xff]
        %v514 = vld [vmem:[%s449 + $0x90] sm:$0xff]
        %v515 = vld [vmem:[%s449 + $0x98] sm:$0xff]
        %v516 = vld [vmem:[%s449 + $0xa0] sm:$0xff]
        %v517 = vld [vmem:[%s449 + $0xa8] sm:$0xff]
        %v518 = vld [vmem:[%s449 + $0xb0] sm:$0xff]
        %v519 = vld [vmem:[%s449 + $0xb8] sm:$0xff]
        %v520 = vld [vmem:[%s449 + $0xc0] sm:$0xff]
        %v521 = vld [vmem:[%s449 + $0xc8] sm:$0xff]
        %v522 = vld [vmem:[%s449 + $0xd0] sm:$0xff]
        %v523 = vld [vmem:[%s449 + $0xd8] sm:$0xff]
        %v524 = vld [vmem:[%s449 + $0xe0] sm:$0xff]
        %v525 = vld [vmem:[%s449 + $0xe8] sm:$0xff]
        %v526 = vld [vmem:[%s449 + $0xf0] sm:$0xff]
        %v527 = vld [vmem:[%s449 + $0xf8] sm:$0xff]
        %v528 = vld [vmem:[%s449 + $0x100] sm:$0xff]
        %v529 = vld [vmem:[%s449 + $0x108] sm:$0xff]
        %v530 = vld [vmem:[%s449 + $0x110] sm:$0xff]
        %v531 = vld [vmem:[%s449 + $0x118] sm:$0xff]
        %v532 = vld [vmem:[%s449 + $0x120] sm:$0xff]
        %v533 = vld [vmem:[%s449 + $0x128] sm:$0xff]
        %v534 = vld [vmem:[%s449 + $0x130] sm:$0xff]
        %v535 = vld [vmem:[%s449 + $0x138] sm:$0xff]
        %v536 = vld [vmem:[%s449 + $0x140] sm:$0xff]
        %v537 = vld [vmem:[%s449 + $0x148] sm:$0xff]
        %v538 = vld [vmem:[%s449 + $0x150] sm:$0xff]
        %v539 = vld [vmem:[%s449 + $0x158] sm:$0xff]
        %v540 = vld [vmem:[%s449 + $0x160] sm:$0xff]
        %v541 = vld [vmem:[%s449 + $0x168] sm:$0xff]
        %v542 = vld [vmem:[%s449 + $0x170] sm:$0xff]
        %v543 = vld [vmem:[%s449 + $0x178] sm:$0xff]
        %v544 = vld [vmem:[%s449 + $0x180] sm:$0xff]
        %v545 = vld [vmem:[%s449 + $0x188] sm:$0xff]
        %v546 = vld [vmem:[%s449 + $0x190] sm:$0xff]
        %v547 = vld [vmem:[%s449 + $0x198] sm:$0xff]
        %v548 = vld [vmem:[%s449 + $0x1a0] sm:$0xff]
        %v549 = vld [vmem:[%s449 + $0x1a8] sm:$0xff]
        %v550 = vld [vmem:[%s449 + $0x1b0] sm:$0xff]
        %v551 = vld [vmem:[%s449 + $0x1b8] sm:$0xff]
        %v552 = vld [vmem:[%s449 + $0x1c0] sm:$0xff]
        %v553 = vld [vmem:[%s449 + $0x1c8] sm:$0xff]
        %v554 = vld [vmem:[%s449 + $0x1d0] sm:$0xff]
        %v555 = vld [vmem:[%s449 + $0x1d8] sm:$0xff]
        %v556 = vld [vmem:[%s449 + $0x1e0] sm:$0xff]
        %v557 = vld [vmem:[%s449 + $0x1e8] sm:$0xff]
        %v558 = vld [vmem:[%s449 + $0x1f0] sm:$0xff]
        %v559 = vld [vmem:[%s449 + $0x1f8] sm:$0xff]
        %v560 = vld [vmem:[%s449 + $0x200] sm:$0xff]
        %v561 = vld [vmem:[%s449 + $0x208] sm:$0xff]
        %v562 = vld [vmem:[%s449 + $0x210] sm:$0xff]
        %v563 = vld [vmem:[%s449 + $0x218] sm:$0xff]
        %v564 = vld [vmem:[%s449 + $0x220] sm:$0xff]
        %v565 = vld [vmem:[%s449 + $0x228] sm:$0xff]
        %v566 = vld [vmem:[%s449 + $0x230] sm:$0xff]
        %v567 = vld [vmem:[%s449 + $0x238] sm:$0xff]
        %v568 = vld [vmem:[%s449 + $0x240] sm:$0xff]
        %v569 = vld [vmem:[%s449 + $0x248] sm:$0xff]
        %v570 = vld [vmem:[%s449 + $0x250] sm:$0xff]
        %v571 = vld [vmem:[%s449 + $0x258] sm:$0xff]
        %v572 = vld [vmem:[%s449 + $0x260] sm:$0xff]
        %v573 = vld [vmem:[%s449 + $0x268] sm:$0xff]
        %v574 = vld [vmem:[%s449 + $0x270] sm:$0xff]
        %v575 = vld [vmem:[%s449 + $0x278] sm:$0xff]
        %v576 = vld [vmem:[%s449 + $0x280] sm:$0xff]
        %v577 = vld [vmem:[%s449 + $0x288] sm:$0xff]
        %v578 = vld [vmem:[%s449 + $0x290] sm:$0xff]
        %v579 = vld [vmem:[%s449 + $0x298] sm:$0xff]
        %v580 = vld [vmem:[%s449 + $0x2a0] sm:$0xff]
        %v581 = vld [vmem:[%s449 + $0x2a8] sm:$0xff]
        %v582 = vld [vmem:[%s449 + $0x2b0] sm:$0xff]
        %v583 = vld [vmem:[%s449 + $0x2b8] sm:$0xff]
        %v584 = vld [vmem:[%s449 + $0x2c0] sm:$0xff]
        %v585 = vld [vmem:[%s449 + $0x2c8] sm:$0xff]
        %v586 = vld [vmem:[%s449 + $0x2d0] sm:$0xff]
        %v587 = vld [vmem:[%s449 + $0x2d8] sm:$0xff]
        %v588 = vld [vmem:[%s449 + $0x2e0] sm:$0xff]
        %v589 = vld [vmem:[%s449 + $0x2e8] sm:$0xff]
        %v590 = vld [vmem:[%s449 + $0x2f0] sm:$0xff]
        %v591 = vld [vmem:[%s449 + $0x2f8] sm:$0xff]
        %v592 = vld [vmem:[%s449 + $0x300] sm:$0xff]
        %v593 = vld [vmem:[%s449 + $0x308] sm:$0xff]
        %v594 = vld [vmem:[%s449 + $0x310] sm:$0xff]
        %v595 = vld [vmem:[%s449 + $0x318] sm:$0xff]
        %v596 = vld [vmem:[%s449 + $0x320] sm:$0xff]
        %v597 = vld [vmem:[%s449 + $0x328] sm:$0xff]
        %v598 = vld [vmem:[%s449 + $0x330] sm:$0xff]
        %v599 = vld [vmem:[%s449 + $0x338] sm:$0xff]
        %v600 = vld [vmem:[%s449 + $0x340] sm:$0xff]
        %v601 = vld [vmem:[%s449 + $0x348] sm:$0xff]
        %v602 = vld [vmem:[%s449 + $0x350] sm:$0xff]
        %v603 = vld [vmem:[%s449 + $0x358] sm:$0xff]
        %v604 = vld [vmem:[%s449 + $0x360] sm:$0xff]
        %v605 = vld [vmem:[%s449 + $0x368] sm:$0xff]
        %v606 = vld [vmem:[%s449 + $0x370] sm:$0xff]
        %v607 = vld [vmem:[%s449 + $0x378] sm:$0xff]
        %v608 = vld [vmem:[%s449 + $0x380] sm:$0xff]
        %v609 = vld [vmem:[%s449 + $0x388] sm:$0xff]
        %v610 = vld [vmem:[%s449 + $0x390] sm:$0xff]
        %v611 = vld [vmem:[%s449 + $0x398] sm:$0xff]
        %v612 = vld [vmem:[%s449 + $0x3a0] sm:$0xff]
        %v613 = vld [vmem:[%s449 + $0x3a8] sm:$0xff]
        %v614 = vld [vmem:[%s449 + $0x3b0] sm:$0xff]
        %v615 = vld [vmem:[%s449 + $0x3b8] sm:$0xff]
        %v616 = vld [vmem:[%s449 + $0x3c0] sm:$0xff]
        %v617 = vld [vmem:[%s449 + $0x3c8] sm:$0xff]
        %v618 = vld [vmem:[%s449 + $0x3d0] sm:$0xff]
        %v619 = vld [vmem:[%s449 + $0x3d8] sm:$0xff]
        %v620 = vld [vmem:[%s449 + $0x3e0] sm:$0xff]
        %v621 = vld [vmem:[%s449 + $0x3e8] sm:$0xff]
        %v622 = vld [vmem:[%s449 + $0x3f0] sm:$0xff]
        %v623 = vld [vmem:[%s449 + $0x3f8] sm:$0xff]
        %v625 = vunpack.c.l.b16 %v495
        %v626 = vunpack.c.h.b16 %v495
        %v627 = vpack.c.b16 %v625, %v625
        %v628 = vpack.c.b16 %v626, %v626
        %v759 = vunpack.c.l.b16 %v496
        %v760 = vunpack.c.h.b16 %v496
        %v761 = vunpack.c.l.b16 %v497
        %v762 = vunpack.c.h.b16 %v497
        %v763 = vunpack.c.l.b16 %v498
        %v764 = vunpack.c.h.b16 %v498
        %v765 = vunpack.c.l.b16 %v499
        %v766 = vunpack.c.h.b16 %v499
        %v767 = vunpack.c.l.b16 %v500
        %v768 = vunpack.c.h.b16 %v500
        %v769 = vunpack.c.l.b16 %v501
        %v770 = vunpack.c.h.b16 %v501
        %v771 = vunpack.c.l.b16 %v502
        %v772 = vunpack.c.h.b16 %v502
        %v773 = vunpack.c.l.b16 %v503
        %v774 = vunpack.c.h.b16 %v503
        %v775 = vunpack.c.l.b16 %v504
        %v776 = vunpack.c.h.b16 %v504
        %v777 = vunpack.c.l.b16 %v505
        %v778 = vunpack.c.h.b16 %v505
        %v779 = vunpack.c.l.b16 %v506
        %v780 = vunpack.c.h.b16 %v506
        %v781 = vunpack.c.l.b16 %v507
        %v782 = vunpack.c.h.b16 %v507
        %v783 = vunpack.c.l.b16 %v508
        %v784 = vunpack.c.h.b16 %v508
        %v785 = vunpack.c.l.b16 %v509
        %v786 = vunpack.c.h.b16 %v509
        %v787 = vunpack.c.l.b16 %v510
        %v788 = vunpack.c.h.b16 %v510
        %v789 = vunpack.c.l.b16 %v511
        %v790 = vunpack.c.h.b16 %v511
        %v791 = vunpack.c.l.b16 %v512
        %v792 = vunpack.c.h.b16 %v512
        %v793 = vunpack.c.l.b16 %v513
        %v794 = vunpack.c.h.b16 %v513
        %v795 = vunpack.c.l.b16 %v514
        %v796 = vunpack.c.h.b16 %v514
        %v797 = vunpack.c.l.b16 %v515
        %v798 = vunpack.c.h.b16 %v515
        %v799 = vunpack.c.l.b16 %v516
        %v800 = vunpack.c.h.b16 %v516
        %v801 = vunpack.c.l.b16 %v517
        %v802 = vunpack.c.h.b16 %v517
        %v803 = vunpack.c.l.b16 %v518
        %v804 = vunpack.c.h.b16 %v518
        %v805 = vunpack.c.l.b16 %v519
        %v806 = vunpack.c.h.b16 %v519
        %v807 = vunpack.c.l.b16 %v520
        %v808 = vunpack.c.h.b16 %v520
        %v809 = vunpack.c.l.b16 %v521
        %v810 = vunpack.c.h.b16 %v521
        %v811 = vunpack.c.l.b16 %v522
        %v812 = vunpack.c.h.b16 %v522
        %v813 = vunpack.c.l.b16 %v523
        %v814 = vunpack.c.h.b16 %v523
        %v815 = vunpack.c.l.b16 %v524
        %v816 = vunpack.c.h.b16 %v524
        %v817 = vunpack.c.l.b16 %v525
        %v818 = vunpack.c.h.b16 %v525
        %v819 = vunpack.c.l.b16 %v526
        %v820 = vunpack.c.h.b16 %v526
        %v821 = vunpack.c.l.b16 %v527
        %v822 = vunpack.c.h.b16 %v527
        %v823 = vunpack.c.l.b16 %v528
        %v824 = vunpack.c.h.b16 %v528
        %v825 = vunpack.c.l.b16 %v529
        %v826 = vunpack.c.h.b16 %v529
        %v827 = vunpack.c.l.b16 %v530
        %v828 = vunpack.c.h.b16 %v530
        %v829 = vunpack.c.l.b16 %v531
        %v830 = vunpack.c.h.b16 %v531
        %v831 = vunpack.c.l.b16 %v532
        %v832 = vunpack.c.h.b16 %v532
        %v833 = vunpack.c.l.b16 %v533
        %v834 = vunpack.c.h.b16 %v533
        %v835 = vunpack.c.l.b16 %v534
        %v836 = vunpack.c.h.b16 %v534
        %v837 = vunpack.c.l.b16 %v535
        %v838 = vunpack.c.h.b16 %v535
        %v839 = vunpack.c.l.b16 %v536
        %v840 = vunpack.c.h.b16 %v536
        %v841 = vunpack.c.l.b16 %v537
        %v842 = vunpack.c.h.b16 %v537
        %v843 = vunpack.c.l.b16 %v538
        %v844 = vunpack.c.h.b16 %v538
        %v845 = vunpack.c.l.b16 %v539
        %v846 = vunpack.c.h.b16 %v539
        %v847 = vunpack.c.l.b16 %v540
        %v848 = vunpack.c.h.b16 %v540
        %v849 = vunpack.c.l.b16 %v541
        %v850 = vunpack.c.h.b16 %v541
        %v851 = vunpack.c.l.b16 %v542
        %v852 = vunpack.c.h.b16 %v542
        %v853 = vunpack.c.l.b16 %v543
        %v854 = vunpack.c.h.b16 %v543
        %v855 = vunpack.c.l.b16 %v544
        %v856 = vunpack.c.h.b16 %v544
        %v857 = vunpack.c.l.b16 %v545
        %v858 = vunpack.c.h.b16 %v545
        %v859 = vunpack.c.l.b16 %v546
        %v860 = vunpack.c.h.b16 %v546
        %v861 = vunpack.c.l.b16 %v547
        %v862 = vunpack.c.h.b16 %v547
        %v863 = vunpack.c.l.b16 %v548
        %v864 = vunpack.c.h.b16 %v548
        %v865 = vunpack.c.l.b16 %v549
        %v866 = vunpack.c.h.b16 %v549
        %v867 = vunpack.c.l.b16 %v550
        %v868 = vunpack.c.h.b16 %v550
        %v869 = vunpack.c.l.b16 %v551
        %v870 = vunpack.c.h.b16 %v551
        %v871 = vunpack.c.l.b16 %v552
        %v872 = vunpack.c.h.b16 %v552
        %v873 = vunpack.c.l.b16 %v553
        %v874 = vunpack.c.h.b16 %v553
        %v875 = vunpack.c.l.b16 %v554
        %v876 = vunpack.c.h.b16 %v554
        %v877 = vunpack.c.l.b16 %v555
        %v878 = vunpack.c.h.b16 %v555
        %v879 = vunpack.c.l.b16 %v556
        %v880 = vunpack.c.h.b16 %v556
        %v881 = vunpack.c.l.b16 %v557
        %v882 = vunpack.c.h.b16 %v557
        %v883 = vunpack.c.l.b16 %v558
        %v884 = vunpack.c.h.b16 %v558
        %v885 = vunpack.c.l.b16 %v559
        %v886 = vunpack.c.h.b16 %v559
        %v887 = vunpack.c.l.b16 %v560
        %v888 = vunpack.c.h.b16 %v560
        %v889 = vunpack.c.l.b16 %v561
        %v890 = vunpack.c.h.b16 %v561
        %v891 = vunpack.c.l.b16 %v562
        %v892 = vunpack.c.h.b16 %v562
        %v893 = vunpack.c.l.b16 %v563
        %v894 = vunpack.c.h.b16 %v563
        %v895 = vunpack.c.l.b16 %v564
        %v896 = vunpack.c.h.b16 %v564
        %v897 = vunpack.c.l.b16 %v565
        %v898 = vunpack.c.h.b16 %v565
        %v899 = vunpack.c.l.b16 %v566
        %v900 = vunpack.c.h.b16 %v566
        %v901 = vunpack.c.l.b16 %v567
        %v902 = vunpack.c.h.b16 %v567
        %v903 = vunpack.c.l.b16 %v568
        %v904 = vunpack.c.h.b16 %v568
        %v905 = vunpack.c.l.b16 %v569
        %v906 = vunpack.c.h.b16 %v569
        %v907 = vunpack.c.l.b16 %v570
        %v908 = vunpack.c.h.b16 %v570
        %v909 = vunpack.c.l.b16 %v571
        %v910 = vunpack.c.h.b16 %v571
        %v911 = vunpack.c.l.b16 %v572
        %v912 = vunpack.c.h.b16 %v572
        %v913 = vunpack.c.l.b16 %v573
        %v914 = vunpack.c.h.b16 %v573
        %v915 = vunpack.c.l.b16 %v574
        %v916 = vunpack.c.h.b16 %v574
        %v917 = vunpack.c.l.b16 %v575
        %v918 = vunpack.c.h.b16 %v575
        %v919 = vunpack.c.l.b16 %v576
        %v920 = vunpack.c.h.b16 %v576
        %v921 = vunpack.c.l.b16 %v577
        %v922 = vunpack.c.h.b16 %v577
        %v923 = vunpack.c.l.b16 %v578
        %v924 = vunpack.c.h.b16 %v578
        %v925 = vunpack.c.l.b16 %v579
        %v926 = vunpack.c.h.b16 %v579
        %v927 = vunpack.c.l.b16 %v580
        %v928 = vunpack.c.h.b16 %v580
        %v929 = vunpack.c.l.b16 %v581
        %v930 = vunpack.c.h.b16 %v581
        %v931 = vunpack.c.l.b16 %v582
        %v932 = vunpack.c.h.b16 %v582
        %v933 = vunpack.c.l.b16 %v583
        %v934 = vunpack.c.h.b16 %v583
        %v935 = vunpack.c.l.b16 %v584
        %v936 = vunpack.c.h.b16 %v584
        %v937 = vunpack.c.l.b16 %v585
        %v938 = vunpack.c.h.b16 %v585
        %v939 = vunpack.c.l.b16 %v586
        %v940 = vunpack.c.h.b16 %v586
        %v941 = vunpack.c.l.b16 %v587
        %v942 = vunpack.c.h.b16 %v587
        %v943 = vunpack.c.l.b16 %v588
        %v944 = vunpack.c.h.b16 %v588
        %v945 = vunpack.c.l.b16 %v589
        %v946 = vunpack.c.h.b16 %v589
        %v947 = vunpack.c.l.b16 %v590
        %v948 = vunpack.c.h.b16 %v590
        %v949 = vunpack.c.l.b16 %v591
        %v950 = vunpack.c.h.b16 %v591
        %v951 = vunpack.c.l.b16 %v592
        %v952 = vunpack.c.h.b16 %v592
        %v953 = vunpack.c.l.b16 %v593
        %v954 = vunpack.c.h.b16 %v593
        %v955 = vunpack.c.l.b16 %v594
        %v956 = vunpack.c.h.b16 %v594
        %v957 = vunpack.c.l.b16 %v595
        %v958 = vunpack.c.h.b16 %v595
        %v959 = vunpack.c.l.b16 %v596
        %v960 = vunpack.c.h.b16 %v596
        %v961 = vunpack.c.l.b16 %v597
        %v962 = vunpack.c.h.b16 %v597
        %v963 = vunpack.c.l.b16 %v598
        %v964 = vunpack.c.h.b16 %v598
        %v965 = vunpack.c.l.b16 %v599
        %v966 = vunpack.c.h.b16 %v599
        %v967 = vunpack.c.l.b16 %v600
        %v968 = vunpack.c.h.b16 %v600
        %v969 = vunpack.c.l.b16 %v601
        %v970 = vunpack.c.h.b16 %v601
        %v971 = vunpack.c.l.b16 %v602
        %v972 = vunpack.c.h.b16 %v602
        %v973 = vunpack.c.l.b16 %v603
        %v974 = vunpack.c.h.b16 %v603
        %v975 = vunpack.c.l.b16 %v604
        %v976 = vunpack.c.h.b16 %v604
        %v977 = vunpack.c.l.b16 %v605
        %v978 = vunpack.c.h.b16 %v605
        %v979 = vunpack.c.l.b16 %v606
        %v980 = vunpack.c.h.b16 %v606
        %v981 = vunpack.c.l.b16 %v607
        %v982 = vunpack.c.h.b16 %v607
        %v983 = vunpack.c.l.b16 %v608
        %v984 = vunpack.c.h.b16 %v608
        %v985 = vunpack.c.l.b16 %v609
        %v986 = vunpack.c.h.b16 %v609
        %v987 = vunpack.c.l.b16 %v610
        %v988 = vunpack.c.h.b16 %v610
        %v989 = vunpack.c.l.b16 %v611
        %v990 = vunpack.c.h.b16 %v611
        %v991 = vunpack.c.l.b16 %v612
        %v992 = vunpack.c.h.b16 %v612
        %v993 = vunpack.c.l.b16 %v613
        %v994 = vunpack.c.h.b16 %v613
        %v995 = vunpack.c.l.b16 %v614
        %v996 = vunpack.c.h.b16 %v614
        %v997 = vunpack.c.l.b16 %v615
        %v998 = vunpack.c.h.b16 %v615
        %v999 = vunpack.c.l.b16 %v616
        %v1000 = vunpack.c.h.b16 %v616
        %v1001 = vunpack.c.l.b16 %v617
        %v1002 = vunpack.c.h.b16 %v617
        %v1003 = vunpack.c.l.b16 %v618
        %v1004 = vunpack.c.h.b16 %v618
        %v1005 = vunpack.c.l.b16 %v619
        %v1006 = vunpack.c.h.b16 %v619
        %v1007 = vunpack.c.l.b16 %v620
        %v1008 = vunpack.c.h.b16 %v620
        %v1009 = vunpack.c.l.b16 %v621
        %v1010 = vunpack.c.h.b16 %v621
        %v1011 = vunpack.c.l.b16 %v622
        %v1012 = vunpack.c.h.b16 %v622
        %v1013 = vunpack.c.l.b16 %v623
        %v1014 = vunpack.c.h.b16 %v623
        %v1015 = vpack.c.b16 %v767, %v759
        %v1016 = vpack.c.b16 %v768, %v760
        %v1017 = vpack.c.b16 %v769, %v761
        %v1018 = vpack.c.b16 %v770, %v762
        %v1019 = vpack.c.b16 %v771, %v763
        %v1020 = vpack.c.b16 %v772, %v764
        %v1021 = vpack.c.b16 %v773, %v765
        %v1022 = vpack.c.b16 %v774, %v766
        %v1023 = vpack.c.b16 %v783, %v775
        %v1024 = vpack.c.b16 %v784, %v776
        %v1025 = vpack.c.b16 %v785, %v777
        %v1026 = vpack.c.b16 %v786, %v778
        %v1027 = vpack.c.b16 %v787, %v779
        %v1028 = vpack.c.b16 %v788, %v780
        %v1029 = vpack.c.b16 %v789, %v781
        %v1030 = vpack.c.b16 %v790, %v782
        %v1031 = vpack.c.b16 %v799, %v791
        %v1032 = vpack.c.b16 %v800, %v792
        %v1033 = vpack.c.b16 %v801, %v793
        %v1034 = vpack.c.b16 %v802, %v794
        %v1035 = vpack.c.b16 %v803, %v795
        %v1036 = vpack.c.b16 %v804, %v796
        %v1037 = vpack.c.b16 %v805, %v797
        %v1038 = vpack.c.b16 %v806, %v798
        %v1039 = vpack.c.b16 %v815, %v807
        %v1040 = vpack.c.b16 %v816, %v808
        %v1041 = vpack.c.b16 %v817, %v809
        %v1042 = vpack.c.b16 %v818, %v810
        %v1043 = vpack.c.b16 %v819, %v811
        %v1044 = vpack.c.b16 %v820, %v812
        %v1045 = vpack.c.b16 %v821, %v813
        %v1046 = vpack.c.b16 %v822, %v814
        %v1047 = vpack.c.b16 %v831, %v823
        %v1048 = vpack.c.b16 %v832, %v824
        %v1049 = vpack.c.b16 %v833, %v825
        %v1050 = vpack.c.b16 %v834, %v826
        %v1051 = vpack.c.b16 %v835, %v827
        %v1052 = vpack.c.b16 %v836, %v828
        %v1053 = vpack.c.b16 %v837, %v829
        %v1054 = vpack.c.b16 %v838, %v830
        %v1055 = vpack.c.b16 %v847, %v839
        %v1056 = vpack.c.b16 %v848, %v840
        %v1057 = vpack.c.b16 %v849, %v841
        %v1058 = vpack.c.b16 %v850, %v842
        %v1059 = vpack.c.b16 %v851, %v843
        %v1060 = vpack.c.b16 %v852, %v844
        %v1061 = vpack.c.b16 %v853, %v845
        %v1062 = vpack.c.b16 %v854, %v846
        %v1063 = vpack.c.b16 %v863, %v855
        %v1064 = vpack.c.b16 %v864, %v856
        %v1065 = vpack.c.b16 %v865, %v857
        %v1066 = vpack.c.b16 %v866, %v858
        %v1067 = vpack.c.b16 %v867, %v859
        %v1068 = vpack.c.b16 %v868, %v860
        %v1069 = vpack.c.b16 %v869, %v861
        %v1070 = vpack.c.b16 %v870, %v862
        %v1071 = vpack.c.b16 %v879, %v871
        %v1072 = vpack.c.b16 %v880, %v872
        %v1073 = vpack.c.b16 %v881, %v873
        %v1074 = vpack.c.b16 %v882, %v874
        %v1075 = vpack.c.b16 %v883, %v875
        %v1076 = vpack.c.b16 %v884, %v876
        %v1077 = vpack.c.b16 %v885, %v877
        %v1078 = vpack.c.b16 %v886, %v878
        %v1079 = vpack.c.b16 %v895, %v887
        %v1080 = vpack.c.b16 %v896, %v888
        %v1081 = vpack.c.b16 %v897, %v889
        %v1082 = vpack.c.b16 %v898, %v890
        %v1083 = vpack.c.b16 %v899, %v891
        %v1084 = vpack.c.b16 %v900, %v892
        %v1085 = vpack.c.b16 %v901, %v893
        %v1086 = vpack.c.b16 %v902, %v894
        %v1087 = vpack.c.b16 %v911, %v903
        %v1088 = vpack.c.b16 %v912, %v904
        %v1089 = vpack.c.b16 %v913, %v905
        %v1090 = vpack.c.b16 %v914, %v906
        %v1091 = vpack.c.b16 %v915, %v907
        %v1092 = vpack.c.b16 %v916, %v908
        %v1093 = vpack.c.b16 %v917, %v909
        %v1094 = vpack.c.b16 %v918, %v910
        %v1095 = vpack.c.b16 %v927, %v919
        %v1096 = vpack.c.b16 %v928, %v920
        %v1097 = vpack.c.b16 %v929, %v921
        %v1098 = vpack.c.b16 %v930, %v922
        %v1099 = vpack.c.b16 %v931, %v923
        %v1100 = vpack.c.b16 %v932, %v924
        %v1101 = vpack.c.b16 %v933, %v925
        %v1102 = vpack.c.b16 %v934, %v926
        %v1103 = vpack.c.b16 %v943, %v935
        %v1104 = vpack.c.b16 %v944, %v936
        %v1105 = vpack.c.b16 %v945, %v937
        %v1106 = vpack.c.b16 %v946, %v938
        %v1107 = vpack.c.b16 %v947, %v939
        %v1108 = vpack.c.b16 %v948, %v940
        %v1109 = vpack.c.b16 %v949, %v941
        %v1110 = vpack.c.b16 %v950, %v942
        %v1111 = vpack.c.b16 %v959, %v951
        %v1112 = vpack.c.b16 %v960, %v952
        %v1113 = vpack.c.b16 %v961, %v953
        %v1114 = vpack.c.b16 %v962, %v954
        %v1115 = vpack.c.b16 %v963, %v955
        %v1116 = vpack.c.b16 %v964, %v956
        %v1117 = vpack.c.b16 %v965, %v957
        %v1118 = vpack.c.b16 %v966, %v958
        %v1119 = vpack.c.b16 %v975, %v967
        %v1120 = vpack.c.b16 %v976, %v968
        %v1121 = vpack.c.b16 %v977, %v969
        %v1122 = vpack.c.b16 %v978, %v970
        %v1123 = vpack.c.b16 %v979, %v971
        %v1124 = vpack.c.b16 %v980, %v972
        %v1125 = vpack.c.b16 %v981, %v973
        %v1126 = vpack.c.b16 %v982, %v974
        %v1127 = vpack.c.b16 %v991, %v983
        %v1128 = vpack.c.b16 %v992, %v984
        %v1129 = vpack.c.b16 %v993, %v985
        %v1130 = vpack.c.b16 %v994, %v986
        %v1131 = vpack.c.b16 %v995, %v987
        %v1132 = vpack.c.b16 %v996, %v988
        %v1133 = vpack.c.b16 %v997, %v989
        %v1134 = vpack.c.b16 %v998, %v990
        %v1135 = vpack.c.b16 %v1007, %v999
        %v1136 = vpack.c.b16 %v1008, %v1000
        %v1137 = vpack.c.b16 %v1009, %v1001
        %v1138 = vpack.c.b16 %v1010, %v1002
        %v1139 = vpack.c.b16 %v1011, %v1003
        %v1140 = vpack.c.b16 %v1012, %v1004
        %v1141 = vpack.c.b16 %v1013, %v1005
        %v1142 = vpack.c.b16 %v1014, %v1006
        %1271 = vmatpush.bf16.msra.mxu0 %v1071
        %1272 = vmatpush.bf16.msra.mxu0 %v1063
        %1273 = vmatpush.bf16.msra.mxu0 %v1055
        %1274 = vmatpush.bf16.msra.mxu0 %v1047
        %1275 = vmatpush.bf16.msra.mxu0 %v1039
        %1276 = vmatpush.bf16.msra.mxu0 %v1031
        %1277 = vmatpush.bf16.msra.mxu0 %v1023
        %1278 = vmatpush.bf16.msra.mxu0 %v1015
        %1279 = vmatmul.bf16.gmra.mxu0 %v627
        %v1280 = vpop.f32.mrf.mxu0
        %v1281 = vadd.f32 0.0, %v1280
        %v1282 = vpop.f32.mrf.mxu0
        %1283 = vdwg.mxu0
        %1284 = vmatpush.bf16.msra.mxu0 %v1135
        %1285 = vmatpush.bf16.msra.mxu0 %v1127
        %1286 = vmatpush.bf16.msra.mxu0 %v1119
        %1287 = vmatpush.bf16.msra.mxu0 %v1111
        %1288 = vmatpush.bf16.msra.mxu0 %v1103
        %1289 = vmatpush.bf16.msra.mxu0 %v1095
        %1290 = vmatpush.bf16.msra.mxu0 %v1087
        %1291 = vmatpush.bf16.msra.mxu0 %v1079
        %1292 = vmatmul.bf16.gmra.mxu0 %v628
        %v1293 = vpop.f32.mrf.mxu0
        %v1294 = vadd.f32 %v1281, %v1293
        %v1295 = vpop.f32.mrf.mxu0
        %1296 = vdwg.mxu0
        %1297 = vmatpush.bf16.msra.mxu0 %v1072
        %1298 = vmatpush.bf16.msra.mxu0 %v1064
        %1299 = vmatpush.bf16.msra.mxu0 %v1056
        %1300 = vmatpush.bf16.msra.mxu0 %v1048
        %1301 = vmatpush.bf16.msra.mxu0 %v1040
        %1302 = vmatpush.bf16.msra.mxu0 %v1032
        %1303 = vmatpush.bf16.msra.mxu0 %v1024
        %1304 = vmatpush.bf16.msra.mxu0 %v1016
        %1305 = vmatmul.bf16.gmra.mxu0 %v627
        %v1306 = vpop.f32.mrf.mxu0
        %v1307 = vadd.f32 0.0, %v1306
        %v1308 = vpop.f32.mrf.mxu0
        %1309 = vdwg.mxu0
        %1310 = vmatpush.bf16.msra.mxu0 %v1136
        %1311 = vmatpush.bf16.msra.mxu0 %v1128
        %1312 = vmatpush.bf16.msra.mxu0 %v1120
        %1313 = vmatpush.bf16.msra.mxu0 %v1112
        %1314 = vmatpush.bf16.msra.mxu0 %v1104
        %1315 = vmatpush.bf16.msra.mxu0 %v1096
        %1316 = vmatpush.bf16.msra.mxu0 %v1088
        %1317 = vmatpush.bf16.msra.mxu0 %v1080
        %1318 = vmatmul.bf16.gmra.mxu0 %v628
        %v1319 = vpop.f32.mrf.mxu0
        %v1320 = vadd.f32 %v1307, %v1319
        %v1321 = vpop.f32.mrf.mxu0
        %1322 = vdwg.mxu0
        %1323 = vmatpush.bf16.msra.mxu0 %v1073
        %1324 = vmatpush.bf16.msra.mxu0 %v1065
        %1325 = vmatpush.bf16.msra.mxu0 %v1057
        %1326 = vmatpush.bf16.msra.mxu0 %v1049
        %1327 = vmatpush.bf16.msra.mxu0 %v1041
        %1328 = vmatpush.bf16.msra.mxu0 %v1033
        %1329 = vmatpush.bf16.msra.mxu0 %v1025
        %1330 = vmatpush.bf16.msra.mxu0 %v1017
        %1331 = vmatmul.bf16.gmra.mxu0 %v627
        %v1332 = vpop.f32.mrf.mxu0
        %v1333 = vadd.f32 0.0, %v1332
        %v1334 = vpop.f32.mrf.mxu0
        %1335 = vdwg.mxu0
        %1336 = vmatpush.bf16.msra.mxu0 %v1137
        %1337 = vmatpush.bf16.msra.mxu0 %v1129
        %1338 = vmatpush.bf16.msra.mxu0 %v1121
        %1339 = vmatpush.bf16.msra.mxu0 %v1113
        %1340 = vmatpush.bf16.msra.mxu0 %v1105
        %1341 = vmatpush.bf16.msra.mxu0 %v1097
        %1342 = vmatpush.bf16.msra.mxu0 %v1089
        %1343 = vmatpush.bf16.msra.mxu0 %v1081
        %1344 = vmatmul.bf16.gmra.mxu0 %v628
        %v1345 = vpop.f32.mrf.mxu0
        %v1346 = vadd.f32 %v1333, %v1345
        %v1347 = vpop.f32.mrf.mxu0
        %1348 = vdwg.mxu0
        %1349 = vmatpush.bf16.msra.mxu0 %v1074
        %1350 = vmatpush.bf16.msra.mxu0 %v1066
        %1351 = vmatpush.bf16.msra.mxu0 %v1058
        %1352 = vmatpush.bf16.msra.mxu0 %v1050
        %1353 = vmatpush.bf16.msra.mxu0 %v1042
        %1354 = vmatpush.bf16.msra.mxu0 %v1034
        %1355 = vmatpush.bf16.msra.mxu0 %v1026
        %1356 = vmatpush.bf16.msra.mxu0 %v1018
        %1357 = vmatmul.bf16.gmra.mxu0 %v627
        %v1358 = vpop.f32.mrf.mxu0
        %v1359 = vadd.f32 0.0, %v1358
        %v1360 = vpop.f32.mrf.mxu0
        %1361 = vdwg.mxu0
        %1362 = vmatpush.bf16.msra.mxu0 %v1138
        %1363 = vmatpush.bf16.msra.mxu0 %v1130
        %1364 = vmatpush.bf16.msra.mxu0 %v1122
        %1365 = vmatpush.bf16.msra.mxu0 %v1114
        %1366 = vmatpush.bf16.msra.mxu0 %v1106
        %1367 = vmatpush.bf16.msra.mxu0 %v1098
        %1368 = vmatpush.bf16.msra.mxu0 %v1090
        %1369 = vmatpush.bf16.msra.mxu0 %v1082
        %1370 = vmatmul.bf16.gmra.mxu0 %v628
        %v1371 = vpop.f32.mrf.mxu0
        %v1372 = vadd.f32 %v1359, %v1371
        %v1373 = vpop.f32.mrf.mxu0
        %1374 = vdwg.mxu0
        %1375 = vmatpush.bf16.msra.mxu0 %v1075
        %1376 = vmatpush.bf16.msra.mxu0 %v1067
        %1377 = vmatpush.bf16.msra.mxu0 %v1059
        %1378 = vmatpush.bf16.msra.mxu0 %v1051
        %1379 = vmatpush.bf16.msra.mxu0 %v1043
        %1380 = vmatpush.bf16.msra.mxu0 %v1035
        %1381 = vmatpush.bf16.msra.mxu0 %v1027
        %1382 = vmatpush.bf16.msra.mxu0 %v1019
        %1383 = vmatmul.bf16.gmra.mxu0 %v627
        %v1384 = vpop.f32.mrf.mxu0
        %v1385 = vadd.f32 0.0, %v1384
        %v1386 = vpop.f32.mrf.mxu0
        %1387 = vdwg.mxu0
        %1388 = vmatpush.bf16.msra.mxu0 %v1139
        %1389 = vmatpush.bf16.msra.mxu0 %v1131
        %1390 = vmatpush.bf16.msra.mxu0 %v1123
        %1391 = vmatpush.bf16.msra.mxu0 %v1115
        %1392 = vmatpush.bf16.msra.mxu0 %v1107
        %1393 = vmatpush.bf16.msra.mxu0 %v1099
        %1394 = vmatpush.bf16.msra.mxu0 %v1091
        %1395 = vmatpush.bf16.msra.mxu0 %v1083
        %1396 = vmatmul.bf16.gmra.mxu0 %v628
        %v1397 = vpop.f32.mrf.mxu0
        %v1398 = vadd.f32 %v1385, %v1397
        %v1399 = vpop.f32.mrf.mxu0
        %1400 = vdwg.mxu0
        %1401 = vmatpush.bf16.msra.mxu0 %v1076
        %1402 = vmatpush.bf16.msra.mxu0 %v1068
        %1403 = vmatpush.bf16.msra.mxu0 %v1060
        %1404 = vmatpush.bf16.msra.mxu0 %v1052
        %1405 = vmatpush.bf16.msra.mxu0 %v1044
        %1406 = vmatpush.bf16.msra.mxu0 %v1036
        %1407 = vmatpush.bf16.msra.mxu0 %v1028
        %1408 = vmatpush.bf16.msra.mxu0 %v1020
        %1409 = vmatmul.bf16.gmra.mxu0 %v627
        %v1410 = vpop.f32.mrf.mxu0
        %v1411 = vadd.f32 0.0, %v1410
        %v1412 = vpop.f32.mrf.mxu0
        %1413 = vdwg.mxu0
        %1414 = vmatpush.bf16.msra.mxu0 %v1140
        %1415 = vmatpush.bf16.msra.mxu0 %v1132
        %1416 = vmatpush.bf16.msra.mxu0 %v1124
        %1417 = vmatpush.bf16.msra.mxu0 %v1116
        %1418 = vmatpush.bf16.msra.mxu0 %v1108
        %1419 = vmatpush.bf16.msra.mxu0 %v1100
        %1420 = vmatpush.bf16.msra.mxu0 %v1092
        %1421 = vmatpush.bf16.msra.mxu0 %v1084
        %1422 = vmatmul.bf16.gmra.mxu0 %v628
        %v1423 = vpop.f32.mrf.mxu0
        %v1424 = vadd.f32 %v1411, %v1423
        %v1425 = vpop.f32.mrf.mxu0
        %1426 = vdwg.mxu0
        %1427 = vmatpush.bf16.msra.mxu0 %v1077
        %1428 = vmatpush.bf16.msra.mxu0 %v1069
        %1429 = vmatpush.bf16.msra.mxu0 %v1061
        %1430 = vmatpush.bf16.msra.mxu0 %v1053
        %1431 = vmatpush.bf16.msra.mxu0 %v1045
        %1432 = vmatpush.bf16.msra.mxu0 %v1037
        %1433 = vmatpush.bf16.msra.mxu0 %v1029
        %1434 = vmatpush.bf16.msra.mxu0 %v1021
        %1435 = vmatmul.bf16.gmra.mxu0 %v627
        %v1436 = vpop.f32.mrf.mxu0
        %v1437 = vadd.f32 0.0, %v1436
        %v1438 = vpop.f32.mrf.mxu0
        %1439 = vdwg.mxu0
        %1440 = vmatpush.bf16.msra.mxu0 %v1141
        %1441 = vmatpush.bf16.msra.mxu0 %v1133
        %1442 = vmatpush.bf16.msra.mxu0 %v1125
        %1443 = vmatpush.bf16.msra.mxu0 %v1117
        %1444 = vmatpush.bf16.msra.mxu0 %v1109
        %1445 = vmatpush.bf16.msra.mxu0 %v1101
        %1446 = vmatpush.bf16.msra.mxu0 %v1093
        %1447 = vmatpush.bf16.msra.mxu0 %v1085
        %1448 = vmatmul.bf16.gmra.mxu0 %v628
        %v1449 = vpop.f32.mrf.mxu0
        %v1450 = vadd.f32 %v1437, %v1449
        %v1451 = vpop.f32.mrf.mxu0
        %1452 = vdwg.mxu0
        %1453 = vmatpush.bf16.msra.mxu0 %v1078
        %1454 = vmatpush.bf16.msra.mxu0 %v1070
        %1455 = vmatpush.bf16.msra.mxu0 %v1062
        %1456 = vmatpush.bf16.msra.mxu0 %v1054
        %1457 = vmatpush.bf16.msra.mxu0 %v1046
        %1458 = vmatpush.bf16.msra.mxu0 %v1038
        %1459 = vmatpush.bf16.msra.mxu0 %v1030
        %1460 = vmatpush.bf16.msra.mxu0 %v1022
        %1461 = vmatmul.bf16.gmra.mxu0 %v627
        %v1462 = vpop.f32.mrf.mxu0
        %v1463 = vadd.f32 0.0, %v1462
        %v1464 = vpop.f32.mrf.mxu0
        %1465 = vdwg.mxu0
        %1466 = vmatpush.bf16.msra.mxu0 %v1142
        %1467 = vmatpush.bf16.msra.mxu0 %v1134
        %1468 = vmatpush.bf16.msra.mxu0 %v1126
        %1469 = vmatpush.bf16.msra.mxu0 %v1118
        %1470 = vmatpush.bf16.msra.mxu0 %v1110
        %1471 = vmatpush.bf16.msra.mxu0 %v1102
        %1472 = vmatpush.bf16.msra.mxu0 %v1094
        %1473 = vmatpush.bf16.msra.mxu0 %v1086
        %1474 = vmatmul.bf16.gmra.mxu0 %v628
        %v1475 = vpop.f32.mrf.mxu0
        %v1476 = vadd.f32 %v1463, %v1475
        %v1477 = vpop.f32.mrf.mxu0
        %1478 = vdwg.mxu0
        %1479 = vst [vmem:[%s485] sm:$0xff] %v1294
        %1480 = vst [vmem:[%s485 + $0x8] sm:$0xff] %v1320
        %1481 = vst [vmem:[%s485 + $0x10] sm:$0xff] %v1346
        %1482 = vst [vmem:[%s485 + $0x18] sm:$0xff] %v1372
        %1483 = vst [vmem:[%s485 + $0x20] sm:$0xff] %v1398
        %1484 = vst [vmem:[%s485 + $0x28] sm:$0xff] %v1424
        %1485 = vst [vmem:[%s485 + $0x30] sm:$0xff] %v1450
        %1486 = vst [vmem:[%s485 + $0x38] sm:$0xff] %v1476
        %v1487 = vadd.f32 %v1294, %v1320
        %v1488 = vadd.f32 %v1487, %v1346
        %v1489 = vadd.f32 %v1488, %v1372
        %v1490 = vadd.f32 %v1489, %v1398
        %v1491 = vadd.f32 %v1490, %v1424
        %v1492 = vadd.f32 %v1491, %v1450
        %v1493 = vadd.f32 %v1492, %v1476
        %1494 = vadd.xlane.f32.xlu0 %v1493
        %v1495 = vpop.xlane.xlu0 %1494
        %vm1496 = vcmask 7168
        %1497 = vst.msk [vmem:[%s490] sm:$0xff] %vm1496, %v1495
        %v1498 = vmul.f32 %v1294, %v1294
        %v1499 = vmul.f32 %v1320, %v1320
        %v1500 = vmul.f32 %v1346, %v1346
        %v1501 = vmul.f32 %v1372, %v1372
        %v1502 = vmul.f32 %v1398, %v1398
        %v1503 = vmul.f32 %v1424, %v1424
        %v1504 = vmul.f32 %v1450, %v1450
        %v1505 = vmul.f32 %v1476, %v1476
        %v1506 = vadd.f32 %v1498, %v1499
        %v1507 = vadd.f32 %v1506, %v1500
        %v1508 = vadd.f32 %v1507, %v1501
        %v1509 = vadd.f32 %v1508, %v1502
        %v1510 = vadd.f32 %v1509, %v1503
        %v1511 = vadd.f32 %v1510, %v1504
        %v1512 = vadd.f32 %v1511, %v1505
        %1513 = vadd.xlane.f32.xlu0 %v1512
        %v1514 = vpop.xlane.xlu0 %1513
        %1515 = vst.msk [vmem:[%s494] sm:$0xff] %vm1496, %v1514
        %s1516 = smul.u32 8, %s16
        %p1517 = scmp.lt.s32.totalorder %s1516, 255
        %s1518 = scalar_select %p1517, %s1516, 255
        %s1519 = smul.addr %s1518, 8
        %s1520 = scalar_lea.vmem %s2, %s1519
        %p1521 = scmp.lt.s32.totalorder %s16, 31
        %s1522 = scalar_select %p1521, %s16, 31
        %s1523 = smul.addr %s1522, 8
        %s1524 = scalar_lea.vmem %s3, %s1523
        %p1525 = scmp.lt.s32.totalorder %s16, 31
        %s1526 = scalar_select %p1525, %s16, 31
        %s1527 = smul.addr %s1526, 8
        %s1528 = scalar_lea.vmem %s4, %s1527
        // Predicated region
        $region52: #{flow_encoder_forward.8} parent=46 // pred_check
          %p1529 = pneg %p81
        $region53: #{flow_encoder_forward.8} parent=46 // pred_check_branch
          %1531 = sbr.rel (%p1529) target = $region55
        $region54: #{flow_encoder_forward.8} parent=46 // pred_region
          %s1532 = smul.u32 8, %s16
        $region55: #{flow_encoder_forward.8} parent=46 // pred_fallthru
          _
        // Predicated region
        $region56: #{flow_encoder_forward.8} parent=46 // pred_check
          %p1533 = pneg %p107
        $region57: #{flow_encoder_forward.8} parent=46 // pred_check_branch
          %1535 = sbr.rel (%p1533) target = $region59
        $region58: #{flow_encoder_forward.8} parent=46 // pred_region
          _
        $region59: #{flow_encoder_forward.8} parent=46 // pred_fallthru
          _
        // Predicated region
        $region60: #{flow_encoder_forward.8} parent=46 // pred_check
          %p1536 = pneg %p133
        $region61: #{flow_encoder_forward.8} parent=46 // pred_check_branch
          %1538 = sbr.rel (%p1536) target = $region63
        $region62: #{flow_encoder_forward.8} parent=46 // pred_region
          _
        $region63: #{flow_encoder_forward.8} parent=46 // pred_fallthru
          _
      $region47: #{flow_encoder_forward.8} parent=5 // pred_fallthru
        _
      %p1539 = scmp.le.s32.totalorder 2, %s11
      // Predicated region
      $region64: #{flow_encoder_forward.8} parent=5 // pred_check
        %p1540 = pneg %p1539
      $region65: #{flow_encoder_forward.8} parent=5 // pred_check_branch
        %1542 = sbr.rel (%p1540) target = $region67
      $region66: #{flow_encoder_forward.8} parent=5 // pred_region
        %s1543 = ssub.s32 %s11, 2
        // Predicated region
        $region68: #{flow_encoder_forward.8} parent=66 // pred_check
          %p1544 = pneg %p87
        $region69: #{flow_encoder_forward.8} parent=66 // pred_check_branch
          %1546 = sbr.rel (%p1544) target = $region71
        $region70: #{flow_encoder_forward.8} parent=66 // pred_region
          %s1547 = smul.u32 8, %s17
          %p1548 = scmp.lt.s32.totalorder %s1547, 255
          %s1549 = scalar_select %p1548, %s1547, 255
          %s1550 = smul.addr %s1549, 8
          %s1551 = scalar_lea.vmem %s2, %s1550
        $region71: #{flow_encoder_forward.8} parent=66 // pred_fallthru
          _
        // Predicated region
        $region72: #{flow_encoder_forward.8} parent=66 // pred_check
          %p1552 = pneg %p113
        $region73: #{flow_encoder_forward.8} parent=66 // pred_check_branch
          %1554 = sbr.rel (%p1552) target = $region75
        $region74: #{flow_encoder_forward.8} parent=66 // pred_region
          %p1555 = scmp.lt.s32.totalorder %s17, 31
          %s1556 = scalar_select %p1555, %s17, 31
          %s1557 = smul.addr %s1556, 8
          %s1558 = scalar_lea.vmem %s3, %s1557
        $region75: #{flow_encoder_forward.8} parent=66 // pred_fallthru
          _
        // Predicated region
        $region76: #{flow_encoder_forward.8} parent=66 // pred_check
          %p1559 = pneg %p139
        $region77: #{flow_encoder_forward.8} parent=66 // pred_check_branch
          %1561 = sbr.rel (%p1559) target = $region79
        $region78: #{flow_encoder_forward.8} parent=66 // pred_region
          %p1562 = scmp.lt.s32.totalorder %s17, 31
          %s1563 = scalar_select %p1562, %s17, 31
          %s1564 = smul.addr %s1563, 8
          %s1565 = scalar_lea.vmem %s4, %s1564
        $region79: #{flow_encoder_forward.8} parent=66 // pred_fallthru
          _
      $region67: #{flow_encoder_forward.8} parent=5 // pred_fallthru
        _
    $region6: #{flow_encoder_forward.8} parent=1 // loop_footer
      %s15 = sadd.s32 1, %s11
    $region7: #{flow_encoder_forward.8} parent=1 // loop_footer_branch
      %10 = sbr.rel target = $region3
    $region8: #{flow_encoder_forward.8} parent=1 // loop_exit
      _

// kernel: flow_encoder_forward.9
$region0: #{flow_encoder_forward.9}
  #allocation0 [shape = 'u32[]', space=smem, size = 0x4, offset = 0x4, fixed_abs, tag = 'smem constant byte address 0x4 - core index']
  #allocation1 [shape = 'u32[72,128]{1,0:T(1,128)}', space=vmem, size = 0x9000, scoped, tag = 'internal scratch']
  %s0 = inlined_call_operand.vmem [shape: f32[8,32768], index: 0, kind: input, shape index: {}]
  %s1 = inlined_call_operand.vmem [shape: f32[8,1], index: 1, kind: input, shape index: {}]
  %s2 = inlined_call_operand.vmem [shape: f32[8,1], index: 2, kind: input, shape index: {}]
  %s3 = inlined_call_operand.vmem [shape: bf16[8,32768], index: 3, kind: output, shape index: {}]
  %s4 = sld [smem:[#allocation0]]
  $region45: #{flow_encoder_forward.9} parent=0
    _
  %s6 = ssub.s32 1, %s4
  %s7 = scalar_select 0, %s6, %s4
  loop: start=0, step=1, limit=34
  $region2: #{flow_encoder_forward.9} parent=0 // loop_pre_header
    _
  $region3: #{flow_encoder_forward.9} parent=0 // loop_header
    %s9 = sphi 0, %s13
    %p10 = scmp.ge.s32.totalorder %s9, 34
    %s19 = sphi 0, %s21
    %s22 = sphi 0, %s19
    %s23 = sphi 0, %s22
    %s39 = sphi 0, %s23
    %s43 = sphi 0, %s43
    %s45 = sphi 0, %s43
    %s46 = sphi 0, %s45
    %s60 = sphi 0, %s46
    %s64 = sphi 0, %s64
    %s66 = sphi 0, %s64
    %s67 = sphi 0, %s66
    %s81 = sphi 0, %s67
    %s87 = sphi 0, %s89
    %s90 = sphi 0, %s87
    %s91 = sphi 0, %s90
    %s107 = sphi 0, %s91
  $region4: #{flow_encoder_forward.9} parent=0 // loop_header_branch
    %12 = sbr.rel (%p10) target = $region8
  $region5: #{flow_encoder_forward.9} parent=0 // loop_body
    %s14 = ssub.s32 %s9, 1
    %s15 = ssub.s32 %s9, 2
    %s16 = sadd.s32 %s9, 1
    %s17 = ssub.s32 %s9, %s16
    %p18 = scmp.eq.s32.totalorder %s17, 0
    %s20 = sadd.s32 %s19, 1
    %s21 = scalar_select %p18, %s19, %s20
    %p24 = pneg %p18
    %p25 = scmp.eq.s32.totalorder %s9, 31
    %p26 = por %p24, %p25
    %p27 = scmp.ne.s32.totalorder %s19, %s22
    %p28 = scmp.eq.s32.totalorder %s9, 0
    %p29 = por %p27, %p28
    %p30 = scmp.ne.s32.totalorder %s19, %s22
    %p31 = scmp.eq.s32.totalorder %s14, 31
    %p32 = por %p30, %p31
    %p33 = scmp.ne.s32.totalorder %s22, %s23
    %p34 = scmp.eq.s32.totalorder %s14, 0
    %p35 = por %p33, %p34
    %p36 = scmp.ne.s32.totalorder %s22, %s23
    %p37 = scmp.eq.s32.totalorder %s15, 31
    %p38 = por %p36, %p37
    %p40 = scmp.ne.s32.totalorder %s23, %s39
    %p41 = scmp.eq.s32.totalorder %s15, 0
    %p42 = por %p40, %p41
    %s44 = sadd.s32 %s43, 1
    %p47 = scmp.eq.s32.totalorder %s9, 31
    %p48 = scmp.ne.s32.totalorder %s43, %s45
    %p49 = scmp.eq.s32.totalorder %s9, 0
    %p50 = por %p48, %p49
    %p51 = scmp.ne.s32.totalorder %s43, %s45
    %p52 = scmp.eq.s32.totalorder %s14, 31
    %p53 = por %p51, %p52
    %p54 = scmp.ne.s32.totalorder %s45, %s46
    %p55 = scmp.eq.s32.totalorder %s14, 0
    %p56 = por %p54, %p55
    %p57 = scmp.ne.s32.totalorder %s45, %s46
    %p58 = scmp.eq.s32.totalorder %s15, 31
    %p59 = por %p57, %p58
    %p61 = scmp.ne.s32.totalorder %s46, %s60
    %p62 = scmp.eq.s32.totalorder %s15, 0
    %p63 = por %p61, %p62
    %s65 = sadd.s32 %s64, 1
    %p68 = scmp.eq.s32.totalorder %s9, 31
    %p69 = scmp.ne.s32.totalorder %s64, %s66
    %p70 = scmp.eq.s32.totalorder %s9, 0
    %p71 = por %p69, %p70
    %p72 = scmp.ne.s32.totalorder %s64, %s66
    %p73 = scmp.eq.s32.totalorder %s14, 31
    %p74 = por %p72, %p73
    %p75 = scmp.ne.s32.totalorder %s66, %s67
    %p76 = scmp.eq.s32.totalorder %s14, 0
    %p77 = por %p75, %p76
    %p78 = scmp.ne.s32.totalorder %s66, %s67
    %p79 = scmp.eq.s32.totalorder %s15, 31
    %p80 = por %p78, %p79
    %p82 = scmp.ne.s32.totalorder %s67, %s81
    %p83 = scmp.eq.s32.totalorder %s15, 0
    %p84 = por %p82, %p83
    %s85 = ssub.s32 %s9, %s16
    %p86 = scmp.eq.s32.totalorder %s85, 0
    %s88 = sadd.s32 %s87, 1
    %s89 = scalar_select %p86, %s87, %s88
    %p92 = pneg %p86
    %p93 = scmp.eq.s32.totalorder %s9, 31
    %p94 = por %p92, %p93
    %p95 = scmp.ne.s32.totalorder %s87, %s90
    %p96 = scmp.eq.s32.totalorder %s9, 0
    %p97 = por %p95, %p96
    %p98 = scmp.ne.s32.totalorder %s87, %s90
    %p99 = scmp.eq.s32.totalorder %s14, 31
    %p100 = por %p98, %p99
    %p101 = scmp.ne.s32.totalorder %s90, %s91
    %p102 = scmp.eq.s32.totalorder %s14, 0
    %p103 = por %p101, %p102
    %p104 = scmp.ne.s32.totalorder %s90, %s91
    %p105 = scmp.eq.s32.totalorder %s15, 31
    %p106 = por %p104, %p105
    %p108 = scmp.ne.s32.totalorder %s91, %s107
    %p109 = scmp.eq.s32.totalorder %s15, 0
    %p110 = por %p108, %p109
    %p111 = scmp.le.s32.totalorder 1, %s9
    %p112 = scmp.lt.s32.totalorder %s9, 33
    %p113 = pnand %p111, %p112
    %p114 = pneg %p113
    // Predicated region
    $region9: #{flow_encoder_forward.9} parent=5 // pred_check
      _
    $region10: #{flow_encoder_forward.9} parent=5 // pred_check_branch
      %116 = sbr.rel (%p113) target = $region12
    $region11: #{flow_encoder_forward.9} parent=5 // pred_region
      %s117 = ssub.s32 %s9, 1
      // Predicated region
      $region13: #{flow_encoder_forward.9} parent=11 // pred_check
        %p118 = pneg %p56
      $region14: #{flow_encoder_forward.9} parent=11 // pred_check_branch
        %120 = sbr.rel (%p118) target = $region16
      $region15: #{flow_encoder_forward.9} parent=11 // pred_region
        _
      $region16: #{flow_encoder_forward.9} parent=11 // pred_fallthru
        _
      // Predicated region
      $region17: #{flow_encoder_forward.9} parent=11 // pred_check
        %p121 = pneg %p77
      $region18: #{flow_encoder_forward.9} parent=11 // pred_check_branch
        %123 = sbr.rel (%p121) target = $region20
      $region19: #{flow_encoder_forward.9} parent=11 // pred_region
        _
      $region20: #{flow_encoder_forward.9} parent=11 // pred_fallthru
        _
    $region12: #{flow_encoder_forward.9} parent=5 // pred_fallthru
      _
    %p124 = scmp.lt.s32.totalorder %s9, 32
    // Predicated region
    $region21: #{flow_encoder_forward.9} parent=5 // pred_check
      %p125 = pneg %p124
    $region22: #{flow_encoder_forward.9} parent=5 // pred_check_branch
      %127 = sbr.rel (%p125) target = $region24
    $region23: #{flow_encoder_forward.9} parent=5 // pred_region
      // Predicated region
      $region25: #{flow_encoder_forward.9} parent=23 // pred_check
        %p128 = pneg %p29
      $region26: #{flow_encoder_forward.9} parent=23 // pred_check_branch
        %130 = sbr.rel (%p128) target = $region28
      $region27: #{flow_encoder_forward.9} parent=23 // pred_region
        %s131 = smul.u32 8, %s9
        %p132 = scmp.lt.s32.totalorder %s131, 255
        %s133 = scalar_select %p132, %s131, 255
        %s134 = smul.addr %s133, 8
        %s135 = scalar_lea.vmem %s0, %s134
        %s136 = smul.u32 8, %s9
      $region28: #{flow_encoder_forward.9} parent=23 // pred_fallthru
        _
    $region24: #{flow_encoder_forward.9} parent=5 // pred_fallthru
      _
    %p137 = scmp.le.s32.totalorder 1, %s9
    %p138 = scmp.lt.s32.totalorder %s9, 33
    %p139 = pnand %p137, %p138
    %p140 = pneg %p139
    // Predicated region
    $region29: #{flow_encoder_forward.9} parent=5 // pred_check
      _
    $region30: #{flow_encoder_forward.9} parent=5 // pred_check_branch
      %142 = sbr.rel (%p139) target = $region32
    $region31: #{flow_encoder_forward.9} parent=5 // pred_region
      %s143 = ssub.s32 %s9, 1
      %s144 = smul.u32 8, %s14
      %p145 = scmp.lt.s32.totalorder %s144, 255
      %s146 = scalar_select %p145, %s144, 255
      %s147 = smul.addr %s146, 8
      %s148 = scalar_lea.vmem %s0, %s147
      %p149 = pneg %p35
      %p150 = pneg %p32
      %p151 = pneg %p56
      %p152 = pneg %p53
      %p153 = pneg %p77
      %p154 = pneg %p74
      %p155 = pneg %p103
      %p156 = pneg %p100
      %s157 = smul.u32 8, %s14
      %p158 = scmp.lt.s32.totalorder %s157, 255
      %s159 = scalar_select %p158, %s157, 255
      %s160 = smul.addr %s159, 4
      %s161 = scalar_lea.vmem %s3, %s160
      %s162 = smul.u32 8, %s14
      %p163 = scmp.lt.s32.totalorder %s162, 255
      %s164 = scalar_select %p163, %s162, 255
      %s165 = smul.addr %s164, 8
      %s166 = scalar_lea.vmem %s0, %s165
      %s167 = smul.u32 8, %s14
      %s168 = smul.u32 8, %s14
      %p169 = scmp.lt.s32.totalorder %s168, 255
      %s170 = scalar_select %p169, %s168, 255
      %s171 = smul.addr %s170, 4
      %s172 = scalar_lea.vmem %s3, %s171
      %s173 = smul.u32 8, %s14
      %v174 = vld [vmem:[%s166] sm:$0xff]
      %v175 = vld [vmem:[%s166 + $0x8] sm:$0xff]
      %v176 = vld [vmem:[%s166 + $0x10] sm:$0xff]
      %v177 = vld [vmem:[%s166 + $0x18] sm:$0xff]
      %v178 = vld [vmem:[%s166 + $0x20] sm:$0xff]
      %v179 = vld [vmem:[%s166 + $0x28] sm:$0xff]
      %v180 = vld [vmem:[%s166 + $0x30] sm:$0xff]
      %v181 = vld [vmem:[%s166 + $0x38] sm:$0xff]
      %v182 = vld [vmem:[%s1] sm:$0xff]
      %184 = vset.pattern.permute.xlu0 0
      %185 = vperm.xlu0 %184, %v182
      %v186 = vpop.permute.xlu0 %185
      %v188 = vmul.f32 %v174, %v186
      %v189 = vmul.f32 %v175, %v186
      %v190 = vmul.f32 %v176, %v186
      %v191 = vmul.f32 %v177, %v186
      %v192 = vmul.f32 %v178, %v186
      %v193 = vmul.f32 %v179, %v186
      %v194 = vmul.f32 %v180, %v186
      %v195 = vmul.f32 %v181, %v186
      %v196 = vld [vmem:[%s2] sm:$0xff]
      %198 = vset.pattern.permute.xlu0 0
      %199 = vperm.xlu0 %198, %v196
      %v200 = vpop.permute.xlu0 %199
      %v202 = vadd.f32 %v188, %v200
      %v203 = vadd.f32 %v189, %v200
      %v204 = vadd.f32 %v190, %v200
      %v205 = vadd.f32 %v191, %v200
      %v206 = vadd.f32 %v192, %v200
      %v207 = vadd.f32 %v193, %v200
      %v208 = vadd.f32 %v194, %v200
      %v209 = vadd.f32 %v195, %v200
      %vm210 = vcmp.ge.f32.partialorder %v202, 0.0
      %vm211 = vcmp.ge.f32.partialorder %v203, 0.0
      %vm212 = vcmp.ge.f32.partialorder %v204, 0.0
      %vm213 = vcmp.ge.f32.partialorder %v205, 0.0
      %vm214 = vcmp.ge.f32.partialorder %v206, 0.0
      %vm215 = vcmp.ge.f32.partialorder %v207, 0.0
      %vm216 = vcmp.ge.f32.partialorder %v208, 0.0
      %vm217 = vcmp.ge.f32.partialorder %v209, 0.0
      %v218 = vmul.f32 %v202, 0.2
      %v219 = vmul.f32 %v203, 0.2
      %v220 = vmul.f32 %v204, 0.2
      %v221 = vmul.f32 %v205, 0.2
      %v222 = vmul.f32 %v206, 0.2
      %v223 = vmul.f32 %v207, 0.2
      %v224 = vmul.f32 %v208, 0.2
      %v225 = vmul.f32 %v209, 0.2
      %v226 = vsel %vm210, %v202, %v218
      %v227 = vsel %vm211, %v203, %v219
      %v228 = vsel %vm212, %v204, %v220
      %v229 = vsel %vm213, %v205, %v221
      %v230 = vsel %vm214, %v206, %v222
      %v231 = vsel %vm215, %v207, %v223
      %v232 = vsel %vm216, %v208, %v224
      %v233 = vsel %vm217, %v209, %v225
      %v234 = vpack.c.bf16 %v227, %v226
      %v235 = vpack.c.bf16 %v229, %v228
      %v236 = vpack.c.bf16 %v231, %v230
      %v237 = vpack.c.bf16 %v233, %v232
      %238 = vst [vmem:[%s172] sm:$0xff] %v234
      %239 = vst [vmem:[%s172 + $0x8] sm:$0xff] %v235
      %240 = vst [vmem:[%s172 + $0x10] sm:$0xff] %v236
      %241 = vst [vmem:[%s172 + $0x18] sm:$0xff] %v237
      %s242 = smul.u32 8, %s14
      %p243 = scmp.lt.s32.totalorder %s242, 255
      %s244 = scalar_select %p243, %s242, 255
      %s245 = smul.addr %s244, 4
      %s246 = scalar_lea.vmem %s3, %s245
      // Predicated region
      $region33: #{flow_encoder_forward.9} parent=31 // pred_check
        %p247 = pneg %p100
      $region34: #{flow_encoder_forward.9} parent=31 // pred_check_branch
        %249 = sbr.rel (%p247) target = $region36
      $region35: #{flow_encoder_forward.9} parent=31 // pred_region
        %s250 = smul.u32 8, %s14
      $region36: #{flow_encoder_forward.9} parent=31 // pred_fallthru
        _
    $region32: #{flow_encoder_forward.9} parent=5 // pred_fallthru
      _
    %p251 = scmp.le.s32.totalorder 2, %s9
    // Predicated region
    $region37: #{flow_encoder_forward.9} parent=5 // pred_check
      %p252 = pneg %p251
    $region38: #{flow_encoder_forward.9} parent=5 // pred_check_branch
      %254 = sbr.rel (%p252) target = $region40
    $region39: #{flow_encoder_forward.9} parent=5 // pred_region
      %s255 = ssub.s32 %s9, 2
      // Predicated region
      $region41: #{flow_encoder_forward.9} parent=39 // pred_check
        %p256 = pneg %p106
      $region42: #{flow_encoder_forward.9} parent=39 // pred_check_branch
        %258 = sbr.rel (%p256) target = $region44
      $region43: #{flow_encoder_forward.9} parent=39 // pred_region
        %s259 = smul.u32 8, %s15
        %p260 = scmp.lt.s32.totalorder %s259, 255
        %s261 = scalar_select %p260, %s259, 255
        %s262 = smul.addr %s261, 4
        %s263 = scalar_lea.vmem %s3, %s262
      $region44: #{flow_encoder_forward.9} parent=39 // pred_fallthru
        _
    $region40: #{flow_encoder_forward.9} parent=5 // pred_fallthru
      _
  $region6: #{flow_encoder_forward.9} parent=0 // loop_footer
    %s13 = sadd.s32 1, %s9
  $region7: #{flow_encoder_forward.9} parent=0 // loop_footer_branch
    %8 = sbr.rel target = $region3
  $region8: #{flow_encoder_forward.9} parent=0 // loop_exit
    _

// kernel: flow_encoder_forward.11
$region0: #{flow_encoder_forward.11}
  #allocation0 [shape = 'u32[]', space=smem, size = 0x4, offset = 0x4, fixed_abs, tag = 'smem constant byte address 0x4 - core index']
  #allocation1 [shape = 'u32[72,128]{1,0:T(1,128)}', space=vmem, size = 0x9000, scoped, tag = 'internal scratch']
  %s0 = inlined_call_operand.vmem [shape: f32[16,4096], index: 0, kind: input, shape index: {}]
  %s1 = inlined_call_operand.vmem [shape: f32[16,1], index: 1, kind: input, shape index: {}]
  %s2 = inlined_call_operand.vmem [shape: f32[16,1], index: 2, kind: input, shape index: {}]
  %s3 = inlined_call_operand.vmem [shape: bf16[16,4096], index: 3, kind: output, shape index: {}]
  %s4 = sld [smem:[#allocation0]]
  $region87: #{flow_encoder_forward.11} parent=0
    _
  %s6 = ssub.s32 1, %s4
  %s7 = scalar_select 0, %s6, %s4
  $region1: #{flow_encoder_forward.11} parent=0
    #allocation2 [shape = 'u8[131072]{0}', space=vmem, size = 0x20000, scoped, tag = 'input window, operand 0']
    #allocation3 [shape = 'u8[65536]{0}', space=vmem, size = 0x10000, scoped, tag = 'output window, operand 0']
    loop: start=0, step=1, limit=6
    $region2: #{flow_encoder_forward.11} parent=1 // loop_pre_header
      _
    $region3: #{flow_encoder_forward.11} parent=1 // loop_header
      %s9 = sphi 0, %s13
      %p10 = scmp.ge.s32.totalorder %s9, 6
      %s19 = sphi 0, %s21
      %s22 = sphi 0, %s19
      %s23 = sphi 0, %s22
      %s39 = sphi 0, %s23
      %s43 = sphi 0, %s43
      %s45 = sphi 0, %s43
      %s46 = sphi 0, %s45
      %s60 = sphi 0, %s46
      %s64 = sphi 0, %s64
      %s66 = sphi 0, %s64
      %s67 = sphi 0, %s66
      %s81 = sphi 0, %s67
      %s87 = sphi 0, %s89
      %s90 = sphi 0, %s87
      %s91 = sphi 0, %s90
      %s107 = sphi 0, %s91
    $region4: #{flow_encoder_forward.11} parent=1 // loop_header_branch
      %12 = sbr.rel (%p10) target = $region8
    $region5: #{flow_encoder_forward.11} parent=1 // loop_body
      %s14 = ssub.s32 %s9, 1
      %s15 = ssub.s32 %s9, 2
      %s16 = sadd.s32 %s9, 1
      %s17 = ssub.s32 %s9, %s16
      %p18 = scmp.eq.s32.totalorder %s17, 0
      %s20 = sadd.s32 %s19, 1
      %s21 = scalar_select %p18, %s19, %s20
      %p24 = pneg %p18
      %p25 = scmp.eq.s32.totalorder %s9, 3
      %p26 = por %p24, %p25
      %p27 = scmp.ne.s32.totalorder %s19, %s22
      %p28 = scmp.eq.s32.totalorder %s9, 0
      %p29 = por %p27, %p28
      %p30 = scmp.ne.s32.totalorder %s19, %s22
      %p31 = scmp.eq.s32.totalorder %s14, 3
      %p32 = por %p30, %p31
      %p33 = scmp.ne.s32.totalorder %s22, %s23
      %p34 = scmp.eq.s32.totalorder %s14, 0
      %p35 = por %p33, %p34
      %p36 = scmp.ne.s32.totalorder %s22, %s23
      %p37 = scmp.eq.s32.totalorder %s15, 3
      %p38 = por %p36, %p37
      %p40 = scmp.ne.s32.totalorder %s23, %s39
      %p41 = scmp.eq.s32.totalorder %s15, 0
      %p42 = por %p40, %p41
      %s44 = sadd.s32 %s43, 1
      %p47 = scmp.eq.s32.totalorder %s9, 3
      %p48 = scmp.ne.s32.totalorder %s43, %s45
      %p49 = scmp.eq.s32.totalorder %s9, 0
      %p50 = por %p48, %p49
      %p51 = scmp.ne.s32.totalorder %s43, %s45
      %p52 = scmp.eq.s32.totalorder %s14, 3
      %p53 = por %p51, %p52
      %p54 = scmp.ne.s32.totalorder %s45, %s46
      %p55 = scmp.eq.s32.totalorder %s14, 0
      %p56 = por %p54, %p55
      %p57 = scmp.ne.s32.totalorder %s45, %s46
      %p58 = scmp.eq.s32.totalorder %s15, 3
      %p59 = por %p57, %p58
      %p61 = scmp.ne.s32.totalorder %s46, %s60
      %p62 = scmp.eq.s32.totalorder %s15, 0
      %p63 = por %p61, %p62
      %s65 = sadd.s32 %s64, 1
      %p68 = scmp.eq.s32.totalorder %s9, 3
      %p69 = scmp.ne.s32.totalorder %s64, %s66
      %p70 = scmp.eq.s32.totalorder %s9, 0
      %p71 = por %p69, %p70
      %p72 = scmp.ne.s32.totalorder %s64, %s66
      %p73 = scmp.eq.s32.totalorder %s14, 3
      %p74 = por %p72, %p73
      %p75 = scmp.ne.s32.totalorder %s66, %s67
      %p76 = scmp.eq.s32.totalorder %s14, 0
      %p77 = por %p75, %p76
      %p78 = scmp.ne.s32.totalorder %s66, %s67
      %p79 = scmp.eq.s32.totalorder %s15, 3
      %p80 = por %p78, %p79
      %p82 = scmp.ne.s32.totalorder %s67, %s81
      %p83 = scmp.eq.s32.totalorder %s15, 0
      %p84 = por %p82, %p83
      %s85 = ssub.s32 %s9, %s16
      %p86 = scmp.eq.s32.totalorder %s85, 0
      %s88 = sadd.s32 %s87, 1
      %s89 = scalar_select %p86, %s87, %s88
      %p92 = pneg %p86
      %p93 = scmp.eq.s32.totalorder %s9, 3
      %p94 = por %p92, %p93
      %p95 = scmp.ne.s32.totalorder %s87, %s90
      %p96 = scmp.eq.s32.totalorder %s9, 0
      %p97 = por %p95, %p96
      %p98 = scmp.ne.s32.totalorder %s87, %s90
      %p99 = scmp.eq.s32.totalorder %s14, 3
      %p100 = por %p98, %p99
      %p101 = scmp.ne.s32.totalorder %s90, %s91
      %p102 = scmp.eq.s32.totalorder %s14, 0
      %p103 = por %p101, %p102
      %p104 = scmp.ne.s32.totalorder %s90, %s91
      %p105 = scmp.eq.s32.totalorder %s15, 3
      %p106 = por %p104, %p105
      %p108 = scmp.ne.s32.totalorder %s91, %s107
      %p109 = scmp.eq.s32.totalorder %s15, 0
      %p110 = por %p108, %p109
      %p111 = scmp.le.s32.totalorder 1, %s9
      %p112 = scmp.lt.s32.totalorder %s9, 5
      %p113 = pnand %p111, %p112
      %p114 = pneg %p113
      // Predicated region
      $region9: #{flow_encoder_forward.11} parent=5 // pred_check
        _
      $region10: #{flow_encoder_forward.11} parent=5 // pred_check_branch
        %116 = sbr.rel (%p113) target = $region12
      $region11: #{flow_encoder_forward.11} parent=5 // pred_region
        %s117 = ssub.s32 %s9, 1
        // Predicated region
        $region13: #{flow_encoder_forward.11} parent=11 // pred_check
          %p118 = pneg %p56
        $region14: #{flow_encoder_forward.11} parent=11 // pred_check_branch
          %120 = sbr.rel (%p118) target = $region16
        $region15: #{flow_encoder_forward.11} parent=11 // pred_region
          _
        $region16: #{flow_encoder_forward.11} parent=11 // pred_fallthru
          _
        // Predicated region
        $region17: #{flow_encoder_forward.11} parent=11 // pred_check
          %p121 = pneg %p77
        $region18: #{flow_encoder_forward.11} parent=11 // pred_check_branch
          %123 = sbr.rel (%p121) target = $region20
        $region19: #{flow_encoder_forward.11} parent=11 // pred_region
          _
        $region20: #{flow_encoder_forward.11} parent=11 // pred_fallthru
          _
      $region12: #{flow_encoder_forward.11} parent=5 // pred_fallthru
        _
      %p124 = scmp.lt.s32.totalorder %s9, 4
      // Predicated region
      $region21: #{flow_encoder_forward.11} parent=5 // pred_check
        %p125 = pneg %p124
      $region22: #{flow_encoder_forward.11} parent=5 // pred_check_branch
        %127 = sbr.rel (%p125) target = $region24
      $region23: #{flow_encoder_forward.11} parent=5 // pred_region
        // Predicated region
        $region25: #{flow_encoder_forward.11} parent=23 // pred_check
          %p128 = pneg %p29
        $region26: #{flow_encoder_forward.11} parent=23 // pred_check_branch
          %130 = sbr.rel (%p128) target = $region28
        $region27: #{flow_encoder_forward.11} parent=23 // pred_region
          %s131 = sand.u32 %s19, 1
          %s132 = sand.u32 %s19, 1
          %s133 = smul.addr %s132, 128
          %s134 = scalar_lea.vmem [#allocation2], %s133
          %s135 = smul.u32 8, %s9
          %s136 = smul.addr %s135, 8
          %s137 = scalar_lea.vmem %s0, %s136
          // Predicated region
          $region29: #{flow_encoder_forward.11} parent=27 // pred_check
            _
          $region30: #{flow_encoder_forward.11} parent=27 // pred_check_branch
            %139 = sbr.rel (0) target = $region32
          $region31: #{flow_encoder_forward.11} parent=27 // pred_region
            // Predicated region
            $region33: #{flow_encoder_forward.11} parent=31 // pred_check
              _
            $region34: #{flow_encoder_forward.11} parent=31 // pred_check_branch
              %141 = sbr.rel (0) target = $region36
            $region35: #{flow_encoder_forward.11} parent=31 // pred_region
              loop: start=0, step=1, limit=1
              $region37: #{flow_encoder_forward.11} parent=35 // loop_pre_header
                _
              $region38: #{flow_encoder_forward.11} parent=35 // loop_header
                %s143 = sphi 0, %s147
                %p144 = scmp.ge.s32.totalorder %s143, 1
                %s148 = sphi %s137, %s137
                %s149 = sphi %s134, %s134
              $region39: #{flow_encoder_forward.11} parent=35 // loop_header_branch
                %146 = sbr.rel (%p144) target = $region43
              $region40: #{flow_encoder_forward.11} parent=35 // loop_body
                %v150 = vld [vmem:[%s148] sm:$0xff]
                %151 = vst [vmem:[%s149] sm:$0xff] %v150
                %v152 = vld [vmem:[%s148 + $0x8] sm:$0xff]
                %153 = vst [vmem:[%s149 + $0x8] sm:$0xff] %v152
                %v154 = vld [vmem:[%s148 + $0x10] sm:$0xff]
                %155 = vst [vmem:[%s149 + $0x10] sm:$0xff] %v154
                %v156 = vld [vmem:[%s148 + $0x18] sm:$0xff]
                %157 = vst [vmem:[%s149 + $0x18] sm:$0xff] %v156
                %v158 = vld [vmem:[%s148 + $0x20] sm:$0xff]
                %159 = vst [vmem:[%s149 + $0x20] sm:$0xff] %v158
                %v160 = vld [vmem:[%s148 + $0x28] sm:$0xff]
                %161 = vst [vmem:[%s149 + $0x28] sm:$0xff] %v160
                %v162 = vld [vmem:[%s148 + $0x30] sm:$0xff]
                %163 = vst [vmem:[%s149 + $0x30] sm:$0xff] %v162
                %v164 = vld [vmem:[%s148 + $0x38] sm:$0xff]
                %165 = vst [vmem:[%s149 + $0x38] sm:$0xff] %v164
                %v166 = vld [vmem:[%s148 + $0x100] sm:$0xff]
                %167 = vst [vmem:[%s149 + $0x40] sm:$0xff] %v166
                %v168 = vld [vmem:[%s148 + $0x108] sm:$0xff]
                %169 = vst [vmem:[%s149 + $0x48] sm:$0xff] %v168
                %v170 = vld [vmem:[%s148 + $0x110] sm:$0xff]
                %171 = vst [vmem:[%s149 + $0x50] sm:$0xff] %v170
                %v172 = vld [vmem:[%s148 + $0x118] sm:$0xff]
                %173 = vst [vmem:[%s149 + $0x58] sm:$0xff] %v172
                %v174 = vld [vmem:[%s148 + $0x120] sm:$0xff]
                %175 = vst [vmem:[%s149 + $0x60] sm:$0xff] %v174
                %v176 = vld [vmem:[%s148 + $0x128] sm:$0xff]
                %177 = vst [vmem:[%s149 + $0x68] sm:$0xff] %v176
                %v178 = vld [vmem:[%s148 + $0x130] sm:$0xff]
                %179 = vst [vmem:[%s149 + $0x70] sm:$0xff] %v178
                %v180 = vld [vmem:[%s148 + $0x138] sm:$0xff]
                %181 = vst [vmem:[%s149 + $0x78] sm:$0xff] %v180
              $region41: #{flow_encoder_forward.11} parent=35 // loop_footer
                %s147 = sadd.s32 1, %s143
              $region42: #{flow_encoder_forward.11} parent=35 // loop_footer_branch
                %142 = sbr.rel target = $region38
              $region43: #{flow_encoder_forward.11} parent=35 // loop_exit
                _
            $region36: #{flow_encoder_forward.11} parent=31 // pred_fallthru
              _
            // Predicated region
            $region44: #{flow_encoder_forward.11} parent=31 // pred_check
              _
            $region45: #{flow_encoder_forward.11} parent=31 // pred_check_branch
              %183 = sbr.rel target = $region47
            $region46: #{flow_encoder_forward.11} parent=31 // pred_region
              _
            $region47: #{flow_encoder_forward.11} parent=31 // pred_fallthru
              _
          $region32: #{flow_encoder_forward.11} parent=27 // pred_fallthru
            _
          %184 = vnop
        $region28: #{flow_encoder_forward.11} parent=23 // pred_fallthru
          _
      $region24: #{flow_encoder_forward.11} parent=5 // pred_fallthru
        _
      %p185 = scmp.le.s32.totalorder 1, %s9
      %p186 = scmp.lt.s32.totalorder %s9, 5
      %p187 = pnand %p185, %p186
      %p188 = pneg %p187
      // Predicated region
      $region48: #{flow_encoder_forward.11} parent=5 // pred_check
        _
      $region49: #{flow_encoder_forward.11} parent=5 // pred_check_branch
        %190 = sbr.rel (%p187) target = $region51
      $region50: #{flow_encoder_forward.11} parent=5 // pred_region
        %s191 = ssub.s32 %s9, 1
        %s192 = sand.u32 %s22, 1
        %s193 = sand.u32 %s22, 1
        %s194 = smul.addr %s193, 128
        %s195 = scalar_lea.vmem [#allocation2], %s194
        // Predicated region
        $region52: #{flow_encoder_forward.11} parent=50 // pred_check
          %p196 = pneg %p35
        $region53: #{flow_encoder_forward.11} parent=50 // pred_check_branch
          %198 = sbr.rel (%p196) target = $region55
        $region54: #{flow_encoder_forward.11} parent=50 // pred_region
          _
        $region55: #{flow_encoder_forward.11} parent=50 // pred_fallthru
          _
        %s199 = sand.u32 %s22, 1
        %s200 = sand.u32 %s22, 1
        %s201 = smul.addr %s200, 128
        %s202 = scalar_lea.vmem [#allocation2], %s201
        %p203 = pneg %p35
        %p204 = pneg %p32
        %p205 = pneg %p56
        %p206 = pneg %p53
        %p207 = pneg %p77
        %p208 = pneg %p74
        %p209 = pneg %p103
        %p210 = pneg %p100
        %s211 = sand.u32 %s90, 1
        %s212 = sand.u32 %s90, 1
        %s213 = smul.addr %s212, 64
        %s214 = scalar_lea.vmem [#allocation3], %s213
        %s215 = smul.u32 8, %s14
        %s216 = smul.u32 8, %s14
        %v217 = vld [vmem:[%s195] sm:$0xff]
        %v218 = vld [vmem:[%s195 + $0x8] sm:$0xff]
        %v219 = vld [vmem:[%s195 + $0x10] sm:$0xff]
        %v220 = vld [vmem:[%s195 + $0x18] sm:$0xff]
        %v221 = vld [vmem:[%s195 + $0x20] sm:$0xff]
        %v222 = vld [vmem:[%s195 + $0x28] sm:$0xff]
        %v223 = vld [vmem:[%s195 + $0x30] sm:$0xff]
        %v224 = vld [vmem:[%s195 + $0x38] sm:$0xff]
        %v225 = vld [vmem:[%s195 + $0x40] sm:$0xff]
        %v226 = vld [vmem:[%s195 + $0x48] sm:$0xff]
        %v227 = vld [vmem:[%s195 + $0x50] sm:$0xff]
        %v228 = vld [vmem:[%s195 + $0x58] sm:$0xff]
        %v229 = vld [vmem:[%s195 + $0x60] sm:$0xff]
        %v230 = vld [vmem:[%s195 + $0x68] sm:$0xff]
        %v231 = vld [vmem:[%s195 + $0x70] sm:$0xff]
        %v232 = vld [vmem:[%s195 + $0x78] sm:$0xff]
        %v233 = vld [vmem:[%s1] sm:$0xff]
        %v234 = vld [vmem:[%s1 + $0x8] sm:$0xff]
        %236 = vset.pattern.permute.xlu0 0
        %237 = vperm.xlu0 %236, %v233
        %v238 = vpop.permute.xlu0 %237
        %241 = vset.pattern.permute.xlu0 0
        %242 = vperm.xlu0 %241, %v234
        %v243 = vpop.permute.xlu0 %242
        %v245 = vmul.f32 %v217, %v238
        %v246 = vmul.f32 %v218, %v238
        %v247 = vmul.f32 %v219, %v238
        %v248 = vmul.f32 %v220, %v238
        %v249 = vmul.f32 %v221, %v238
        %v250 = vmul.f32 %v222, %v238
        %v251 = vmul.f32 %v223, %v238
        %v252 = vmul.f32 %v224, %v238
        %v253 = vmul.f32 %v225, %v243
        %v254 = vmul.f32 %v226, %v243
        %v255 = vmul.f32 %v227, %v243
        %v256 = vmul.f32 %v228, %v243
        %v257 = vmul.f32 %v229, %v243
        %v258 = vmul.f32 %v230, %v243
        %v259 = vmul.f32 %v231, %v243
        %v260 = vmul.f32 %v232, %v243
        %v261 = vld [vmem:[%s2] sm:$0xff]
        %v262 = vld [vmem:[%s2 + $0x8] sm:$0xff]
        %264 = vset.pattern.permute.xlu0 0
        %265 = vperm.xlu0 %264, %v261
        %v266 = vpop.permute.xlu0 %265
        %269 = vset.pattern.permute.xlu0 0
        %270 = vperm.xlu0 %269, %v262
        %v271 = vpop.permute.xlu0 %270
        %v273 = vadd.f32 %v245, %v266
        %v274 = vadd.f32 %v246, %v266
        %v275 = vadd.f32 %v247, %v266
        %v276 = vadd.f32 %v248, %v266
        %v277 = vadd.f32 %v249, %v266
        %v278 = vadd.f32 %v250, %v266
        %v279 = vadd.f32 %v251, %v266
        %v280 = vadd.f32 %v252, %v266
        %v281 = vadd.f32 %v253, %v271
        %v282 = vadd.f32 %v254, %v271
        %v283 = vadd.f32 %v255, %v271
        %v284 = vadd.f32 %v256, %v271
        %v285 = vadd.f32 %v257, %v271
        %v286 = vadd.f32 %v258, %v271
        %v287 = vadd.f32 %v259, %v271
        %v288 = vadd.f32 %v260, %v271
        %vm289 = vcmp.ge.f32.partialorder %v273, 0.0
        %vm290 = vcmp.ge.f32.partialorder %v274, 0.0
        %vm291 = vcmp.ge.f32.partialorder %v275, 0.0
        %vm292 = vcmp.ge.f32.partialorder %v276, 0.0
        %vm293 = vcmp.ge.f32.partialorder %v277, 0.0
        %vm294 = vcmp.ge.f32.partialorder %v278, 0.0
        %vm295 = vcmp.ge.f32.partialorder %v279, 0.0
        %vm296 = vcmp.ge.f32.partialorder %v280, 0.0
        %vm297 = vcmp.ge.f32.partialorder %v281, 0.0
        %vm298 = vcmp.ge.f32.partialorder %v282, 0.0
        %vm299 = vcmp.ge.f32.partialorder %v283, 0.0
        %vm300 = vcmp.ge.f32.partialorder %v284, 0.0
        %vm301 = vcmp.ge.f32.partialorder %v285, 0.0
        %vm302 = vcmp.ge.f32.partialorder %v286, 0.0
        %vm303 = vcmp.ge.f32.partialorder %v287, 0.0
        %vm304 = vcmp.ge.f32.partialorder %v288, 0.0
        %v305 = vmul.f32 %v273, 0.2
        %v306 = vmul.f32 %v274, 0.2
        %v307 = vmul.f32 %v275, 0.2
        %v308 = vmul.f32 %v276, 0.2
        %v309 = vmul.f32 %v277, 0.2
        %v310 = vmul.f32 %v278, 0.2
        %v311 = vmul.f32 %v279, 0.2
        %v312 = vmul.f32 %v280, 0.2
        %v313 = vmul.f32 %v281, 0.2
        %v314 = vmul.f32 %v282, 0.2
        %v315 = vmul.f32 %v283, 0.2
        %v316 = vmul.f32 %v284, 0.2
        %v317 = vmul.f32 %v285, 0.2
        %v318 = vmul.f32 %v286, 0.2
        %v319 = vmul.f32 %v287, 0.2
        %v320 = vmul.f32 %v288, 0.2
        %v321 = vsel %vm289, %v273, %v305
        %v322 = vsel %vm290, %v274, %v306
        %v323 = vsel %vm291, %v275, %v307
        %v324 = vsel %vm292, %v276, %v308
        %v325 = vsel %vm293, %v277, %v309
        %v326 = vsel %vm294, %v278, %v310
        %v327 = vsel %vm295, %v279, %v311
        %v328 = vsel %vm296, %v280, %v312
        %v329 = vsel %vm297, %v281, %v313
        %v330 = vsel %vm298, %v282, %v314
        %v331 = vsel %vm299, %v283, %v315
        %v332 = vsel %vm300, %v284, %v316
        %v333 = vsel %vm301, %v285, %v317
        %v334 = vsel %vm302, %v286, %v318
        %v335 = vsel %vm303, %v287, %v319
        %v336 = vsel %vm304, %v288, %v320
        %v337 = vpack.c.bf16 %v322, %v321
        %v338 = vpack.c.bf16 %v324, %v323
        %v339 = vpack.c.bf16 %v326, %v325
        %v340 = vpack.c.bf16 %v328, %v327
        %v341 = vpack.c.bf16 %v330, %v329
        %v342 = vpack.c.bf16 %v332, %v331
        %v343 = vpack.c.bf16 %v334, %v333
        %v344 = vpack.c.bf16 %v336, %v335
        %345 = vst [vmem:[%s214] sm:$0xff] %v337
        %346 = vst [vmem:[%s214 + $0x8] sm:$0xff] %v338
        %347 = vst [vmem:[%s214 + $0x10] sm:$0xff] %v339
        %348 = vst [vmem:[%s214 + $0x18] sm:$0xff] %v340
        %349 = vst [vmem:[%s214 + $0x20] sm:$0xff] %v341
        %350 = vst [vmem:[%s214 + $0x28] sm:$0xff] %v342
        %351 = vst [vmem:[%s214 + $0x30] sm:$0xff] %v343
        %352 = vst [vmem:[%s214 + $0x38] sm:$0xff] %v344
        %s353 = sand.u32 %s90, 1
        %s354 = sand.u32 %s90, 1
        %s355 = smul.addr %s354, 64
        %s356 = scalar_lea.vmem [#allocation3], %s355
        // Predicated region
        $region56: #{flow_encoder_forward.11} parent=50 // pred_check
          %p357 = pneg %p100
        $region57: #{flow_encoder_forward.11} parent=50 // pred_check_branch
          %359 = sbr.rel (%p357) target = $region59
        $region58: #{flow_encoder_forward.11} parent=50 // pred_region
          %s360 = smul.u32 8, %s14
          %s361 = smul.addr %s360, 4
          %s362 = scalar_lea.vmem %s3, %s361
          // Predicated region
          $region60: #{flow_encoder_forward.11} parent=58 // pred_check
            _
          $region61: #{flow_encoder_forward.11} parent=58 // pred_check_branch
            %364 = sbr.rel (0) target = $region63
          $region62: #{flow_encoder_forward.11} parent=58 // pred_region
            // Predicated region
            $region64: #{flow_encoder_forward.11} parent=62 // pred_check
              _
            $region65: #{flow_encoder_forward.11} parent=62 // pred_check_branch
              %366 = sbr.rel (0) target = $region67
            $region66: #{flow_encoder_forward.11} parent=62 // pred_region
              loop: start=0, step=1, limit=1
              $region68: #{flow_encoder_forward.11} parent=66 // loop_pre_header
                _
              $region69: #{flow_encoder_forward.11} parent=66 // loop_header
                %s368 = sphi 0, %s372
                %p369 = scmp.ge.s32.totalorder %s368, 1
                %s373 = sphi %s356, %s356
                %s374 = sphi %s362, %s362
              $region70: #{flow_encoder_forward.11} parent=66 // loop_header_branch
                %371 = sbr.rel (%p369) target = $region74
              $region71: #{flow_encoder_forward.11} parent=66 // loop_body
                %v375 = vld [vmem:[%s373] sm:$0xff]
                %376 = vst [vmem:[%s374] sm:$0xff] %v375
                %v377 = vld [vmem:[%s373 + $0x8] sm:$0xff]
                %378 = vst [vmem:[%s374 + $0x8] sm:$0xff] %v377
                %v379 = vld [vmem:[%s373 + $0x10] sm:$0xff]
                %380 = vst [vmem:[%s374 + $0x10] sm:$0xff] %v379
                %v381 = vld [vmem:[%s373 + $0x18] sm:$0xff]
                %382 = vst [vmem:[%s374 + $0x18] sm:$0xff] %v381
                %v383 = vld [vmem:[%s373 + $0x20] sm:$0xff]
                %384 = vst [vmem:[%s374 + $0x80] sm:$0xff] %v383
                %v385 = vld [vmem:[%s373 + $0x28] sm:$0xff]
                %386 = vst [vmem:[%s374 + $0x88] sm:$0xff] %v385
                %v387 = vld [vmem:[%s373 + $0x30] sm:$0xff]
                %388 = vst [vmem:[%s374 + $0x90] sm:$0xff] %v387
                %v389 = vld [vmem:[%s373 + $0x38] sm:$0xff]
                %390 = vst [vmem:[%s374 + $0x98] sm:$0xff] %v389
              $region72: #{flow_encoder_forward.11} parent=66 // loop_footer
                %s372 = sadd.s32 1, %s368
              $region73: #{flow_encoder_forward.11} parent=66 // loop_footer_branch
                %367 = sbr.rel target = $region69
              $region74: #{flow_encoder_forward.11} parent=66 // loop_exit
                _
            $region67: #{flow_encoder_forward.11} parent=62 // pred_fallthru
              _
            // Predicated region
            $region75: #{flow_encoder_forward.11} parent=62 // pred_check
              _
            $region76: #{flow_encoder_forward.11} parent=62 // pred_check_branch
              %392 = sbr.rel target = $region78
            $region77: #{flow_encoder_forward.11} parent=62 // pred_region
              _
            $region78: #{flow_encoder_forward.11} parent=62 // pred_fallthru
              _
          $region63: #{flow_encoder_forward.11} parent=58 // pred_fallthru
            _
          %393 = vnop
        $region59: #{flow_encoder_forward.11} parent=50 // pred_fallthru
          _
      $region51: #{flow_encoder_forward.11} parent=5 // pred_fallthru
        _
      %p394 = scmp.le.s32.totalorder 2, %s9
      // Predicated region
      $region79: #{flow_encoder_forward.11} parent=5 // pred_check
        %p395 = pneg %p394
      $region80: #{flow_encoder_forward.11} parent=5 // pred_check_branch
        %397 = sbr.rel (%p395) target = $region82
      $region81: #{flow_encoder_forward.11} parent=5 // pred_region
        %s398 = ssub.s32 %s9, 2
        // Predicated region
        $region83: #{flow_encoder_forward.11} parent=81 // pred_check
          %p399 = pneg %p106
        $region84: #{flow_encoder_forward.11} parent=81 // pred_check_branch
          %401 = sbr.rel (%p399) target = $region86
        $region85: #{flow_encoder_forward.11} parent=81 // pred_region
          %s402 = sand.u32 %s91, 1
          %s403 = sand.u32 %s91, 1
          %s404 = smul.addr %s403, 64
          %s405 = scalar_lea.vmem [#allocation3], %s404
        $region86: #{flow_encoder_forward.11} parent=81 // pred_fallthru
          _
      $region82: #{flow_encoder_forward.11} parent=5 // pred_fallthru
        _
    $region6: #{flow_encoder_forward.11} parent=1 // loop_footer
      %s13 = sadd.s32 1, %s9
    $region7: #{flow_encoder_forward.11} parent=1 // loop_footer_branch
      %8 = sbr.rel target = $region3
    $region8: #{flow_encoder_forward.11} parent=1 // loop_exit
      _

// kernel: flow_encoder_forward.10
$region0: #{flow_encoder_forward.10}
  #allocation0 [shape = 'u32[]', space=smem, size = 0x4, offset = 0x4, fixed_abs, tag = 'smem constant byte address 0x4 - core index']
  #allocation1 [shape = 'u32[72,128]{1,0:T(1,128)}', space=vmem, size = 0x9000, scoped, tag = 'internal scratch']
  %s0 = inlined_call_operand.vmem [shape: bf16[16,512], index: 0, kind: input, shape index: {}]
  %s1 = inlined_call_operand.vmem [shape: bf16[512,4096], index: 1, kind: input, shape index: {}]
  %s2 = inlined_call_operand.vmem [shape: f32[16,4096], index: 2, kind: output, shape index: {0}]
  %s3 = inlined_call_operand.vmem [shape: f32[4,16,1], index: 3, kind: output, shape index: {1}]
  %s4 = inlined_call_operand.vmem [shape: f32[4,16,1], index: 4, kind: output, shape index: {2}]
  %5 = xla_tuple %s2, %s3, %s4
  %s6 = sld [smem:[#allocation0]]
  $region99: #{flow_encoder_forward.10} parent=0
    _
  %s8 = ssub.s32 1, %s6
  %s9 = scalar_select 0, %s8, %s6
  $region1: #{flow_encoder_forward.10} parent=0
    #allocation2 [shape = 'u8[2097152]{0}', space=vmem, size = 0x200000, scoped, tag = 'input window, operand 1']
    #allocation3 [shape = 'u8[131072]{0}', space=vmem, size = 0x20000, scoped, tag = 'output window, operand 0']
    loop: start=0, step=1, limit=6
    $region2: #{flow_encoder_forward.10} parent=1 // loop_pre_header
      _
    $region3: #{flow_encoder_forward.10} parent=1 // loop_header
      %s11 = sphi 0, %s15
      %p12 = scmp.ge.s32.totalorder %s11, 6
      %s19 = sphi 0, %s19
      %s21 = sphi 0, %s19
      %s22 = sphi 0, %s21
      %s36 = sphi 0, %s22
      %s42 = sphi 0, %s44
      %s45 = sphi 0, %s42
      %s46 = sphi 0, %s45
      %s62 = sphi 0, %s46
      %s68 = sphi 0, %s70
      %s71 = sphi 0, %s68
      %s72 = sphi 0, %s71
      %s88 = sphi 0, %s72
      %s94 = sphi 0, %s96
      %s97 = sphi 0, %s94
      %s98 = sphi 0, %s97
      %s114 = sphi 0, %s98
      %s120 = sphi 0, %s122
      %s123 = sphi 0, %s120
      %s124 = sphi 0, %s123
      %s140 = sphi 0, %s124
    $region4: #{flow_encoder_forward.10} parent=1 // loop_header_branch
      %14 = sbr.rel (%p12) target = $region8
    $region5: #{flow_encoder_forward.10} parent=1 // loop_body
      %s16 = ssub.s32 %s11, 1
      %s17 = ssub.s32 %s11, 2
      %s18 = sadd.s32 %s11, 1
      %s20 = sadd.s32 %s19, 1
      %p23 = scmp.eq.s32.totalorder %s11, 3
      %p24 = scmp.ne.s32.totalorder %s19, %s21
      %p25 = scmp.eq.s32.totalorder %s11, 0
      %p26 = por %p24, %p25
      %p27 = scmp.ne.s32.totalorder %s19, %s21
      %p28 = scmp.eq.s32.totalorder %s16, 3
      %p29 = por %p27, %p28
      %p30 = scmp.ne.s32.totalorder %s21, %s22
      %p31 = scmp.eq.s32.totalorder %s16, 0
      %p32 = por %p30, %p31
      %p33 = scmp.ne.s32.totalorder %s21, %s22
      %p34 = scmp.eq.s32.totalorder %s17, 3
      %p35 = por %p33, %p34
      %p37 = scmp.ne.s32.totalorder %s22, %s36
      %p38 = scmp.eq.s32.totalorder %s17, 0
      %p39 = por %p37, %p38
      %s40 = ssub.s32 %s11, %s18
      %p41 = scmp.eq.s32.totalorder %s40, 0
      %s43 = sadd.s32 %s42, 1
      %s44 = scalar_select %p41, %s42, %s43
      %p47 = pneg %p41
      %p48 = scmp.eq.s32.totalorder %s11, 3
      %p49 = por %p47, %p48
      %p50 = scmp.ne.s32.totalorder %s42, %s45
      %p51 = scmp.eq.s32.totalorder %s11, 0
      %p52 = por %p50, %p51
      %p53 = scmp.ne.s32.totalorder %s42, %s45
      %p54 = scmp.eq.s32.totalorder %s16, 3
      %p55 = por %p53, %p54
      %p56 = scmp.ne.s32.totalorder %s45, %s46
      %p57 = scmp.eq.s32.totalorder %s16, 0
      %p58 = por %p56, %p57
      %p59 = scmp.ne.s32.totalorder %s45, %s46
      %p60 = scmp.eq.s32.totalorder %s17, 3
      %p61 = por %p59, %p60
      %p63 = scmp.ne.s32.totalorder %s46, %s62
      %p64 = scmp.eq.s32.totalorder %s17, 0
      %p65 = por %p63, %p64
      %s66 = ssub.s32 %s11, %s18
      %p67 = scmp.eq.s32.totalorder %s66, 0
      %s69 = sadd.s32 %s68, 1
      %s70 = scalar_select %p67, %s68, %s69
      %p73 = pneg %p67
      %p74 = scmp.eq.s32.totalorder %s11, 3
      %p75 = por %p73, %p74
      %p76 = scmp.ne.s32.totalorder %s68, %s71
      %p77 = scmp.eq.s32.totalorder %s11, 0
      %p78 = por %p76, %p77
      %p79 = scmp.ne.s32.totalorder %s68, %s71
      %p80 = scmp.eq.s32.totalorder %s16, 3
      %p81 = por %p79, %p80
      %p82 = scmp.ne.s32.totalorder %s71, %s72
      %p83 = scmp.eq.s32.totalorder %s16, 0
      %p84 = por %p82, %p83
      %p85 = scmp.ne.s32.totalorder %s71, %s72
      %p86 = scmp.eq.s32.totalorder %s17, 3
      %p87 = por %p85, %p86
      %p89 = scmp.ne.s32.totalorder %s72, %s88
      %p90 = scmp.eq.s32.totalorder %s17, 0
      %p91 = por %p89, %p90
      %s92 = ssub.s32 %s11, %s18
      %p93 = scmp.eq.s32.totalorder %s92, 0
      %s95 = sadd.s32 %s94, 1
      %s96 = scalar_select %p93, %s94, %s95
      %p99 = pneg %p93
      %p100 = scmp.eq.s32.totalorder %s11, 3
      %p101 = por %p99, %p100
      %p102 = scmp.ne.s32.totalorder %s94, %s97
      %p103 = scmp.eq.s32.totalorder %s11, 0
      %p104 = por %p102, %p103
      %p105 = scmp.ne.s32.totalorder %s94, %s97
      %p106 = scmp.eq.s32.totalorder %s16, 3
      %p107 = por %p105, %p106
      %p108 = scmp.ne.s32.totalorder %s97, %s98
      %p109 = scmp.eq.s32.totalorder %s16, 0
      %p110 = por %p108, %p109
      %p111 = scmp.ne.s32.totalorder %s97, %s98
      %p112 = scmp.eq.s32.totalorder %s17, 3
      %p113 = por %p111, %p112
      %p115 = scmp.ne.s32.totalorder %s98, %s114
      %p116 = scmp.eq.s32.totalorder %s17, 0
      %p117 = por %p115, %p116
      %s118 = ssub.s32 %s11, %s18
      %p119 = scmp.eq.s32.totalorder %s118, 0
      %s121 = sadd.s32 %s120, 1
      %s122 = scalar_select %p119, %s120, %s121
      %p125 = pneg %p119
      %p126 = scmp.eq.s32.totalorder %s11, 3
      %p127 = por %p125, %p126
      %p128 = scmp.ne.s32.totalorder %s120, %s123
      %p129 = scmp.eq.s32.totalorder %s11, 0
      %p130 = por %p128, %p129
      %p131 = scmp.ne.s32.totalorder %s120, %s123
      %p132 = scmp.eq.s32.totalorder %s16, 3
      %p133 = por %p131, %p132
      %p134 = scmp.ne.s32.totalorder %s123, %s124
      %p135 = scmp.eq.s32.totalorder %s16, 0
      %p136 = por %p134, %p135
      %p137 = scmp.ne.s32.totalorder %s123, %s124
      %p138 = scmp.eq.s32.totalorder %s17, 3
      %p139 = por %p137, %p138
      %p141 = scmp.ne.s32.totalorder %s124, %s140
      %p142 = scmp.eq.s32.totalorder %s17, 0
      %p143 = por %p141, %p142
      %p144 = scmp.le.s32.totalorder 1, %s11
      %p145 = scmp.lt.s32.totalorder %s11, 5
      %p146 = pnand %p144, %p145
      %p147 = pneg %p146
      // Predicated region
      $region9: #{flow_encoder_forward.10} parent=5 // pred_check
        _
      $region10: #{flow_encoder_forward.10} parent=5 // pred_check_branch
        %149 = sbr.rel (%p146) target = $region12
      $region11: #{flow_encoder_forward.10} parent=5 // pred_region
        %s150 = ssub.s32 %s11, 1
        // Predicated region
        $region13: #{flow_encoder_forward.10} parent=11 // pred_check
          %p151 = pneg %p32
        $region14: #{flow_encoder_forward.10} parent=11 // pred_check_branch
          %153 = sbr.rel (%p151) target = $region16
        $region15: #{flow_encoder_forward.10} parent=11 // pred_region
          _
        $region16: #{flow_encoder_forward.10} parent=11 // pred_fallthru
          _
      $region12: #{flow_encoder_forward.10} parent=5 // pred_fallthru
        _
      %p154 = scmp.lt.s32.totalorder %s11, 4
      // Predicated region
      $region17: #{flow_encoder_forward.10} parent=5 // pred_check
        %p155 = pneg %p154
      $region18: #{flow_encoder_forward.10} parent=5 // pred_check_branch
        %157 = sbr.rel (%p155) target = $region20
      $region19: #{flow_encoder_forward.10} parent=5 // pred_region
        // Predicated region
        $region21: #{flow_encoder_forward.10} parent=19 // pred_check
          %p158 = pneg %p52
        $region22: #{flow_encoder_forward.10} parent=19 // pred_check_branch
          %160 = sbr.rel (%p158) target = $region24
        $region23: #{flow_encoder_forward.10} parent=19 // pred_region
          %s161 = sand.u32 %s42, 1
          %s162 = sand.u32 %s42, 1
          %s163 = smul.addr %s162, 2048
          %s164 = scalar_lea.vmem [#allocation2], %s163
          %s165 = smul.u32 8, %s11
          %s166 = smul.addr %s165, 4
          %s167 = scalar_lea.vmem %s1, %s166
          // Predicated region
          $region25: #{flow_encoder_forward.10} parent=23 // pred_check
            _
          $region26: #{flow_encoder_forward.10} parent=23 // pred_check_branch
            %169 = sbr.rel (0) target = $region28
          $region27: #{flow_encoder_forward.10} parent=23 // pred_region
            // Predicated region
            $region29: #{flow_encoder_forward.10} parent=27 // pred_check
              _
            $region30: #{flow_encoder_forward.10} parent=27 // pred_check_branch
              %171 = sbr.rel (0) target = $region32
            $region31: #{flow_encoder_forward.10} parent=27 // pred_region
              loop: start=0, step=1, limit=1
              $region33: #{flow_encoder_forward.10} parent=31 // loop_pre_header
                _
              $region34: #{flow_encoder_forward.10} parent=31 // loop_header
                %s173 = sphi 0, %s177
                %p174 = scmp.ge.s32.totalorder %s173, 1
                %s178 = sphi %s167, %s167
                %s179 = sphi %s164, %s164
              $region35: #{flow_encoder_forward.10} parent=31 // loop_header_branch
                %176 = sbr.rel (%p174) target = $region39
              $region36: #{flow_encoder_forward.10} parent=31 // loop_body
                %v180 = vld [vmem:[%s178] sm:$0xff]
                %181 = vst [vmem:[%s179] sm:$0xff] %v180
                %v182 = vld [vmem:[%s178 + $0x8] sm:$0xff]
                %183 = vst [vmem:[%s179 + $0x8] sm:$0xff] %v182
                %v184 = vld [vmem:[%s178 + $0x10] sm:$0xff]
                %185 = vst [vmem:[%s179 + $0x10] sm:$0xff] %v184
                %v186 = vld [vmem:[%s178 + $0x18] sm:$0xff]
                %187 = vst [vmem:[%s179 + $0x18] sm:$0xff] %v186
                %v188 = vld [vmem:[%s178 + $0x80] sm:$0xff]
                %189 = vst [vmem:[%s179 + $0x20] sm:$0xff] %v188
                %v190 = vld [vmem:[%s178 + $0x88] sm:$0xff]
                %191 = vst [vmem:[%s179 + $0x28] sm:$0xff] %v190
                %v192 = vld [vmem:[%s178 + $0x90] sm:$0xff]
                %193 = vst [vmem:[%s179 + $0x30] sm:$0xff] %v192
                %v194 = vld [vmem:[%s178 + $0x98] sm:$0xff]
                %195 = vst [vmem:[%s179 + $0x38] sm:$0xff] %v194
                %v196 = vld [vmem:[%s178 + $0x100] sm:$0xff]
                %197 = vst [vmem:[%s179 + $0x40] sm:$0xff] %v196
                %v198 = vld [vmem:[%s178 + $0x108] sm:$0xff]
                %199 = vst [vmem:[%s179 + $0x48] sm:$0xff] %v198
                %v200 = vld [vmem:[%s178 + $0x110] sm:$0xff]
                %201 = vst [vmem:[%s179 + $0x50] sm:$0xff] %v200
                %v202 = vld [vmem:[%s178 + $0x118] sm:$0xff]
                %203 = vst [vmem:[%s179 + $0x58] sm:$0xff] %v202
                %v204 = vld [vmem:[%s178 + $0x180] sm:$0xff]
                %205 = vst [vmem:[%s179 + $0x60] sm:$0xff] %v204
                %v206 = vld [vmem:[%s178 + $0x188] sm:$0xff]
                %207 = vst [vmem:[%s179 + $0x68] sm:$0xff] %v206
                %v208 = vld [vmem:[%s178 + $0x190] sm:$0xff]
                %209 = vst [vmem:[%s179 + $0x70] sm:$0xff] %v208
                %v210 = vld [vmem:[%s178 + $0x198] sm:$0xff]
                %211 = vst [vmem:[%s179 + $0x78] sm:$0xff] %v210
                %v212 = vld [vmem:[%s178 + $0x200] sm:$0xff]
                %213 = vst [vmem:[%s179 + $0x80] sm:$0xff] %v212
                %v214 = vld [vmem:[%s178 + $0x208] sm:$0xff]
                %215 = vst [vmem:[%s179 + $0x88] sm:$0xff] %v214
                %v216 = vld [vmem:[%s178 + $0x210] sm:$0xff]
                %217 = vst [vmem:[%s179 + $0x90] sm:$0xff] %v216
                %v218 = vld [vmem:[%s178 + $0x218] sm:$0xff]
                %219 = vst [vmem:[%s179 + $0x98] sm:$0xff] %v218
                %v220 = vld [vmem:[%s178 + $0x280] sm:$0xff]
                %221 = vst [vmem:[%s179 + $0xa0] sm:$0xff] %v220
                %v222 = vld [vmem:[%s178 + $0x288] sm:$0xff]
                %223 = vst [vmem:[%s179 + $0xa8] sm:$0xff] %v222
                %v224 = vld [vmem:[%s178 + $0x290] sm:$0xff]
                %225 = vst [vmem:[%s179 + $0xb0] sm:$0xff] %v224
                %v226 = vld [vmem:[%s178 + $0x298] sm:$0xff]
                %227 = vst [vmem:[%s179 + $0xb8] sm:$0xff] %v226
                %v228 = vld [vmem:[%s178 + $0x300] sm:$0xff]
                %229 = vst [vmem:[%s179 + $0xc0] sm:$0xff] %v228
                %v230 = vld [vmem:[%s178 + $0x308] sm:$0xff]
                %231 = vst [vmem:[%s179 + $0xc8] sm:$0xff] %v230
                %v232 = vld [vmem:[%s178 + $0x310] sm:$0xff]
                %233 = vst [vmem:[%s179 + $0xd0] sm:$0xff] %v232
                %v234 = vld [vmem:[%s178 + $0x318] sm:$0xff]
                %235 = vst [vmem:[%s179 + $0xd8] sm:$0xff] %v234
                %v236 = vld [vmem:[%s178 + $0x380] sm:$0xff]
                %237 = vst [vmem:[%s179 + $0xe0] sm:$0xff] %v236
                %v238 = vld [vmem:[%s178 + $0x388] sm:$0xff]
                %239 = vst [vmem:[%s179 + $0xe8] sm:$0xff] %v238
                %v240 = vld [vmem:[%s178 + $0x390] sm:$0xff]
                %241 = vst [vmem:[%s179 + $0xf0] sm:$0xff] %v240
                %v242 = vld [vmem:[%s178 + $0x398] sm:$0xff]
                %243 = vst [vmem:[%s179 + $0xf8] sm:$0xff] %v242
                %v244 = vld [vmem:[%s178 + $0x400] sm:$0xff]
                %245 = vst [vmem:[%s179 + $0x100] sm:$0xff] %v244
                %v246 = vld [vmem:[%s178 + $0x408] sm:$0xff]
                %247 = vst [vmem:[%s179 + $0x108] sm:$0xff] %v246
                %v248 = vld [vmem:[%s178 + $0x410] sm:$0xff]
                %249 = vst [vmem:[%s179 + $0x110] sm:$0xff] %v248
                %v250 = vld [vmem:[%s178 + $0x418] sm:$0xff]
                %251 = vst [vmem:[%s179 + $0x118] sm:$0xff] %v250
                %v252 = vld [vmem:[%s178 + $0x480] sm:$0xff]
                %253 = vst [vmem:[%s179 + $0x120] sm:$0xff] %v252
                %v254 = vld [vmem:[%s178 + $0x488] sm:$0xff]
                %255 = vst [vmem:[%s179 + $0x128] sm:$0xff] %v254
                %v256 = vld [vmem:[%s178 + $0x490] sm:$0xff]
                %257 = vst [vmem:[%s179 + $0x130] sm:$0xff] %v256
                %v258 = vld [vmem:[%s178 + $0x498] sm:$0xff]
                %259 = vst [vmem:[%s179 + $0x138] sm:$0xff] %v258
                %v260 = vld [vmem:[%s178 + $0x500] sm:$0xff]
                %261 = vst [vmem:[%s179 + $0x140] sm:$0xff] %v260
                %v262 = vld [vmem:[%s178 + $0x508] sm:$0xff]
                %263 = vst [vmem:[%s179 + $0x148] sm:$0xff] %v262
                %v264 = vld [vmem:[%s178 + $0x510] sm:$0xff]
                %265 = vst [vmem:[%s179 + $0x150] sm:$0xff] %v264
                %v266 = vld [vmem:[%s178 + $0x518] sm:$0xff]
                %267 = vst [vmem:[%s179 + $0x158] sm:$0xff] %v266
                %v268 = vld [vmem:[%s178 + $0x580] sm:$0xff]
                %269 = vst [vmem:[%s179 + $0x160] sm:$0xff] %v268
                %v270 = vld [vmem:[%s178 + $0x588] sm:$0xff]
                %271 = vst [vmem:[%s179 + $0x168] sm:$0xff] %v270
                %v272 = vld [vmem:[%s178 + $0x590] sm:$0xff]
                %273 = vst [vmem:[%s179 + $0x170] sm:$0xff] %v272
                %v274 = vld [vmem:[%s178 + $0x598] sm:$0xff]
                %275 = vst [vmem:[%s179 + $0x178] sm:$0xff] %v274
                %v276 = vld [vmem:[%s178 + $0x600] sm:$0xff]
                %277 = vst [vmem:[%s179 + $0x180] sm:$0xff] %v276
                %v278 = vld [vmem:[%s178 + $0x608] sm:$0xff]
                %279 = vst [vmem:[%s179 + $0x188] sm:$0xff] %v278
                %v280 = vld [vmem:[%s178 + $0x610] sm:$0xff]
                %281 = vst [vmem:[%s179 + $0x190] sm:$0xff] %v280
                %v282 = vld [vmem:[%s178 + $0x618] sm:$0xff]
                %283 = vst [vmem:[%s179 + $0x198] sm:$0xff] %v282
                %v284 = vld [vmem:[%s178 + $0x680] sm:$0xff]
                %285 = vst [vmem:[%s179 + $0x1a0] sm:$0xff] %v284
                %v286 = vld [vmem:[%s178 + $0x688] sm:$0xff]
                %287 = vst [vmem:[%s179 + $0x1a8] sm:$0xff] %v286
                %v288 = vld [vmem:[%s178 + $0x690] sm:$0xff]
                %289 = vst [vmem:[%s179 + $0x1b0] sm:$0xff] %v288
                %v290 = vld [vmem:[%s178 + $0x698] sm:$0xff]
                %291 = vst [vmem:[%s179 + $0x1b8] sm:$0xff] %v290
                %v292 = vld [vmem:[%s178 + $0x700] sm:$0xff]
                %293 = vst [vmem:[%s179 + $0x1c0] sm:$0xff] %v292
                %v294 = vld [vmem:[%s178 + $0x708] sm:$0xff]
                %295 = vst [vmem:[%s179 + $0x1c8] sm:$0xff] %v294
                %v296 = vld [vmem:[%s178 + $0x710] sm:$0xff]
                %297 = vst [vmem:[%s179 + $0x1d0] sm:$0xff] %v296
                %v298 = vld [vmem:[%s178 + $0x718] sm:$0xff]
                %299 = vst [vmem:[%s179 + $0x1d8] sm:$0xff] %v298
                %v300 = vld [vmem:[%s178 + $0x780] sm:$0xff]
                %301 = vst [vmem:[%s179 + $0x1e0] sm:$0xff] %v300
                %v302 = vld [vmem:[%s178 + $0x788] sm:$0xff]
                %303 = vst [vmem:[%s179 + $0x1e8] sm:$0xff] %v302
                %v304 = vld [vmem:[%s178 + $0x790] sm:$0xff]
                %305 = vst [vmem:[%s179 + $0x1f0] sm:$0xff] %v304
                %v306 = vld [vmem:[%s178 + $0x798] sm:$0xff]
                %307 = vst [vmem:[%s179 + $0x1f8] sm:$0xff] %v306
                %v308 = vld [vmem:[%s178 + $0x800] sm:$0xff]
                %309 = vst [vmem:[%s179 + $0x200] sm:$0xff] %v308
                %v310 = vld [vmem:[%s178 + $0x808] sm:$0xff]
                %311 = vst [vmem:[%s179 + $0x208] sm:$0xff] %v310
                %v312 = vld [vmem:[%s178 + $0x810] sm:$0xff]
                %313 = vst [vmem:[%s179 + $0x210] sm:$0xff] %v312
                %v314 = vld [vmem:[%s178 + $0x818] sm:$0xff]
                %315 = vst [vmem:[%s179 + $0x218] sm:$0xff] %v314
                %v316 = vld [vmem:[%s178 + $0x880] sm:$0xff]
                %317 = vst [vmem:[%s179 + $0x220] sm:$0xff] %v316
                %v318 = vld [vmem:[%s178 + $0x888] sm:$0xff]
                %319 = vst [vmem:[%s179 + $0x228] sm:$0xff] %v318
                %v320 = vld [vmem:[%s178 + $0x890] sm:$0xff]
                %321 = vst [vmem:[%s179 + $0x230] sm:$0xff] %v320
                %v322 = vld [vmem:[%s178 + $0x898] sm:$0xff]
                %323 = vst [vmem:[%s179 + $0x238] sm:$0xff] %v322
                %v324 = vld [vmem:[%s178 + $0x900] sm:$0xff]
                %325 = vst [vmem:[%s179 + $0x240] sm:$0xff] %v324
                %v326 = vld [vmem:[%s178 + $0x908] sm:$0xff]
                %327 = vst [vmem:[%s179 + $0x248] sm:$0xff] %v326
                %v328 = vld [vmem:[%s178 + $0x910] sm:$0xff]
                %329 = vst [vmem:[%s179 + $0x250] sm:$0xff] %v328
                %v330 = vld [vmem:[%s178 + $0x918] sm:$0xff]
                %331 = vst [vmem:[%s179 + $0x258] sm:$0xff] %v330
                %v332 = vld [vmem:[%s178 + $0x980] sm:$0xff]
                %333 = vst [vmem:[%s179 + $0x260] sm:$0xff] %v332
                %v334 = vld [vmem:[%s178 + $0x988] sm:$0xff]
                %335 = vst [vmem:[%s179 + $0x268] sm:$0xff] %v334
                %v336 = vld [vmem:[%s178 + $0x990] sm:$0xff]
                %337 = vst [vmem:[%s179 + $0x270] sm:$0xff] %v336
                %v338 = vld [vmem:[%s178 + $0x998] sm:$0xff]
                %339 = vst [vmem:[%s179 + $0x278] sm:$0xff] %v338
                %v340 = vld [vmem:[%s178 + $0xa00] sm:$0xff]
                %341 = vst [vmem:[%s179 + $0x280] sm:$0xff] %v340
                %v342 = vld [vmem:[%s178 + $0xa08] sm:$0xff]
                %343 = vst [vmem:[%s179 + $0x288] sm:$0xff] %v342
                %v344 = vld [vmem:[%s178 + $0xa10] sm:$0xff]
                %345 = vst [vmem:[%s179 + $0x290] sm:$0xff] %v344
                %v346 = vld [vmem:[%s178 + $0xa18] sm:$0xff]
                %347 = vst [vmem:[%s179 + $0x298] sm:$0xff] %v346
                %v348 = vld [vmem:[%s178 + $0xa80] sm:$0xff]
                %349 = vst [vmem:[%s179 + $0x2a0] sm:$0xff] %v348
                %v350 = vld [vmem:[%s178 + $0xa88] sm:$0xff]
                %351 = vst [vmem:[%s179 + $0x2a8] sm:$0xff] %v350
                %v352 = vld [vmem:[%s178 + $0xa90] sm:$0xff]
                %353 = vst [vmem:[%s179 + $0x2b0] sm:$0xff] %v352
                %v354 = vld [vmem:[%s178 + $0xa98] sm:$0xff]
                %355 = vst [vmem:[%s179 + $0x2b8] sm:$0xff] %v354
                %v356 = vld [vmem:[%s178 + $0xb00] sm:$0xff]
                %357 = vst [vmem:[%s179 + $0x2c0] sm:$0xff] %v356
                %v358 = vld [vmem:[%s178 + $0xb08] sm:$0xff]
                %359 = vst [vmem:[%s179 + $0x2c8] sm:$0xff] %v358
                %v360 = vld [vmem:[%s178 + $0xb10] sm:$0xff]
                %361 = vst [vmem:[%s179 + $0x2d0] sm:$0xff] %v360
                %v362 = vld [vmem:[%s178 + $0xb18] sm:$0xff]
                %363 = vst [vmem:[%s179 + $0x2d8] sm:$0xff] %v362
                %v364 = vld [vmem:[%s178 + $0xb80] sm:$0xff]
                %365 = vst [vmem:[%s179 + $0x2e0] sm:$0xff] %v364
                %v366 = vld [vmem:[%s178 + $0xb88] sm:$0xff]
                %367 = vst [vmem:[%s179 + $0x2e8] sm:$0xff] %v366
                %v368 = vld [vmem:[%s178 + $0xb90] sm:$0xff]
                %369 = vst [vmem:[%s179 + $0x2f0] sm:$0xff] %v368
                %v370 = vld [vmem:[%s178 + $0xb98] sm:$0xff]
                %371 = vst [vmem:[%s179 + $0x2f8] sm:$0xff] %v370
                %v372 = vld [vmem:[%s178 + $0xc00] sm:$0xff]
                %373 = vst [vmem:[%s179 + $0x300] sm:$0xff] %v372
                %v374 = vld [vmem:[%s178 + $0xc08] sm:$0xff]
                %375 = vst [vmem:[%s179 + $0x308] sm:$0xff] %v374
                %v376 = vld [vmem:[%s178 + $0xc10] sm:$0xff]
                %377 = vst [vmem:[%s179 + $0x310] sm:$0xff] %v376
                %v378 = vld [vmem:[%s178 + $0xc18] sm:$0xff]
                %379 = vst [vmem:[%s179 + $0x318] sm:$0xff] %v378
                %v380 = vld [vmem:[%s178 + $0xc80] sm:$0xff]
                %381 = vst [vmem:[%s179 + $0x320] sm:$0xff] %v380
                %v382 = vld [vmem:[%s178 + $0xc88] sm:$0xff]
                %383 = vst [vmem:[%s179 + $0x328] sm:$0xff] %v382
                %v384 = vld [vmem:[%s178 + $0xc90] sm:$0xff]
                %385 = vst [vmem:[%s179 + $0x330] sm:$0xff] %v384
                %v386 = vld [vmem:[%s178 + $0xc98] sm:$0xff]
                %387 = vst [vmem:[%s179 + $0x338] sm:$0xff] %v386
                %v388 = vld [vmem:[%s178 + $0xd00] sm:$0xff]
                %389 = vst [vmem:[%s179 + $0x340] sm:$0xff] %v388
                %v390 = vld [vmem:[%s178 + $0xd08] sm:$0xff]
                %391 = vst [vmem:[%s179 + $0x348] sm:$0xff] %v390
                %v392 = vld [vmem:[%s178 + $0xd10] sm:$0xff]
                %393 = vst [vmem:[%s179 + $0x350] sm:$0xff] %v392
                %v394 = vld [vmem:[%s178 + $0xd18] sm:$0xff]
                %395 = vst [vmem:[%s179 + $0x358] sm:$0xff] %v394
                %v396 = vld [vmem:[%s178 + $0xd80] sm:$0xff]
                %397 = vst [vmem:[%s179 + $0x360] sm:$0xff] %v396
                %v398 = vld [vmem:[%s178 + $0xd88] sm:$0xff]
                %399 = vst [vmem:[%s179 + $0x368] sm:$0xff] %v398
                %v400 = vld [vmem:[%s178 + $0xd90] sm:$0xff]
                %401 = vst [vmem:[%s179 + $0x370] sm:$0xff] %v400
                %v402 = vld [vmem:[%s178 + $0xd98] sm:$0xff]
                %403 = vst [vmem:[%s179 + $0x378] sm:$0xff] %v402
                %v404 = vld [vmem:[%s178 + $0xe00] sm:$0xff]
                %405 = vst [vmem:[%s179 + $0x380] sm:$0xff] %v404
                %v406 = vld [vmem:[%s178 + $0xe08] sm:$0xff]
                %407 = vst [vmem:[%s179 + $0x388] sm:$0xff] %v406
                %v408 = vld [vmem:[%s178 + $0xe10] sm:$0xff]
                %409 = vst [vmem:[%s179 + $0x390] sm:$0xff] %v408
                %v410 = vld [vmem:[%s178 + $0xe18] sm:$0xff]
                %411 = vst [vmem:[%s179 + $0x398] sm:$0xff] %v410
                %v412 = vld [vmem:[%s178 + $0xe80] sm:$0xff]
                %413 = vst [vmem:[%s179 + $0x3a0] sm:$0xff] %v412
                %v414 = vld [vmem:[%s178 + $0xe88] sm:$0xff]
                %415 = vst [vmem:[%s179 + $0x3a8] sm:$0xff] %v414
                %v416 = vld [vmem:[%s178 + $0xe90] sm:$0xff]
                %417 = vst [vmem:[%s179 + $0x3b0] sm:$0xff] %v416
                %v418 = vld [vmem:[%s178 + $0xe98] sm:$0xff]
                %419 = vst [vmem:[%s179 + $0x3b8] sm:$0xff] %v418
                %v420 = vld [vmem:[%s178 + $0xf00] sm:$0xff]
                %421 = vst [vmem:[%s179 + $0x3c0] sm:$0xff] %v420
                %v422 = vld [vmem:[%s178 + $0xf08] sm:$0xff]
                %423 = vst [vmem:[%s179 + $0x3c8] sm:$0xff] %v422
                %v424 = vld [vmem:[%s178 + $0xf10] sm:$0xff]
                %425 = vst [vmem:[%s179 + $0x3d0] sm:$0xff] %v424
                %v426 = vld [vmem:[%s178 + $0xf18] sm:$0xff]
                %427 = vst [vmem:[%s179 + $0x3d8] sm:$0xff] %v426
                %v428 = vld [vmem:[%s178 + $0xf80] sm:$0xff]
                %429 = vst [vmem:[%s179 + $0x3e0] sm:$0xff] %v428
                %v430 = vld [vmem:[%s178 + $0xf88] sm:$0xff]
                %431 = vst [vmem:[%s179 + $0x3e8] sm:$0xff] %v430
                %v432 = vld [vmem:[%s178 + $0xf90] sm:$0xff]
                %433 = vst [vmem:[%s179 + $0x3f0] sm:$0xff] %v432
                %v434 = vld [vmem:[%s178 + $0xf98] sm:$0xff]
                %435 = vst [vmem:[%s179 + $0x3f8] sm:$0xff] %v434
                %v436 = vld [vmem:[%s178 + $0x1000] sm:$0xff]
                %437 = vst [vmem:[%s179 + $0x400] sm:$0xff] %v436
                %v438 = vld [vmem:[%s178 + $0x1008] sm:$0xff]
                %439 = vst [vmem:[%s179 + $0x408] sm:$0xff] %v438
                %v440 = vld [vmem:[%s178 + $0x1010] sm:$0xff]
                %441 = vst [vmem:[%s179 + $0x410] sm:$0xff] %v440
                %v442 = vld [vmem:[%s178 + $0x1018] sm:$0xff]
                %443 = vst [vmem:[%s179 + $0x418] sm:$0xff] %v442
                %v444 = vld [vmem:[%s178 + $0x1080] sm:$0xff]
                %445 = vst [vmem:[%s179 + $0x420] sm:$0xff] %v444
                %v446 = vld [vmem:[%s178 + $0x1088] sm:$0xff]
                %447 = vst [vmem:[%s179 + $0x428] sm:$0xff] %v446
                %v448 = vld [vmem:[%s178 + $0x1090] sm:$0xff]
                %449 = vst [vmem:[%s179 + $0x430] sm:$0xff] %v448
                %v450 = vld [vmem:[%s178 + $0x1098] sm:$0xff]
                %451 = vst [vmem:[%s179 + $0x438] sm:$0xff] %v450
                %v452 = vld [vmem:[%s178 + $0x1100] sm:$0xff]
                %453 = vst [vmem:[%s179 + $0x440] sm:$0xff] %v452
                %v454 = vld [vmem:[%s178 + $0x1108] sm:$0xff]
                %455 = vst [vmem:[%s179 + $0x448] sm:$0xff] %v454
                %v456 = vld [vmem:[%s178 + $0x1110] sm:$0xff]
                %457 = vst [vmem:[%s179 + $0x450] sm:$0xff] %v456
                %v458 = vld [vmem:[%s178 + $0x1118] sm:$0xff]
                %459 = vst [vmem:[%s179 + $0x458] sm:$0xff] %v458
                %v460 = vld [vmem:[%s178 + $0x1180] sm:$0xff]
                %461 = vst [vmem:[%s179 + $0x460] sm:$0xff] %v460
                %v462 = vld [vmem:[%s178 + $0x1188] sm:$0xff]
                %463 = vst [vmem:[%s179 + $0x468] sm:$0xff] %v462
                %v464 = vld [vmem:[%s178 + $0x1190] sm:$0xff]
                %465 = vst [vmem:[%s179 + $0x470] sm:$0xff] %v464
                %v466 = vld [vmem:[%s178 + $0x1198] sm:$0xff]
                %467 = vst [vmem:[%s179 + $0x478] sm:$0xff] %v466
                %v468 = vld [vmem:[%s178 + $0x1200] sm:$0xff]
                %469 = vst [vmem:[%s179 + $0x480] sm:$0xff] %v468
                %v470 = vld [vmem:[%s178 + $0x1208] sm:$0xff]
                %471 = vst [vmem:[%s179 + $0x488] sm:$0xff] %v470
                %v472 = vld [vmem:[%s178 + $0x1210] sm:$0xff]
                %473 = vst [vmem:[%s179 + $0x490] sm:$0xff] %v472
                %v474 = vld [vmem:[%s178 + $0x1218] sm:$0xff]
                %475 = vst [vmem:[%s179 + $0x498] sm:$0xff] %v474
                %v476 = vld [vmem:[%s178 + $0x1280] sm:$0xff]
                %477 = vst [vmem:[%s179 + $0x4a0] sm:$0xff] %v476
                %v478 = vld [vmem:[%s178 + $0x1288] sm:$0xff]
                %479 = vst [vmem:[%s179 + $0x4a8] sm:$0xff] %v478
                %v480 = vld [vmem:[%s178 + $0x1290] sm:$0xff]
                %481 = vst [vmem:[%s179 + $0x4b0] sm:$0xff] %v480
                %v482 = vld [vmem:[%s178 + $0x1298] sm:$0xff]
                %483 = vst [vmem:[%s179 + $0x4b8] sm:$0xff] %v482
                %v484 = vld [vmem:[%s178 + $0x1300] sm:$0xff]
                %485 = vst [vmem:[%s179 + $0x4c0] sm:$0xff] %v484
                %v486 = vld [vmem:[%s178 + $0x1308] sm:$0xff]
                %487 = vst [vmem:[%s179 + $0x4c8] sm:$0xff] %v486
                %v488 = vld [vmem:[%s178 + $0x1310] sm:$0xff]
                %489 = vst [vmem:[%s179 + $0x4d0] sm:$0xff] %v488
                %v490 = vld [vmem:[%s178 + $0x1318] sm:$0xff]
                %491 = vst [vmem:[%s179 + $0x4d8] sm:$0xff] %v490
                %v492 = vld [vmem:[%s178 + $0x1380] sm:$0xff]
                %493 = vst [vmem:[%s179 + $0x4e0] sm:$0xff] %v492
                %v494 = vld [vmem:[%s178 + $0x1388] sm:$0xff]
                %495 = vst [vmem:[%s179 + $0x4e8] sm:$0xff] %v494
                %v496 = vld [vmem:[%s178 + $0x1390] sm:$0xff]
                %497 = vst [vmem:[%s179 + $0x4f0] sm:$0xff] %v496
                %v498 = vld [vmem:[%s178 + $0x1398] sm:$0xff]
                %499 = vst [vmem:[%s179 + $0x4f8] sm:$0xff] %v498
                %v500 = vld [vmem:[%s178 + $0x1400] sm:$0xff]
                %501 = vst [vmem:[%s179 + $0x500] sm:$0xff] %v500
                %v502 = vld [vmem:[%s178 + $0x1408] sm:$0xff]
                %503 = vst [vmem:[%s179 + $0x508] sm:$0xff] %v502
                %v504 = vld [vmem:[%s178 + $0x1410] sm:$0xff]
                %505 = vst [vmem:[%s179 + $0x510] sm:$0xff] %v504
                %v506 = vld [vmem:[%s178 + $0x1418] sm:$0xff]
                %507 = vst [vmem:[%s179 + $0x518] sm:$0xff] %v506
                %v508 = vld [vmem:[%s178 + $0x1480] sm:$0xff]
                %509 = vst [vmem:[%s179 + $0x520] sm:$0xff] %v508
                %v510 = vld [vmem:[%s178 + $0x1488] sm:$0xff]
                %511 = vst [vmem:[%s179 + $0x528] sm:$0xff] %v510
                %v512 = vld [vmem:[%s178 + $0x1490] sm:$0xff]
                %513 = vst [vmem:[%s179 + $0x530] sm:$0xff] %v512
                %v514 = vld [vmem:[%s178 + $0x1498] sm:$0xff]
                %515 = vst [vmem:[%s179 + $0x538] sm:$0xff] %v514
                %v516 = vld [vmem:[%s178 + $0x1500] sm:$0xff]
                %517 = vst [vmem:[%s179 + $0x540] sm:$0xff] %v516
                %v518 = vld [vmem:[%s178 + $0x1508] sm:$0xff]
                %519 = vst [vmem:[%s179 + $0x548] sm:$0xff] %v518
                %v520 = vld [vmem:[%s178 + $0x1510] sm:$0xff]
                %521 = vst [vmem:[%s179 + $0x550] sm:$0xff] %v520
                %v522 = vld [vmem:[%s178 + $0x1518] sm:$0xff]
                %523 = vst [vmem:[%s179 + $0x558] sm:$0xff] %v522
                %v524 = vld [vmem:[%s178 + $0x1580] sm:$0xff]
                %525 = vst [vmem:[%s179 + $0x560] sm:$0xff] %v524
                %v526 = vld [vmem:[%s178 + $0x1588] sm:$0xff]
                %527 = vst [vmem:[%s179 + $0x568] sm:$0xff] %v526
                %v528 = vld [vmem:[%s178 + $0x1590] sm:$0xff]
                %529 = vst [vmem:[%s179 + $0x570] sm:$0xff] %v528
                %v530 = vld [vmem:[%s178 + $0x1598] sm:$0xff]
                %531 = vst [vmem:[%s179 + $0x578] sm:$0xff] %v530
                %v532 = vld [vmem:[%s178 + $0x1600] sm:$0xff]
                %533 = vst [vmem:[%s179 + $0x580] sm:$0xff] %v532
                %v534 = vld [vmem:[%s178 + $0x1608] sm:$0xff]
                %535 = vst [vmem:[%s179 + $0x588] sm:$0xff] %v534
                %v536 = vld [vmem:[%s178 + $0x1610] sm:$0xff]
                %537 = vst [vmem:[%s179 + $0x590] sm:$0xff] %v536
                %v538 = vld [vmem:[%s178 + $0x1618] sm:$0xff]
                %539 = vst [vmem:[%s179 + $0x598] sm:$0xff] %v538
                %v540 = vld [vmem:[%s178 + $0x1680] sm:$0xff]
                %541 = vst [vmem:[%s179 + $0x5a0] sm:$0xff] %v540
                %v542 = vld [vmem:[%s178 + $0x1688] sm:$0xff]
                %543 = vst [vmem:[%s179 + $0x5a8] sm:$0xff] %v542
                %v544 = vld [vmem:[%s178 + $0x1690] sm:$0xff]
                %545 = vst [vmem:[%s179 + $0x5b0] sm:$0xff] %v544
                %v546 = vld [vmem:[%s178 + $0x1698] sm:$0xff]
                %547 = vst [vmem:[%s179 + $0x5b8] sm:$0xff] %v546
                %v548 = vld [vmem:[%s178 + $0x1700] sm:$0xff]
                %549 = vst [vmem:[%s179 + $0x5c0] sm:$0xff] %v548
                %v550 = vld [vmem:[%s178 + $0x1708] sm:$0xff]
                %551 = vst [vmem:[%s179 + $0x5c8] sm:$0xff] %v550
                %v552 = vld [vmem:[%s178 + $0x1710] sm:$0xff]
                %553 = vst [vmem:[%s179 + $0x5d0] sm:$0xff] %v552
                %v554 = vld [vmem:[%s178 + $0x1718] sm:$0xff]
                %555 = vst [vmem:[%s179 + $0x5d8] sm:$0xff] %v554
                %v556 = vld [vmem:[%s178 + $0x1780] sm:$0xff]
                %557 = vst [vmem:[%s179 + $0x5e0] sm:$0xff] %v556
                %v558 = vld [vmem:[%s178 + $0x1788] sm:$0xff]
                %559 = vst [vmem:[%s179 + $0x5e8] sm:$0xff] %v558
                %v560 = vld [vmem:[%s178 + $0x1790] sm:$0xff]
                %561 = vst [vmem:[%s179 + $0x5f0] sm:$0xff] %v560
                %v562 = vld [vmem:[%s178 + $0x1798] sm:$0xff]
                %563 = vst [vmem:[%s179 + $0x5f8] sm:$0xff] %v562
                %v564 = vld [vmem:[%s178 + $0x1800] sm:$0xff]
                %565 = vst [vmem:[%s179 + $0x600] sm:$0xff] %v564
                %v566 = vld [vmem:[%s178 + $0x1808] sm:$0xff]
                %567 = vst [vmem:[%s179 + $0x608] sm:$0xff] %v566
                %v568 = vld [vmem:[%s178 + $0x1810] sm:$0xff]
                %569 = vst [vmem:[%s179 + $0x610] sm:$0xff] %v568
                %v570 = vld [vmem:[%s178 + $0x1818] sm:$0xff]
                %571 = vst [vmem:[%s179 + $0x618] sm:$0xff] %v570
                %v572 = vld [vmem:[%s178 + $0x1880] sm:$0xff]
                %573 = vst [vmem:[%s179 + $0x620] sm:$0xff] %v572
                %v574 = vld [vmem:[%s178 + $0x1888] sm:$0xff]
                %575 = vst [vmem:[%s179 + $0x628] sm:$0xff] %v574
                %v576 = vld [vmem:[%s178 + $0x1890] sm:$0xff]
                %577 = vst [vmem:[%s179 + $0x630] sm:$0xff] %v576
                %v578 = vld [vmem:[%s178 + $0x1898] sm:$0xff]
                %579 = vst [vmem:[%s179 + $0x638] sm:$0xff] %v578
                %v580 = vld [vmem:[%s178 + $0x1900] sm:$0xff]
                %581 = vst [vmem:[%s179 + $0x640] sm:$0xff] %v580
                %v582 = vld [vmem:[%s178 + $0x1908] sm:$0xff]
                %583 = vst [vmem:[%s179 + $0x648] sm:$0xff] %v582
                %v584 = vld [vmem:[%s178 + $0x1910] sm:$0xff]
                %585 = vst [vmem:[%s179 + $0x650] sm:$0xff] %v584
                %v586 = vld [vmem:[%s178 + $0x1918] sm:$0xff]
                %587 = vst [vmem:[%s179 + $0x658] sm:$0xff] %v586
                %v588 = vld [vmem:[%s178 + $0x1980] sm:$0xff]
                %589 = vst [vmem:[%s179 + $0x660] sm:$0xff] %v588
                %v590 = vld [vmem:[%s178 + $0x1988] sm:$0xff]
                %591 = vst [vmem:[%s179 + $0x668] sm:$0xff] %v590
                %v592 = vld [vmem:[%s178 + $0x1990] sm:$0xff]
                %593 = vst [vmem:[%s179 + $0x670] sm:$0xff] %v592
                %v594 = vld [vmem:[%s178 + $0x1998] sm:$0xff]
                %595 = vst [vmem:[%s179 + $0x678] sm:$0xff] %v594
                %v596 = vld [vmem:[%s178 + $0x1a00] sm:$0xff]
                %597 = vst [vmem:[%s179 + $0x680] sm:$0xff] %v596
                %v598 = vld [vmem:[%s178 + $0x1a08] sm:$0xff]
                %599 = vst [vmem:[%s179 + $0x688] sm:$0xff] %v598
                %v600 = vld [vmem:[%s178 + $0x1a10] sm:$0xff]
                %601 = vst [vmem:[%s179 + $0x690] sm:$0xff] %v600
                %v602 = vld [vmem:[%s178 + $0x1a18] sm:$0xff]
                %603 = vst [vmem:[%s179 + $0x698] sm:$0xff] %v602
                %v604 = vld [vmem:[%s178 + $0x1a80] sm:$0xff]
                %605 = vst [vmem:[%s179 + $0x6a0] sm:$0xff] %v604
                %v606 = vld [vmem:[%s178 + $0x1a88] sm:$0xff]
                %607 = vst [vmem:[%s179 + $0x6a8] sm:$0xff] %v606
                %v608 = vld [vmem:[%s178 + $0x1a90] sm:$0xff]
                %609 = vst [vmem:[%s179 + $0x6b0] sm:$0xff] %v608
                %v610 = vld [vmem:[%s178 + $0x1a98] sm:$0xff]
                %611 = vst [vmem:[%s179 + $0x6b8] sm:$0xff] %v610
                %v612 = vld [vmem:[%s178 + $0x1b00] sm:$0xff]
                %613 = vst [vmem:[%s179 + $0x6c0] sm:$0xff] %v612
                %v614 = vld [vmem:[%s178 + $0x1b08] sm:$0xff]
                %615 = vst [vmem:[%s179 + $0x6c8] sm:$0xff] %v614
                %v616 = vld [vmem:[%s178 + $0x1b10] sm:$0xff]
                %617 = vst [vmem:[%s179 + $0x6d0] sm:$0xff] %v616
                %v618 = vld [vmem:[%s178 + $0x1b18] sm:$0xff]
                %619 = vst [vmem:[%s179 + $0x6d8] sm:$0xff] %v618
                %v620 = vld [vmem:[%s178 + $0x1b80] sm:$0xff]
                %621 = vst [vmem:[%s179 + $0x6e0] sm:$0xff] %v620
                %v622 = vld [vmem:[%s178 + $0x1b88] sm:$0xff]
                %623 = vst [vmem:[%s179 + $0x6e8] sm:$0xff] %v622
                %v624 = vld [vmem:[%s178 + $0x1b90] sm:$0xff]
                %625 = vst [vmem:[%s179 + $0x6f0] sm:$0xff] %v624
                %v626 = vld [vmem:[%s178 + $0x1b98] sm:$0xff]
                %627 = vst [vmem:[%s179 + $0x6f8] sm:$0xff] %v626
                %v628 = vld [vmem:[%s178 + $0x1c00] sm:$0xff]
                %629 = vst [vmem:[%s179 + $0x700] sm:$0xff] %v628
                %v630 = vld [vmem:[%s178 + $0x1c08] sm:$0xff]
                %631 = vst [vmem:[%s179 + $0x708] sm:$0xff] %v630
                %v632 = vld [vmem:[%s178 + $0x1c10] sm:$0xff]
                %633 = vst [vmem:[%s179 + $0x710] sm:$0xff] %v632
                %v634 = vld [vmem:[%s178 + $0x1c18] sm:$0xff]
                %635 = vst [vmem:[%s179 + $0x718] sm:$0xff] %v634
                %v636 = vld [vmem:[%s178 + $0x1c80] sm:$0xff]
                %637 = vst [vmem:[%s179 + $0x720] sm:$0xff] %v636
                %v638 = vld [vmem:[%s178 + $0x1c88] sm:$0xff]
                %639 = vst [vmem:[%s179 + $0x728] sm:$0xff] %v638
                %v640 = vld [vmem:[%s178 + $0x1c90] sm:$0xff]
                %641 = vst [vmem:[%s179 + $0x730] sm:$0xff] %v640
                %v642 = vld [vmem:[%s178 + $0x1c98] sm:$0xff]
                %643 = vst [vmem:[%s179 + $0x738] sm:$0xff] %v642
                %v644 = vld [vmem:[%s178 + $0x1d00] sm:$0xff]
                %645 = vst [vmem:[%s179 + $0x740] sm:$0xff] %v644
                %v646 = vld [vmem:[%s178 + $0x1d08] sm:$0xff]
                %647 = vst [vmem:[%s179 + $0x748] sm:$0xff] %v646
                %v648 = vld [vmem:[%s178 + $0x1d10] sm:$0xff]
                %649 = vst [vmem:[%s179 + $0x750] sm:$0xff] %v648
                %v650 = vld [vmem:[%s178 + $0x1d18] sm:$0xff]
                %651 = vst [vmem:[%s179 + $0x758] sm:$0xff] %v650
                %v652 = vld [vmem:[%s178 + $0x1d80] sm:$0xff]
                %653 = vst [vmem:[%s179 + $0x760] sm:$0xff] %v652
                %v654 = vld [vmem:[%s178 + $0x1d88] sm:$0xff]
                %655 = vst [vmem:[%s179 + $0x768] sm:$0xff] %v654
                %v656 = vld [vmem:[%s178 + $0x1d90] sm:$0xff]
                %657 = vst [vmem:[%s179 + $0x770] sm:$0xff] %v656
                %v658 = vld [vmem:[%s178 + $0x1d98] sm:$0xff]
                %659 = vst [vmem:[%s179 + $0x778] sm:$0xff] %v658
                %v660 = vld [vmem:[%s178 + $0x1e00] sm:$0xff]
                %661 = vst [vmem:[%s179 + $0x780] sm:$0xff] %v660
                %v662 = vld [vmem:[%s178 + $0x1e08] sm:$0xff]
                %663 = vst [vmem:[%s179 + $0x788] sm:$0xff] %v662
                %v664 = vld [vmem:[%s178 + $0x1e10] sm:$0xff]
                %665 = vst [vmem:[%s179 + $0x790] sm:$0xff] %v664
                %v666 = vld [vmem:[%s178 + $0x1e18] sm:$0xff]
                %667 = vst [vmem:[%s179 + $0x798] sm:$0xff] %v666
                %v668 = vld [vmem:[%s178 + $0x1e80] sm:$0xff]
                %669 = vst [vmem:[%s179 + $0x7a0] sm:$0xff] %v668
                %v670 = vld [vmem:[%s178 + $0x1e88] sm:$0xff]
                %671 = vst [vmem:[%s179 + $0x7a8] sm:$0xff] %v670
                %v672 = vld [vmem:[%s178 + $0x1e90] sm:$0xff]
                %673 = vst [vmem:[%s179 + $0x7b0] sm:$0xff] %v672
                %v674 = vld [vmem:[%s178 + $0x1e98] sm:$0xff]
                %675 = vst [vmem:[%s179 + $0x7b8] sm:$0xff] %v674
                %v676 = vld [vmem:[%s178 + $0x1f00] sm:$0xff]
                %677 = vst [vmem:[%s179 + $0x7c0] sm:$0xff] %v676
                %v678 = vld [vmem:[%s178 + $0x1f08] sm:$0xff]
                %679 = vst [vmem:[%s179 + $0x7c8] sm:$0xff] %v678
                %v680 = vld [vmem:[%s178 + $0x1f10] sm:$0xff]
                %681 = vst [vmem:[%s179 + $0x7d0] sm:$0xff] %v680
                %v682 = vld [vmem:[%s178 + $0x1f18] sm:$0xff]
                %683 = vst [vmem:[%s179 + $0x7d8] sm:$0xff] %v682
                %v684 = vld [vmem:[%s178 + $0x1f80] sm:$0xff]
                %685 = vst [vmem:[%s179 + $0x7e0] sm:$0xff] %v684
                %v686 = vld [vmem:[%s178 + $0x1f88] sm:$0xff]
                %687 = vst [vmem:[%s179 + $0x7e8] sm:$0xff] %v686
                %v688 = vld [vmem:[%s178 + $0x1f90] sm:$0xff]
                %689 = vst [vmem:[%s179 + $0x7f0] sm:$0xff] %v688
                %v690 = vld [vmem:[%s178 + $0x1f98] sm:$0xff]
                %691 = vst [vmem:[%s179 + $0x7f8] sm:$0xff] %v690
              $region37: #{flow_encoder_forward.10} parent=31 // loop_footer
                %s177 = sadd.s32 1, %s173
              $region38: #{flow_encoder_forward.10} parent=31 // loop_footer_branch
                %172 = sbr.rel target = $region34
              $region39: #{flow_encoder_forward.10} parent=31 // loop_exit
                _
            $region32: #{flow_encoder_forward.10} parent=27 // pred_fallthru
              _
            // Predicated region
            $region40: #{flow_encoder_forward.10} parent=27 // pred_check
              _
            $region41: #{flow_encoder_forward.10} parent=27 // pred_check_branch
              %693 = sbr.rel target = $region43
            $region42: #{flow_encoder_forward.10} parent=27 // pred_region
              _
            $region43: #{flow_encoder_forward.10} parent=27 // pred_fallthru
              _
          $region28: #{flow_encoder_forward.10} parent=23 // pred_fallthru
            _
          %694 = vnop
        $region24: #{flow_encoder_forward.10} parent=19 // pred_fallthru
          _
      $region20: #{flow_encoder_forward.10} parent=5 // pred_fallthru
        _
      %p695 = scmp.le.s32.totalorder 1, %s11
      %p696 = scmp.lt.s32.totalorder %s11, 5
      %p697 = pnand %p695, %p696
      %p698 = pneg %p697
      // Predicated region
      $region44: #{flow_encoder_forward.10} parent=5 // pred_check
        _
      $region45: #{flow_encoder_forward.10} parent=5 // pred_check_branch
        %700 = sbr.rel (%p697) target = $region47
      $region46: #{flow_encoder_forward.10} parent=5 // pred_region
        %s701 = ssub.s32 %s11, 1
        %s702 = sand.u32 %s45, 1
        %s703 = sand.u32 %s45, 1
        %s704 = smul.addr %s703, 2048
        %s705 = scalar_lea.vmem [#allocation2], %s704
        // Predicated region
        $region48: #{flow_encoder_forward.10} parent=46 // pred_check
          %p706 = pneg %p58
        $region49: #{flow_encoder_forward.10} parent=46 // pred_check_branch
          %708 = sbr.rel (%p706) target = $region51
        $region50: #{flow_encoder_forward.10} parent=46 // pred_region
          _
        $region51: #{flow_encoder_forward.10} parent=46 // pred_fallthru
          _
        %p709 = pneg %p32
        %p710 = pneg %p29
        %s711 = sand.u32 %s45, 1
        %s712 = sand.u32 %s45, 1
        %s713 = smul.addr %s712, 2048
        %s714 = scalar_lea.vmem [#allocation2], %s713
        %p715 = pneg %p58
        %p716 = pneg %p55
        %p717 = pneg %p84
        %p718 = pneg %p81
        %s719 = sand.u32 %s71, 1
        %s720 = sand.u32 %s71, 1
        %s721 = smul.addr %s720, 128
        %s722 = scalar_lea.vmem [#allocation3], %s721
        %p723 = pneg %p110
        %p724 = pneg %p107
        %p725 = scmp.lt.s32.totalorder %s16, 3
        %s726 = scalar_select %p725, %s16, 3
        %s727 = smul.addr %s726, 2
        %s728 = smul.addr %s727, 8
        %s729 = scalar_lea.vmem %s3, %s728
        %p730 = pneg %p136
        %p731 = pneg %p133
        %p732 = scmp.lt.s32.totalorder %s16, 3
        %s733 = scalar_select %p732, %s16, 3
        %s734 = smul.addr %s733, 2
        %s735 = smul.addr %s734, 8
        %s736 = scalar_lea.vmem %s4, %s735
        %s737 = smul.u32 8, %s16
        %s738 = smul.u32 8, %s16
        %p739 = scmp.lt.s32.totalorder %s16, 3
        %s740 = scalar_select %p739, %s16, 3
        %s741 = smul.addr %s740, 2
        %s742 = smul.addr %s741, 8
        %s743 = scalar_lea.vmem %s3, %s742
        %p744 = scmp.lt.s32.totalorder %s16, 3
        %s745 = scalar_select %p744, %s16, 3
        %s746 = smul.addr %s745, 2
        %s747 = smul.addr %s746, 8
        %s748 = scalar_lea.vmem %s4, %s747
        %v749 = vld [vmem:[%s0] sm:$0xff]
        %v750 = vld [vmem:[%s0 + $0x8] sm:$0xff]
        %v751 = vld [vmem:[%s0 + $0x10] sm:$0xff]
        %v752 = vld [vmem:[%s0 + $0x18] sm:$0xff]
        %v753 = vld [vmem:[%s705] sm:$0xff]
        %v754 = vld [vmem:[%s705 + $0x8] sm:$0xff]
        %v755 = vld [vmem:[%s705 + $0x10] sm:$0xff]
        %v756 = vld [vmem:[%s705 + $0x18] sm:$0xff]
        %v757 = vld [vmem:[%s705 + $0x20] sm:$0xff]
        %v758 = vld [vmem:[%s705 + $0x28] sm:$0xff]
        %v759 = vld [vmem:[%s705 + $0x30] sm:$0xff]
        %v760 = vld [vmem:[%s705 + $0x38] sm:$0xff]
        %v761 = vld [vmem:[%s705 + $0x40] sm:$0xff]
        %v762 = vld [vmem:[%s705 + $0x48] sm:$0xff]
        %v763 = vld [vmem:[%s705 + $0x50] sm:$0xff]
        %v764 = vld [vmem:[%s705 + $0x58] sm:$0xff]
        %v765 = vld [vmem:[%s705 + $0x60] sm:$0xff]
        %v766 = vld [vmem:[%s705 + $0x68] sm:$0xff]
        %v767 = vld [vmem:[%s705 + $0x70] sm:$0xff]
        %v768 = vld [vmem:[%s705 + $0x78] sm:$0xff]
        %v769 = vld [vmem:[%s705 + $0x80] sm:$0xff]
        %v770 = vld [vmem:[%s705 + $0x88] sm:$0xff]
        %v771 = vld [vmem:[%s705 + $0x90] sm:$0xff]
        %v772 = vld [vmem:[%s705 + $0x98] sm:$0xff]
        %v773 = vld [vmem:[%s705 + $0xa0] sm:$0xff]
        %v774 = vld [vmem:[%s705 + $0xa8] sm:$0xff]
        %v775 = vld [vmem:[%s705 + $0xb0] sm:$0xff]
        %v776 = vld [vmem:[%s705 + $0xb8] sm:$0xff]
        %v777 = vld [vmem:[%s705 + $0xc0] sm:$0xff]
        %v778 = vld [vmem:[%s705 + $0xc8] sm:$0xff]
        %v779 = vld [vmem:[%s705 + $0xd0] sm:$0xff]
        %v780 = vld [vmem:[%s705 + $0xd8] sm:$0xff]
        %v781 = vld [vmem:[%s705 + $0xe0] sm:$0xff]
        %v782 = vld [vmem:[%s705 + $0xe8] sm:$0xff]
        %v783 = vld [vmem:[%s705 + $0xf0] sm:$0xff]
        %v784 = vld [vmem:[%s705 + $0xf8] sm:$0xff]
        %v785 = vld [vmem:[%s705 + $0x100] sm:$0xff]
        %v786 = vld [vmem:[%s705 + $0x108] sm:$0xff]
        %v787 = vld [vmem:[%s705 + $0x110] sm:$0xff]
        %v788 = vld [vmem:[%s705 + $0x118] sm:$0xff]
        %v789 = vld [vmem:[%s705 + $0x120] sm:$0xff]
        %v790 = vld [vmem:[%s705 + $0x128] sm:$0xff]
        %v791 = vld [vmem:[%s705 + $0x130] sm:$0xff]
        %v792 = vld [vmem:[%s705 + $0x138] sm:$0xff]
        %v793 = vld [vmem:[%s705 + $0x140] sm:$0xff]
        %v794 = vld [vmem:[%s705 + $0x148] sm:$0xff]
        %v795 = vld [vmem:[%s705 + $0x150] sm:$0xff]
        %v796 = vld [vmem:[%s705 + $0x158] sm:$0xff]
        %v797 = vld [vmem:[%s705 + $0x160] sm:$0xff]
        %v798 = vld [vmem:[%s705 + $0x168] sm:$0xff]
        %v799 = vld [vmem:[%s705 + $0x170] sm:$0xff]
        %v800 = vld [vmem:[%s705 + $0x178] sm:$0xff]
        %v801 = vld [vmem:[%s705 + $0x180] sm:$0xff]
        %v802 = vld [vmem:[%s705 + $0x188] sm:$0xff]
        %v803 = vld [vmem:[%s705 + $0x190] sm:$0xff]
        %v804 = vld [vmem:[%s705 + $0x198] sm:$0xff]
        %v805 = vld [vmem:[%s705 + $0x1a0] sm:$0xff]
        %v806 = vld [vmem:[%s705 + $0x1a8] sm:$0xff]
        %v807 = vld [vmem:[%s705 + $0x1b0] sm:$0xff]
        %v808 = vld [vmem:[%s705 + $0x1b8] sm:$0xff]
        %v809 = vld [vmem:[%s705 + $0x1c0] sm:$0xff]
        %v810 = vld [vmem:[%s705 + $0x1c8] sm:$0xff]
        %v811 = vld [vmem:[%s705 + $0x1d0] sm:$0xff]
        %v812 = vld [vmem:[%s705 + $0x1d8] sm:$0xff]
        %v813 = vld [vmem:[%s705 + $0x1e0] sm:$0xff]
        %v814 = vld [vmem:[%s705 + $0x1e8] sm:$0xff]
        %v815 = vld [vmem:[%s705 + $0x1f0] sm:$0xff]
        %v816 = vld [vmem:[%s705 + $0x1f8] sm:$0xff]
        %v817 = vld [vmem:[%s705 + $0x200] sm:$0xff]
        %v818 = vld [vmem:[%s705 + $0x208] sm:$0xff]
        %v819 = vld [vmem:[%s705 + $0x210] sm:$0xff]
        %v820 = vld [vmem:[%s705 + $0x218] sm:$0xff]
        %v821 = vld [vmem:[%s705 + $0x220] sm:$0xff]
        %v822 = vld [vmem:[%s705 + $0x228] sm:$0xff]
        %v823 = vld [vmem:[%s705 + $0x230] sm:$0xff]
        %v824 = vld [vmem:[%s705 + $0x238] sm:$0xff]
        %v825 = vld [vmem:[%s705 + $0x240] sm:$0xff]
        %v826 = vld [vmem:[%s705 + $0x248] sm:$0xff]
        %v827 = vld [vmem:[%s705 + $0x250] sm:$0xff]
        %v828 = vld [vmem:[%s705 + $0x258] sm:$0xff]
        %v829 = vld [vmem:[%s705 + $0x260] sm:$0xff]
        %v830 = vld [vmem:[%s705 + $0x268] sm:$0xff]
        %v831 = vld [vmem:[%s705 + $0x270] sm:$0xff]
        %v832 = vld [vmem:[%s705 + $0x278] sm:$0xff]
        %v833 = vld [vmem:[%s705 + $0x280] sm:$0xff]
        %v834 = vld [vmem:[%s705 + $0x288] sm:$0xff]
        %v835 = vld [vmem:[%s705 + $0x290] sm:$0xff]
        %v836 = vld [vmem:[%s705 + $0x298] sm:$0xff]
        %v837 = vld [vmem:[%s705 + $0x2a0] sm:$0xff]
        %v838 = vld [vmem:[%s705 + $0x2a8] sm:$0xff]
        %v839 = vld [vmem:[%s705 + $0x2b0] sm:$0xff]
        %v840 = vld [vmem:[%s705 + $0x2b8] sm:$0xff]
        %v841 = vld [vmem:[%s705 + $0x2c0] sm:$0xff]
        %v842 = vld [vmem:[%s705 + $0x2c8] sm:$0xff]
        %v843 = vld [vmem:[%s705 + $0x2d0] sm:$0xff]
        %v844 = vld [vmem:[%s705 + $0x2d8] sm:$0xff]
        %v845 = vld [vmem:[%s705 + $0x2e0] sm:$0xff]
        %v846 = vld [vmem:[%s705 + $0x2e8] sm:$0xff]
        %v847 = vld [vmem:[%s705 + $0x2f0] sm:$0xff]
        %v848 = vld [vmem:[%s705 + $0x2f8] sm:$0xff]
        %v849 = vld [vmem:[%s705 + $0x300] sm:$0xff]
        %v850 = vld [vmem:[%s705 + $0x308] sm:$0xff]
        %v851 = vld [vmem:[%s705 + $0x310] sm:$0xff]
        %v852 = vld [vmem:[%s705 + $0x318] sm:$0xff]
        %v853 = vld [vmem:[%s705 + $0x320] sm:$0xff]
        %v854 = vld [vmem:[%s705 + $0x328] sm:$0xff]
        %v855 = vld [vmem:[%s705 + $0x330] sm:$0xff]
        %v856 = vld [vmem:[%s705 + $0x338] sm:$0xff]
        %v857 = vld [vmem:[%s705 + $0x340] sm:$0xff]
        %v858 = vld [vmem:[%s705 + $0x348] sm:$0xff]
        %v859 = vld [vmem:[%s705 + $0x350] sm:$0xff]
        %v860 = vld [vmem:[%s705 + $0x358] sm:$0xff]
        %v861 = vld [vmem:[%s705 + $0x360] sm:$0xff]
        %v862 = vld [vmem:[%s705 + $0x368] sm:$0xff]
        %v863 = vld [vmem:[%s705 + $0x370] sm:$0xff]
        %v864 = vld [vmem:[%s705 + $0x378] sm:$0xff]
        %v865 = vld [vmem:[%s705 + $0x380] sm:$0xff]
        %v866 = vld [vmem:[%s705 + $0x388] sm:$0xff]
        %v867 = vld [vmem:[%s705 + $0x390] sm:$0xff]
        %v868 = vld [vmem:[%s705 + $0x398] sm:$0xff]
        %v869 = vld [vmem:[%s705 + $0x3a0] sm:$0xff]
        %v870 = vld [vmem:[%s705 + $0x3a8] sm:$0xff]
        %v871 = vld [vmem:[%s705 + $0x3b0] sm:$0xff]
        %v872 = vld [vmem:[%s705 + $0x3b8] sm:$0xff]
        %v873 = vld [vmem:[%s705 + $0x3c0] sm:$0xff]
        %v874 = vld [vmem:[%s705 + $0x3c8] sm:$0xff]
        %v875 = vld [vmem:[%s705 + $0x3d0] sm:$0xff]
        %v876 = vld [vmem:[%s705 + $0x3d8] sm:$0xff]
        %v877 = vld [vmem:[%s705 + $0x3e0] sm:$0xff]
        %v878 = vld [vmem:[%s705 + $0x3e8] sm:$0xff]
        %v879 = vld [vmem:[%s705 + $0x3f0] sm:$0xff]
        %v880 = vld [vmem:[%s705 + $0x3f8] sm:$0xff]
        %v881 = vld [vmem:[%s705 + $0x400] sm:$0xff]
        %v882 = vld [vmem:[%s705 + $0x408] sm:$0xff]
        %v883 = vld [vmem:[%s705 + $0x410] sm:$0xff]
        %v884 = vld [vmem:[%s705 + $0x418] sm:$0xff]
        %v885 = vld [vmem:[%s705 + $0x420] sm:$0xff]
        %v886 = vld [vmem:[%s705 + $0x428] sm:$0xff]
        %v887 = vld [vmem:[%s705 + $0x430] sm:$0xff]
        %v888 = vld [vmem:[%s705 + $0x438] sm:$0xff]
        %v889 = vld [vmem:[%s705 + $0x440] sm:$0xff]
        %v890 = vld [vmem:[%s705 + $0x448] sm:$0xff]
        %v891 = vld [vmem:[%s705 + $0x450] sm:$0xff]
        %v892 = vld [vmem:[%s705 + $0x458] sm:$0xff]
        %v893 = vld [vmem:[%s705 + $0x460] sm:$0xff]
        %v894 = vld [vmem:[%s705 + $0x468] sm:$0xff]
        %v895 = vld [vmem:[%s705 + $0x470] sm:$0xff]
        %v896 = vld [vmem:[%s705 + $0x478] sm:$0xff]
        %v897 = vld [vmem:[%s705 + $0x480] sm:$0xff]
        %v898 = vld [vmem:[%s705 + $0x488] sm:$0xff]
        %v899 = vld [vmem:[%s705 + $0x490] sm:$0xff]
        %v900 = vld [vmem:[%s705 + $0x498] sm:$0xff]
        %v901 = vld [vmem:[%s705 + $0x4a0] sm:$0xff]
        %v902 = vld [vmem:[%s705 + $0x4a8] sm:$0xff]
        %v903 = vld [vmem:[%s705 + $0x4b0] sm:$0xff]
        %v904 = vld [vmem:[%s705 + $0x4b8] sm:$0xff]
        %v905 = vld [vmem:[%s705 + $0x4c0] sm:$0xff]
        %v906 = vld [vmem:[%s705 + $0x4c8] sm:$0xff]
        %v907 = vld [vmem:[%s705 + $0x4d0] sm:$0xff]
        %v908 = vld [vmem:[%s705 + $0x4d8] sm:$0xff]
        %v909 = vld [vmem:[%s705 + $0x4e0] sm:$0xff]
        %v910 = vld [vmem:[%s705 + $0x4e8] sm:$0xff]
        %v911 = vld [vmem:[%s705 + $0x4f0] sm:$0xff]
        %v912 = vld [vmem:[%s705 + $0x4f8] sm:$0xff]
        %v913 = vld [vmem:[%s705 + $0x500] sm:$0xff]
        %v914 = vld [vmem:[%s705 + $0x508] sm:$0xff]
        %v915 = vld [vmem:[%s705 + $0x510] sm:$0xff]
        %v916 = vld [vmem:[%s705 + $0x518] sm:$0xff]
        %v917 = vld [vmem:[%s705 + $0x520] sm:$0xff]
        %v918 = vld [vmem:[%s705 + $0x528] sm:$0xff]
        %v919 = vld [vmem:[%s705 + $0x530] sm:$0xff]
        %v920 = vld [vmem:[%s705 + $0x538] sm:$0xff]
        %v921 = vld [vmem:[%s705 + $0x540] sm:$0xff]
        %v922 = vld [vmem:[%s705 + $0x548] sm:$0xff]
        %v923 = vld [vmem:[%s705 + $0x550] sm:$0xff]
        %v924 = vld [vmem:[%s705 + $0x558] sm:$0xff]
        %v925 = vld [vmem:[%s705 + $0x560] sm:$0xff]
        %v926 = vld [vmem:[%s705 + $0x568] sm:$0xff]
        %v927 = vld [vmem:[%s705 + $0x570] sm:$0xff]
        %v928 = vld [vmem:[%s705 + $0x578] sm:$0xff]
        %v929 = vld [vmem:[%s705 + $0x580] sm:$0xff]
        %v930 = vld [vmem:[%s705 + $0x588] sm:$0xff]
        %v931 = vld [vmem:[%s705 + $0x590] sm:$0xff]
        %v932 = vld [vmem:[%s705 + $0x598] sm:$0xff]
        %v933 = vld [vmem:[%s705 + $0x5a0] sm:$0xff]
        %v934 = vld [vmem:[%s705 + $0x5a8] sm:$0xff]
        %v935 = vld [vmem:[%s705 + $0x5b0] sm:$0xff]
        %v936 = vld [vmem:[%s705 + $0x5b8] sm:$0xff]
        %v937 = vld [vmem:[%s705 + $0x5c0] sm:$0xff]
        %v938 = vld [vmem:[%s705 + $0x5c8] sm:$0xff]
        %v939 = vld [vmem:[%s705 + $0x5d0] sm:$0xff]
        %v940 = vld [vmem:[%s705 + $0x5d8] sm:$0xff]
        %v941 = vld [vmem:[%s705 + $0x5e0] sm:$0xff]
        %v942 = vld [vmem:[%s705 + $0x5e8] sm:$0xff]
        %v943 = vld [vmem:[%s705 + $0x5f0] sm:$0xff]
        %v944 = vld [vmem:[%s705 + $0x5f8] sm:$0xff]
        %v945 = vld [vmem:[%s705 + $0x600] sm:$0xff]
        %v946 = vld [vmem:[%s705 + $0x608] sm:$0xff]
        %v947 = vld [vmem:[%s705 + $0x610] sm:$0xff]
        %v948 = vld [vmem:[%s705 + $0x618] sm:$0xff]
        %v949 = vld [vmem:[%s705 + $0x620] sm:$0xff]
        %v950 = vld [vmem:[%s705 + $0x628] sm:$0xff]
        %v951 = vld [vmem:[%s705 + $0x630] sm:$0xff]
        %v952 = vld [vmem:[%s705 + $0x638] sm:$0xff]
        %v953 = vld [vmem:[%s705 + $0x640] sm:$0xff]
        %v954 = vld [vmem:[%s705 + $0x648] sm:$0xff]
        %v955 = vld [vmem:[%s705 + $0x650] sm:$0xff]
        %v956 = vld [vmem:[%s705 + $0x658] sm:$0xff]
        %v957 = vld [vmem:[%s705 + $0x660] sm:$0xff]
        %v958 = vld [vmem:[%s705 + $0x668] sm:$0xff]
        %v959 = vld [vmem:[%s705 + $0x670] sm:$0xff]
        %v960 = vld [vmem:[%s705 + $0x678] sm:$0xff]
        %v961 = vld [vmem:[%s705 + $0x680] sm:$0xff]
        %v962 = vld [vmem:[%s705 + $0x688] sm:$0xff]
        %v963 = vld [vmem:[%s705 + $0x690] sm:$0xff]
        %v964 = vld [vmem:[%s705 + $0x698] sm:$0xff]
        %v965 = vld [vmem:[%s705 + $0x6a0] sm:$0xff]
        %v966 = vld [vmem:[%s705 + $0x6a8] sm:$0xff]
        %v967 = vld [vmem:[%s705 + $0x6b0] sm:$0xff]
        %v968 = vld [vmem:[%s705 + $0x6b8] sm:$0xff]
        %v969 = vld [vmem:[%s705 + $0x6c0] sm:$0xff]
        %v970 = vld [vmem:[%s705 + $0x6c8] sm:$0xff]
        %v971 = vld [vmem:[%s705 + $0x6d0] sm:$0xff]
        %v972 = vld [vmem:[%s705 + $0x6d8] sm:$0xff]
        %v973 = vld [vmem:[%s705 + $0x6e0] sm:$0xff]
        %v974 = vld [vmem:[%s705 + $0x6e8] sm:$0xff]
        %v975 = vld [vmem:[%s705 + $0x6f0] sm:$0xff]
        %v976 = vld [vmem:[%s705 + $0x6f8] sm:$0xff]
        %v977 = vld [vmem:[%s705 + $0x700] sm:$0xff]
        %v978 = vld [vmem:[%s705 + $0x708] sm:$0xff]
        %v979 = vld [vmem:[%s705 + $0x710] sm:$0xff]
        %v980 = vld [vmem:[%s705 + $0x718] sm:$0xff]
        %v981 = vld [vmem:[%s705 + $0x720] sm:$0xff]
        %v982 = vld [vmem:[%s705 + $0x728] sm:$0xff]
        %v983 = vld [vmem:[%s705 + $0x730] sm:$0xff]
        %v984 = vld [vmem:[%s705 + $0x738] sm:$0xff]
        %v985 = vld [vmem:[%s705 + $0x740] sm:$0xff]
        %v986 = vld [vmem:[%s705 + $0x748] sm:$0xff]
        %v987 = vld [vmem:[%s705 + $0x750] sm:$0xff]
        %v988 = vld [vmem:[%s705 + $0x758] sm:$0xff]
        %v989 = vld [vmem:[%s705 + $0x760] sm:$0xff]
        %v990 = vld [vmem:[%s705 + $0x768] sm:$0xff]
        %v991 = vld [vmem:[%s705 + $0x770] sm:$0xff]
        %v992 = vld [vmem:[%s705 + $0x778] sm:$0xff]
        %v993 = vld [vmem:[%s705 + $0x780] sm:$0xff]
        %v994 = vld [vmem:[%s705 + $0x788] sm:$0xff]
        %v995 = vld [vmem:[%s705 + $0x790] sm:$0xff]
        %v996 = vld [vmem:[%s705 + $0x798] sm:$0xff]
        %v997 = vld [vmem:[%s705 + $0x7a0] sm:$0xff]
        %v998 = vld [vmem:[%s705 + $0x7a8] sm:$0xff]
        %v999 = vld [vmem:[%s705 + $0x7b0] sm:$0xff]
        %v1000 = vld [vmem:[%s705 + $0x7b8] sm:$0xff]
        %v1001 = vld [vmem:[%s705 + $0x7c0] sm:$0xff]
        %v1002 = vld [vmem:[%s705 + $0x7c8] sm:$0xff]
        %v1003 = vld [vmem:[%s705 + $0x7d0] sm:$0xff]
        %v1004 = vld [vmem:[%s705 + $0x7d8] sm:$0xff]
        %v1005 = vld [vmem:[%s705 + $0x7e0] sm:$0xff]
        %v1006 = vld [vmem:[%s705 + $0x7e8] sm:$0xff]
        %v1007 = vld [vmem:[%s705 + $0x7f0] sm:$0xff]
        %v1008 = vld [vmem:[%s705 + $0x7f8] sm:$0xff]
        %v1013 = vunpack.c.l.b16 %v749
        %v1014 = vunpack.c.h.b16 %v749
        %v1015 = vunpack.c.l.b16 %v750
        %v1016 = vunpack.c.h.b16 %v750
        %v1017 = vunpack.c.l.b16 %v751
        %v1018 = vunpack.c.h.b16 %v751
        %v1019 = vunpack.c.l.b16 %v752
        %v1020 = vunpack.c.h.b16 %v752
        %v1021 = vpack.c.b16 %v1017, %v1013
        %v1022 = vpack.c.b16 %v1018, %v1014
        %v1023 = vpack.c.b16 %v1019, %v1015
        %v1024 = vpack.c.b16 %v1020, %v1016
        %v1285 = vunpack.c.l.b16 %v753
        %v1286 = vunpack.c.h.b16 %v753
        %v1287 = vunpack.c.l.b16 %v754
        %v1288 = vunpack.c.h.b16 %v754
        %v1289 = vunpack.c.l.b16 %v755
        %v1290 = vunpack.c.h.b16 %v755
        %v1291 = vunpack.c.l.b16 %v756
        %v1292 = vunpack.c.h.b16 %v756
        %v1293 = vunpack.c.l.b16 %v757
        %v1294 = vunpack.c.h.b16 %v757
        %v1295 = vunpack.c.l.b16 %v758
        %v1296 = vunpack.c.h.b16 %v758
        %v1297 = vunpack.c.l.b16 %v759
        %v1298 = vunpack.c.h.b16 %v759
        %v1299 = vunpack.c.l.b16 %v760
        %v1300 = vunpack.c.h.b16 %v760
        %v1301 = vunpack.c.l.b16 %v761
        %v1302 = vunpack.c.h.b16 %v761
        %v1303 = vunpack.c.l.b16 %v762
        %v1304 = vunpack.c.h.b16 %v762
        %v1305 = vunpack.c.l.b16 %v763
        %v1306 = vunpack.c.h.b16 %v763
        %v1307 = vunpack.c.l.b16 %v764
        %v1308 = vunpack.c.h.b16 %v764
        %v1309 = vunpack.c.l.b16 %v765
        %v1310 = vunpack.c.h.b16 %v765
        %v1311 = vunpack.c.l.b16 %v766
        %v1312 = vunpack.c.h.b16 %v766
        %v1313 = vunpack.c.l.b16 %v767
        %v1314 = vunpack.c.h.b16 %v767
        %v1315 = vunpack.c.l.b16 %v768
        %v1316 = vunpack.c.h.b16 %v768
        %v1317 = vunpack.c.l.b16 %v769
        %v1318 = vunpack.c.h.b16 %v769
        %v1319 = vunpack.c.l.b16 %v770
        %v1320 = vunpack.c.h.b16 %v770
        %v1321 = vunpack.c.l.b16 %v771
        %v1322 = vunpack.c.h.b16 %v771
        %v1323 = vunpack.c.l.b16 %v772
        %v1324 = vunpack.c.h.b16 %v772
        %v1325 = vunpack.c.l.b16 %v773
        %v1326 = vunpack.c.h.b16 %v773
        %v1327 = vunpack.c.l.b16 %v774
        %v1328 = vunpack.c.h.b16 %v774
        %v1329 = vunpack.c.l.b16 %v775
        %v1330 = vunpack.c.h.b16 %v775
        %v1331 = vunpack.c.l.b16 %v776
        %v1332 = vunpack.c.h.b16 %v776
        %v1333 = vunpack.c.l.b16 %v777
        %v1334 = vunpack.c.h.b16 %v777
        %v1335 = vunpack.c.l.b16 %v778
        %v1336 = vunpack.c.h.b16 %v778
        %v1337 = vunpack.c.l.b16 %v779
        %v1338 = vunpack.c.h.b16 %v779
        %v1339 = vunpack.c.l.b16 %v780
        %v1340 = vunpack.c.h.b16 %v780
        %v1341 = vunpack.c.l.b16 %v781
        %v1342 = vunpack.c.h.b16 %v781
        %v1343 = vunpack.c.l.b16 %v782
        %v1344 = vunpack.c.h.b16 %v782
        %v1345 = vunpack.c.l.b16 %v783
        %v1346 = vunpack.c.h.b16 %v783
        %v1347 = vunpack.c.l.b16 %v784
        %v1348 = vunpack.c.h.b16 %v784
        %v1349 = vunpack.c.l.b16 %v785
        %v1350 = vunpack.c.h.b16 %v785
        %v1351 = vunpack.c.l.b16 %v786
        %v1352 = vunpack.c.h.b16 %v786
        %v1353 = vunpack.c.l.b16 %v787
        %v1354 = vunpack.c.h.b16 %v787
        %v1355 = vunpack.c.l.b16 %v788
        %v1356 = vunpack.c.h.b16 %v788
        %v1357 = vunpack.c.l.b16 %v789
        %v1358 = vunpack.c.h.b16 %v789
        %v1359 = vunpack.c.l.b16 %v790
        %v1360 = vunpack.c.h.b16 %v790
        %v1361 = vunpack.c.l.b16 %v791
        %v1362 = vunpack.c.h.b16 %v791
        %v1363 = vunpack.c.l.b16 %v792
        %v1364 = vunpack.c.h.b16 %v792
        %v1365 = vunpack.c.l.b16 %v793
        %v1366 = vunpack.c.h.b16 %v793
        %v1367 = vunpack.c.l.b16 %v794
        %v1368 = vunpack.c.h.b16 %v794
        %v1369 = vunpack.c.l.b16 %v795
        %v1370 = vunpack.c.h.b16 %v795
        %v1371 = vunpack.c.l.b16 %v796
        %v1372 = vunpack.c.h.b16 %v796
        %v1373 = vunpack.c.l.b16 %v797
        %v1374 = vunpack.c.h.b16 %v797
        %v1375 = vunpack.c.l.b16 %v798
        %v1376 = vunpack.c.h.b16 %v798
        %v1377 = vunpack.c.l.b16 %v799
        %v1378 = vunpack.c.h.b16 %v799
        %v1379 = vunpack.c.l.b16 %v800
        %v1380 = vunpack.c.h.b16 %v800
        %v1381 = vunpack.c.l.b16 %v801
        %v1382 = vunpack.c.h.b16 %v801
        %v1383 = vunpack.c.l.b16 %v802
        %v1384 = vunpack.c.h.b16 %v802
        %v1385 = vunpack.c.l.b16 %v803
        %v1386 = vunpack.c.h.b16 %v803
        %v1387 = vunpack.c.l.b16 %v804
        %v1388 = vunpack.c.h.b16 %v804
        %v1389 = vunpack.c.l.b16 %v805
        %v1390 = vunpack.c.h.b16 %v805
        %v1391 = vunpack.c.l.b16 %v806
        %v1392 = vunpack.c.h.b16 %v806
        %v1393 = vunpack.c.l.b16 %v807
        %v1394 = vunpack.c.h.b16 %v807
        %v1395 = vunpack.c.l.b16 %v808
        %v1396 = vunpack.c.h.b16 %v808
        %v1397 = vunpack.c.l.b16 %v809
        %v1398 = vunpack.c.h.b16 %v809
        %v1399 = vunpack.c.l.b16 %v810
        %v1400 = vunpack.c.h.b16 %v810
        %v1401 = vunpack.c.l.b16 %v811
        %v1402 = vunpack.c.h.b16 %v811
        %v1403 = vunpack.c.l.b16 %v812
        %v1404 = vunpack.c.h.b16 %v812
        %v1405 = vunpack.c.l.b16 %v813
        %v1406 = vunpack.c.h.b16 %v813
        %v1407 = vunpack.c.l.b16 %v814
        %v1408 = vunpack.c.h.b16 %v814
        %v1409 = vunpack.c.l.b16 %v815
        %v1410 = vunpack.c.h.b16 %v815
        %v1411 = vunpack.c.l.b16 %v816
        %v1412 = vunpack.c.h.b16 %v816
        %v1413 = vunpack.c.l.b16 %v817
        %v1414 = vunpack.c.h.b16 %v817
        %v1415 = vunpack.c.l.b16 %v818
        %v1416 = vunpack.c.h.b16 %v818
        %v1417 = vunpack.c.l.b16 %v819
        %v1418 = vunpack.c.h.b16 %v819
        %v1419 = vunpack.c.l.b16 %v820
        %v1420 = vunpack.c.h.b16 %v820
        %v1421 = vunpack.c.l.b16 %v821
        %v1422 = vunpack.c.h.b16 %v821
        %v1423 = vunpack.c.l.b16 %v822
        %v1424 = vunpack.c.h.b16 %v822
        %v1425 = vunpack.c.l.b16 %v823
        %v1426 = vunpack.c.h.b16 %v823
        %v1427 = vunpack.c.l.b16 %v824
        %v1428 = vunpack.c.h.b16 %v824
        %v1429 = vunpack.c.l.b16 %v825
        %v1430 = vunpack.c.h.b16 %v825
        %v1431 = vunpack.c.l.b16 %v826
        %v1432 = vunpack.c.h.b16 %v826
        %v1433 = vunpack.c.l.b16 %v827
        %v1434 = vunpack.c.h.b16 %v827
        %v1435 = vunpack.c.l.b16 %v828
        %v1436 = vunpack.c.h.b16 %v828
        %v1437 = vunpack.c.l.b16 %v829
        %v1438 = vunpack.c.h.b16 %v829
        %v1439 = vunpack.c.l.b16 %v830
        %v1440 = vunpack.c.h.b16 %v830
        %v1441 = vunpack.c.l.b16 %v831
        %v1442 = vunpack.c.h.b16 %v831
        %v1443 = vunpack.c.l.b16 %v832
        %v1444 = vunpack.c.h.b16 %v832
        %v1445 = vunpack.c.l.b16 %v833
        %v1446 = vunpack.c.h.b16 %v833
        %v1447 = vunpack.c.l.b16 %v834
        %v1448 = vunpack.c.h.b16 %v834
        %v1449 = vunpack.c.l.b16 %v835
        %v1450 = vunpack.c.h.b16 %v835
        %v1451 = vunpack.c.l.b16 %v836
        %v1452 = vunpack.c.h.b16 %v836
        %v1453 = vunpack.c.l.b16 %v837
        %v1454 = vunpack.c.h.b16 %v837
        %v1455 = vunpack.c.l.b16 %v838
        %v1456 = vunpack.c.h.b16 %v838
        %v1457 = vunpack.c.l.b16 %v839
        %v1458 = vunpack.c.h.b16 %v839
        %v1459 = vunpack.c.l.b16 %v840
        %v1460 = vunpack.c.h.b16 %v840
        %v1461 = vunpack.c.l.b16 %v841
        %v1462 = vunpack.c.h.b16 %v841
        %v1463 = vunpack.c.l.b16 %v842
        %v1464 = vunpack.c.h.b16 %v842
        %v1465 = vunpack.c.l.b16 %v843
        %v1466 = vunpack.c.h.b16 %v843
        %v1467 = vunpack.c.l.b16 %v844
        %v1468 = vunpack.c.h.b16 %v844
        %v1469 = vunpack.c.l.b16 %v845
        %v1470 = vunpack.c.h.b16 %v845
        %v1471 = vunpack.c.l.b16 %v846
        %v1472 = vunpack.c.h.b16 %v846
        %v1473 = vunpack.c.l.b16 %v847
        %v1474 = vunpack.c.h.b16 %v847
        %v1475 = vunpack.c.l.b16 %v848
        %v1476 = vunpack.c.h.b16 %v848
        %v1477 = vunpack.c.l.b16 %v849
        %v1478 = vunpack.c.h.b16 %v849
        %v1479 = vunpack.c.l.b16 %v850
        %v1480 = vunpack.c.h.b16 %v850
        %v1481 = vunpack.c.l.b16 %v851
        %v1482 = vunpack.c.h.b16 %v851
        %v1483 = vunpack.c.l.b16 %v852
        %v1484 = vunpack.c.h.b16 %v852
        %v1485 = vunpack.c.l.b16 %v853
        %v1486 = vunpack.c.h.b16 %v853
        %v1487 = vunpack.c.l.b16 %v854
        %v1488 = vunpack.c.h.b16 %v854
        %v1489 = vunpack.c.l.b16 %v855
        %v1490 = vunpack.c.h.b16 %v855
        %v1491 = vunpack.c.l.b16 %v856
        %v1492 = vunpack.c.h.b16 %v856
        %v1493 = vunpack.c.l.b16 %v857
        %v1494 = vunpack.c.h.b16 %v857
        %v1495 = vunpack.c.l.b16 %v858
        %v1496 = vunpack.c.h.b16 %v858
        %v1497 = vunpack.c.l.b16 %v859
        %v1498 = vunpack.c.h.b16 %v859
        %v1499 = vunpack.c.l.b16 %v860
        %v1500 = vunpack.c.h.b16 %v860
        %v1501 = vunpack.c.l.b16 %v861
        %v1502 = vunpack.c.h.b16 %v861
        %v1503 = vunpack.c.l.b16 %v862
        %v1504 = vunpack.c.h.b16 %v862
        %v1505 = vunpack.c.l.b16 %v863
        %v1506 = vunpack.c.h.b16 %v863
        %v1507 = vunpack.c.l.b16 %v864
        %v1508 = vunpack.c.h.b16 %v864
        %v1509 = vunpack.c.l.b16 %v865
        %v1510 = vunpack.c.h.b16 %v865
        %v1511 = vunpack.c.l.b16 %v866
        %v1512 = vunpack.c.h.b16 %v866
        %v1513 = vunpack.c.l.b16 %v867
        %v1514 = vunpack.c.h.b16 %v867
        %v1515 = vunpack.c.l.b16 %v868
        %v1516 = vunpack.c.h.b16 %v868
        %v1517 = vunpack.c.l.b16 %v869
        %v1518 = vunpack.c.h.b16 %v869
        %v1519 = vunpack.c.l.b16 %v870
        %v1520 = vunpack.c.h.b16 %v870
        %v1521 = vunpack.c.l.b16 %v871
        %v1522 = vunpack.c.h.b16 %v871
        %v1523 = vunpack.c.l.b16 %v872
        %v1524 = vunpack.c.h.b16 %v872
        %v1525 = vunpack.c.l.b16 %v873
        %v1526 = vunpack.c.h.b16 %v873
        %v1527 = vunpack.c.l.b16 %v874
        %v1528 = vunpack.c.h.b16 %v874
        %v1529 = vunpack.c.l.b16 %v875
        %v1530 = vunpack.c.h.b16 %v875
        %v1531 = vunpack.c.l.b16 %v876
        %v1532 = vunpack.c.h.b16 %v876
        %v1533 = vunpack.c.l.b16 %v877
        %v1534 = vunpack.c.h.b16 %v877
        %v1535 = vunpack.c.l.b16 %v878
        %v1536 = vunpack.c.h.b16 %v878
        %v1537 = vunpack.c.l.b16 %v879
        %v1538 = vunpack.c.h.b16 %v879
        %v1539 = vunpack.c.l.b16 %v880
        %v1540 = vunpack.c.h.b16 %v880
        %v1541 = vunpack.c.l.b16 %v881
        %v1542 = vunpack.c.h.b16 %v881
        %v1543 = vunpack.c.l.b16 %v882
        %v1544 = vunpack.c.h.b16 %v882
        %v1545 = vunpack.c.l.b16 %v883
        %v1546 = vunpack.c.h.b16 %v883
        %v1547 = vunpack.c.l.b16 %v884
        %v1548 = vunpack.c.h.b16 %v884
        %v1549 = vunpack.c.l.b16 %v885
        %v1550 = vunpack.c.h.b16 %v885
        %v1551 = vunpack.c.l.b16 %v886
        %v1552 = vunpack.c.h.b16 %v886
        %v1553 = vunpack.c.l.b16 %v887
        %v1554 = vunpack.c.h.b16 %v887
        %v1555 = vunpack.c.l.b16 %v888
        %v1556 = vunpack.c.h.b16 %v888
        %v1557 = vunpack.c.l.b16 %v889
        %v1558 = vunpack.c.h.b16 %v889
        %v1559 = vunpack.c.l.b16 %v890
        %v1560 = vunpack.c.h.b16 %v890
        %v1561 = vunpack.c.l.b16 %v891
        %v1562 = vunpack.c.h.b16 %v891
        %v1563 = vunpack.c.l.b16 %v892
        %v1564 = vunpack.c.h.b16 %v892
        %v1565 = vunpack.c.l.b16 %v893
        %v1566 = vunpack.c.h.b16 %v893
        %v1567 = vunpack.c.l.b16 %v894
        %v1568 = vunpack.c.h.b16 %v894
        %v1569 = vunpack.c.l.b16 %v895
        %v1570 = vunpack.c.h.b16 %v895
        %v1571 = vunpack.c.l.b16 %v896
        %v1572 = vunpack.c.h.b16 %v896
        %v1573 = vunpack.c.l.b16 %v897
        %v1574 = vunpack.c.h.b16 %v897
        %v1575 = vunpack.c.l.b16 %v898
        %v1576 = vunpack.c.h.b16 %v898
        %v1577 = vunpack.c.l.b16 %v899
        %v1578 = vunpack.c.h.b16 %v899
        %v1579 = vunpack.c.l.b16 %v900
        %v1580 = vunpack.c.h.b16 %v900
        %v1581 = vunpack.c.l.b16 %v901
        %v1582 = vunpack.c.h.b16 %v901
        %v1583 = vunpack.c.l.b16 %v902
        %v1584 = vunpack.c.h.b16 %v902
        %v1585 = vunpack.c.l.b16 %v903
        %v1586 = vunpack.c.h.b16 %v903
        %v1587 = vunpack.c.l.b16 %v904
        %v1588 = vunpack.c.h.b16 %v904
        %v1589 = vunpack.c.l.b16 %v905
        %v1590 = vunpack.c.h.b16 %v905
        %v1591 = vunpack.c.l.b16 %v906
        %v1592 = vunpack.c.h.b16 %v906
        %v1593 = vunpack.c.l.b16 %v907
        %v1594 = vunpack.c.h.b16 %v907
        %v1595 = vunpack.c.l.b16 %v908
        %v1596 = vunpack.c.h.b16 %v908
        %v1597 = vunpack.c.l.b16 %v909
        %v1598 = vunpack.c.h.b16 %v909
        %v1599 = vunpack.c.l.b16 %v910
        %v1600 = vunpack.c.h.b16 %v910
        %v1601 = vunpack.c.l.b16 %v911
        %v1602 = vunpack.c.h.b16 %v911
        %v1603 = vunpack.c.l.b16 %v912
        %v1604 = vunpack.c.h.b16 %v912
        %v1605 = vunpack.c.l.b16 %v913
        %v1606 = vunpack.c.h.b16 %v913
        %v1607 = vunpack.c.l.b16 %v914
        %v1608 = vunpack.c.h.b16 %v914
        %v1609 = vunpack.c.l.b16 %v915
        %v1610 = vunpack.c.h.b16 %v915
        %v1611 = vunpack.c.l.b16 %v916
        %v1612 = vunpack.c.h.b16 %v916
        %v1613 = vunpack.c.l.b16 %v917
        %v1614 = vunpack.c.h.b16 %v917
        %v1615 = vunpack.c.l.b16 %v918
        %v1616 = vunpack.c.h.b16 %v918
        %v1617 = vunpack.c.l.b16 %v919
        %v1618 = vunpack.c.h.b16 %v919
        %v1619 = vunpack.c.l.b16 %v920
        %v1620 = vunpack.c.h.b16 %v920
        %v1621 = vunpack.c.l.b16 %v921
        %v1622 = vunpack.c.h.b16 %v921
        %v1623 = vunpack.c.l.b16 %v922
        %v1624 = vunpack.c.h.b16 %v922
        %v1625 = vunpack.c.l.b16 %v923
        %v1626 = vunpack.c.h.b16 %v923
        %v1627 = vunpack.c.l.b16 %v924
        %v1628 = vunpack.c.h.b16 %v924
        %v1629 = vunpack.c.l.b16 %v925
        %v1630 = vunpack.c.h.b16 %v925
        %v1631 = vunpack.c.l.b16 %v926
        %v1632 = vunpack.c.h.b16 %v926
        %v1633 = vunpack.c.l.b16 %v927
        %v1634 = vunpack.c.h.b16 %v927
        %v1635 = vunpack.c.l.b16 %v928
        %v1636 = vunpack.c.h.b16 %v928
        %v1637 = vunpack.c.l.b16 %v929
        %v1638 = vunpack.c.h.b16 %v929
        %v1639 = vunpack.c.l.b16 %v930
        %v1640 = vunpack.c.h.b16 %v930
        %v1641 = vunpack.c.l.b16 %v931
        %v1642 = vunpack.c.h.b16 %v931
        %v1643 = vunpack.c.l.b16 %v932
        %v1644 = vunpack.c.h.b16 %v932
        %v1645 = vunpack.c.l.b16 %v933
        %v1646 = vunpack.c.h.b16 %v933
        %v1647 = vunpack.c.l.b16 %v934
        %v1648 = vunpack.c.h.b16 %v934
        %v1649 = vunpack.c.l.b16 %v935
        %v1650 = vunpack.c.h.b16 %v935
        %v1651 = vunpack.c.l.b16 %v936
        %v1652 = vunpack.c.h.b16 %v936
        %v1653 = vunpack.c.l.b16 %v937
        %v1654 = vunpack.c.h.b16 %v937
        %v1655 = vunpack.c.l.b16 %v938
        %v1656 = vunpack.c.h.b16 %v938
        %v1657 = vunpack.c.l.b16 %v939
        %v1658 = vunpack.c.h.b16 %v939
        %v1659 = vunpack.c.l.b16 %v940
        %v1660 = vunpack.c.h.b16 %v940
        %v1661 = vunpack.c.l.b16 %v941
        %v1662 = vunpack.c.h.b16 %v941
        %v1663 = vunpack.c.l.b16 %v942
        %v1664 = vunpack.c.h.b16 %v942
        %v1665 = vunpack.c.l.b16 %v943
        %v1666 = vunpack.c.h.b16 %v943
        %v1667 = vunpack.c.l.b16 %v944
        %v1668 = vunpack.c.h.b16 %v944
        %v1669 = vunpack.c.l.b16 %v945
        %v1670 = vunpack.c.h.b16 %v945
        %v1671 = vunpack.c.l.b16 %v946
        %v1672 = vunpack.c.h.b16 %v946
        %v1673 = vunpack.c.l.b16 %v947
        %v1674 = vunpack.c.h.b16 %v947
        %v1675 = vunpack.c.l.b16 %v948
        %v1676 = vunpack.c.h.b16 %v948
        %v1677 = vunpack.c.l.b16 %v949
        %v1678 = vunpack.c.h.b16 %v949
        %v1679 = vunpack.c.l.b16 %v950
        %v1680 = vunpack.c.h.b16 %v950
        %v1681 = vunpack.c.l.b16 %v951
        %v1682 = vunpack.c.h.b16 %v951
        %v1683 = vunpack.c.l.b16 %v952
        %v1684 = vunpack.c.h.b16 %v952
        %v1685 = vunpack.c.l.b16 %v953
        %v1686 = vunpack.c.h.b16 %v953
        %v1687 = vunpack.c.l.b16 %v954
        %v1688 = vunpack.c.h.b16 %v954
        %v1689 = vunpack.c.l.b16 %v955
        %v1690 = vunpack.c.h.b16 %v955
        %v1691 = vunpack.c.l.b16 %v956
        %v1692 = vunpack.c.h.b16 %v956
        %v1693 = vunpack.c.l.b16 %v957
        %v1694 = vunpack.c.h.b16 %v957
        %v1695 = vunpack.c.l.b16 %v958
        %v1696 = vunpack.c.h.b16 %v958
        %v1697 = vunpack.c.l.b16 %v959
        %v1698 = vunpack.c.h.b16 %v959
        %v1699 = vunpack.c.l.b16 %v960
        %v1700 = vunpack.c.h.b16 %v960
        %v1701 = vunpack.c.l.b16 %v961
        %v1702 = vunpack.c.h.b16 %v961
        %v1703 = vunpack.c.l.b16 %v962
        %v1704 = vunpack.c.h.b16 %v962
        %v1705 = vunpack.c.l.b16 %v963
        %v1706 = vunpack.c.h.b16 %v963
        %v1707 = vunpack.c.l.b16 %v964
        %v1708 = vunpack.c.h.b16 %v964
        %v1709 = vunpack.c.l.b16 %v965
        %v1710 = vunpack.c.h.b16 %v965
        %v1711 = vunpack.c.l.b16 %v966
        %v1712 = vunpack.c.h.b16 %v966
        %v1713 = vunpack.c.l.b16 %v967
        %v1714 = vunpack.c.h.b16 %v967
        %v1715 = vunpack.c.l.b16 %v968
        %v1716 = vunpack.c.h.b16 %v968
        %v1717 = vunpack.c.l.b16 %v969
        %v1718 = vunpack.c.h.b16 %v969
        %v1719 = vunpack.c.l.b16 %v970
        %v1720 = vunpack.c.h.b16 %v970
        %v1721 = vunpack.c.l.b16 %v971
        %v1722 = vunpack.c.h.b16 %v971
        %v1723 = vunpack.c.l.b16 %v972
        %v1724 = vunpack.c.h.b16 %v972
        %v1725 = vunpack.c.l.b16 %v973
        %v1726 = vunpack.c.h.b16 %v973
        %v1727 = vunpack.c.l.b16 %v974
        %v1728 = vunpack.c.h.b16 %v974
        %v1729 = vunpack.c.l.b16 %v975
        %v1730 = vunpack.c.h.b16 %v975
        %v1731 = vunpack.c.l.b16 %v976
        %v1732 = vunpack.c.h.b16 %v976
        %v1733 = vunpack.c.l.b16 %v977
        %v1734 = vunpack.c.h.b16 %v977
        %v1735 = vunpack.c.l.b16 %v978
        %v1736 = vunpack.c.h.b16 %v978
        %v1737 = vunpack.c.l.b16 %v979
        %v1738 = vunpack.c.h.b16 %v979
        %v1739 = vunpack.c.l.b16 %v980
        %v1740 = vunpack.c.h.b16 %v980
        %v1741 = vunpack.c.l.b16 %v981
        %v1742 = vunpack.c.h.b16 %v981
        %v1743 = vunpack.c.l.b16 %v982
        %v1744 = vunpack.c.h.b16 %v982
        %v1745 = vunpack.c.l.b16 %v983
        %v1746 = vunpack.c.h.b16 %v983
        %v1747 = vunpack.c.l.b16 %v984
        %v1748 = vunpack.c.h.b16 %v984
        %v1749 = vunpack.c.l.b16 %v985
        %v1750 = vunpack.c.h.b16 %v985
        %v1751 = vunpack.c.l.b16 %v986
        %v1752 = vunpack.c.h.b16 %v986
        %v1753 = vunpack.c.l.b16 %v987
        %v1754 = vunpack.c.h.b16 %v987
        %v1755 = vunpack.c.l.b16 %v988
        %v1756 = vunpack.c.h.b16 %v988
        %v1757 = vunpack.c.l.b16 %v989
        %v1758 = vunpack.c.h.b16 %v989
        %v1759 = vunpack.c.l.b16 %v990
        %v1760 = vunpack.c.h.b16 %v990
        %v1761 = vunpack.c.l.b16 %v991
        %v1762 = vunpack.c.h.b16 %v991
        %v1763 = vunpack.c.l.b16 %v992
        %v1764 = vunpack.c.h.b16 %v992
        %v1765 = vunpack.c.l.b16 %v993
        %v1766 = vunpack.c.h.b16 %v993
        %v1767 = vunpack.c.l.b16 %v994
        %v1768 = vunpack.c.h.b16 %v994
        %v1769 = vunpack.c.l.b16 %v995
        %v1770 = vunpack.c.h.b16 %v995
        %v1771 = vunpack.c.l.b16 %v996
        %v1772 = vunpack.c.h.b16 %v996
        %v1773 = vunpack.c.l.b16 %v997
        %v1774 = vunpack.c.h.b16 %v997
        %v1775 = vunpack.c.l.b16 %v998
        %v1776 = vunpack.c.h.b16 %v998
        %v1777 = vunpack.c.l.b16 %v999
        %v1778 = vunpack.c.h.b16 %v999
        %v1779 = vunpack.c.l.b16 %v1000
        %v1780 = vunpack.c.h.b16 %v1000
        %v1781 = vunpack.c.l.b16 %v1001
        %v1782 = vunpack.c.h.b16 %v1001
        %v1783 = vunpack.c.l.b16 %v1002
        %v1784 = vunpack.c.h.b16 %v1002
        %v1785 = vunpack.c.l.b16 %v1003
        %v1786 = vunpack.c.h.b16 %v1003
        %v1787 = vunpack.c.l.b16 %v1004
        %v1788 = vunpack.c.h.b16 %v1004
        %v1789 = vunpack.c.l.b16 %v1005
        %v1790 = vunpack.c.h.b16 %v1005
        %v1791 = vunpack.c.l.b16 %v1006
        %v1792 = vunpack.c.h.b16 %v1006
        %v1793 = vunpack.c.l.b16 %v1007
        %v1794 = vunpack.c.h.b16 %v1007
        %v1795 = vunpack.c.l.b16 %v1008
        %v1796 = vunpack.c.h.b16 %v1008
        %v1797 = vpack.c.b16 %v1293, %v1285
        %v1798 = vpack.c.b16 %v1294, %v1286
        %v1799 = vpack.c.b16 %v1295, %v1287
        %v1800 = vpack.c.b16 %v1296, %v1288
        %v1801 = vpack.c.b16 %v1297, %v1289
        %v1802 = vpack.c.b16 %v1298, %v1290
        %v1803 = vpack.c.b16 %v1299, %v1291
        %v1804 = vpack.c.b16 %v1300, %v1292
        %v1805 = vpack.c.b16 %v1309, %v1301
        %v1806 = vpack.c.b16 %v1310, %v1302
        %v1807 = vpack.c.b16 %v1311, %v1303
        %v1808 = vpack.c.b16 %v1312, %v1304
        %v1809 = vpack.c.b16 %v1313, %v1305
        %v1810 = vpack.c.b16 %v1314, %v1306
        %v1811 = vpack.c.b16 %v1315, %v1307
        %v1812 = vpack.c.b16 %v1316, %v1308
        %v1813 = vpack.c.b16 %v1325, %v1317
        %v1814 = vpack.c.b16 %v1326, %v1318
        %v1815 = vpack.c.b16 %v1327, %v1319
        %v1816 = vpack.c.b16 %v1328, %v1320
        %v1817 = vpack.c.b16 %v1329, %v1321
        %v1818 = vpack.c.b16 %v1330, %v1322
        %v1819 = vpack.c.b16 %v1331, %v1323
        %v1820 = vpack.c.b16 %v1332, %v1324
        %v1821 = vpack.c.b16 %v1341, %v1333
        %v1822 = vpack.c.b16 %v1342, %v1334
        %v1823 = vpack.c.b16 %v1343, %v1335
        %v1824 = vpack.c.b16 %v1344, %v1336
        %v1825 = vpack.c.b16 %v1345, %v1337
        %v1826 = vpack.c.b16 %v1346, %v1338
        %v1827 = vpack.c.b16 %v1347, %v1339
        %v1828 = vpack.c.b16 %v1348, %v1340
        %v1829 = vpack.c.b16 %v1357, %v1349
        %v1830 = vpack.c.b16 %v1358, %v1350
        %v1831 = vpack.c.b16 %v1359, %v1351
        %v1832 = vpack.c.b16 %v1360, %v1352
        %v1833 = vpack.c.b16 %v1361, %v1353
        %v1834 = vpack.c.b16 %v1362, %v1354
        %v1835 = vpack.c.b16 %v1363, %v1355
        %v1836 = vpack.c.b16 %v1364, %v1356
        %v1837 = vpack.c.b16 %v1373, %v1365
        %v1838 = vpack.c.b16 %v1374, %v1366
        %v1839 = vpack.c.b16 %v1375, %v1367
        %v1840 = vpack.c.b16 %v1376, %v1368
        %v1841 = vpack.c.b16 %v1377, %v1369
        %v1842 = vpack.c.b16 %v1378, %v1370
        %v1843 = vpack.c.b16 %v1379, %v1371
        %v1844 = vpack.c.b16 %v1380, %v1372
        %v1845 = vpack.c.b16 %v1389, %v1381
        %v1846 = vpack.c.b16 %v1390, %v1382
        %v1847 = vpack.c.b16 %v1391, %v1383
        %v1848 = vpack.c.b16 %v1392, %v1384
        %v1849 = vpack.c.b16 %v1393, %v1385
        %v1850 = vpack.c.b16 %v1394, %v1386
        %v1851 = vpack.c.b16 %v1395, %v1387
        %v1852 = vpack.c.b16 %v1396, %v1388
        %v1853 = vpack.c.b16 %v1405, %v1397
        %v1854 = vpack.c.b16 %v1406, %v1398
        %v1855 = vpack.c.b16 %v1407, %v1399
        %v1856 = vpack.c.b16 %v1408, %v1400
        %v1857 = vpack.c.b16 %v1409, %v1401
        %v1858 = vpack.c.b16 %v1410, %v1402
        %v1859 = vpack.c.b16 %v1411, %v1403
        %v1860 = vpack.c.b16 %v1412, %v1404
        %v1861 = vpack.c.b16 %v1421, %v1413
        %v1862 = vpack.c.b16 %v1422, %v1414
        %v1863 = vpack.c.b16 %v1423, %v1415
        %v1864 = vpack.c.b16 %v1424, %v1416
        %v1865 = vpack.c.b16 %v1425, %v1417
        %v1866 = vpack.c.b16 %v1426, %v1418
        %v1867 = vpack.c.b16 %v1427, %v1419
        %v1868 = vpack.c.b16 %v1428, %v1420
        %v1869 = vpack.c.b16 %v1437, %v1429
        %v1870 = vpack.c.b16 %v1438, %v1430
        %v1871 = vpack.c.b16 %v1439, %v1431
        %v1872 = vpack.c.b16 %v1440, %v1432
        %v1873 = vpack.c.b16 %v1441, %v1433
        %v1874 = vpack.c.b16 %v1442, %v1434
        %v1875 = vpack.c.b16 %v1443, %v1435
        %v1876 = vpack.c.b16 %v1444, %v1436
        %v1877 = vpack.c.b16 %v1453, %v1445
        %v1878 = vpack.c.b16 %v1454, %v1446
        %v1879 = vpack.c.b16 %v1455, %v1447
        %v1880 = vpack.c.b16 %v1456, %v1448
        %v1881 = vpack.c.b16 %v1457, %v1449
        %v1882 = vpack.c.b16 %v1458, %v1450
        %v1883 = vpack.c.b16 %v1459, %v1451
        %v1884 = vpack.c.b16 %v1460, %v1452
        %v1885 = vpack.c.b16 %v1469, %v1461
        %v1886 = vpack.c.b16 %v1470, %v1462
        %v1887 = vpack.c.b16 %v1471, %v1463
        %v1888 = vpack.c.b16 %v1472, %v1464
        %v1889 = vpack.c.b16 %v1473, %v1465
        %v1890 = vpack.c.b16 %v1474, %v1466
        %v1891 = vpack.c.b16 %v1475, %v1467
        %v1892 = vpack.c.b16 %v1476, %v1468
        %v1893 = vpack.c.b16 %v1485, %v1477
        %v1894 = vpack.c.b16 %v1486, %v1478
        %v1895 = vpack.c.b16 %v1487, %v1479
        %v1896 = vpack.c.b16 %v1488, %v1480
        %v1897 = vpack.c.b16 %v1489, %v1481
        %v1898 = vpack.c.b16 %v1490, %v1482
        %v1899 = vpack.c.b16 %v1491, %v1483
        %v1900 = vpack.c.b16 %v1492, %v1484
        %v1901 = vpack.c.b16 %v1501, %v1493
        %v1902 = vpack.c.b16 %v1502, %v1494
        %v1903 = vpack.c.b16 %v1503, %v1495
        %v1904 = vpack.c.b16 %v1504, %v1496
        %v1905 = vpack.c.b16 %v1505, %v1497
        %v1906 = vpack.c.b16 %v1506, %v1498
        %v1907 = vpack.c.b16 %v1507, %v1499
        %v1908 = vpack.c.b16 %v1508, %v1500
        %v1909 = vpack.c.b16 %v1517, %v1509
        %v1910 = vpack.c.b16 %v1518, %v1510
        %v1911 = vpack.c.b16 %v1519, %v1511
        %v1912 = vpack.c.b16 %v1520, %v1512
        %v1913 = vpack.c.b16 %v1521, %v1513
        %v1914 = vpack.c.b16 %v1522, %v1514
        %v1915 = vpack.c.b16 %v1523, %v1515
        %v1916 = vpack.c.b16 %v1524, %v1516
        %v1917 = vpack.c.b16 %v1533, %v1525
        %v1918 = vpack.c.b16 %v1534, %v1526
        %v1919 = vpack.c.b16 %v1535, %v1527
        %v1920 = vpack.c.b16 %v1536, %v1528
        %v1921 = vpack.c.b16 %v1537, %v1529
        %v1922 = vpack.c.b16 %v1538, %v1530
        %v1923 = vpack.c.b16 %v1539, %v1531
        %v1924 = vpack.c.b16 %v1540, %v1532
        %v1925 = vpack.c.b16 %v1549, %v1541
        %v1926 = vpack.c.b16 %v1550, %v1542
        %v1927 = vpack.c.b16 %v1551, %v1543
        %v1928 = vpack.c.b16 %v1552, %v1544
        %v1929 = vpack.c.b16 %v1553, %v1545
        %v1930 = vpack.c.b16 %v1554, %v1546
        %v1931 = vpack.c.b16 %v1555, %v1547
        %v1932 = vpack.c.b16 %v1556, %v1548
        %v1933 = vpack.c.b16 %v1565, %v1557
        %v1934 = vpack.c.b16 %v1566, %v1558
        %v1935 = vpack.c.b16 %v1567, %v1559
        %v1936 = vpack.c.b16 %v1568, %v1560
        %v1937 = vpack.c.b16 %v1569, %v1561
        %v1938 = vpack.c.b16 %v1570, %v1562
        %v1939 = vpack.c.b16 %v1571, %v1563
        %v1940 = vpack.c.b16 %v1572, %v1564
        %v1941 = vpack.c.b16 %v1581, %v1573
        %v1942 = vpack.c.b16 %v1582, %v1574
        %v1943 = vpack.c.b16 %v1583, %v1575
        %v1944 = vpack.c.b16 %v1584, %v1576
        %v1945 = vpack.c.b16 %v1585, %v1577
        %v1946 = vpack.c.b16 %v1586, %v1578
        %v1947 = vpack.c.b16 %v1587, %v1579
        %v1948 = vpack.c.b16 %v1588, %v1580
        %v1949 = vpack.c.b16 %v1597, %v1589
        %v1950 = vpack.c.b16 %v1598, %v1590
        %v1951 = vpack.c.b16 %v1599, %v1591
        %v1952 = vpack.c.b16 %v1600, %v1592
        %v1953 = vpack.c.b16 %v1601, %v1593
        %v1954 = vpack.c.b16 %v1602, %v1594
        %v1955 = vpack.c.b16 %v1603, %v1595
        %v1956 = vpack.c.b16 %v1604, %v1596
        %v1957 = vpack.c.b16 %v1613, %v1605
        %v1958 = vpack.c.b16 %v1614, %v1606
        %v1959 = vpack.c.b16 %v1615, %v1607
        %v1960 = vpack.c.b16 %v1616, %v1608
        %v1961 = vpack.c.b16 %v1617, %v1609
        %v1962 = vpack.c.b16 %v1618, %v1610
        %v1963 = vpack.c.b16 %v1619, %v1611
        %v1964 = vpack.c.b16 %v1620, %v1612
        %v1965 = vpack.c.b16 %v1629, %v1621
        %v1966 = vpack.c.b16 %v1630, %v1622
        %v1967 = vpack.c.b16 %v1631, %v1623
        %v1968 = vpack.c.b16 %v1632, %v1624
        %v1969 = vpack.c.b16 %v1633, %v1625
        %v1970 = vpack.c.b16 %v1634, %v1626
        %v1971 = vpack.c.b16 %v1635, %v1627
        %v1972 = vpack.c.b16 %v1636, %v1628
        %v1973 = vpack.c.b16 %v1645, %v1637
        %v1974 = vpack.c.b16 %v1646, %v1638
        %v1975 = vpack.c.b16 %v1647, %v1639
        %v1976 = vpack.c.b16 %v1648, %v1640
        %v1977 = vpack.c.b16 %v1649, %v1641
        %v1978 = vpack.c.b16 %v1650, %v1642
        %v1979 = vpack.c.b16 %v1651, %v1643
        %v1980 = vpack.c.b16 %v1652, %v1644
        %v1981 = vpack.c.b16 %v1661, %v1653
        %v1982 = vpack.c.b16 %v1662, %v1654
        %v1983 = vpack.c.b16 %v1663, %v1655
        %v1984 = vpack.c.b16 %v1664, %v1656
        %v1985 = vpack.c.b16 %v1665, %v1657
        %v1986 = vpack.c.b16 %v1666, %v1658
        %v1987 = vpack.c.b16 %v1667, %v1659
        %v1988 = vpack.c.b16 %v1668, %v1660
        %v1989 = vpack.c.b16 %v1677, %v1669
        %v1990 = vpack.c.b16 %v1678, %v1670
        %v1991 = vpack.c.b16 %v1679, %v1671
        %v1992 = vpack.c.b16 %v1680, %v1672
        %v1993 = vpack.c.b16 %v1681, %v1673
        %v1994 = vpack.c.b16 %v1682, %v1674
        %v1995 = vpack.c.b16 %v1683, %v1675
        %v1996 = vpack.c.b16 %v1684, %v1676
        %v1997 = vpack.c.b16 %v1693, %v1685
        %v1998 = vpack.c.b16 %v1694, %v1686
        %v1999 = vpack.c.b16 %v1695, %v1687
        %v2000 = vpack.c.b16 %v1696, %v1688
        %v2001 = vpack.c.b16 %v1697, %v1689
        %v2002 = vpack.c.b16 %v1698, %v1690
        %v2003 = vpack.c.b16 %v1699, %v1691
        %v2004 = vpack.c.b16 %v1700, %v1692
        %v2005 = vpack.c.b16 %v1709, %v1701
        %v2006 = vpack.c.b16 %v1710, %v1702
        %v2007 = vpack.c.b16 %v1711, %v1703
        %v2008 = vpack.c.b16 %v1712, %v1704
        %v2009 = vpack.c.b16 %v1713, %v1705
        %v2010 = vpack.c.b16 %v1714, %v1706
        %v2011 = vpack.c.b16 %v1715, %v1707
        %v2012 = vpack.c.b16 %v1716, %v1708
        %v2013 = vpack.c.b16 %v1725, %v1717
        %v2014 = vpack.c.b16 %v1726, %v1718
        %v2015 = vpack.c.b16 %v1727, %v1719
        %v2016 = vpack.c.b16 %v1728, %v1720
        %v2017 = vpack.c.b16 %v1729, %v1721
        %v2018 = vpack.c.b16 %v1730, %v1722
        %v2019 = vpack.c.b16 %v1731, %v1723
        %v2020 = vpack.c.b16 %v1732, %v1724
        %v2021 = vpack.c.b16 %v1741, %v1733
        %v2022 = vpack.c.b16 %v1742, %v1734
        %v2023 = vpack.c.b16 %v1743, %v1735
        %v2024 = vpack.c.b16 %v1744, %v1736
        %v2025 = vpack.c.b16 %v1745, %v1737
        %v2026 = vpack.c.b16 %v1746, %v1738
        %v2027 = vpack.c.b16 %v1747, %v1739
        %v2028 = vpack.c.b16 %v1748, %v1740
        %v2029 = vpack.c.b16 %v1757, %v1749
        %v2030 = vpack.c.b16 %v1758, %v1750
        %v2031 = vpack.c.b16 %v1759, %v1751
        %v2032 = vpack.c.b16 %v1760, %v1752
        %v2033 = vpack.c.b16 %v1761, %v1753
        %v2034 = vpack.c.b16 %v1762, %v1754
        %v2035 = vpack.c.b16 %v1763, %v1755
        %v2036 = vpack.c.b16 %v1764, %v1756
        %v2037 = vpack.c.b16 %v1773, %v1765
        %v2038 = vpack.c.b16 %v1774, %v1766
        %v2039 = vpack.c.b16 %v1775, %v1767
        %v2040 = vpack.c.b16 %v1776, %v1768
        %v2041 = vpack.c.b16 %v1777, %v1769
        %v2042 = vpack.c.b16 %v1778, %v1770
        %v2043 = vpack.c.b16 %v1779, %v1771
        %v2044 = vpack.c.b16 %v1780, %v1772
        %v2045 = vpack.c.b16 %v1789, %v1781
        %v2046 = vpack.c.b16 %v1790, %v1782
        %v2047 = vpack.c.b16 %v1791, %v1783
        %v2048 = vpack.c.b16 %v1792, %v1784
        %v2049 = vpack.c.b16 %v1793, %v1785
        %v2050 = vpack.c.b16 %v1794, %v1786
        %v2051 = vpack.c.b16 %v1795, %v1787
        %v2052 = vpack.c.b16 %v1796, %v1788
        %2309 = vmatpush.bf16.msra.mxu0 %v1853
        %2310 = vmatpush.bf16.msra.mxu0 %v1845
        %2311 = vmatpush.bf16.msra.mxu0 %v1837
        %2312 = vmatpush.bf16.msra.mxu0 %v1829
        %2313 = vmatpush.bf16.msra.mxu0 %v1821
        %2314 = vmatpush.bf16.msra.mxu0 %v1813
        %2315 = vmatpush.bf16.msra.mxu0 %v1805
        %2316 = vmatpush.bf16.msra.mxu0 %v1797
        %2317 = vmatmul.bf16.gmra.mxu0 %v1021
        %v2318 = vpop.f32.mrf.mxu0
        %v2319 = vadd.f32 0.0, %v2318
        %v2320 = vpop.f32.mrf.mxu0
        %v2321 = vadd.f32 0.0, %v2320
        %2322 = vdwg.mxu0
        %2323 = vmatpush.bf16.msra.mxu0 %v1917
        %2324 = vmatpush.bf16.msra.mxu0 %v1909
        %2325 = vmatpush.bf16.msra.mxu0 %v1901
        %2326 = vmatpush.bf16.msra.mxu0 %v1893
        %2327 = vmatpush.bf16.msra.mxu0 %v1885
        %2328 = vmatpush.bf16.msra.mxu0 %v1877
        %2329 = vmatpush.bf16.msra.mxu0 %v1869
        %2330 = vmatpush.bf16.msra.mxu0 %v1861
        %2331 = vmatmul.bf16.gmra.mxu0 %v1022
        %v2332 = vpop.f32.mrf.mxu0
        %v2333 = vadd.f32 %v2319, %v2332
        %v2334 = vpop.f32.mrf.mxu0
        %v2335 = vadd.f32 %v2321, %v2334
        %2336 = vdwg.mxu0
        %2337 = vmatpush.bf16.msra.mxu0 %v1981
        %2338 = vmatpush.bf16.msra.mxu0 %v1973
        %2339 = vmatpush.bf16.msra.mxu0 %v1965
        %2340 = vmatpush.bf16.msra.mxu0 %v1957
        %2341 = vmatpush.bf16.msra.mxu0 %v1949
        %2342 = vmatpush.bf16.msra.mxu0 %v1941
        %2343 = vmatpush.bf16.msra.mxu0 %v1933
        %2344 = vmatpush.bf16.msra.mxu0 %v1925
        %2345 = vmatmul.bf16.gmra.mxu0 %v1023
        %v2346 = vpop.f32.mrf.mxu0
        %v2347 = vadd.f32 %v2333, %v2346
        %v2348 = vpop.f32.mrf.mxu0
        %v2349 = vadd.f32 %v2335, %v2348
        %2350 = vdwg.mxu0
        %2351 = vmatpush.bf16.msra.mxu0 %v2045
        %2352 = vmatpush.bf16.msra.mxu0 %v2037
        %2353 = vmatpush.bf16.msra.mxu0 %v2029
        %2354 = vmatpush.bf16.msra.mxu0 %v2021
        %2355 = vmatpush.bf16.msra.mxu0 %v2013
        %2356 = vmatpush.bf16.msra.mxu0 %v2005
        %2357 = vmatpush.bf16.msra.mxu0 %v1997
        %2358 = vmatpush.bf16.msra.mxu0 %v1989
        %2359 = vmatmul.bf16.gmra.mxu0 %v1024
        %v2360 = vpop.f32.mrf.mxu0
        %v2361 = vadd.f32 %v2347, %v2360
        %v2362 = vpop.f32.mrf.mxu0
        %v2363 = vadd.f32 %v2349, %v2362
        %2364 = vdwg.mxu0
        %2365 = vmatpush.bf16.msra.mxu0 %v1854
        %2366 = vmatpush.bf16.msra.mxu0 %v1846
        %2367 = vmatpush.bf16.msra.mxu0 %v1838
        %2368 = vmatpush.bf16.msra.mxu0 %v1830
        %2369 = vmatpush.bf16.msra.mxu0 %v1822
        %2370 = vmatpush.bf16.msra.mxu0 %v1814
        %2371 = vmatpush.bf16.msra.mxu0 %v1806
        %2372 = vmatpush.bf16.msra.mxu0 %v1798
        %2373 = vmatmul.bf16.gmra.mxu0 %v1021
        %v2374 = vpop.f32.mrf.mxu0
        %v2375 = vadd.f32 0.0, %v2374
        %v2376 = vpop.f32.mrf.mxu0
        %v2377 = vadd.f32 0.0, %v2376
        %2378 = vdwg.mxu0
        %2379 = vmatpush.bf16.msra.mxu0 %v1918
        %2380 = vmatpush.bf16.msra.mxu0 %v1910
        %2381 = vmatpush.bf16.msra.mxu0 %v1902
        %2382 = vmatpush.bf16.msra.mxu0 %v1894
        %2383 = vmatpush.bf16.msra.mxu0 %v1886
        %2384 = vmatpush.bf16.msra.mxu0 %v1878
        %2385 = vmatpush.bf16.msra.mxu0 %v1870
        %2386 = vmatpush.bf16.msra.mxu0 %v1862
        %2387 = vmatmul.bf16.gmra.mxu0 %v1022
        %v2388 = vpop.f32.mrf.mxu0
        %v2389 = vadd.f32 %v2375, %v2388
        %v2390 = vpop.f32.mrf.mxu0
        %v2391 = vadd.f32 %v2377, %v2390
        %2392 = vdwg.mxu0
        %2393 = vmatpush.bf16.msra.mxu0 %v1982
        %2394 = vmatpush.bf16.msra.mxu0 %v1974
        %2395 = vmatpush.bf16.msra.mxu0 %v1966
        %2396 = vmatpush.bf16.msra.mxu0 %v1958
        %2397 = vmatpush.bf16.msra.mxu0 %v1950
        %2398 = vmatpush.bf16.msra.mxu0 %v1942
        %2399 = vmatpush.bf16.msra.mxu0 %v1934
        %2400 = vmatpush.bf16.msra.mxu0 %v1926
        %2401 = vmatmul.bf16.gmra.mxu0 %v1023
        %v2402 = vpop.f32.mrf.mxu0
        %v2403 = vadd.f32 %v2389, %v2402
        %v2404 = vpop.f32.mrf.mxu0
        %v2405 = vadd.f32 %v2391, %v2404
        %2406 = vdwg.mxu0
        %2407 = vmatpush.bf16.msra.mxu0 %v2046
        %2408 = vmatpush.bf16.msra.mxu0 %v2038
        %2409 = vmatpush.bf16.msra.mxu0 %v2030
        %2410 = vmatpush.bf16.msra.mxu0 %v2022
        %2411 = vmatpush.bf16.msra.mxu0 %v2014
        %2412 = vmatpush.bf16.msra.mxu0 %v2006
        %2413 = vmatpush.bf16.msra.mxu0 %v1998
        %2414 = vmatpush.bf16.msra.mxu0 %v1990
        %2415 = vmatmul.bf16.gmra.mxu0 %v1024
        %v2416 = vpop.f32.mrf.mxu0
        %v2417 = vadd.f32 %v2403, %v2416
        %v2418 = vpop.f32.mrf.mxu0
        %v2419 = vadd.f32 %v2405, %v2418
        %2420 = vdwg.mxu0
        %2421 = vmatpush.bf16.msra.mxu0 %v1855
        %2422 = vmatpush.bf16.msra.mxu0 %v1847
        %2423 = vmatpush.bf16.msra.mxu0 %v1839
        %2424 = vmatpush.bf16.msra.mxu0 %v1831
        %2425 = vmatpush.bf16.msra.mxu0 %v1823
        %2426 = vmatpush.bf16.msra.mxu0 %v1815
        %2427 = vmatpush.bf16.msra.mxu0 %v1807
        %2428 = vmatpush.bf16.msra.mxu0 %v1799
        %2429 = vmatmul.bf16.gmra.mxu0 %v1021
        %v2430 = vpop.f32.mrf.mxu0
        %v2431 = vadd.f32 0.0, %v2430
        %v2432 = vpop.f32.mrf.mxu0
        %v2433 = vadd.f32 0.0, %v2432
        %2434 = vdwg.mxu0
        %2435 = vmatpush.bf16.msra.mxu0 %v1919
        %2436 = vmatpush.bf16.msra.mxu0 %v1911
        %2437 = vmatpush.bf16.msra.mxu0 %v1903
        %2438 = vmatpush.bf16.msra.mxu0 %v1895
        %2439 = vmatpush.bf16.msra.mxu0 %v1887
        %2440 = vmatpush.bf16.msra.mxu0 %v1879
        %2441 = vmatpush.bf16.msra.mxu0 %v1871
        %2442 = vmatpush.bf16.msra.mxu0 %v1863
        %2443 = vmatmul.bf16.gmra.mxu0 %v1022
        %v2444 = vpop.f32.mrf.mxu0
        %v2445 = vadd.f32 %v2431, %v2444
        %v2446 = vpop.f32.mrf.mxu0
        %v2447 = vadd.f32 %v2433, %v2446
        %2448 = vdwg.mxu0
        %2449 = vmatpush.bf16.msra.mxu0 %v1983
        %2450 = vmatpush.bf16.msra.mxu0 %v1975
        %2451 = vmatpush.bf16.msra.mxu0 %v1967
        %2452 = vmatpush.bf16.msra.mxu0 %v1959
        %2453 = vmatpush.bf16.msra.mxu0 %v1951
        %2454 = vmatpush.bf16.msra.mxu0 %v1943
        %2455 = vmatpush.bf16.msra.mxu0 %v1935
        %2456 = vmatpush.bf16.msra.mxu0 %v1927
        %2457 = vmatmul.bf16.gmra.mxu0 %v1023
        %v2458 = vpop.f32.mrf.mxu0
        %v2459 = vadd.f32 %v2445, %v2458
        %v2460 = vpop.f32.mrf.mxu0
        %v2461 = vadd.f32 %v2447, %v2460
        %2462 = vdwg.mxu0
        %2463 = vmatpush.bf16.msra.mxu0 %v2047
        %2464 = vmatpush.bf16.msra.mxu0 %v2039
        %2465 = vmatpush.bf16.msra.mxu0 %v2031
        %2466 = vmatpush.bf16.msra.mxu0 %v2023
        %2467 = vmatpush.bf16.msra.mxu0 %v2015
        %2468 = vmatpush.bf16.msra.mxu0 %v2007
        %2469 = vmatpush.bf16.msra.mxu0 %v1999
        %2470 = vmatpush.bf16.msra.mxu0 %v1991
        %2471 = vmatmul.bf16.gmra.mxu0 %v1024
        %v2472 = vpop.f32.mrf.mxu0
        %v2473 = vadd.f32 %v2459, %v2472
        %v2474 = vpop.f32.mrf.mxu0
        %v2475 = vadd.f32 %v2461, %v2474
        %2476 = vdwg.mxu0
        %2477 = vmatpush.bf16.msra.mxu0 %v1856
        %2478 = vmatpush.bf16.msra.mxu0 %v1848
        %2479 = vmatpush.bf16.msra.mxu0 %v1840
        %2480 = vmatpush.bf16.msra.mxu0 %v1832
        %2481 = vmatpush.bf16.msra.mxu0 %v1824
        %2482 = vmatpush.bf16.msra.mxu0 %v1816
        %2483 = vmatpush.bf16.msra.mxu0 %v1808
        %2484 = vmatpush.bf16.msra.mxu0 %v1800
        %2485 = vmatmul.bf16.gmra.mxu0 %v1021
        %v2486 = vpop.f32.mrf.mxu0
        %v2487 = vadd.f32 0.0, %v2486
        %v2488 = vpop.f32.mrf.mxu0
        %v2489 = vadd.f32 0.0, %v2488
        %2490 = vdwg.mxu0
        %2491 = vmatpush.bf16.msra.mxu0 %v1920
        %2492 = vmatpush.bf16.msra.mxu0 %v1912
        %2493 = vmatpush.bf16.msra.mxu0 %v1904
        %2494 = vmatpush.bf16.msra.mxu0 %v1896
        %2495 = vmatpush.bf16.msra.mxu0 %v1888
        %2496 = vmatpush.bf16.msra.mxu0 %v1880
        %2497 = vmatpush.bf16.msra.mxu0 %v1872
        %2498 = vmatpush.bf16.msra.mxu0 %v1864
        %2499 = vmatmul.bf16.gmra.mxu0 %v1022
        %v2500 = vpop.f32.mrf.mxu0
        %v2501 = vadd.f32 %v2487, %v2500
        %v2502 = vpop.f32.mrf.mxu0
        %v2503 = vadd.f32 %v2489, %v2502
        %2504 = vdwg.mxu0
        %2505 = vmatpush.bf16.msra.mxu0 %v1984
        %2506 = vmatpush.bf16.msra.mxu0 %v1976
        %2507 = vmatpush.bf16.msra.mxu0 %v1968
        %2508 = vmatpush.bf16.msra.mxu0 %v1960
        %2509 = vmatpush.bf16.msra.mxu0 %v1952
        %2510 = vmatpush.bf16.msra.mxu0 %v1944
        %2511 = vmatpush.bf16.msra.mxu0 %v1936
        %2512 = vmatpush.bf16.msra.mxu0 %v1928
        %2513 = vmatmul.bf16.gmra.mxu0 %v1023
        %v2514 = vpop.f32.mrf.mxu0
        %v2515 = vadd.f32 %v2501, %v2514
        %v2516 = vpop.f32.mrf.mxu0
        %v2517 = vadd.f32 %v2503, %v2516
        %2518 = vdwg.mxu0
        %2519 = vmatpush.bf16.msra.mxu0 %v2048
        %2520 = vmatpush.bf16.msra.mxu0 %v2040
        %2521 = vmatpush.bf16.msra.mxu0 %v2032
        %2522 = vmatpush.bf16.msra.mxu0 %v2024
        %2523 = vmatpush.bf16.msra.mxu0 %v2016
        %2524 = vmatpush.bf16.msra.mxu0 %v2008
        %2525 = vmatpush.bf16.msra.mxu0 %v2000
        %2526 = vmatpush.bf16.msra.mxu0 %v1992
        %2527 = vmatmul.bf16.gmra.mxu0 %v1024
        %v2528 = vpop.f32.mrf.mxu0
        %v2529 = vadd.f32 %v2515, %v2528
        %v2530 = vpop.f32.mrf.mxu0
        %v2531 = vadd.f32 %v2517, %v2530
        %2532 = vdwg.mxu0
        %2533 = vmatpush.bf16.msra.mxu0 %v1857
        %2534 = vmatpush.bf16.msra.mxu0 %v1849
        %2535 = vmatpush.bf16.msra.mxu0 %v1841
        %2536 = vmatpush.bf16.msra.mxu0 %v1833
        %2537 = vmatpush.bf16.msra.mxu0 %v1825
        %2538 = vmatpush.bf16.msra.mxu0 %v1817
        %2539 = vmatpush.bf16.msra.mxu0 %v1809
        %2540 = vmatpush.bf16.msra.mxu0 %v1801
        %2541 = vmatmul.bf16.gmra.mxu0 %v1021
        %v2542 = vpop.f32.mrf.mxu0
        %v2543 = vadd.f32 0.0, %v2542
        %v2544 = vpop.f32.mrf.mxu0
        %v2545 = vadd.f32 0.0, %v2544
        %2546 = vdwg.mxu0
        %2547 = vmatpush.bf16.msra.mxu0 %v1921
        %2548 = vmatpush.bf16.msra.mxu0 %v1913
        %2549 = vmatpush.bf16.msra.mxu0 %v1905
        %2550 = vmatpush.bf16.msra.mxu0 %v1897
        %2551 = vmatpush.bf16.msra.mxu0 %v1889
        %2552 = vmatpush.bf16.msra.mxu0 %v1881
        %2553 = vmatpush.bf16.msra.mxu0 %v1873
        %2554 = vmatpush.bf16.msra.mxu0 %v1865
        %2555 = vmatmul.bf16.gmra.mxu0 %v1022
        %v2556 = vpop.f32.mrf.mxu0
        %v2557 = vadd.f32 %v2543, %v2556
        %v2558 = vpop.f32.mrf.mxu0
        %v2559 = vadd.f32 %v2545, %v2558
        %2560 = vdwg.mxu0
        %2561 = vmatpush.bf16.msra.mxu0 %v1985
        %2562 = vmatpush.bf16.msra.mxu0 %v1977
        %2563 = vmatpush.bf16.msra.mxu0 %v1969
        %2564 = vmatpush.bf16.msra.mxu0 %v1961
        %2565 = vmatpush.bf16.msra.mxu0 %v1953
        %2566 = vmatpush.bf16.msra.mxu0 %v1945
        %2567 = vmatpush.bf16.msra.mxu0 %v1937
        %2568 = vmatpush.bf16.msra.mxu0 %v1929
        %2569 = vmatmul.bf16.gmra.mxu0 %v1023
        %v2570 = vpop.f32.mrf.mxu0
        %v2571 = vadd.f32 %v2557, %v2570
        %v2572 = vpop.f32.mrf.mxu0
        %v2573 = vadd.f32 %v2559, %v2572
        %2574 = vdwg.mxu0
        %2575 = vmatpush.bf16.msra.mxu0 %v2049
        %2576 = vmatpush.bf16.msra.mxu0 %v2041
        %2577 = vmatpush.bf16.msra.mxu0 %v2033
        %2578 = vmatpush.bf16.msra.mxu0 %v2025
        %2579 = vmatpush.bf16.msra.mxu0 %v2017
        %2580 = vmatpush.bf16.msra.mxu0 %v2009
        %2581 = vmatpush.bf16.msra.mxu0 %v2001
        %2582 = vmatpush.bf16.msra.mxu0 %v1993
        %2583 = vmatmul.bf16.gmra.mxu0 %v1024
        %v2584 = vpop.f32.mrf.mxu0
        %v2585 = vadd.f32 %v2571, %v2584
        %v2586 = vpop.f32.mrf.mxu0
        %v2587 = vadd.f32 %v2573, %v2586
        %2588 = vdwg.mxu0
        %2589 = vmatpush.bf16.msra.mxu0 %v1858
        %2590 = vmatpush.bf16.msra.mxu0 %v1850
        %2591 = vmatpush.bf16.msra.mxu0 %v1842
        %2592 = vmatpush.bf16.msra.mxu0 %v1834
        %2593 = vmatpush.bf16.msra.mxu0 %v1826
        %2594 = vmatpush.bf16.msra.mxu0 %v1818
        %2595 = vmatpush.bf16.msra.mxu0 %v1810
        %2596 = vmatpush.bf16.msra.mxu0 %v1802
        %2597 = vmatmul.bf16.gmra.mxu0 %v1021
        %v2598 = vpop.f32.mrf.mxu0
        %v2599 = vadd.f32 0.0, %v2598
        %v2600 = vpop.f32.mrf.mxu0
        %v2601 = vadd.f32 0.0, %v2600
        %2602 = vdwg.mxu0
        %2603 = vmatpush.bf16.msra.mxu0 %v1922
        %2604 = vmatpush.bf16.msra.mxu0 %v1914
        %2605 = vmatpush.bf16.msra.mxu0 %v1906
        %2606 = vmatpush.bf16.msra.mxu0 %v1898
        %2607 = vmatpush.bf16.msra.mxu0 %v1890
        %2608 = vmatpush.bf16.msra.mxu0 %v1882
        %2609 = vmatpush.bf16.msra.mxu0 %v1874
        %2610 = vmatpush.bf16.msra.mxu0 %v1866
        %2611 = vmatmul.bf16.gmra.mxu0 %v1022
        %v2612 = vpop.f32.mrf.mxu0
        %v2613 = vadd.f32 %v2599, %v2612
        %v2614 = vpop.f32.mrf.mxu0
        %v2615 = vadd.f32 %v2601, %v2614
        %2616 = vdwg.mxu0
        %2617 = vmatpush.bf16.msra.mxu0 %v1986
        %2618 = vmatpush.bf16.msra.mxu0 %v1978
        %2619 = vmatpush.bf16.msra.mxu0 %v1970
        %2620 = vmatpush.bf16.msra.mxu0 %v1962
        %2621 = vmatpush.bf16.msra.mxu0 %v1954
        %2622 = vmatpush.bf16.msra.mxu0 %v1946
        %2623 = vmatpush.bf16.msra.mxu0 %v1938
        %2624 = vmatpush.bf16.msra.mxu0 %v1930
        %2625 = vmatmul.bf16.gmra.mxu0 %v1023
        %v2626 = vpop.f32.mrf.mxu0
        %v2627 = vadd.f32 %v2613, %v2626
        %v2628 = vpop.f32.mrf.mxu0
        %v2629 = vadd.f32 %v2615, %v2628
        %2630 = vdwg.mxu0
        %2631 = vmatpush.bf16.msra.mxu0 %v2050
        %2632 = vmatpush.bf16.msra.mxu0 %v2042
        %2633 = vmatpush.bf16.msra.mxu0 %v2034
        %2634 = vmatpush.bf16.msra.mxu0 %v2026
        %2635 = vmatpush.bf16.msra.mxu0 %v2018
        %2636 = vmatpush.bf16.msra.mxu0 %v2010
        %2637 = vmatpush.bf16.msra.mxu0 %v2002
        %2638 = vmatpush.bf16.msra.mxu0 %v1994
        %2639 = vmatmul.bf16.gmra.mxu0 %v1024
        %v2640 = vpop.f32.mrf.mxu0
        %v2641 = vadd.f32 %v2627, %v2640
        %v2642 = vpop.f32.mrf.mxu0
        %v2643 = vadd.f32 %v2629, %v2642
        %2644 = vdwg.mxu0
        %2645 = vmatpush.bf16.msra.mxu0 %v1859
        %2646 = vmatpush.bf16.msra.mxu0 %v1851
        %2647 = vmatpush.bf16.msra.mxu0 %v1843
        %2648 = vmatpush.bf16.msra.mxu0 %v1835
        %2649 = vmatpush.bf16.msra.mxu0 %v1827
        %2650 = vmatpush.bf16.msra.mxu0 %v1819
        %2651 = vmatpush.bf16.msra.mxu0 %v1811
        %2652 = vmatpush.bf16.msra.mxu0 %v1803
        %2653 = vmatmul.bf16.gmra.mxu0 %v1021
        %v2654 = vpop.f32.mrf.mxu0
        %v2655 = vadd.f32 0.0, %v2654
        %v2656 = vpop.f32.mrf.mxu0
        %v2657 = vadd.f32 0.0, %v2656
        %2658 = vdwg.mxu0
        %2659 = vmatpush.bf16.msra.mxu0 %v1923
        %2660 = vmatpush.bf16.msra.mxu0 %v1915
        %2661 = vmatpush.bf16.msra.mxu0 %v1907
        %2662 = vmatpush.bf16.msra.mxu0 %v1899
        %2663 = vmatpush.bf16.msra.mxu0 %v1891
        %2664 = vmatpush.bf16.msra.mxu0 %v1883
        %2665 = vmatpush.bf16.msra.mxu0 %v1875
        %2666 = vmatpush.bf16.msra.mxu0 %v1867
        %2667 = vmatmul.bf16.gmra.mxu0 %v1022
        %v2668 = vpop.f32.mrf.mxu0
        %v2669 = vadd.f32 %v2655, %v2668
        %v2670 = vpop.f32.mrf.mxu0
        %v2671 = vadd.f32 %v2657, %v2670
        %2672 = vdwg.mxu0
        %2673 = vmatpush.bf16.msra.mxu0 %v1987
        %2674 = vmatpush.bf16.msra.mxu0 %v1979
        %2675 = vmatpush.bf16.msra.mxu0 %v1971
        %2676 = vmatpush.bf16.msra.mxu0 %v1963
        %2677 = vmatpush.bf16.msra.mxu0 %v1955
        %2678 = vmatpush.bf16.msra.mxu0 %v1947
        %2679 = vmatpush.bf16.msra.mxu0 %v1939
        %2680 = vmatpush.bf16.msra.mxu0 %v1931
        %2681 = vmatmul.bf16.gmra.mxu0 %v1023
        %v2682 = vpop.f32.mrf.mxu0
        %v2683 = vadd.f32 %v2669, %v2682
        %v2684 = vpop.f32.mrf.mxu0
        %v2685 = vadd.f32 %v2671, %v2684
        %2686 = vdwg.mxu0
        %2687 = vmatpush.bf16.msra.mxu0 %v2051
        %2688 = vmatpush.bf16.msra.mxu0 %v2043
        %2689 = vmatpush.bf16.msra.mxu0 %v2035
        %2690 = vmatpush.bf16.msra.mxu0 %v2027
        %2691 = vmatpush.bf16.msra.mxu0 %v2019
        %2692 = vmatpush.bf16.msra.mxu0 %v2011
        %2693 = vmatpush.bf16.msra.mxu0 %v2003
        %2694 = vmatpush.bf16.msra.mxu0 %v1995
        %2695 = vmatmul.bf16.gmra.mxu0 %v1024
        %v2696 = vpop.f32.mrf.mxu0
        %v2697 = vadd.f32 %v2683, %v2696
        %v2698 = vpop.f32.mrf.mxu0
        %v2699 = vadd.f32 %v2685, %v2698
        %2700 = vdwg.mxu0
        %2701 = vmatpush.bf16.msra.mxu0 %v1860
        %2702 = vmatpush.bf16.msra.mxu0 %v1852
        %2703 = vmatpush.bf16.msra.mxu0 %v1844
        %2704 = vmatpush.bf16.msra.mxu0 %v1836
        %2705 = vmatpush.bf16.msra.mxu0 %v1828
        %2706 = vmatpush.bf16.msra.mxu0 %v1820
        %2707 = vmatpush.bf16.msra.mxu0 %v1812
        %2708 = vmatpush.bf16.msra.mxu0 %v1804
        %2709 = vmatmul.bf16.gmra.mxu0 %v1021
        %v2710 = vpop.f32.mrf.mxu0
        %v2711 = vadd.f32 0.0, %v2710
        %v2712 = vpop.f32.mrf.mxu0
        %v2713 = vadd.f32 0.0, %v2712
        %2714 = vdwg.mxu0
        %2715 = vmatpush.bf16.msra.mxu0 %v1924
        %2716 = vmatpush.bf16.msra.mxu0 %v1916
        %2717 = vmatpush.bf16.msra.mxu0 %v1908
        %2718 = vmatpush.bf16.msra.mxu0 %v1900
        %2719 = vmatpush.bf16.msra.mxu0 %v1892
        %2720 = vmatpush.bf16.msra.mxu0 %v1884
        %2721 = vmatpush.bf16.msra.mxu0 %v1876
        %2722 = vmatpush.bf16.msra.mxu0 %v1868
        %2723 = vmatmul.bf16.gmra.mxu0 %v1022
        %v2724 = vpop.f32.mrf.mxu0
        %v2725 = vadd.f32 %v2711, %v2724
        %v2726 = vpop.f32.mrf.mxu0
        %v2727 = vadd.f32 %v2713, %v2726
        %2728 = vdwg.mxu0
        %2729 = vmatpush.bf16.msra.mxu0 %v1988
        %2730 = vmatpush.bf16.msra.mxu0 %v1980
        %2731 = vmatpush.bf16.msra.mxu0 %v1972
        %2732 = vmatpush.bf16.msra.mxu0 %v1964
        %2733 = vmatpush.bf16.msra.mxu0 %v1956
        %2734 = vmatpush.bf16.msra.mxu0 %v1948
        %2735 = vmatpush.bf16.msra.mxu0 %v1940
        %2736 = vmatpush.bf16.msra.mxu0 %v1932
        %2737 = vmatmul.bf16.gmra.mxu0 %v1023
        %v2738 = vpop.f32.mrf.mxu0
        %v2739 = vadd.f32 %v2725, %v2738
        %v2740 = vpop.f32.mrf.mxu0
        %v2741 = vadd.f32 %v2727, %v2740
        %2742 = vdwg.mxu0
        %2743 = vmatpush.bf16.msra.mxu0 %v2052
        %2744 = vmatpush.bf16.msra.mxu0 %v2044
        %2745 = vmatpush.bf16.msra.mxu0 %v2036
        %2746 = vmatpush.bf16.msra.mxu0 %v2028
        %2747 = vmatpush.bf16.msra.mxu0 %v2020
        %2748 = vmatpush.bf16.msra.mxu0 %v2012
        %2749 = vmatpush.bf16.msra.mxu0 %v2004
        %2750 = vmatpush.bf16.msra.mxu0 %v1996
        %2751 = vmatmul.bf16.gmra.mxu0 %v1024
        %v2752 = vpop.f32.mrf.mxu0
        %v2753 = vadd.f32 %v2739, %v2752
        %v2754 = vpop.f32.mrf.mxu0
        %v2755 = vadd.f32 %v2741, %v2754
        %2756 = vdwg.mxu0
        %2757 = vst [vmem:[%s722] sm:$0xff] %v2361
        %2758 = vst [vmem:[%s722 + $0x8] sm:$0xff] %v2417
        %2759 = vst [vmem:[%s722 + $0x10] sm:$0xff] %v2473
        %2760 = vst [vmem:[%s722 + $0x18] sm:$0xff] %v2529
        %2761 = vst [vmem:[%s722 + $0x20] sm:$0xff] %v2585
        %2762 = vst [vmem:[%s722 + $0x28] sm:$0xff] %v2641
        %2763 = vst [vmem:[%s722 + $0x30] sm:$0xff] %v2697
        %2764 = vst [vmem:[%s722 + $0x38] sm:$0xff] %v2753
        %2765 = vst [vmem:[%s722 + $0x40] sm:$0xff] %v2363
        %2766 = vst [vmem:[%s722 + $0x48] sm:$0xff] %v2419
        %2767 = vst [vmem:[%s722 + $0x50] sm:$0xff] %v2475
        %2768 = vst [vmem:[%s722 + $0x58] sm:$0xff] %v2531
        %2769 = vst [vmem:[%s722 + $0x60] sm:$0xff] %v2587
        %2770 = vst [vmem:[%s722 + $0x68] sm:$0xff] %v2643
        %2771 = vst [vmem:[%s722 + $0x70] sm:$0xff] %v2699
        %2772 = vst [vmem:[%s722 + $0x78] sm:$0xff] %v2755
        %v2773 = vadd.f32 %v2361, %v2417
        %v2774 = vadd.f32 %v2773, %v2473
        %v2775 = vadd.f32 %v2774, %v2529
        %v2776 = vadd.f32 %v2775, %v2585
        %v2777 = vadd.f32 %v2776, %v2641
        %v2778 = vadd.f32 %v2777, %v2697
        %v2779 = vadd.f32 %v2778, %v2753
        %2780 = vadd.xlane.f32.xlu0 %v2779
        %v2781 = vpop.xlane.xlu0 %2780
        %v2782 = vadd.f32 %v2363, %v2419
        %v2783 = vadd.f32 %v2782, %v2475
        %v2784 = vadd.f32 %v2783, %v2531
        %v2785 = vadd.f32 %v2784, %v2587
        %v2786 = vadd.f32 %v2785, %v2643
        %v2787 = vadd.f32 %v2786, %v2699
        %v2788 = vadd.f32 %v2787, %v2755
        %2789 = vadd.xlane.f32.xlu0 %v2788
        %v2790 = vpop.xlane.xlu0 %2789
        %vm2791 = vcmask 7168
        %2792 = vst.msk [vmem:[%s743] sm:$0xff] %vm2791, %v2781
        %2793 = vst.msk [vmem:[%s743 + $0x8] sm:$0xff] %vm2791, %v2790
        %v2794 = vmul.f32 %v2361, %v2361
        %v2795 = vmul.f32 %v2417, %v2417
        %v2796 = vmul.f32 %v2473, %v2473
        %v2797 = vmul.f32 %v2529, %v2529
        %v2798 = vmul.f32 %v2585, %v2585
        %v2799 = vmul.f32 %v2641, %v2641
        %v2800 = vmul.f32 %v2697, %v2697
        %v2801 = vmul.f32 %v2753, %v2753
        %v2802 = vmul.f32 %v2363, %v2363
        %v2803 = vmul.f32 %v2419, %v2419
        %v2804 = vmul.f32 %v2475, %v2475
        %v2805 = vmul.f32 %v2531, %v2531
        %v2806 = vmul.f32 %v2587, %v2587
        %v2807 = vmul.f32 %v2643, %v2643
        %v2808 = vmul.f32 %v2699, %v2699
        %v2809 = vmul.f32 %v2755, %v2755
        %v2810 = vadd.f32 %v2794, %v2795
        %v2811 = vadd.f32 %v2810, %v2796
        %v2812 = vadd.f32 %v2811, %v2797
        %v2813 = vadd.f32 %v2812, %v2798
        %v2814 = vadd.f32 %v2813, %v2799
        %v2815 = vadd.f32 %v2814, %v2800
        %v2816 = vadd.f32 %v2815, %v2801
        %2817 = vadd.xlane.f32.xlu0 %v2816
        %v2818 = vpop.xlane.xlu0 %2817
        %v2819 = vadd.f32 %v2802, %v2803
        %v2820 = vadd.f32 %v2819, %v2804
        %v2821 = vadd.f32 %v2820, %v2805
        %v2822 = vadd.f32 %v2821, %v2806
        %v2823 = vadd.f32 %v2822, %v2807
        %v2824 = vadd.f32 %v2823, %v2808
        %v2825 = vadd.f32 %v2824, %v2809
        %2826 = vadd.xlane.f32.xlu0 %v2825
        %v2827 = vpop.xlane.xlu0 %2826
        %2828 = vst.msk [vmem:[%s748] sm:$0xff] %vm2791, %v2818
        %2829 = vst.msk [vmem:[%s748 + $0x8] sm:$0xff] %vm2791, %v2827
        %s2830 = sand.u32 %s71, 1
        %s2831 = sand.u32 %s71, 1
        %s2832 = smul.addr %s2831, 128
        %s2833 = scalar_lea.vmem [#allocation3], %s2832
        %p2834 = scmp.lt.s32.totalorder %s16, 3
        %s2835 = scalar_select %p2834, %s16, 3
        %s2836 = smul.addr %s2835, 2
        %s2837 = smul.addr %s2836, 8
        %s2838 = scalar_lea.vmem %s3, %s2837
        %p2839 = scmp.lt.s32.totalorder %s16, 3
        %s2840 = scalar_select %p2839, %s16, 3
        %s2841 = smul.addr %s2840, 2
        %s2842 = smul.addr %s2841, 8
        %s2843 = scalar_lea.vmem %s4, %s2842
        // Predicated region
        $region52: #{flow_encoder_forward.10} parent=46 // pred_check
          %p2844 = pneg %p81
        $region53: #{flow_encoder_forward.10} parent=46 // pred_check_branch
          %2846 = sbr.rel (%p2844) target = $region55
        $region54: #{flow_encoder_forward.10} parent=46 // pred_region
          %s2847 = smul.u32 8, %s16
          %s2848 = smul.addr %s2847, 8
          %s2849 = scalar_lea.vmem %s2, %s2848
          // Predicated region
          $region56: #{flow_encoder_forward.10} parent=54 // pred_check
            _
          $region57: #{flow_encoder_forward.10} parent=54 // pred_check_branch
            %2851 = sbr.rel (0) target = $region59
          $region58: #{flow_encoder_forward.10} parent=54 // pred_region
            // Predicated region
            $region60: #{flow_encoder_forward.10} parent=58 // pred_check
              _
            $region61: #{flow_encoder_forward.10} parent=58 // pred_check_branch
              %2853 = sbr.rel (0) target = $region63
            $region62: #{flow_encoder_forward.10} parent=58 // pred_region
              loop: start=0, step=1, limit=1
              $region64: #{flow_encoder_forward.10} parent=62 // loop_pre_header
                _
              $region65: #{flow_encoder_forward.10} parent=62 // loop_header
                %s2855 = sphi 0, %s2859
                %p2856 = scmp.ge.s32.totalorder %s2855, 1
                %s2860 = sphi %s2833, %s2833
                %s2861 = sphi %s2849, %s2849
              $region66: #{flow_encoder_forward.10} parent=62 // loop_header_branch
                %2858 = sbr.rel (%p2856) target = $region70
              $region67: #{flow_encoder_forward.10} parent=62 // loop_body
                %v2862 = vld [vmem:[%s2860] sm:$0xff]
                %2863 = vst [vmem:[%s2861] sm:$0xff] %v2862
                %v2864 = vld [vmem:[%s2860 + $0x8] sm:$0xff]
                %2865 = vst [vmem:[%s2861 + $0x8] sm:$0xff] %v2864
                %v2866 = vld [vmem:[%s2860 + $0x10] sm:$0xff]
                %2867 = vst [vmem:[%s2861 + $0x10] sm:$0xff] %v2866
                %v2868 = vld [vmem:[%s2860 + $0x18] sm:$0xff]
                %2869 = vst [vmem:[%s2861 + $0x18] sm:$0xff] %v2868
                %v2870 = vld [vmem:[%s2860 + $0x20] sm:$0xff]
                %2871 = vst [vmem:[%s2861 + $0x20] sm:$0xff] %v2870
                %v2872 = vld [vmem:[%s2860 + $0x28] sm:$0xff]
                %2873 = vst [vmem:[%s2861 + $0x28] sm:$0xff] %v2872
                %v2874 = vld [vmem:[%s2860 + $0x30] sm:$0xff]
                %2875 = vst [vmem:[%s2861 + $0x30] sm:$0xff] %v2874
                %v2876 = vld [vmem:[%s2860 + $0x38] sm:$0xff]
                %2877 = vst [vmem:[%s2861 + $0x38] sm:$0xff] %v2876
                %v2878 = vld [vmem:[%s2860 + $0x40] sm:$0xff]
                %2879 = vst [vmem:[%s2861 + $0x100] sm:$0xff] %v2878
                %v2880 = vld [vmem:[%s2860 + $0x48] sm:$0xff]
                %2881 = vst [vmem:[%s2861 + $0x108] sm:$0xff] %v2880
                %v2882 = vld [vmem:[%s2860 + $0x50] sm:$0xff]
                %2883 = vst [vmem:[%s2861 + $0x110] sm:$0xff] %v2882
                %v2884 = vld [vmem:[%s2860 + $0x58] sm:$0xff]
                %2885 = vst [vmem:[%s2861 + $0x118] sm:$0xff] %v2884
                %v2886 = vld [vmem:[%s2860 + $0x60] sm:$0xff]
                %2887 = vst [vmem:[%s2861 + $0x120] sm:$0xff] %v2886
                %v2888 = vld [vmem:[%s2860 + $0x68] sm:$0xff]
                %2889 = vst [vmem:[%s2861 + $0x128] sm:$0xff] %v2888
                %v2890 = vld [vmem:[%s2860 + $0x70] sm:$0xff]
                %2891 = vst [vmem:[%s2861 + $0x130] sm:$0xff] %v2890
                %v2892 = vld [vmem:[%s2860 + $0x78] sm:$0xff]
                %2893 = vst [vmem:[%s2861 + $0x138] sm:$0xff] %v2892
              $region68: #{flow_encoder_forward.10} parent=62 // loop_footer
                %s2859 = sadd.s32 1, %s2855
              $region69: #{flow_encoder_forward.10} parent=62 // loop_footer_branch
                %2854 = sbr.rel target = $region65
              $region70: #{flow_encoder_forward.10} parent=62 // loop_exit
                _
            $region63: #{flow_encoder_forward.10} parent=58 // pred_fallthru
              _
            // Predicated region
            $region71: #{flow_encoder_forward.10} parent=58 // pred_check
              _
            $region72: #{flow_encoder_forward.10} parent=58 // pred_check_branch
              %2895 = sbr.rel target = $region74
            $region73: #{flow_encoder_forward.10} parent=58 // pred_region
              _
            $region74: #{flow_encoder_forward.10} parent=58 // pred_fallthru
              _
          $region59: #{flow_encoder_forward.10} parent=54 // pred_fallthru
            _
          %2896 = vnop
        $region55: #{flow_encoder_forward.10} parent=46 // pred_fallthru
          _
        // Predicated region
        $region75: #{flow_encoder_forward.10} parent=46 // pred_check
          %p2897 = pneg %p107
        $region76: #{flow_encoder_forward.10} parent=46 // pred_check_branch
          %2899 = sbr.rel (%p2897) target = $region78
        $region77: #{flow_encoder_forward.10} parent=46 // pred_region
          _
        $region78: #{flow_encoder_forward.10} parent=46 // pred_fallthru
          _
        // Predicated region
        $region79: #{flow_encoder_forward.10} parent=46 // pred_check
          %p2900 = pneg %p133
        $region80: #{flow_encoder_forward.10} parent=46 // pred_check_branch
          %2902 = sbr.rel (%p2900) target = $region82
        $region81: #{flow_encoder_forward.10} parent=46 // pred_region
          _
        $region82: #{flow_encoder_forward.10} parent=46 // pred_fallthru
          _
      $region47: #{flow_encoder_forward.10} parent=5 // pred_fallthru
        _
      %p2903 = scmp.le.s32.totalorder 2, %s11
      // Predicated region
      $region83: #{flow_encoder_forward.10} parent=5 // pred_check
        %p2904 = pneg %p2903
      $region84: #{flow_encoder_forward.10} parent=5 // pred_check_branch
        %2906 = sbr.rel (%p2904) target = $region86
      $region85: #{flow_encoder_forward.10} parent=5 // pred_region
        %s2907 = ssub.s32 %s11, 2
        // Predicated region
        $region87: #{flow_encoder_forward.10} parent=85 // pred_check
          %p2908 = pneg %p87
        $region88: #{flow_encoder_forward.10} parent=85 // pred_check_branch
          %2910 = sbr.rel (%p2908) target = $region90
        $region89: #{flow_encoder_forward.10} parent=85 // pred_region
          %s2911 = sand.u32 %s72, 1
          %s2912 = sand.u32 %s72, 1
          %s2913 = smul.addr %s2912, 128
          %s2914 = scalar_lea.vmem [#allocation3], %s2913
        $region90: #{flow_encoder_forward.10} parent=85 // pred_fallthru
          _
        // Predicated region
        $region91: #{flow_encoder_forward.10} parent=85 // pred_check
          %p2915 = pneg %p113
        $region92: #{flow_encoder_forward.10} parent=85 // pred_check_branch
          %2917 = sbr.rel (%p2915) target = $region94
        $region93: #{flow_encoder_forward.10} parent=85 // pred_region
          %p2918 = scmp.lt.s32.totalorder %s17, 3
          %s2919 = scalar_select %p2918, %s17, 3
          %s2920 = smul.addr %s2919, 2
          %s2921 = smul.addr %s2920, 8
          %s2922 = scalar_lea.vmem %s3, %s2921
        $region94: #{flow_encoder_forward.10} parent=85 // pred_fallthru
          _
        // Predicated region
        $region95: #{flow_encoder_forward.10} parent=85 // pred_check
          %p2923 = pneg %p139
        $region96: #{flow_encoder_forward.10} parent=85 // pred_check_branch
          %2925 = sbr.rel (%p2923) target = $region98
        $region97: #{flow_encoder_forward.10} parent=85 // pred_region
          %p2926 = scmp.lt.s32.totalorder %s17, 3
          %s2927 = scalar_select %p2926, %s17, 3
          %s2928 = smul.addr %s2927, 2
          %s2929 = smul.addr %s2928, 8
          %s2930 = scalar_lea.vmem %s4, %s2929
        $region98: #{flow_encoder_forward.10} parent=85 // pred_fallthru
          _
      $region86: #{flow_encoder_forward.10} parent=5 // pred_fallthru
        _
    $region6: #{flow_encoder_forward.10} parent=1 // loop_footer
      %s15 = sadd.s32 1, %s11
    $region7: #{flow_encoder_forward.10} parent=1 // loop_footer_branch
      %10 = sbr.rel target = $region3
    $region8: #{flow_encoder_forward.10} parent=1 // loop_exit
      _

// kernel: flow_encoder_forward.13
$region0: #{flow_encoder_forward.13}
  #allocation0 [shape = 'u32[]', space=smem, size = 0x4, offset = 0x4, fixed_abs, tag = 'smem constant byte address 0x4 - core index']
  #allocation1 [shape = 'u32[72,128]{1,0:T(1,128)}', space=vmem, size = 0x9000, scoped, tag = 'internal scratch']
  %s0 = inlined_call_operand.vmem [shape: f32[32,512], index: 0, kind: input, shape index: {}]
  %s1 = inlined_call_operand.vmem [shape: f32[32,1], index: 1, kind: input, shape index: {}]
  %s2 = inlined_call_operand.vmem [shape: f32[32,1], index: 2, kind: input, shape index: {}]
  %s3 = inlined_call_operand.vmem [shape: bf16[32,512], index: 3, kind: output, shape index: {}]
  %s4 = sld [smem:[#allocation0]]
  $region22: #{flow_encoder_forward.13} parent=0
    _
  %s6 = ssub.s32 1, %s4
  %s7 = scalar_select 0, %s6, %s4
  // Predicated region
  $region2: #{flow_encoder_forward.13} parent=0 // pred_check
    _
  $region3: #{flow_encoder_forward.13} parent=0 // pred_check_branch
    %9 = sbr.rel (0) target = $region5
  $region4: #{flow_encoder_forward.13} parent=0 // pred_region
    _
  $region5: #{flow_encoder_forward.13} parent=0 // pred_fallthru
    _
  // Predicated region
  $region6: #{flow_encoder_forward.13} parent=0 // pred_check
    _
  $region7: #{flow_encoder_forward.13} parent=0 // pred_check_branch
    %11 = sbr.rel (0) target = $region9
  $region8: #{flow_encoder_forward.13} parent=0 // pred_region
    _
  $region9: #{flow_encoder_forward.13} parent=0 // pred_fallthru
    _
  // Predicated region
  $region10: #{flow_encoder_forward.13} parent=0 // pred_check
    _
  $region11: #{flow_encoder_forward.13} parent=0 // pred_check_branch
    %13 = sbr.rel (0) target = $region13
  $region12: #{flow_encoder_forward.13} parent=0 // pred_region
    _
  $region13: #{flow_encoder_forward.13} parent=0 // pred_fallthru
    _
  %v14 = vld [vmem:[%s0] sm:$0xff]
  %v15 = vld [vmem:[%s0 + $0x8] sm:$0xff]
  %v16 = vld [vmem:[%s0 + $0x10] sm:$0xff]
  %v17 = vld [vmem:[%s0 + $0x18] sm:$0xff]
  %v18 = vld [vmem:[%s0 + $0x20] sm:$0xff]
  %v19 = vld [vmem:[%s0 + $0x28] sm:$0xff]
  %v20 = vld [vmem:[%s0 + $0x30] sm:$0xff]
  %v21 = vld [vmem:[%s0 + $0x38] sm:$0xff]
  %v22 = vld [vmem:[%s0 + $0x40] sm:$0xff]
  %v23 = vld [vmem:[%s0 + $0x48] sm:$0xff]
  %v24 = vld [vmem:[%s0 + $0x50] sm:$0xff]
  %v25 = vld [vmem:[%s0 + $0x58] sm:$0xff]
  %v26 = vld [vmem:[%s0 + $0x60] sm:$0xff]
  %v27 = vld [vmem:[%s0 + $0x68] sm:$0xff]
  %v28 = vld [vmem:[%s0 + $0x70] sm:$0xff]
  %v29 = vld [vmem:[%s0 + $0x78] sm:$0xff]
  %v30 = vld [vmem:[%s1] sm:$0xff]
  %v31 = vld [vmem:[%s1 + $0x8] sm:$0xff]
  %v32 = vld [vmem:[%s1 + $0x10] sm:$0xff]
  %v33 = vld [vmem:[%s1 + $0x18] sm:$0xff]
  %35 = vset.pattern.permute.xlu0 0
  %36 = vperm.xlu0 %35, %v30
  %v37 = vpop.permute.xlu0 %36
  %40 = vset.pattern.permute.xlu0 0
  %41 = vperm.xlu0 %40, %v31
  %v42 = vpop.permute.xlu0 %41
  %45 = vset.pattern.permute.xlu0 0
  %46 = vperm.xlu0 %45, %v32
  %v47 = vpop.permute.xlu0 %46
  %50 = vset.pattern.permute.xlu0 0
  %51 = vperm.xlu0 %50, %v33
  %v52 = vpop.permute.xlu0 %51
  %v54 = vmul.f32 %v14, %v37
  %v55 = vmul.f32 %v15, %v37
  %v56 = vmul.f32 %v16, %v37
  %v57 = vmul.f32 %v17, %v37
  %v58 = vmul.f32 %v18, %v42
  %v59 = vmul.f32 %v19, %v42
  %v60 = vmul.f32 %v20, %v42
  %v61 = vmul.f32 %v21, %v42
  %v62 = vmul.f32 %v22, %v47
  %v63 = vmul.f32 %v23, %v47
  %v64 = vmul.f32 %v24, %v47
  %v65 = vmul.f32 %v25, %v47
  %v66 = vmul.f32 %v26, %v52
  %v67 = vmul.f32 %v27, %v52
  %v68 = vmul.f32 %v28, %v52
  %v69 = vmul.f32 %v29, %v52
  %v70 = vld [vmem:[%s2] sm:$0xff]
  %v71 = vld [vmem:[%s2 + $0x8] sm:$0xff]
  %v72 = vld [vmem:[%s2 + $0x10] sm:$0xff]
  %v73 = vld [vmem:[%s2 + $0x18] sm:$0xff]
  %75 = vset.pattern.permute.xlu0 0
  %76 = vperm.xlu0 %75, %v70
  %v77 = vpop.permute.xlu0 %76
  %80 = vset.pattern.permute.xlu0 0
  %81 = vperm.xlu0 %80, %v71
  %v82 = vpop.permute.xlu0 %81
  %85 = vset.pattern.permute.xlu0 0
  %86 = vperm.xlu0 %85, %v72
  %v87 = vpop.permute.xlu0 %86
  %90 = vset.pattern.permute.xlu0 0
  %91 = vperm.xlu0 %90, %v73
  %v92 = vpop.permute.xlu0 %91
  %v94 = vadd.f32 %v54, %v77
  %v95 = vadd.f32 %v55, %v77
  %v96 = vadd.f32 %v56, %v77
  %v97 = vadd.f32 %v57, %v77
  %v98 = vadd.f32 %v58, %v82
  %v99 = vadd.f32 %v59, %v82
  %v100 = vadd.f32 %v60, %v82
  %v101 = vadd.f32 %v61, %v82
  %v102 = vadd.f32 %v62, %v87
  %v103 = vadd.f32 %v63, %v87
  %v104 = vadd.f32 %v64, %v87
  %v105 = vadd.f32 %v65, %v87
  %v106 = vadd.f32 %v66, %v92
  %v107 = vadd.f32 %v67, %v92
  %v108 = vadd.f32 %v68, %v92
  %v109 = vadd.f32 %v69, %v92
  %vm110 = vcmp.ge.f32.partialorder %v94, 0.0
  %vm111 = vcmp.ge.f32.partialorder %v95, 0.0
  %vm112 = vcmp.ge.f32.partialorder %v96, 0.0
  %vm113 = vcmp.ge.f32.partialorder %v97, 0.0
  %vm114 = vcmp.ge.f32.partialorder %v98, 0.0
  %vm115 = vcmp.ge.f32.partialorder %v99, 0.0
  %vm116 = vcmp.ge.f32.partialorder %v100, 0.0
  %vm117 = vcmp.ge.f32.partialorder %v101, 0.0
  %vm118 = vcmp.ge.f32.partialorder %v102, 0.0
  %vm119 = vcmp.ge.f32.partialorder %v103, 0.0
  %vm120 = vcmp.ge.f32.partialorder %v104, 0.0
  %vm121 = vcmp.ge.f32.partialorder %v105, 0.0
  %vm122 = vcmp.ge.f32.partialorder %v106, 0.0
  %vm123 = vcmp.ge.f32.partialorder %v107, 0.0
  %vm124 = vcmp.ge.f32.partialorder %v108, 0.0
  %vm125 = vcmp.ge.f32.partialorder %v109, 0.0
  %v126 = vmul.f32 %v94, 0.2
  %v127 = vmul.f32 %v95, 0.2
  %v128 = vmul.f32 %v96, 0.2
  %v129 = vmul.f32 %v97, 0.2
  %v130 = vmul.f32 %v98, 0.2
  %v131 = vmul.f32 %v99, 0.2
  %v132 = vmul.f32 %v100, 0.2
  %v133 = vmul.f32 %v101, 0.2
  %v134 = vmul.f32 %v102, 0.2
  %v135 = vmul.f32 %v103, 0.2
  %v136 = vmul.f32 %v104, 0.2
  %v137 = vmul.f32 %v105, 0.2
  %v138 = vmul.f32 %v106, 0.2
  %v139 = vmul.f32 %v107, 0.2
  %v140 = vmul.f32 %v108, 0.2
  %v141 = vmul.f32 %v109, 0.2
  %v142 = vsel %vm110, %v94, %v126
  %v143 = vsel %vm111, %v95, %v127
  %v144 = vsel %vm112, %v96, %v128
  %v145 = vsel %vm113, %v97, %v129
  %v146 = vsel %vm114, %v98, %v130
  %v147 = vsel %vm115, %v99, %v131
  %v148 = vsel %vm116, %v100, %v132
  %v149 = vsel %vm117, %v101, %v133
  %v150 = vsel %vm118, %v102, %v134
  %v151 = vsel %vm119, %v103, %v135
  %v152 = vsel %vm120, %v104, %v136
  %v153 = vsel %vm121, %v105, %v137
  %v154 = vsel %vm122, %v106, %v138
  %v155 = vsel %vm123, %v107, %v139
  %v156 = vsel %vm124, %v108, %v140
  %v157 = vsel %vm125, %v109, %v141
  %v158 = vpack.c.bf16 %v143, %v142
  %v159 = vpack.c.bf16 %v145, %v144
  %v160 = vpack.c.bf16 %v147, %v146
  %v161 = vpack.c.bf16 %v149, %v148
  %v162 = vpack.c.bf16 %v151, %v150
  %v163 = vpack.c.bf16 %v153, %v152
  %v164 = vpack.c.bf16 %v155, %v154
  %v165 = vpack.c.bf16 %v157, %v156
  %166 = vst [vmem:[%s3] sm:$0xff] %v158
  %167 = vst [vmem:[%s3 + $0x8] sm:$0xff] %v159
  %168 = vst [vmem:[%s3 + $0x10] sm:$0xff] %v160
  %169 = vst [vmem:[%s3 + $0x18] sm:$0xff] %v161
  %170 = vst [vmem:[%s3 + $0x20] sm:$0xff] %v162
  %171 = vst [vmem:[%s3 + $0x28] sm:$0xff] %v163
  %172 = vst [vmem:[%s3 + $0x30] sm:$0xff] %v164
  %173 = vst [vmem:[%s3 + $0x38] sm:$0xff] %v165
  // Predicated region
  $region14: #{flow_encoder_forward.13} parent=0 // pred_check
    _
  $region15: #{flow_encoder_forward.13} parent=0 // pred_check_branch
    %175 = sbr.rel (0) target = $region17
  $region16: #{flow_encoder_forward.13} parent=0 // pred_region
    _
  $region17: #{flow_encoder_forward.13} parent=0 // pred_fallthru
    _
  // Predicated region
  $region18: #{flow_encoder_forward.13} parent=0 // pred_check
    _
  $region19: #{flow_encoder_forward.13} parent=0 // pred_check_branch
    %177 = sbr.rel (0) target = $region21
  $region20: #{flow_encoder_forward.13} parent=0 // pred_region
    _
  $region21: #{flow_encoder_forward.13} parent=0 // pred_fallthru
    _

// kernel: flow_encoder_forward.12
$region0: #{flow_encoder_forward.12}
  #allocation0 [shape = 'u32[]', space=smem, size = 0x4, offset = 0x4, fixed_abs, tag = 'smem constant byte address 0x4 - core index']
  #allocation1 [shape = 'u32[72,128]{1,0:T(1,128)}', space=vmem, size = 0x9000, scoped, tag = 'internal scratch']
  %s0 = inlined_call_operand.vmem [shape: bf16[32,1024], index: 0, kind: input, shape index: {}]
  %s1 = inlined_call_operand.vmem [shape: bf16[1024,512], index: 1, kind: input, shape index: {}]
  %s2 = inlined_call_operand.vmem [shape: f32[32,512], index: 2, kind: output, shape index: {0}]
  %s3 = inlined_call_operand.vmem [shape: f32[1,32,1], index: 3, kind: output, shape index: {1}]
  %s4 = inlined_call_operand.vmem [shape: f32[1,32,1], index: 4, kind: output, shape index: {2}]
  %5 = xla_tuple %s2, %s3, %s4
  %s6 = sld [smem:[#allocation0]]
  $region34: #{flow_encoder_forward.12} parent=0
    _
  %s8 = ssub.s32 1, %s6
  %s9 = scalar_select 0, %s8, %s6
  // Predicated region
  $region2: #{flow_encoder_forward.12} parent=0 // pred_check
    _
  $region3: #{flow_encoder_forward.12} parent=0 // pred_check_branch
    %11 = sbr.rel (0) target = $region5
  $region4: #{flow_encoder_forward.12} parent=0 // pred_region
    _
  $region5: #{flow_encoder_forward.12} parent=0 // pred_fallthru
    _
  // Predicated region
  $region6: #{flow_encoder_forward.12} parent=0 // pred_check
    _
  $region7: #{flow_encoder_forward.12} parent=0 // pred_check_branch
    %13 = sbr.rel (0) target = $region9
  $region8: #{flow_encoder_forward.12} parent=0 // pred_region
    _
  $region9: #{flow_encoder_forward.12} parent=0 // pred_fallthru
    _
  %v14 = vld [vmem:[%s0] sm:$0xff]
  %v15 = vld [vmem:[%s0 + $0x8] sm:$0xff]
  %v16 = vld [vmem:[%s0 + $0x10] sm:$0xff]
  %v17 = vld [vmem:[%s0 + $0x18] sm:$0xff]
  %v18 = vld [vmem:[%s0 + $0x20] sm:$0xff]
  %v19 = vld [vmem:[%s0 + $0x28] sm:$0xff]
  %v20 = vld [vmem:[%s0 + $0x30] sm:$0xff]
  %v21 = vld [vmem:[%s0 + $0x38] sm:$0xff]
  %v22 = vld [vmem:[%s0 + $0x40] sm:$0xff]
  %v23 = vld [vmem:[%s0 + $0x48] sm:$0xff]
  %v24 = vld [vmem:[%s0 + $0x50] sm:$0xff]
  %v25 = vld [vmem:[%s0 + $0x58] sm:$0xff]
  %v26 = vld [vmem:[%s0 + $0x60] sm:$0xff]
  %v27 = vld [vmem:[%s0 + $0x68] sm:$0xff]
  %v28 = vld [vmem:[%s0 + $0x70] sm:$0xff]
  %v29 = vld [vmem:[%s0 + $0x78] sm:$0xff]
  %v30 = vld [vmem:[%s1] sm:$0xff]
  %v31 = vld [vmem:[%s1 + $0x8] sm:$0xff]
  %v32 = vld [vmem:[%s1 + $0x10] sm:$0xff]
  %v33 = vld [vmem:[%s1 + $0x18] sm:$0xff]
  %v34 = vld [vmem:[%s1 + $0x20] sm:$0xff]
  %v35 = vld [vmem:[%s1 + $0x28] sm:$0xff]
  %v36 = vld [vmem:[%s1 + $0x30] sm:$0xff]
  %v37 = vld [vmem:[%s1 + $0x38] sm:$0xff]
  %v38 = vld [vmem:[%s1 + $0x40] sm:$0xff]
  %v39 = vld [vmem:[%s1 + $0x48] sm:$0xff]
  %v40 = vld [vmem:[%s1 + $0x50] sm:$0xff]
  %v41 = vld [vmem:[%s1 + $0x58] sm:$0xff]
  %v42 = vld [vmem:[%s1 + $0x60] sm:$0xff]
  %v43 = vld [vmem:[%s1 + $0x68] sm:$0xff]
  %v44 = vld [vmem:[%s1 + $0x70] sm:$0xff]
  %v45 = vld [vmem:[%s1 + $0x78] sm:$0xff]
  %v46 = vld [vmem:[%s1 + $0x80] sm:$0xff]
  %v47 = vld [vmem:[%s1 + $0x88] sm:$0xff]
  %v48 = vld [vmem:[%s1 + $0x90] sm:$0xff]
  %v49 = vld [vmem:[%s1 + $0x98] sm:$0xff]
  %v50 = vld [vmem:[%s1 + $0xa0] sm:$0xff]
  %v51 = vld [vmem:[%s1 + $0xa8] sm:$0xff]
  %v52 = vld [vmem:[%s1 + $0xb0] sm:$0xff]
  %v53 = vld [vmem:[%s1 + $0xb8] sm:$0xff]
  %v54 = vld [vmem:[%s1 + $0xc0] sm:$0xff]
  %v55 = vld [vmem:[%s1 + $0xc8] sm:$0xff]
  %v56 = vld [vmem:[%s1 + $0xd0] sm:$0xff]
  %v57 = vld [vmem:[%s1 + $0xd8] sm:$0xff]
  %v58 = vld [vmem:[%s1 + $0xe0] sm:$0xff]
  %v59 = vld [vmem:[%s1 + $0xe8] sm:$0xff]
  %v60 = vld [vmem:[%s1 + $0xf0] sm:$0xff]
  %v61 = vld [vmem:[%s1 + $0xf8] sm:$0xff]
  %v62 = vld [vmem:[%s1 + $0x100] sm:$0xff]
  %v63 = vld [vmem:[%s1 + $0x108] sm:$0xff]
  %v64 = vld [vmem:[%s1 + $0x110] sm:$0xff]
  %v65 = vld [vmem:[%s1 + $0x118] sm:$0xff]
  %v66 = vld [vmem:[%s1 + $0x120] sm:$0xff]
  %v67 = vld [vmem:[%s1 + $0x128] sm:$0xff]
  %v68 = vld [vmem:[%s1 + $0x130] sm:$0xff]
  %v69 = vld [vmem:[%s1 + $0x138] sm:$0xff]
  %v70 = vld [vmem:[%s1 + $0x140] sm:$0xff]
  %v71 = vld [vmem:[%s1 + $0x148] sm:$0xff]
  %v72 = vld [vmem:[%s1 + $0x150] sm:$0xff]
  %v73 = vld [vmem:[%s1 + $0x158] sm:$0xff]
  %v74 = vld [vmem:[%s1 + $0x160] sm:$0xff]
  %v75 = vld [vmem:[%s1 + $0x168] sm:$0xff]
  %v76 = vld [vmem:[%s1 + $0x170] sm:$0xff]
  %v77 = vld [vmem:[%s1 + $0x178] sm:$0xff]
  %v78 = vld [vmem:[%s1 + $0x180] sm:$0xff]
  %v79 = vld [vmem:[%s1 + $0x188] sm:$0xff]
  %v80 = vld [vmem:[%s1 + $0x190] sm:$0xff]
  %v81 = vld [vmem:[%s1 + $0x198] sm:$0xff]
  %v82 = vld [vmem:[%s1 + $0x1a0] sm:$0xff]
  %v83 = vld [vmem:[%s1 + $0x1a8] sm:$0xff]
  %v84 = vld [vmem:[%s1 + $0x1b0] sm:$0xff]
  %v85 = vld [vmem:[%s1 + $0x1b8] sm:$0xff]
  %v86 = vld [vmem:[%s1 + $0x1c0] sm:$0xff]
  %v87 = vld [vmem:[%s1 + $0x1c8] sm:$0xff]
  %v88 = vld [vmem:[%s1 + $0x1d0] sm:$0xff]
  %v89 = vld [vmem:[%s1 + $0x1d8] sm:$0xff]
  %v90 = vld [vmem:[%s1 + $0x1e0] sm:$0xff]
  %v91 = vld [vmem:[%s1 + $0x1e8] sm:$0xff]
  %v92 = vld [vmem:[%s1 + $0x1f0] sm:$0xff]
  %v93 = vld [vmem:[%s1 + $0x1f8] sm:$0xff]
  %v94 = vld [vmem:[%s1 + $0x200] sm:$0xff]
  %v95 = vld [vmem:[%s1 + $0x208] sm:$0xff]
  %v96 = vld [vmem:[%s1 + $0x210] sm:$0xff]
  %v97 = vld [vmem:[%s1 + $0x218] sm:$0xff]
  %v98 = vld [vmem:[%s1 + $0x220] sm:$0xff]
  %v99 = vld [vmem:[%s1 + $0x228] sm:$0xff]
  %v100 = vld [vmem:[%s1 + $0x230] sm:$0xff]
  %v101 = vld [vmem:[%s1 + $0x238] sm:$0xff]
  %v102 = vld [vmem:[%s1 + $0x240] sm:$0xff]
  %v103 = vld [vmem:[%s1 + $0x248] sm:$0xff]
  %v104 = vld [vmem:[%s1 + $0x250] sm:$0xff]
  %v105 = vld [vmem:[%s1 + $0x258] sm:$0xff]
  %v106 = vld [vmem:[%s1 + $0x260] sm:$0xff]
  %v107 = vld [vmem:[%s1 + $0x268] sm:$0xff]
  %v108 = vld [vmem:[%s1 + $0x270] sm:$0xff]
  %v109 = vld [vmem:[%s1 + $0x278] sm:$0xff]
  %v110 = vld [vmem:[%s1 + $0x280] sm:$0xff]
  %v111 = vld [vmem:[%s1 + $0x288] sm:$0xff]
  %v112 = vld [vmem:[%s1 + $0x290] sm:$0xff]
  %v113 = vld [vmem:[%s1 + $0x298] sm:$0xff]
  %v114 = vld [vmem:[%s1 + $0x2a0] sm:$0xff]
  %v115 = vld [vmem:[%s1 + $0x2a8] sm:$0xff]
  %v116 = vld [vmem:[%s1 + $0x2b0] sm:$0xff]
  %v117 = vld [vmem:[%s1 + $0x2b8] sm:$0xff]
  %v118 = vld [vmem:[%s1 + $0x2c0] sm:$0xff]
  %v119 = vld [vmem:[%s1 + $0x2c8] sm:$0xff]
  %v120 = vld [vmem:[%s1 + $0x2d0] sm:$0xff]
  %v121 = vld [vmem:[%s1 + $0x2d8] sm:$0xff]
  %v122 = vld [vmem:[%s1 + $0x2e0] sm:$0xff]
  %v123 = vld [vmem:[%s1 + $0x2e8] sm:$0xff]
  %v124 = vld [vmem:[%s1 + $0x2f0] sm:$0xff]
  %v125 = vld [vmem:[%s1 + $0x2f8] sm:$0xff]
  %v126 = vld [vmem:[%s1 + $0x300] sm:$0xff]
  %v127 = vld [vmem:[%s1 + $0x308] sm:$0xff]
  %v128 = vld [vmem:[%s1 + $0x310] sm:$0xff]
  %v129 = vld [vmem:[%s1 + $0x318] sm:$0xff]
  %v130 = vld [vmem:[%s1 + $0x320] sm:$0xff]
  %v131 = vld [vmem:[%s1 + $0x328] sm:$0xff]
  %v132 = vld [vmem:[%s1 + $0x330] sm:$0xff]
  %v133 = vld [vmem:[%s1 + $0x338] sm:$0xff]
  %v134 = vld [vmem:[%s1 + $0x340] sm:$0xff]
  %v135 = vld [vmem:[%s1 + $0x348] sm:$0xff]
  %v136 = vld [vmem:[%s1 + $0x350] sm:$0xff]
  %v137 = vld [vmem:[%s1 + $0x358] sm:$0xff]
  %v138 = vld [vmem:[%s1 + $0x360] sm:$0xff]
  %v139 = vld [vmem:[%s1 + $0x368] sm:$0xff]
  %v140 = vld [vmem:[%s1 + $0x370] sm:$0xff]
  %v141 = vld [vmem:[%s1 + $0x378] sm:$0xff]
  %v142 = vld [vmem:[%s1 + $0x380] sm:$0xff]
  %v143 = vld [vmem:[%s1 + $0x388] sm:$0xff]
  %v144 = vld [vmem:[%s1 + $0x390] sm:$0xff]
  %v145 = vld [vmem:[%s1 + $0x398] sm:$0xff]
  %v146 = vld [vmem:[%s1 + $0x3a0] sm:$0xff]
  %v147 = vld [vmem:[%s1 + $0x3a8] sm:$0xff]
  %v148 = vld [vmem:[%s1 + $0x3b0] sm:$0xff]
  %v149 = vld [vmem:[%s1 + $0x3b8] sm:$0xff]
  %v150 = vld [vmem:[%s1 + $0x3c0] sm:$0xff]
  %v151 = vld [vmem:[%s1 + $0x3c8] sm:$0xff]
  %v152 = vld [vmem:[%s1 + $0x3d0] sm:$0xff]
  %v153 = vld [vmem:[%s1 + $0x3d8] sm:$0xff]
  %v154 = vld [vmem:[%s1 + $0x3e0] sm:$0xff]
  %v155 = vld [vmem:[%s1 + $0x3e8] sm:$0xff]
  %v156 = vld [vmem:[%s1 + $0x3f0] sm:$0xff]
  %v157 = vld [vmem:[%s1 + $0x3f8] sm:$0xff]
  %v158 = vld [vmem:[%s1 + $0x400] sm:$0xff]
  %v159 = vld [vmem:[%s1 + $0x408] sm:$0xff]
  %v160 = vld [vmem:[%s1 + $0x410] sm:$0xff]
  %v161 = vld [vmem:[%s1 + $0x418] sm:$0xff]
  %v162 = vld [vmem:[%s1 + $0x420] sm:$0xff]
  %v163 = vld [vmem:[%s1 + $0x428] sm:$0xff]
  %v164 = vld [vmem:[%s1 + $0x430] sm:$0xff]
  %v165 = vld [vmem:[%s1 + $0x438] sm:$0xff]
  %v166 = vld [vmem:[%s1 + $0x440] sm:$0xff]
  %v167 = vld [vmem:[%s1 + $0x448] sm:$0xff]
  %v168 = vld [vmem:[%s1 + $0x450] sm:$0xff]
  %v169 = vld [vmem:[%s1 + $0x458] sm:$0xff]
  %v170 = vld [vmem:[%s1 + $0x460] sm:$0xff]
  %v171 = vld [vmem:[%s1 + $0x468] sm:$0xff]
  %v172 = vld [vmem:[%s1 + $0x470] sm:$0xff]
  %v173 = vld [vmem:[%s1 + $0x478] sm:$0xff]
  %v174 = vld [vmem:[%s1 + $0x480] sm:$0xff]
  %v175 = vld [vmem:[%s1 + $0x488] sm:$0xff]
  %v176 = vld [vmem:[%s1 + $0x490] sm:$0xff]
  %v177 = vld [vmem:[%s1 + $0x498] sm:$0xff]
  %v178 = vld [vmem:[%s1 + $0x4a0] sm:$0xff]
  %v179 = vld [vmem:[%s1 + $0x4a8] sm:$0xff]
  %v180 = vld [vmem:[%s1 + $0x4b0] sm:$0xff]
  %v181 = vld [vmem:[%s1 + $0x4b8] sm:$0xff]
  %v182 = vld [vmem:[%s1 + $0x4c0] sm:$0xff]
  %v183 = vld [vmem:[%s1 + $0x4c8] sm:$0xff]
  %v184 = vld [vmem:[%s1 + $0x4d0] sm:$0xff]
  %v185 = vld [vmem:[%s1 + $0x4d8] sm:$0xff]
  %v186 = vld [vmem:[%s1 + $0x4e0] sm:$0xff]
  %v187 = vld [vmem:[%s1 + $0x4e8] sm:$0xff]
  %v188 = vld [vmem:[%s1 + $0x4f0] sm:$0xff]
  %v189 = vld [vmem:[%s1 + $0x4f8] sm:$0xff]
  %v190 = vld [vmem:[%s1 + $0x500] sm:$0xff]
  %v191 = vld [vmem:[%s1 + $0x508] sm:$0xff]
  %v192 = vld [vmem:[%s1 + $0x510] sm:$0xff]
  %v193 = vld [vmem:[%s1 + $0x518] sm:$0xff]
  %v194 = vld [vmem:[%s1 + $0x520] sm:$0xff]
  %v195 = vld [vmem:[%s1 + $0x528] sm:$0xff]
  %v196 = vld [vmem:[%s1 + $0x530] sm:$0xff]
  %v197 = vld [vmem:[%s1 + $0x538] sm:$0xff]
  %v198 = vld [vmem:[%s1 + $0x540] sm:$0xff]
  %v199 = vld [vmem:[%s1 + $0x548] sm:$0xff]
  %v200 = vld [vmem:[%s1 + $0x550] sm:$0xff]
  %v201 = vld [vmem:[%s1 + $0x558] sm:$0xff]
  %v202 = vld [vmem:[%s1 + $0x560] sm:$0xff]
  %v203 = vld [vmem:[%s1 + $0x568] sm:$0xff]
  %v204 = vld [vmem:[%s1 + $0x570] sm:$0xff]
  %v205 = vld [vmem:[%s1 + $0x578] sm:$0xff]
  %v206 = vld [vmem:[%s1 + $0x580] sm:$0xff]
  %v207 = vld [vmem:[%s1 + $0x588] sm:$0xff]
  %v208 = vld [vmem:[%s1 + $0x590] sm:$0xff]
  %v209 = vld [vmem:[%s1 + $0x598] sm:$0xff]
  %v210 = vld [vmem:[%s1 + $0x5a0] sm:$0xff]
  %v211 = vld [vmem:[%s1 + $0x5a8] sm:$0xff]
  %v212 = vld [vmem:[%s1 + $0x5b0] sm:$0xff]
  %v213 = vld [vmem:[%s1 + $0x5b8] sm:$0xff]
  %v214 = vld [vmem:[%s1 + $0x5c0] sm:$0xff]
  %v215 = vld [vmem:[%s1 + $0x5c8] sm:$0xff]
  %v216 = vld [vmem:[%s1 + $0x5d0] sm:$0xff]
  %v217 = vld [vmem:[%s1 + $0x5d8] sm:$0xff]
  %v218 = vld [vmem:[%s1 + $0x5e0] sm:$0xff]
  %v219 = vld [vmem:[%s1 + $0x5e8] sm:$0xff]
  %v220 = vld [vmem:[%s1 + $0x5f0] sm:$0xff]
  %v221 = vld [vmem:[%s1 + $0x5f8] sm:$0xff]
  %v222 = vld [vmem:[%s1 + $0x600] sm:$0xff]
  %v223 = vld [vmem:[%s1 + $0x608] sm:$0xff]
  %v224 = vld [vmem:[%s1 + $0x610] sm:$0xff]
  %v225 = vld [vmem:[%s1 + $0x618] sm:$0xff]
  %v226 = vld [vmem:[%s1 + $0x620] sm:$0xff]
  %v227 = vld [vmem:[%s1 + $0x628] sm:$0xff]
  %v228 = vld [vmem:[%s1 + $0x630] sm:$0xff]
  %v229 = vld [vmem:[%s1 + $0x638] sm:$0xff]
  %v230 = vld [vmem:[%s1 + $0x640] sm:$0xff]
  %v231 = vld [vmem:[%s1 + $0x648] sm:$0xff]
  %v232 = vld [vmem:[%s1 + $0x650] sm:$0xff]
  %v233 = vld [vmem:[%s1 + $0x658] sm:$0xff]
  %v234 = vld [vmem:[%s1 + $0x660] sm:$0xff]
  %v235 = vld [vmem:[%s1 + $0x668] sm:$0xff]
  %v236 = vld [vmem:[%s1 + $0x670] sm:$0xff]
  %v237 = vld [vmem:[%s1 + $0x678] sm:$0xff]
  %v238 = vld [vmem:[%s1 + $0x680] sm:$0xff]
  %v239 = vld [vmem:[%s1 + $0x688] sm:$0xff]
  %v240 = vld [vmem:[%s1 + $0x690] sm:$0xff]
  %v241 = vld [vmem:[%s1 + $0x698] sm:$0xff]
  %v242 = vld [vmem:[%s1 + $0x6a0] sm:$0xff]
  %v243 = vld [vmem:[%s1 + $0x6a8] sm:$0xff]
  %v244 = vld [vmem:[%s1 + $0x6b0] sm:$0xff]
  %v245 = vld [vmem:[%s1 + $0x6b8] sm:$0xff]
  %v246 = vld [vmem:[%s1 + $0x6c0] sm:$0xff]
  %v247 = vld [vmem:[%s1 + $0x6c8] sm:$0xff]
  %v248 = vld [vmem:[%s1 + $0x6d0] sm:$0xff]
  %v249 = vld [vmem:[%s1 + $0x6d8] sm:$0xff]
  %v250 = vld [vmem:[%s1 + $0x6e0] sm:$0xff]
  %v251 = vld [vmem:[%s1 + $0x6e8] sm:$0xff]
  %v252 = vld [vmem:[%s1 + $0x6f0] sm:$0xff]
  %v253 = vld [vmem:[%s1 + $0x6f8] sm:$0xff]
  %v254 = vld [vmem:[%s1 + $0x700] sm:$0xff]
  %v255 = vld [vmem:[%s1 + $0x708] sm:$0xff]
  %v256 = vld [vmem:[%s1 + $0x710] sm:$0xff]
  %v257 = vld [vmem:[%s1 + $0x718] sm:$0xff]
  %v258 = vld [vmem:[%s1 + $0x720] sm:$0xff]
  %v259 = vld [vmem:[%s1 + $0x728] sm:$0xff]
  %v260 = vld [vmem:[%s1 + $0x730] sm:$0xff]
  %v261 = vld [vmem:[%s1 + $0x738] sm:$0xff]
  %v262 = vld [vmem:[%s1 + $0x740] sm:$0xff]
  %v263 = vld [vmem:[%s1 + $0x748] sm:$0xff]
  %v264 = vld [vmem:[%s1 + $0x750] sm:$0xff]
  %v265 = vld [vmem:[%s1 + $0x758] sm:$0xff]
  %v266 = vld [vmem:[%s1 + $0x760] sm:$0xff]
  %v267 = vld [vmem:[%s1 + $0x768] sm:$0xff]
  %v268 = vld [vmem:[%s1 + $0x770] sm:$0xff]
  %v269 = vld [vmem:[%s1 + $0x778] sm:$0xff]
  %v270 = vld [vmem:[%s1 + $0x780] sm:$0xff]
  %v271 = vld [vmem:[%s1 + $0x788] sm:$0xff]
  %v272 = vld [vmem:[%s1 + $0x790] sm:$0xff]
  %v273 = vld [vmem:[%s1 + $0x798] sm:$0xff]
  %v274 = vld [vmem:[%s1 + $0x7a0] sm:$0xff]
  %v275 = vld [vmem:[%s1 + $0x7a8] sm:$0xff]
  %v276 = vld [vmem:[%s1 + $0x7b0] sm:$0xff]
  %v277 = vld [vmem:[%s1 + $0x7b8] sm:$0xff]
  %v278 = vld [vmem:[%s1 + $0x7c0] sm:$0xff]
  %v279 = vld [vmem:[%s1 + $0x7c8] sm:$0xff]
  %v280 = vld [vmem:[%s1 + $0x7d0] sm:$0xff]
  %v281 = vld [vmem:[%s1 + $0x7d8] sm:$0xff]
  %v282 = vld [vmem:[%s1 + $0x7e0] sm:$0xff]
  %v283 = vld [vmem:[%s1 + $0x7e8] sm:$0xff]
  %v284 = vld [vmem:[%s1 + $0x7f0] sm:$0xff]
  %v285 = vld [vmem:[%s1 + $0x7f8] sm:$0xff]
  %v302 = vunpack.c.l.b16 %v14
  %v303 = vunpack.c.h.b16 %v14
  %v304 = vunpack.c.l.b16 %v15
  %v305 = vunpack.c.h.b16 %v15
  %v306 = vunpack.c.l.b16 %v16
  %v307 = vunpack.c.h.b16 %v16
  %v308 = vunpack.c.l.b16 %v17
  %v309 = vunpack.c.h.b16 %v17
  %v310 = vunpack.c.l.b16 %v18
  %v311 = vunpack.c.h.b16 %v18
  %v312 = vunpack.c.l.b16 %v19
  %v313 = vunpack.c.h.b16 %v19
  %v314 = vunpack.c.l.b16 %v20
  %v315 = vunpack.c.h.b16 %v20
  %v316 = vunpack.c.l.b16 %v21
  %v317 = vunpack.c.h.b16 %v21
  %v318 = vunpack.c.l.b16 %v22
  %v319 = vunpack.c.h.b16 %v22
  %v320 = vunpack.c.l.b16 %v23
  %v321 = vunpack.c.h.b16 %v23
  %v322 = vunpack.c.l.b16 %v24
  %v323 = vunpack.c.h.b16 %v24
  %v324 = vunpack.c.l.b16 %v25
  %v325 = vunpack.c.h.b16 %v25
  %v326 = vunpack.c.l.b16 %v26
  %v327 = vunpack.c.h.b16 %v26
  %v328 = vunpack.c.l.b16 %v27
  %v329 = vunpack.c.h.b16 %v27
  %v330 = vunpack.c.l.b16 %v28
  %v331 = vunpack.c.h.b16 %v28
  %v332 = vunpack.c.l.b16 %v29
  %v333 = vunpack.c.h.b16 %v29
  %v334 = vpack.c.b16 %v310, %v302
  %v335 = vpack.c.b16 %v311, %v303
  %v336 = vpack.c.b16 %v312, %v304
  %v337 = vpack.c.b16 %v313, %v305
  %v338 = vpack.c.b16 %v314, %v306
  %v339 = vpack.c.b16 %v315, %v307
  %v340 = vpack.c.b16 %v316, %v308
  %v341 = vpack.c.b16 %v317, %v309
  %v342 = vpack.c.b16 %v326, %v318
  %v343 = vpack.c.b16 %v327, %v319
  %v344 = vpack.c.b16 %v328, %v320
  %v345 = vpack.c.b16 %v329, %v321
  %v346 = vpack.c.b16 %v330, %v322
  %v347 = vpack.c.b16 %v331, %v323
  %v348 = vpack.c.b16 %v332, %v324
  %v349 = vpack.c.b16 %v333, %v325
  %v622 = vunpack.c.l.b16 %v30
  %v623 = vunpack.c.h.b16 %v30
  %v624 = vunpack.c.l.b16 %v31
  %v625 = vunpack.c.h.b16 %v31
  %v626 = vunpack.c.l.b16 %v32
  %v627 = vunpack.c.h.b16 %v32
  %v628 = vunpack.c.l.b16 %v33
  %v629 = vunpack.c.h.b16 %v33
  %v630 = vunpack.c.l.b16 %v34
  %v631 = vunpack.c.h.b16 %v34
  %v632 = vunpack.c.l.b16 %v35
  %v633 = vunpack.c.h.b16 %v35
  %v634 = vunpack.c.l.b16 %v36
  %v635 = vunpack.c.h.b16 %v36
  %v636 = vunpack.c.l.b16 %v37
  %v637 = vunpack.c.h.b16 %v37
  %v638 = vunpack.c.l.b16 %v38
  %v639 = vunpack.c.h.b16 %v38
  %v640 = vunpack.c.l.b16 %v39
  %v641 = vunpack.c.h.b16 %v39
  %v642 = vunpack.c.l.b16 %v40
  %v643 = vunpack.c.h.b16 %v40
  %v644 = vunpack.c.l.b16 %v41
  %v645 = vunpack.c.h.b16 %v41
  %v646 = vunpack.c.l.b16 %v42
  %v647 = vunpack.c.h.b16 %v42
  %v648 = vunpack.c.l.b16 %v43
  %v649 = vunpack.c.h.b16 %v43
  %v650 = vunpack.c.l.b16 %v44
  %v651 = vunpack.c.h.b16 %v44
  %v652 = vunpack.c.l.b16 %v45
  %v653 = vunpack.c.h.b16 %v45
  %v654 = vunpack.c.l.b16 %v46
  %v655 = vunpack.c.h.b16 %v46
  %v656 = vunpack.c.l.b16 %v47
  %v657 = vunpack.c.h.b16 %v47
  %v658 = vunpack.c.l.b16 %v48
  %v659 = vunpack.c.h.b16 %v48
  %v660 = vunpack.c.l.b16 %v49
  %v661 = vunpack.c.h.b16 %v49
  %v662 = vunpack.c.l.b16 %v50
  %v663 = vunpack.c.h.b16 %v50
  %v664 = vunpack.c.l.b16 %v51
  %v665 = vunpack.c.h.b16 %v51
  %v666 = vunpack.c.l.b16 %v52
  %v667 = vunpack.c.h.b16 %v52
  %v668 = vunpack.c.l.b16 %v53
  %v669 = vunpack.c.h.b16 %v53
  %v670 = vunpack.c.l.b16 %v54
  %v671 = vunpack.c.h.b16 %v54
  %v672 = vunpack.c.l.b16 %v55
  %v673 = vunpack.c.h.b16 %v55
  %v674 = vunpack.c.l.b16 %v56
  %v675 = vunpack.c.h.b16 %v56
  %v676 = vunpack.c.l.b16 %v57
  %v677 = vunpack.c.h.b16 %v57
  %v678 = vunpack.c.l.b16 %v58
  %v679 = vunpack.c.h.b16 %v58
  %v680 = vunpack.c.l.b16 %v59
  %v681 = vunpack.c.h.b16 %v59
  %v682 = vunpack.c.l.b16 %v60
  %v683 = vunpack.c.h.b16 %v60
  %v684 = vunpack.c.l.b16 %v61
  %v685 = vunpack.c.h.b16 %v61
  %v686 = vunpack.c.l.b16 %v62
  %v687 = vunpack.c.h.b16 %v62
  %v688 = vunpack.c.l.b16 %v63
  %v689 = vunpack.c.h.b16 %v63
  %v690 = vunpack.c.l.b16 %v64
  %v691 = vunpack.c.h.b16 %v64
  %v692 = vunpack.c.l.b16 %v65
  %v693 = vunpack.c.h.b16 %v65
  %v694 = vunpack.c.l.b16 %v66
  %v695 = vunpack.c.h.b16 %v66
  %v696 = vunpack.c.l.b16 %v67
  %v697 = vunpack.c.h.b16 %v67
  %v698 = vunpack.c.l.b16 %v68
  %v699 = vunpack.c.h.b16 %v68
  %v700 = vunpack.c.l.b16 %v69
  %v701 = vunpack.c.h.b16 %v69
  %v702 = vunpack.c.l.b16 %v70
  %v703 = vunpack.c.h.b16 %v70
  %v704 = vunpack.c.l.b16 %v71
  %v705 = vunpack.c.h.b16 %v71
  %v706 = vunpack.c.l.b16 %v72
  %v707 = vunpack.c.h.b16 %v72
  %v708 = vunpack.c.l.b16 %v73
  %v709 = vunpack.c.h.b16 %v73
  %v710 = vunpack.c.l.b16 %v74
  %v711 = vunpack.c.h.b16 %v74
  %v712 = vunpack.c.l.b16 %v75
  %v713 = vunpack.c.h.b16 %v75
  %v714 = vunpack.c.l.b16 %v76
  %v715 = vunpack.c.h.b16 %v76
  %v716 = vunpack.c.l.b16 %v77
  %v717 = vunpack.c.h.b16 %v77
  %v718 = vunpack.c.l.b16 %v78
  %v719 = vunpack.c.h.b16 %v78
  %v720 = vunpack.c.l.b16 %v79
  %v721 = vunpack.c.h.b16 %v79
  %v722 = vunpack.c.l.b16 %v80
  %v723 = vunpack.c.h.b16 %v80
  %v724 = vunpack.c.l.b16 %v81
  %v725 = vunpack.c.h.b16 %v81
  %v726 = vunpack.c.l.b16 %v82
  %v727 = vunpack.c.h.b16 %v82
  %v728 = vunpack.c.l.b16 %v83
  %v729 = vunpack.c.h.b16 %v83
  %v730 = vunpack.c.l.b16 %v84
  %v731 = vunpack.c.h.b16 %v84
  %v732 = vunpack.c.l.b16 %v85
  %v733 = vunpack.c.h.b16 %v85
  %v734 = vunpack.c.l.b16 %v86
  %v735 = vunpack.c.h.b16 %v86
  %v736 = vunpack.c.l.b16 %v87
  %v737 = vunpack.c.h.b16 %v87
  %v738 = vunpack.c.l.b16 %v88
  %v739 = vunpack.c.h.b16 %v88
  %v740 = vunpack.c.l.b16 %v89
  %v741 = vunpack.c.h.b16 %v89
  %v742 = vunpack.c.l.b16 %v90
  %v743 = vunpack.c.h.b16 %v90
  %v744 = vunpack.c.l.b16 %v91
  %v745 = vunpack.c.h.b16 %v91
  %v746 = vunpack.c.l.b16 %v92
  %v747 = vunpack.c.h.b16 %v92
  %v748 = vunpack.c.l.b16 %v93
  %v749 = vunpack.c.h.b16 %v93
  %v750 = vunpack.c.l.b16 %v94
  %v751 = vunpack.c.h.b16 %v94
  %v752 = vunpack.c.l.b16 %v95
  %v753 = vunpack.c.h.b16 %v95
  %v754 = vunpack.c.l.b16 %v96
  %v755 = vunpack.c.h.b16 %v96
  %v756 = vunpack.c.l.b16 %v97
  %v757 = vunpack.c.h.b16 %v97
  %v758 = vunpack.c.l.b16 %v98
  %v759 = vunpack.c.h.b16 %v98
  %v760 = vunpack.c.l.b16 %v99
  %v761 = vunpack.c.h.b16 %v99
  %v762 = vunpack.c.l.b16 %v100
  %v763 = vunpack.c.h.b16 %v100
  %v764 = vunpack.c.l.b16 %v101
  %v765 = vunpack.c.h.b16 %v101
  %v766 = vunpack.c.l.b16 %v102
  %v767 = vunpack.c.h.b16 %v102
  %v768 = vunpack.c.l.b16 %v103
  %v769 = vunpack.c.h.b16 %v103
  %v770 = vunpack.c.l.b16 %v104
  %v771 = vunpack.c.h.b16 %v104
  %v772 = vunpack.c.l.b16 %v105
  %v773 = vunpack.c.h.b16 %v105
  %v774 = vunpack.c.l.b16 %v106
  %v775 = vunpack.c.h.b16 %v106
  %v776 = vunpack.c.l.b16 %v107
  %v777 = vunpack.c.h.b16 %v107
  %v778 = vunpack.c.l.b16 %v108
  %v779 = vunpack.c.h.b16 %v108
  %v780 = vunpack.c.l.b16 %v109
  %v781 = vunpack.c.h.b16 %v109
  %v782 = vunpack.c.l.b16 %v110
  %v783 = vunpack.c.h.b16 %v110
  %v784 = vunpack.c.l.b16 %v111
  %v785 = vunpack.c.h.b16 %v111
  %v786 = vunpack.c.l.b16 %v112
  %v787 = vunpack.c.h.b16 %v112
  %v788 = vunpack.c.l.b16 %v113
  %v789 = vunpack.c.h.b16 %v113
  %v790 = vunpack.c.l.b16 %v114
  %v791 = vunpack.c.h.b16 %v114
  %v792 = vunpack.c.l.b16 %v115
  %v793 = vunpack.c.h.b16 %v115
  %v794 = vunpack.c.l.b16 %v116
  %v795 = vunpack.c.h.b16 %v116
  %v796 = vunpack.c.l.b16 %v117
  %v797 = vunpack.c.h.b16 %v117
  %v798 = vunpack.c.l.b16 %v118
  %v799 = vunpack.c.h.b16 %v118
  %v800 = vunpack.c.l.b16 %v119
  %v801 = vunpack.c.h.b16 %v119
  %v802 = vunpack.c.l.b16 %v120
  %v803 = vunpack.c.h.b16 %v120
  %v804 = vunpack.c.l.b16 %v121
  %v805 = vunpack.c.h.b16 %v121
  %v806 = vunpack.c.l.b16 %v122
  %v807 = vunpack.c.h.b16 %v122
  %v808 = vunpack.c.l.b16 %v123
  %v809 = vunpack.c.h.b16 %v123
  %v810 = vunpack.c.l.b16 %v124
  %v811 = vunpack.c.h.b16 %v124
  %v812 = vunpack.c.l.b16 %v125
  %v813 = vunpack.c.h.b16 %v125
  %v814 = vunpack.c.l.b16 %v126
  %v815 = vunpack.c.h.b16 %v126
  %v816 = vunpack.c.l.b16 %v127
  %v817 = vunpack.c.h.b16 %v127
  %v818 = vunpack.c.l.b16 %v128
  %v819 = vunpack.c.h.b16 %v128
  %v820 = vunpack.c.l.b16 %v129
  %v821 = vunpack.c.h.b16 %v129
  %v822 = vunpack.c.l.b16 %v130
  %v823 = vunpack.c.h.b16 %v130
  %v824 = vunpack.c.l.b16 %v131
  %v825 = vunpack.c.h.b16 %v131
  %v826 = vunpack.c.l.b16 %v132
  %v827 = vunpack.c.h.b16 %v132
  %v828 = vunpack.c.l.b16 %v133
  %v829 = vunpack.c.h.b16 %v133
  %v830 = vunpack.c.l.b16 %v134
  %v831 = vunpack.c.h.b16 %v134
  %v832 = vunpack.c.l.b16 %v135
  %v833 = vunpack.c.h.b16 %v135
  %v834 = vunpack.c.l.b16 %v136
  %v835 = vunpack.c.h.b16 %v136
  %v836 = vunpack.c.l.b16 %v137
  %v837 = vunpack.c.h.b16 %v137
  %v838 = vunpack.c.l.b16 %v138
  %v839 = vunpack.c.h.b16 %v138
  %v840 = vunpack.c.l.b16 %v139
  %v841 = vunpack.c.h.b16 %v139
  %v842 = vunpack.c.l.b16 %v140
  %v843 = vunpack.c.h.b16 %v140
  %v844 = vunpack.c.l.b16 %v141
  %v845 = vunpack.c.h.b16 %v141
  %v846 = vunpack.c.l.b16 %v142
  %v847 = vunpack.c.h.b16 %v142
  %v848 = vunpack.c.l.b16 %v143
  %v849 = vunpack.c.h.b16 %v143
  %v850 = vunpack.c.l.b16 %v144
  %v851 = vunpack.c.h.b16 %v144
  %v852 = vunpack.c.l.b16 %v145
  %v853 = vunpack.c.h.b16 %v145
  %v854 = vunpack.c.l.b16 %v146
  %v855 = vunpack.c.h.b16 %v146
  %v856 = vunpack.c.l.b16 %v147
  %v857 = vunpack.c.h.b16 %v147
  %v858 = vunpack.c.l.b16 %v148
  %v859 = vunpack.c.h.b16 %v148
  %v860 = vunpack.c.l.b16 %v149
  %v861 = vunpack.c.h.b16 %v149
  %v862 = vunpack.c.l.b16 %v150
  %v863 = vunpack.c.h.b16 %v150
  %v864 = vunpack.c.l.b16 %v151
  %v865 = vunpack.c.h.b16 %v151
  %v866 = vunpack.c.l.b16 %v152
  %v867 = vunpack.c.h.b16 %v152
  %v868 = vunpack.c.l.b16 %v153
  %v869 = vunpack.c.h.b16 %v153
  %v870 = vunpack.c.l.b16 %v154
  %v871 = vunpack.c.h.b16 %v154
  %v872 = vunpack.c.l.b16 %v155
  %v873 = vunpack.c.h.b16 %v155
  %v874 = vunpack.c.l.b16 %v156
  %v875 = vunpack.c.h.b16 %v156
  %v876 = vunpack.c.l.b16 %v157
  %v877 = vunpack.c.h.b16 %v157
  %v878 = vunpack.c.l.b16 %v158
  %v879 = vunpack.c.h.b16 %v158
  %v880 = vunpack.c.l.b16 %v159
  %v881 = vunpack.c.h.b16 %v159
  %v882 = vunpack.c.l.b16 %v160
  %v883 = vunpack.c.h.b16 %v160
  %v884 = vunpack.c.l.b16 %v161
  %v885 = vunpack.c.h.b16 %v161
  %v886 = vunpack.c.l.b16 %v162
  %v887 = vunpack.c.h.b16 %v162
  %v888 = vunpack.c.l.b16 %v163
  %v889 = vunpack.c.h.b16 %v163
  %v890 = vunpack.c.l.b16 %v164
  %v891 = vunpack.c.h.b16 %v164
  %v892 = vunpack.c.l.b16 %v165
  %v893 = vunpack.c.h.b16 %v165
  %v894 = vunpack.c.l.b16 %v166
  %v895 = vunpack.c.h.b16 %v166
  %v896 = vunpack.c.l.b16 %v167
  %v897 = vunpack.c.h.b16 %v167
  %v898 = vunpack.c.l.b16 %v168
  %v899 = vunpack.c.h.b16 %v168
  %v900 = vunpack.c.l.b16 %v169
  %v901 = vunpack.c.h.b16 %v169
  %v902 = vunpack.c.l.b16 %v170
  %v903 = vunpack.c.h.b16 %v170
  %v904 = vunpack.c.l.b16 %v171
  %v905 = vunpack.c.h.b16 %v171
  %v906 = vunpack.c.l.b16 %v172
  %v907 = vunpack.c.h.b16 %v172
  %v908 = vunpack.c.l.b16 %v173
  %v909 = vunpack.c.h.b16 %v173
  %v910 = vunpack.c.l.b16 %v174
  %v911 = vunpack.c.h.b16 %v174
  %v912 = vunpack.c.l.b16 %v175
  %v913 = vunpack.c.h.b16 %v175
  %v914 = vunpack.c.l.b16 %v176
  %v915 = vunpack.c.h.b16 %v176
  %v916 = vunpack.c.l.b16 %v177
  %v917 = vunpack.c.h.b16 %v177
  %v918 = vunpack.c.l.b16 %v178
  %v919 = vunpack.c.h.b16 %v178
  %v920 = vunpack.c.l.b16 %v179
  %v921 = vunpack.c.h.b16 %v179
  %v922 = vunpack.c.l.b16 %v180
  %v923 = vunpack.c.h.b16 %v180
  %v924 = vunpack.c.l.b16 %v181
  %v925 = vunpack.c.h.b16 %v181
  %v926 = vunpack.c.l.b16 %v182
  %v927 = vunpack.c.h.b16 %v182
  %v928 = vunpack.c.l.b16 %v183
  %v929 = vunpack.c.h.b16 %v183
  %v930 = vunpack.c.l.b16 %v184
  %v931 = vunpack.c.h.b16 %v184
  %v932 = vunpack.c.l.b16 %v185
  %v933 = vunpack.c.h.b16 %v185
  %v934 = vunpack.c.l.b16 %v186
  %v935 = vunpack.c.h.b16 %v186
  %v936 = vunpack.c.l.b16 %v187
  %v937 = vunpack.c.h.b16 %v187
  %v938 = vunpack.c.l.b16 %v188
  %v939 = vunpack.c.h.b16 %v188
  %v940 = vunpack.c.l.b16 %v189
  %v941 = vunpack.c.h.b16 %v189
  %v942 = vunpack.c.l.b16 %v190
  %v943 = vunpack.c.h.b16 %v190
  %v944 = vunpack.c.l.b16 %v191
  %v945 = vunpack.c.h.b16 %v191
  %v946 = vunpack.c.l.b16 %v192
  %v947 = vunpack.c.h.b16 %v192
  %v948 = vunpack.c.l.b16 %v193
  %v949 = vunpack.c.h.b16 %v193
  %v950 = vunpack.c.l.b16 %v194
  %v951 = vunpack.c.h.b16 %v194
  %v952 = vunpack.c.l.b16 %v195
  %v953 = vunpack.c.h.b16 %v195
  %v954 = vunpack.c.l.b16 %v196
  %v955 = vunpack.c.h.b16 %v196
  %v956 = vunpack.c.l.b16 %v197
  %v957 = vunpack.c.h.b16 %v197
  %v958 = vunpack.c.l.b16 %v198
  %v959 = vunpack.c.h.b16 %v198
  %v960 = vunpack.c.l.b16 %v199
  %v961 = vunpack.c.h.b16 %v199
  %v962 = vunpack.c.l.b16 %v200
  %v963 = vunpack.c.h.b16 %v200
  %v964 = vunpack.c.l.b16 %v201
  %v965 = vunpack.c.h.b16 %v201
  %v966 = vunpack.c.l.b16 %v202
  %v967 = vunpack.c.h.b16 %v202
  %v968 = vunpack.c.l.b16 %v203
  %v969 = vunpack.c.h.b16 %v203
  %v970 = vunpack.c.l.b16 %v204
  %v971 = vunpack.c.h.b16 %v204
  %v972 = vunpack.c.l.b16 %v205
  %v973 = vunpack.c.h.b16 %v205
  %v974 = vunpack.c.l.b16 %v206
  %v975 = vunpack.c.h.b16 %v206
  %v976 = vunpack.c.l.b16 %v207
  %v977 = vunpack.c.h.b16 %v207
  %v978 = vunpack.c.l.b16 %v208
  %v979 = vunpack.c.h.b16 %v208
  %v980 = vunpack.c.l.b16 %v209
  %v981 = vunpack.c.h.b16 %v209
  %v982 = vunpack.c.l.b16 %v210
  %v983 = vunpack.c.h.b16 %v210
  %v984 = vunpack.c.l.b16 %v211
  %v985 = vunpack.c.h.b16 %v211
  %v986 = vunpack.c.l.b16 %v212
  %v987 = vunpack.c.h.b16 %v212
  %v988 = vunpack.c.l.b16 %v213
  %v989 = vunpack.c.h.b16 %v213
  %v990 = vunpack.c.l.b16 %v214
  %v991 = vunpack.c.h.b16 %v214
  %v992 = vunpack.c.l.b16 %v215
  %v993 = vunpack.c.h.b16 %v215
  %v994 = vunpack.c.l.b16 %v216
  %v995 = vunpack.c.h.b16 %v216
  %v996 = vunpack.c.l.b16 %v217
  %v997 = vunpack.c.h.b16 %v217
  %v998 = vunpack.c.l.b16 %v218
  %v999 = vunpack.c.h.b16 %v218
  %v1000 = vunpack.c.l.b16 %v219
  %v1001 = vunpack.c.h.b16 %v219
  %v1002 = vunpack.c.l.b16 %v220
  %v1003 = vunpack.c.h.b16 %v220
  %v1004 = vunpack.c.l.b16 %v221
  %v1005 = vunpack.c.h.b16 %v221
  %v1006 = vunpack.c.l.b16 %v222
  %v1007 = vunpack.c.h.b16 %v222
  %v1008 = vunpack.c.l.b16 %v223
  %v1009 = vunpack.c.h.b16 %v223
  %v1010 = vunpack.c.l.b16 %v224
  %v1011 = vunpack.c.h.b16 %v224
  %v1012 = vunpack.c.l.b16 %v225
  %v1013 = vunpack.c.h.b16 %v225
  %v1014 = vunpack.c.l.b16 %v226
  %v1015 = vunpack.c.h.b16 %v226
  %v1016 = vunpack.c.l.b16 %v227
  %v1017 = vunpack.c.h.b16 %v227
  %v1018 = vunpack.c.l.b16 %v228
  %v1019 = vunpack.c.h.b16 %v228
  %v1020 = vunpack.c.l.b16 %v229
  %v1021 = vunpack.c.h.b16 %v229
  %v1022 = vunpack.c.l.b16 %v230
  %v1023 = vunpack.c.h.b16 %v230
  %v1024 = vunpack.c.l.b16 %v231
  %v1025 = vunpack.c.h.b16 %v231
  %v1026 = vunpack.c.l.b16 %v232
  %v1027 = vunpack.c.h.b16 %v232
  %v1028 = vunpack.c.l.b16 %v233
  %v1029 = vunpack.c.h.b16 %v233
  %v1030 = vunpack.c.l.b16 %v234
  %v1031 = vunpack.c.h.b16 %v234
  %v1032 = vunpack.c.l.b16 %v235
  %v1033 = vunpack.c.h.b16 %v235
  %v1034 = vunpack.c.l.b16 %v236
  %v1035 = vunpack.c.h.b16 %v236
  %v1036 = vunpack.c.l.b16 %v237
  %v1037 = vunpack.c.h.b16 %v237
  %v1038 = vunpack.c.l.b16 %v238
  %v1039 = vunpack.c.h.b16 %v238
  %v1040 = vunpack.c.l.b16 %v239
  %v1041 = vunpack.c.h.b16 %v239
  %v1042 = vunpack.c.l.b16 %v240
  %v1043 = vunpack.c.h.b16 %v240
  %v1044 = vunpack.c.l.b16 %v241
  %v1045 = vunpack.c.h.b16 %v241
  %v1046 = vunpack.c.l.b16 %v242
  %v1047 = vunpack.c.h.b16 %v242
  %v1048 = vunpack.c.l.b16 %v243
  %v1049 = vunpack.c.h.b16 %v243
  %v1050 = vunpack.c.l.b16 %v244
  %v1051 = vunpack.c.h.b16 %v244
  %v1052 = vunpack.c.l.b16 %v245
  %v1053 = vunpack.c.h.b16 %v245
  %v1054 = vunpack.c.l.b16 %v246
  %v1055 = vunpack.c.h.b16 %v246
  %v1056 = vunpack.c.l.b16 %v247
  %v1057 = vunpack.c.h.b16 %v247
  %v1058 = vunpack.c.l.b16 %v248
  %v1059 = vunpack.c.h.b16 %v248
  %v1060 = vunpack.c.l.b16 %v249
  %v1061 = vunpack.c.h.b16 %v249
  %v1062 = vunpack.c.l.b16 %v250
  %v1063 = vunpack.c.h.b16 %v250
  %v1064 = vunpack.c.l.b16 %v251
  %v1065 = vunpack.c.h.b16 %v251
  %v1066 = vunpack.c.l.b16 %v252
  %v1067 = vunpack.c.h.b16 %v252
  %v1068 = vunpack.c.l.b16 %v253
  %v1069 = vunpack.c.h.b16 %v253
  %v1070 = vunpack.c.l.b16 %v254
  %v1071 = vunpack.c.h.b16 %v254
  %v1072 = vunpack.c.l.b16 %v255
  %v1073 = vunpack.c.h.b16 %v255
  %v1074 = vunpack.c.l.b16 %v256
  %v1075 = vunpack.c.h.b16 %v256
  %v1076 = vunpack.c.l.b16 %v257
  %v1077 = vunpack.c.h.b16 %v257
  %v1078 = vunpack.c.l.b16 %v258
  %v1079 = vunpack.c.h.b16 %v258
  %v1080 = vunpack.c.l.b16 %v259
  %v1081 = vunpack.c.h.b16 %v259
  %v1082 = vunpack.c.l.b16 %v260
  %v1083 = vunpack.c.h.b16 %v260
  %v1084 = vunpack.c.l.b16 %v261
  %v1085 = vunpack.c.h.b16 %v261
  %v1086 = vunpack.c.l.b16 %v262
  %v1087 = vunpack.c.h.b16 %v262
  %v1088 = vunpack.c.l.b16 %v263
  %v1089 = vunpack.c.h.b16 %v263
  %v1090 = vunpack.c.l.b16 %v264
  %v1091 = vunpack.c.h.b16 %v264
  %v1092 = vunpack.c.l.b16 %v265
  %v1093 = vunpack.c.h.b16 %v265
  %v1094 = vunpack.c.l.b16 %v266
  %v1095 = vunpack.c.h.b16 %v266
  %v1096 = vunpack.c.l.b16 %v267
  %v1097 = vunpack.c.h.b16 %v267
  %v1098 = vunpack.c.l.b16 %v268
  %v1099 = vunpack.c.h.b16 %v268
  %v1100 = vunpack.c.l.b16 %v269
  %v1101 = vunpack.c.h.b16 %v269
  %v1102 = vunpack.c.l.b16 %v270
  %v1103 = vunpack.c.h.b16 %v270
  %v1104 = vunpack.c.l.b16 %v271
  %v1105 = vunpack.c.h.b16 %v271
  %v1106 = vunpack.c.l.b16 %v272
  %v1107 = vunpack.c.h.b16 %v272
  %v1108 = vunpack.c.l.b16 %v273
  %v1109 = vunpack.c.h.b16 %v273
  %v1110 = vunpack.c.l.b16 %v274
  %v1111 = vunpack.c.h.b16 %v274
  %v1112 = vunpack.c.l.b16 %v275
  %v1113 = vunpack.c.h.b16 %v275
  %v1114 = vunpack.c.l.b16 %v276
  %v1115 = vunpack.c.h.b16 %v276
  %v1116 = vunpack.c.l.b16 %v277
  %v1117 = vunpack.c.h.b16 %v277
  %v1118 = vunpack.c.l.b16 %v278
  %v1119 = vunpack.c.h.b16 %v278
  %v1120 = vunpack.c.l.b16 %v279
  %v1121 = vunpack.c.h.b16 %v279
  %v1122 = vunpack.c.l.b16 %v280
  %v1123 = vunpack.c.h.b16 %v280
  %v1124 = vunpack.c.l.b16 %v281
  %v1125 = vunpack.c.h.b16 %v281
  %v1126 = vunpack.c.l.b16 %v282
  %v1127 = vunpack.c.h.b16 %v282
  %v1128 = vunpack.c.l.b16 %v283
  %v1129 = vunpack.c.h.b16 %v283
  %v1130 = vunpack.c.l.b16 %v284
  %v1131 = vunpack.c.h.b16 %v284
  %v1132 = vunpack.c.l.b16 %v285
  %v1133 = vunpack.c.h.b16 %v285
  %v1134 = vpack.c.b16 %v626, %v622
  %v1135 = vpack.c.b16 %v627, %v623
  %v1136 = vpack.c.b16 %v628, %v624
  %v1137 = vpack.c.b16 %v629, %v625
  %v1138 = vpack.c.b16 %v634, %v630
  %v1139 = vpack.c.b16 %v635, %v631
  %v1140 = vpack.c.b16 %v636, %v632
  %v1141 = vpack.c.b16 %v637, %v633
  %v1142 = vpack.c.b16 %v642, %v638
  %v1143 = vpack.c.b16 %v643, %v639
  %v1144 = vpack.c.b16 %v644, %v640
  %v1145 = vpack.c.b16 %v645, %v641
  %v1146 = vpack.c.b16 %v650, %v646
  %v1147 = vpack.c.b16 %v651, %v647
  %v1148 = vpack.c.b16 %v652, %v648
  %v1149 = vpack.c.b16 %v653, %v649
  %v1150 = vpack.c.b16 %v658, %v654
  %v1151 = vpack.c.b16 %v659, %v655
  %v1152 = vpack.c.b16 %v660, %v656
  %v1153 = vpack.c.b16 %v661, %v657
  %v1154 = vpack.c.b16 %v666, %v662
  %v1155 = vpack.c.b16 %v667, %v663
  %v1156 = vpack.c.b16 %v668, %v664
  %v1157 = vpack.c.b16 %v669, %v665
  %v1158 = vpack.c.b16 %v674, %v670
  %v1159 = vpack.c.b16 %v675, %v671
  %v1160 = vpack.c.b16 %v676, %v672
  %v1161 = vpack.c.b16 %v677, %v673
  %v1162 = vpack.c.b16 %v682, %v678
  %v1163 = vpack.c.b16 %v683, %v679
  %v1164 = vpack.c.b16 %v684, %v680
  %v1165 = vpack.c.b16 %v685, %v681
  %v1166 = vpack.c.b16 %v690, %v686
  %v1167 = vpack.c.b16 %v691, %v687
  %v1168 = vpack.c.b16 %v692, %v688
  %v1169 = vpack.c.b16 %v693, %v689
  %v1170 = vpack.c.b16 %v698, %v694
  %v1171 = vpack.c.b16 %v699, %v695
  %v1172 = vpack.c.b16 %v700, %v696
  %v1173 = vpack.c.b16 %v701, %v697
  %v1174 = vpack.c.b16 %v706, %v702
  %v1175 = vpack.c.b16 %v707, %v703
  %v1176 = vpack.c.b16 %v708, %v704
  %v1177 = vpack.c.b16 %v709, %v705
  %v1178 = vpack.c.b16 %v714, %v710
  %v1179 = vpack.c.b16 %v715, %v711
  %v1180 = vpack.c.b16 %v716, %v712
  %v1181 = vpack.c.b16 %v717, %v713
  %v1182 = vpack.c.b16 %v722, %v718
  %v1183 = vpack.c.b16 %v723, %v719
  %v1184 = vpack.c.b16 %v724, %v720
  %v1185 = vpack.c.b16 %v725, %v721
  %v1186 = vpack.c.b16 %v730, %v726
  %v1187 = vpack.c.b16 %v731, %v727
  %v1188 = vpack.c.b16 %v732, %v728
  %v1189 = vpack.c.b16 %v733, %v729
  %v1190 = vpack.c.b16 %v738, %v734
  %v1191 = vpack.c.b16 %v739, %v735
  %v1192 = vpack.c.b16 %v740, %v736
  %v1193 = vpack.c.b16 %v741, %v737
  %v1194 = vpack.c.b16 %v746, %v742
  %v1195 = vpack.c.b16 %v747, %v743
  %v1196 = vpack.c.b16 %v748, %v744
  %v1197 = vpack.c.b16 %v749, %v745
  %v1198 = vpack.c.b16 %v754, %v750
  %v1199 = vpack.c.b16 %v755, %v751
  %v1200 = vpack.c.b16 %v756, %v752
  %v1201 = vpack.c.b16 %v757, %v753
  %v1202 = vpack.c.b16 %v762, %v758
  %v1203 = vpack.c.b16 %v763, %v759
  %v1204 = vpack.c.b16 %v764, %v760
  %v1205 = vpack.c.b16 %v765, %v761
  %v1206 = vpack.c.b16 %v770, %v766
  %v1207 = vpack.c.b16 %v771, %v767
  %v1208 = vpack.c.b16 %v772, %v768
  %v1209 = vpack.c.b16 %v773, %v769
  %v1210 = vpack.c.b16 %v778, %v774
  %v1211 = vpack.c.b16 %v779, %v775
  %v1212 = vpack.c.b16 %v780, %v776
  %v1213 = vpack.c.b16 %v781, %v777
  %v1214 = vpack.c.b16 %v786, %v782
  %v1215 = vpack.c.b16 %v787, %v783
  %v1216 = vpack.c.b16 %v788, %v784
  %v1217 = vpack.c.b16 %v789, %v785
  %v1218 = vpack.c.b16 %v794, %v790
  %v1219 = vpack.c.b16 %v795, %v791
  %v1220 = vpack.c.b16 %v796, %v792
  %v1221 = vpack.c.b16 %v797, %v793
  %v1222 = vpack.c.b16 %v802, %v798
  %v1223 = vpack.c.b16 %v803, %v799
  %v1224 = vpack.c.b16 %v804, %v800
  %v1225 = vpack.c.b16 %v805, %v801
  %v1226 = vpack.c.b16 %v810, %v806
  %v1227 = vpack.c.b16 %v811, %v807
  %v1228 = vpack.c.b16 %v812, %v808
  %v1229 = vpack.c.b16 %v813, %v809
  %v1230 = vpack.c.b16 %v818, %v814
  %v1231 = vpack.c.b16 %v819, %v815
  %v1232 = vpack.c.b16 %v820, %v816
  %v1233 = vpack.c.b16 %v821, %v817
  %v1234 = vpack.c.b16 %v826, %v822
  %v1235 = vpack.c.b16 %v827, %v823
  %v1236 = vpack.c.b16 %v828, %v824
  %v1237 = vpack.c.b16 %v829, %v825
  %v1238 = vpack.c.b16 %v834, %v830
  %v1239 = vpack.c.b16 %v835, %v831
  %v1240 = vpack.c.b16 %v836, %v832
  %v1241 = vpack.c.b16 %v837, %v833
  %v1242 = vpack.c.b16 %v842, %v838
  %v1243 = vpack.c.b16 %v843, %v839
  %v1244 = vpack.c.b16 %v844, %v840
  %v1245 = vpack.c.b16 %v845, %v841
  %v1246 = vpack.c.b16 %v850, %v846
  %v1247 = vpack.c.b16 %v851, %v847
  %v1248 = vpack.c.b16 %v852, %v848
  %v1249 = vpack.c.b16 %v853, %v849
  %v1250 = vpack.c.b16 %v858, %v854
  %v1251 = vpack.c.b16 %v859, %v855
  %v1252 = vpack.c.b16 %v860, %v856
  %v1253 = vpack.c.b16 %v861, %v857
  %v1254 = vpack.c.b16 %v866, %v862
  %v1255 = vpack.c.b16 %v867, %v863
  %v1256 = vpack.c.b16 %v868, %v864
  %v1257 = vpack.c.b16 %v869, %v865
  %v1258 = vpack.c.b16 %v874, %v870
  %v1259 = vpack.c.b16 %v875, %v871
  %v1260 = vpack.c.b16 %v876, %v872
  %v1261 = vpack.c.b16 %v877, %v873
  %v1262 = vpack.c.b16 %v882, %v878
  %v1263 = vpack.c.b16 %v883, %v879
  %v1264 = vpack.c.b16 %v884, %v880
  %v1265 = vpack.c.b16 %v885, %v881
  %v1266 = vpack.c.b16 %v890, %v886
  %v1267 = vpack.c.b16 %v891, %v887
  %v1268 = vpack.c.b16 %v892, %v888
  %v1269 = vpack.c.b16 %v893, %v889
  %v1270 = vpack.c.b16 %v898, %v894
  %v1271 = vpack.c.b16 %v899, %v895
  %v1272 = vpack.c.b16 %v900, %v896
  %v1273 = vpack.c.b16 %v901, %v897
  %v1274 = vpack.c.b16 %v906, %v902
  %v1275 = vpack.c.b16 %v907, %v903
  %v1276 = vpack.c.b16 %v908, %v904
  %v1277 = vpack.c.b16 %v909, %v905
  %v1278 = vpack.c.b16 %v914, %v910
  %v1279 = vpack.c.b16 %v915, %v911
  %v1280 = vpack.c.b16 %v916, %v912
  %v1281 = vpack.c.b16 %v917, %v913
  %v1282 = vpack.c.b16 %v922, %v918
  %v1283 = vpack.c.b16 %v923, %v919
  %v1284 = vpack.c.b16 %v924, %v920
  %v1285 = vpack.c.b16 %v925, %v921
  %v1286 = vpack.c.b16 %v930, %v926
  %v1287 = vpack.c.b16 %v931, %v927
  %v1288 = vpack.c.b16 %v932, %v928
  %v1289 = vpack.c.b16 %v933, %v929
  %v1290 = vpack.c.b16 %v938, %v934
  %v1291 = vpack.c.b16 %v939, %v935
  %v1292 = vpack.c.b16 %v940, %v936
  %v1293 = vpack.c.b16 %v941, %v937
  %v1294 = vpack.c.b16 %v946, %v942
  %v1295 = vpack.c.b16 %v947, %v943
  %v1296 = vpack.c.b16 %v948, %v944
  %v1297 = vpack.c.b16 %v949, %v945
  %v1298 = vpack.c.b16 %v954, %v950
  %v1299 = vpack.c.b16 %v955, %v951
  %v1300 = vpack.c.b16 %v956, %v952
  %v1301 = vpack.c.b16 %v957, %v953
  %v1302 = vpack.c.b16 %v962, %v958
  %v1303 = vpack.c.b16 %v963, %v959
  %v1304 = vpack.c.b16 %v964, %v960
  %v1305 = vpack.c.b16 %v965, %v961
  %v1306 = vpack.c.b16 %v970, %v966
  %v1307 = vpack.c.b16 %v971, %v967
  %v1308 = vpack.c.b16 %v972, %v968
  %v1309 = vpack.c.b16 %v973, %v969
  %v1310 = vpack.c.b16 %v978, %v974
  %v1311 = vpack.c.b16 %v979, %v975
  %v1312 = vpack.c.b16 %v980, %v976
  %v1313 = vpack.c.b16 %v981, %v977
  %v1314 = vpack.c.b16 %v986, %v982
  %v1315 = vpack.c.b16 %v987, %v983
  %v1316 = vpack.c.b16 %v988, %v984
  %v1317 = vpack.c.b16 %v989, %v985
  %v1318 = vpack.c.b16 %v994, %v990
  %v1319 = vpack.c.b16 %v995, %v991
  %v1320 = vpack.c.b16 %v996, %v992
  %v1321 = vpack.c.b16 %v997, %v993
  %v1322 = vpack.c.b16 %v1002, %v998
  %v1323 = vpack.c.b16 %v1003, %v999
  %v1324 = vpack.c.b16 %v1004, %v1000
  %v1325 = vpack.c.b16 %v1005, %v1001
  %v1326 = vpack.c.b16 %v1010, %v1006
  %v1327 = vpack.c.b16 %v1011, %v1007
  %v1328 = vpack.c.b16 %v1012, %v1008
  %v1329 = vpack.c.b16 %v1013, %v1009
  %v1330 = vpack.c.b16 %v1018, %v1014
  %v1331 = vpack.c.b16 %v1019, %v1015
  %v1332 = vpack.c.b16 %v1020, %v1016
  %v1333 = vpack.c.b16 %v1021, %v1017
  %v1334 = vpack.c.b16 %v1026, %v1022
  %v1335 = vpack.c.b16 %v1027, %v1023
  %v1336 = vpack.c.b16 %v1028, %v1024
  %v1337 = vpack.c.b16 %v1029, %v1025
  %v1338 = vpack.c.b16 %v1034, %v1030
  %v1339 = vpack.c.b16 %v1035, %v1031
  %v1340 = vpack.c.b16 %v1036, %v1032
  %v1341 = vpack.c.b16 %v1037, %v1033
  %v1342 = vpack.c.b16 %v1042, %v1038
  %v1343 = vpack.c.b16 %v1043, %v1039
  %v1344 = vpack.c.b16 %v1044, %v1040
  %v1345 = vpack.c.b16 %v1045, %v1041
  %v1346 = vpack.c.b16 %v1050, %v1046
  %v1347 = vpack.c.b16 %v1051, %v1047
  %v1348 = vpack.c.b16 %v1052, %v1048
  %v1349 = vpack.c.b16 %v1053, %v1049
  %v1350 = vpack.c.b16 %v1058, %v1054
  %v1351 = vpack.c.b16 %v1059, %v1055
  %v1352 = vpack.c.b16 %v1060, %v1056
  %v1353 = vpack.c.b16 %v1061, %v1057
  %v1354 = vpack.c.b16 %v1066, %v1062
  %v1355 = vpack.c.b16 %v1067, %v1063
  %v1356 = vpack.c.b16 %v1068, %v1064
  %v1357 = vpack.c.b16 %v1069, %v1065
  %v1358 = vpack.c.b16 %v1074, %v1070
  %v1359 = vpack.c.b16 %v1075, %v1071
  %v1360 = vpack.c.b16 %v1076, %v1072
  %v1361 = vpack.c.b16 %v1077, %v1073
  %v1362 = vpack.c.b16 %v1082, %v1078
  %v1363 = vpack.c.b16 %v1083, %v1079
  %v1364 = vpack.c.b16 %v1084, %v1080
  %v1365 = vpack.c.b16 %v1085, %v1081
  %v1366 = vpack.c.b16 %v1090, %v1086
  %v1367 = vpack.c.b16 %v1091, %v1087
  %v1368 = vpack.c.b16 %v1092, %v1088
  %v1369 = vpack.c.b16 %v1093, %v1089
  %v1370 = vpack.c.b16 %v1098, %v1094
  %v1371 = vpack.c.b16 %v1099, %v1095
  %v1372 = vpack.c.b16 %v1100, %v1096
  %v1373 = vpack.c.b16 %v1101, %v1097
  %v1374 = vpack.c.b16 %v1106, %v1102
  %v1375 = vpack.c.b16 %v1107, %v1103
  %v1376 = vpack.c.b16 %v1108, %v1104
  %v1377 = vpack.c.b16 %v1109, %v1105
  %v1378 = vpack.c.b16 %v1114, %v1110
  %v1379 = vpack.c.b16 %v1115, %v1111
  %v1380 = vpack.c.b16 %v1116, %v1112
  %v1381 = vpack.c.b16 %v1117, %v1113
  %v1382 = vpack.c.b16 %v1122, %v1118
  %v1383 = vpack.c.b16 %v1123, %v1119
  %v1384 = vpack.c.b16 %v1124, %v1120
  %v1385 = vpack.c.b16 %v1125, %v1121
  %v1386 = vpack.c.b16 %v1130, %v1126
  %v1387 = vpack.c.b16 %v1131, %v1127
  %v1388 = vpack.c.b16 %v1132, %v1128
  %v1389 = vpack.c.b16 %v1133, %v1129
  %1646 = vmatpush.bf16.msra.mxu0 %v1162
  %1647 = vmatpush.bf16.msra.mxu0 %v1158
  %1648 = vmatpush.bf16.msra.mxu0 %v1154
  %1649 = vmatpush.bf16.msra.mxu0 %v1150
  %1650 = vmatpush.bf16.msra.mxu0 %v1146
  %1651 = vmatpush.bf16.msra.mxu0 %v1142
  %1652 = vmatpush.bf16.msra.mxu0 %v1138
  %1653 = vmatpush.bf16.msra.mxu0 %v1134
  %1654 = vmatmul.bf16.gmra.mxu0 %v334
  %v1655 = vpop.f32.mrf.mxu0
  %v1656 = vadd.f32 0.0, %v1655
  %v1657 = vpop.f32.mrf.mxu0
  %v1658 = vadd.f32 0.0, %v1657
  %1659 = vmatmul.bf16.gmra.mxu0 %v342
  %v1660 = vpop.f32.mrf.mxu0
  %v1661 = vadd.f32 0.0, %v1660
  %v1662 = vpop.f32.mrf.mxu0
  %v1663 = vadd.f32 0.0, %v1662
  %1664 = vdwg.mxu0
  %1665 = vmatpush.bf16.msra.mxu0 %v1194
  %1666 = vmatpush.bf16.msra.mxu0 %v1190
  %1667 = vmatpush.bf16.msra.mxu0 %v1186
  %1668 = vmatpush.bf16.msra.mxu0 %v1182
  %1669 = vmatpush.bf16.msra.mxu0 %v1178
  %1670 = vmatpush.bf16.msra.mxu0 %v1174
  %1671 = vmatpush.bf16.msra.mxu0 %v1170
  %1672 = vmatpush.bf16.msra.mxu0 %v1166
  %1673 = vmatmul.bf16.gmra.mxu0 %v335
  %v1674 = vpop.f32.mrf.mxu0
  %v1675 = vadd.f32 %v1656, %v1674
  %v1676 = vpop.f32.mrf.mxu0
  %v1677 = vadd.f32 %v1658, %v1676
  %1678 = vmatmul.bf16.gmra.mxu0 %v343
  %v1679 = vpop.f32.mrf.mxu0
  %v1680 = vadd.f32 %v1661, %v1679
  %v1681 = vpop.f32.mrf.mxu0
  %v1682 = vadd.f32 %v1663, %v1681
  %1683 = vdwg.mxu0
  %1684 = vmatpush.bf16.msra.mxu0 %v1226
  %1685 = vmatpush.bf16.msra.mxu0 %v1222
  %1686 = vmatpush.bf16.msra.mxu0 %v1218
  %1687 = vmatpush.bf16.msra.mxu0 %v1214
  %1688 = vmatpush.bf16.msra.mxu0 %v1210
  %1689 = vmatpush.bf16.msra.mxu0 %v1206
  %1690 = vmatpush.bf16.msra.mxu0 %v1202
  %1691 = vmatpush.bf16.msra.mxu0 %v1198
  %1692 = vmatmul.bf16.gmra.mxu0 %v336
  %v1693 = vpop.f32.mrf.mxu0
  %v1694 = vadd.f32 %v1675, %v1693
  %v1695 = vpop.f32.mrf.mxu0
  %v1696 = vadd.f32 %v1677, %v1695
  %1697 = vmatmul.bf16.gmra.mxu0 %v344
  %v1698 = vpop.f32.mrf.mxu0
  %v1699 = vadd.f32 %v1680, %v1698
  %v1700 = vpop.f32.mrf.mxu0
  %v1701 = vadd.f32 %v1682, %v1700
  %1702 = vdwg.mxu0
  %1703 = vmatpush.bf16.msra.mxu0 %v1258
  %1704 = vmatpush.bf16.msra.mxu0 %v1254
  %1705 = vmatpush.bf16.msra.mxu0 %v1250
  %1706 = vmatpush.bf16.msra.mxu0 %v1246
  %1707 = vmatpush.bf16.msra.mxu0 %v1242
  %1708 = vmatpush.bf16.msra.mxu0 %v1238
  %1709 = vmatpush.bf16.msra.mxu0 %v1234
  %1710 = vmatpush.bf16.msra.mxu0 %v1230
  %1711 = vmatmul.bf16.gmra.mxu0 %v337
  %v1712 = vpop.f32.mrf.mxu0
  %v1713 = vadd.f32 %v1694, %v1712
  %v1714 = vpop.f32.mrf.mxu0
  %v1715 = vadd.f32 %v1696, %v1714
  %1716 = vmatmul.bf16.gmra.mxu0 %v345
  %v1717 = vpop.f32.mrf.mxu0
  %v1718 = vadd.f32 %v1699, %v1717
  %v1719 = vpop.f32.mrf.mxu0
  %v1720 = vadd.f32 %v1701, %v1719
  %1721 = vdwg.mxu0
  %1722 = vmatpush.bf16.msra.mxu0 %v1290
  %1723 = vmatpush.bf16.msra.mxu0 %v1286
  %1724 = vmatpush.bf16.msra.mxu0 %v1282
  %1725 = vmatpush.bf16.msra.mxu0 %v1278
  %1726 = vmatpush.bf16.msra.mxu0 %v1274
  %1727 = vmatpush.bf16.msra.mxu0 %v1270
  %1728 = vmatpush.bf16.msra.mxu0 %v1266
  %1729 = vmatpush.bf16.msra.mxu0 %v1262
  %1730 = vmatmul.bf16.gmra.mxu0 %v338
  %v1731 = vpop.f32.mrf.mxu0
  %v1732 = vadd.f32 %v1713, %v1731
  %v1733 = vpop.f32.mrf.mxu0
  %v1734 = vadd.f32 %v1715, %v1733
  %1735 = vmatmul.bf16.gmra.mxu0 %v346
  %v1736 = vpop.f32.mrf.mxu0
  %v1737 = vadd.f32 %v1718, %v1736
  %v1738 = vpop.f32.mrf.mxu0
  %v1739 = vadd.f32 %v1720, %v1738
  %1740 = vdwg.mxu0
  %1741 = vmatpush.bf16.msra.mxu0 %v1322
  %1742 = vmatpush.bf16.msra.mxu0 %v1318
  %1743 = vmatpush.bf16.msra.mxu0 %v1314
  %1744 = vmatpush.bf16.msra.mxu0 %v1310
  %1745 = vmatpush.bf16.msra.mxu0 %v1306
  %1746 = vmatpush.bf16.msra.mxu0 %v1302
  %1747 = vmatpush.bf16.msra.mxu0 %v1298
  %1748 = vmatpush.bf16.msra.mxu0 %v1294
  %1749 = vmatmul.bf16.gmra.mxu0 %v339
  %v1750 = vpop.f32.mrf.mxu0
  %v1751 = vadd.f32 %v1732, %v1750
  %v1752 = vpop.f32.mrf.mxu0
  %v1753 = vadd.f32 %v1734, %v1752
  %1754 = vmatmul.bf16.gmra.mxu0 %v347
  %v1755 = vpop.f32.mrf.mxu0
  %v1756 = vadd.f32 %v1737, %v1755
  %v1757 = vpop.f32.mrf.mxu0
  %v1758 = vadd.f32 %v1739, %v1757
  %1759 = vdwg.mxu0
  %1760 = vmatpush.bf16.msra.mxu0 %v1354
  %1761 = vmatpush.bf16.msra.mxu0 %v1350
  %1762 = vmatpush.bf16.msra.mxu0 %v1346
  %1763 = vmatpush.bf16.msra.mxu0 %v1342
  %1764 = vmatpush.bf16.msra.mxu0 %v1338
  %1765 = vmatpush.bf16.msra.mxu0 %v1334
  %1766 = vmatpush.bf16.msra.mxu0 %v1330
  %1767 = vmatpush.bf16.msra.mxu0 %v1326
  %1768 = vmatmul.bf16.gmra.mxu0 %v340
  %v1769 = vpop.f32.mrf.mxu0
  %v1770 = vadd.f32 %v1751, %v1769
  %v1771 = vpop.f32.mrf.mxu0
  %v1772 = vadd.f32 %v1753, %v1771
  %1773 = vmatmul.bf16.gmra.mxu0 %v348
  %v1774 = vpop.f32.mrf.mxu0
  %v1775 = vadd.f32 %v1756, %v1774
  %v1776 = vpop.f32.mrf.mxu0
  %v1777 = vadd.f32 %v1758, %v1776
  %1778 = vdwg.mxu0
  %1779 = vmatpush.bf16.msra.mxu0 %v1386
  %1780 = vmatpush.bf16.msra.mxu0 %v1382
  %1781 = vmatpush.bf16.msra.mxu0 %v1378
  %1782 = vmatpush.bf16.msra.mxu0 %v1374
  %1783 = vmatpush.bf16.msra.mxu0 %v1370
  %1784 = vmatpush.bf16.msra.mxu0 %v1366
  %1785 = vmatpush.bf16.msra.mxu0 %v1362
  %1786 = vmatpush.bf16.msra.mxu0 %v1358
  %1787 = vmatmul.bf16.gmra.mxu0 %v341
  %v1788 = vpop.f32.mrf.mxu0
  %v1789 = vadd.f32 %v1770, %v1788
  %v1790 = vpop.f32.mrf.mxu0
  %v1791 = vadd.f32 %v1772, %v1790
  %1792 = vmatmul.bf16.gmra.mxu0 %v349
  %v1793 = vpop.f32.mrf.mxu0
  %v1794 = vadd.f32 %v1775, %v1793
  %v1795 = vpop.f32.mrf.mxu0
  %v1796 = vadd.f32 %v1777, %v1795
  %1797 = vdwg.mxu0
  %1798 = vmatpush.bf16.msra.mxu0 %v1163
  %1799 = vmatpush.bf16.msra.mxu0 %v1159
  %1800 = vmatpush.bf16.msra.mxu0 %v1155
  %1801 = vmatpush.bf16.msra.mxu0 %v1151
  %1802 = vmatpush.bf16.msra.mxu0 %v1147
  %1803 = vmatpush.bf16.msra.mxu0 %v1143
  %1804 = vmatpush.bf16.msra.mxu0 %v1139
  %1805 = vmatpush.bf16.msra.mxu0 %v1135
  %1806 = vmatmul.bf16.gmra.mxu0 %v334
  %v1807 = vpop.f32.mrf.mxu0
  %v1808 = vadd.f32 0.0, %v1807
  %v1809 = vpop.f32.mrf.mxu0
  %v1810 = vadd.f32 0.0, %v1809
  %1811 = vmatmul.bf16.gmra.mxu0 %v342
  %v1812 = vpop.f32.mrf.mxu0
  %v1813 = vadd.f32 0.0, %v1812
  %v1814 = vpop.f32.mrf.mxu0
  %v1815 = vadd.f32 0.0, %v1814
  %1816 = vdwg.mxu0
  %1817 = vmatpush.bf16.msra.mxu0 %v1195
  %1818 = vmatpush.bf16.msra.mxu0 %v1191
  %1819 = vmatpush.bf16.msra.mxu0 %v1187
  %1820 = vmatpush.bf16.msra.mxu0 %v1183
  %1821 = vmatpush.bf16.msra.mxu0 %v1179
  %1822 = vmatpush.bf16.msra.mxu0 %v1175
  %1823 = vmatpush.bf16.msra.mxu0 %v1171
  %1824 = vmatpush.bf16.msra.mxu0 %v1167
  %1825 = vmatmul.bf16.gmra.mxu0 %v335
  %v1826 = vpop.f32.mrf.mxu0
  %v1827 = vadd.f32 %v1808, %v1826
  %v1828 = vpop.f32.mrf.mxu0
  %v1829 = vadd.f32 %v1810, %v1828
  %1830 = vmatmul.bf16.gmra.mxu0 %v343
  %v1831 = vpop.f32.mrf.mxu0
  %v1832 = vadd.f32 %v1813, %v1831
  %v1833 = vpop.f32.mrf.mxu0
  %v1834 = vadd.f32 %v1815, %v1833
  %1835 = vdwg.mxu0
  %1836 = vmatpush.bf16.msra.mxu0 %v1227
  %1837 = vmatpush.bf16.msra.mxu0 %v1223
  %1838 = vmatpush.bf16.msra.mxu0 %v1219
  %1839 = vmatpush.bf16.msra.mxu0 %v1215
  %1840 = vmatpush.bf16.msra.mxu0 %v1211
  %1841 = vmatpush.bf16.msra.mxu0 %v1207
  %1842 = vmatpush.bf16.msra.mxu0 %v1203
  %1843 = vmatpush.bf16.msra.mxu0 %v1199
  %1844 = vmatmul.bf16.gmra.mxu0 %v336
  %v1845 = vpop.f32.mrf.mxu0
  %v1846 = vadd.f32 %v1827, %v1845
  %v1847 = vpop.f32.mrf.mxu0
  %v1848 = vadd.f32 %v1829, %v1847
  %1849 = vmatmul.bf16.gmra.mxu0 %v344
  %v1850 = vpop.f32.mrf.mxu0
  %v1851 = vadd.f32 %v1832, %v1850
  %v1852 = vpop.f32.mrf.mxu0
  %v1853 = vadd.f32 %v1834, %v1852
  %1854 = vdwg.mxu0
  %1855 = vmatpush.bf16.msra.mxu0 %v1259
  %1856 = vmatpush.bf16.msra.mxu0 %v1255
  %1857 = vmatpush.bf16.msra.mxu0 %v1251
  %1858 = vmatpush.bf16.msra.mxu0 %v1247
  %1859 = vmatpush.bf16.msra.mxu0 %v1243
  %1860 = vmatpush.bf16.msra.mxu0 %v1239
  %1861 = vmatpush.bf16.msra.mxu0 %v1235
  %1862 = vmatpush.bf16.msra.mxu0 %v1231
  %1863 = vmatmul.bf16.gmra.mxu0 %v337
  %v1864 = vpop.f32.mrf.mxu0
  %v1865 = vadd.f32 %v1846, %v1864
  %v1866 = vpop.f32.mrf.mxu0
  %v1867 = vadd.f32 %v1848, %v1866
  %1868 = vmatmul.bf16.gmra.mxu0 %v345
  %v1869 = vpop.f32.mrf.mxu0
  %v1870 = vadd.f32 %v1851, %v1869
  %v1871 = vpop.f32.mrf.mxu0
  %v1872 = vadd.f32 %v1853, %v1871
  %1873 = vdwg.mxu0
  %1874 = vmatpush.bf16.msra.mxu0 %v1291
  %1875 = vmatpush.bf16.msra.mxu0 %v1287
  %1876 = vmatpush.bf16.msra.mxu0 %v1283
  %1877 = vmatpush.bf16.msra.mxu0 %v1279
  %1878 = vmatpush.bf16.msra.mxu0 %v1275
  %1879 = vmatpush.bf16.msra.mxu0 %v1271
  %1880 = vmatpush.bf16.msra.mxu0 %v1267
  %1881 = vmatpush.bf16.msra.mxu0 %v1263
  %1882 = vmatmul.bf16.gmra.mxu0 %v338
  %v1883 = vpop.f32.mrf.mxu0
  %v1884 = vadd.f32 %v1865, %v1883
  %v1885 = vpop.f32.mrf.mxu0
  %v1886 = vadd.f32 %v1867, %v1885
  %1887 = vmatmul.bf16.gmra.mxu0 %v346
  %v1888 = vpop.f32.mrf.mxu0
  %v1889 = vadd.f32 %v1870, %v1888
  %v1890 = vpop.f32.mrf.mxu0
  %v1891 = vadd.f32 %v1872, %v1890
  %1892 = vdwg.mxu0
  %1893 = vmatpush.bf16.msra.mxu0 %v1323
  %1894 = vmatpush.bf16.msra.mxu0 %v1319
  %1895 = vmatpush.bf16.msra.mxu0 %v1315
  %1896 = vmatpush.bf16.msra.mxu0 %v1311
  %1897 = vmatpush.bf16.msra.mxu0 %v1307
  %1898 = vmatpush.bf16.msra.mxu0 %v1303
  %1899 = vmatpush.bf16.msra.mxu0 %v1299
  %1900 = vmatpush.bf16.msra.mxu0 %v1295
  %1901 = vmatmul.bf16.gmra.mxu0 %v339
  %v1902 = vpop.f32.mrf.mxu0
  %v1903 = vadd.f32 %v1884, %v1902
  %v1904 = vpop.f32.mrf.mxu0
  %v1905 = vadd.f32 %v1886, %v1904
  %1906 = vmatmul.bf16.gmra.mxu0 %v347
  %v1907 = vpop.f32.mrf.mxu0
  %v1908 = vadd.f32 %v1889, %v1907
  %v1909 = vpop.f32.mrf.mxu0
  %v1910 = vadd.f32 %v1891, %v1909
  %1911 = vdwg.mxu0
  %1912 = vmatpush.bf16.msra.mxu0 %v1355
  %1913 = vmatpush.bf16.msra.mxu0 %v1351
  %1914 = vmatpush.bf16.msra.mxu0 %v1347
  %1915 = vmatpush.bf16.msra.mxu0 %v1343
  %1916 = vmatpush.bf16.msra.mxu0 %v1339
  %1917 = vmatpush.bf16.msra.mxu0 %v1335
  %1918 = vmatpush.bf16.msra.mxu0 %v1331
  %1919 = vmatpush.bf16.msra.mxu0 %v1327
  %1920 = vmatmul.bf16.gmra.mxu0 %v340
  %v1921 = vpop.f32.mrf.mxu0
  %v1922 = vadd.f32 %v1903, %v1921
  %v1923 = vpop.f32.mrf.mxu0
  %v1924 = vadd.f32 %v1905, %v1923
  %1925 = vmatmul.bf16.gmra.mxu0 %v348
  %v1926 = vpop.f32.mrf.mxu0
  %v1927 = vadd.f32 %v1908, %v1926
  %v1928 = vpop.f32.mrf.mxu0
  %v1929 = vadd.f32 %v1910, %v1928
  %1930 = vdwg.mxu0
  %1931 = vmatpush.bf16.msra.mxu0 %v1387
  %1932 = vmatpush.bf16.msra.mxu0 %v1383
  %1933 = vmatpush.bf16.msra.mxu0 %v1379
  %1934 = vmatpush.bf16.msra.mxu0 %v1375
  %1935 = vmatpush.bf16.msra.mxu0 %v1371
  %1936 = vmatpush.bf16.msra.mxu0 %v1367
  %1937 = vmatpush.bf16.msra.mxu0 %v1363
  %1938 = vmatpush.bf16.msra.mxu0 %v1359
  %1939 = vmatmul.bf16.gmra.mxu0 %v341
  %v1940 = vpop.f32.mrf.mxu0
  %v1941 = vadd.f32 %v1922, %v1940
  %v1942 = vpop.f32.mrf.mxu0
  %v1943 = vadd.f32 %v1924, %v1942
  %1944 = vmatmul.bf16.gmra.mxu0 %v349
  %v1945 = vpop.f32.mrf.mxu0
  %v1946 = vadd.f32 %v1927, %v1945
  %v1947 = vpop.f32.mrf.mxu0
  %v1948 = vadd.f32 %v1929, %v1947
  %1949 = vdwg.mxu0
  %1950 = vmatpush.bf16.msra.mxu0 %v1164
  %1951 = vmatpush.bf16.msra.mxu0 %v1160
  %1952 = vmatpush.bf16.msra.mxu0 %v1156
  %1953 = vmatpush.bf16.msra.mxu0 %v1152
  %1954 = vmatpush.bf16.msra.mxu0 %v1148
  %1955 = vmatpush.bf16.msra.mxu0 %v1144
  %1956 = vmatpush.bf16.msra.mxu0 %v1140
  %1957 = vmatpush.bf16.msra.mxu0 %v1136
  %1958 = vmatmul.bf16.gmra.mxu0 %v334
  %v1959 = vpop.f32.mrf.mxu0
  %v1960 = vadd.f32 0.0, %v1959
  %v1961 = vpop.f32.mrf.mxu0
  %v1962 = vadd.f32 0.0, %v1961
  %1963 = vmatmul.bf16.gmra.mxu0 %v342
  %v1964 = vpop.f32.mrf.mxu0
  %v1965 = vadd.f32 0.0, %v1964
  %v1966 = vpop.f32.mrf.mxu0
  %v1967 = vadd.f32 0.0, %v1966
  %1968 = vdwg.mxu0
  %1969 = vmatpush.bf16.msra.mxu0 %v1196
  %1970 = vmatpush.bf16.msra.mxu0 %v1192
  %1971 = vmatpush.bf16.msra.mxu0 %v1188
  %1972 = vmatpush.bf16.msra.mxu0 %v1184
  %1973 = vmatpush.bf16.msra.mxu0 %v1180
  %1974 = vmatpush.bf16.msra.mxu0 %v1176
  %1975 = vmatpush.bf16.msra.mxu0 %v1172
  %1976 = vmatpush.bf16.msra.mxu0 %v1168
  %1977 = vmatmul.bf16.gmra.mxu0 %v335
  %v1978 = vpop.f32.mrf.mxu0
  %v1979 = vadd.f32 %v1960, %v1978
  %v1980 = vpop.f32.mrf.mxu0
  %v1981 = vadd.f32 %v1962, %v1980
  %1982 = vmatmul.bf16.gmra.mxu0 %v343
  %v1983 = vpop.f32.mrf.mxu0
  %v1984 = vadd.f32 %v1965, %v1983
  %v1985 = vpop.f32.mrf.mxu0
  %v1986 = vadd.f32 %v1967, %v1985
  %1987 = vdwg.mxu0
  %1988 = vmatpush.bf16.msra.mxu0 %v1228
  %1989 = vmatpush.bf16.msra.mxu0 %v1224
  %1990 = vmatpush.bf16.msra.mxu0 %v1220
  %1991 = vmatpush.bf16.msra.mxu0 %v1216
  %1992 = vmatpush.bf16.msra.mxu0 %v1212
  %1993 = vmatpush.bf16.msra.mxu0 %v1208
  %1994 = vmatpush.bf16.msra.mxu0 %v1204
  %1995 = vmatpush.bf16.msra.mxu0 %v1200
  %1996 = vmatmul.bf16.gmra.mxu0 %v336
  %v1997 = vpop.f32.mrf.mxu0
  %v1998 = vadd.f32 %v1979, %v1997
  %v1999 = vpop.f32.mrf.mxu0
  %v2000 = vadd.f32 %v1981, %v1999
  %2001 = vmatmul.bf16.gmra.mxu0 %v344
  %v2002 = vpop.f32.mrf.mxu0
  %v2003 = vadd.f32 %v1984, %v2002
  %v2004 = vpop.f32.mrf.mxu0
  %v2005 = vadd.f32 %v1986, %v2004
  %2006 = vdwg.mxu0
  %2007 = vmatpush.bf16.msra.mxu0 %v1260
  %2008 = vmatpush.bf16.msra.mxu0 %v1256
  %2009 = vmatpush.bf16.msra.mxu0 %v1252
  %2010 = vmatpush.bf16.msra.mxu0 %v1248
  %2011 = vmatpush.bf16.msra.mxu0 %v1244
  %2012 = vmatpush.bf16.msra.mxu0 %v1240
  %2013 = vmatpush.bf16.msra.mxu0 %v1236
  %2014 = vmatpush.bf16.msra.mxu0 %v1232
  %2015 = vmatmul.bf16.gmra.mxu0 %v337
  %v2016 = vpop.f32.mrf.mxu0
  %v2017 = vadd.f32 %v1998, %v2016
  %v2018 = vpop.f32.mrf.mxu0
  %v2019 = vadd.f32 %v2000, %v2018
  %2020 = vmatmul.bf16.gmra.mxu0 %v345
  %v2021 = vpop.f32.mrf.mxu0
  %v2022 = vadd.f32 %v2003, %v2021
  %v2023 = vpop.f32.mrf.mxu0
  %v2024 = vadd.f32 %v2005, %v2023
  %2025 = vdwg.mxu0
  %2026 = vmatpush.bf16.msra.mxu0 %v1292
  %2027 = vmatpush.bf16.msra.mxu0 %v1288
  %2028 = vmatpush.bf16.msra.mxu0 %v1284
  %2029 = vmatpush.bf16.msra.mxu0 %v1280
  %2030 = vmatpush.bf16.msra.mxu0 %v1276
  %2031 = vmatpush.bf16.msra.mxu0 %v1272
  %2032 = vmatpush.bf16.msra.mxu0 %v1268
  %2033 = vmatpush.bf16.msra.mxu0 %v1264
  %2034 = vmatmul.bf16.gmra.mxu0 %v338
  %v2035 = vpop.f32.mrf.mxu0
  %v2036 = vadd.f32 %v2017, %v2035
  %v2037 = vpop.f32.mrf.mxu0
  %v2038 = vadd.f32 %v2019, %v2037
  %2039 = vmatmul.bf16.gmra.mxu0 %v346
  %v2040 = vpop.f32.mrf.mxu0
  %v2041 = vadd.f32 %v2022, %v2040
  %v2042 = vpop.f32.mrf.mxu0
  %v2043 = vadd.f32 %v2024, %v2042
  %2044 = vdwg.mxu0
  %2045 = vmatpush.bf16.msra.mxu0 %v1324
  %2046 = vmatpush.bf16.msra.mxu0 %v1320
  %2047 = vmatpush.bf16.msra.mxu0 %v1316
  %2048 = vmatpush.bf16.msra.mxu0 %v1312
  %2049 = vmatpush.bf16.msra.mxu0 %v1308
  %2050 = vmatpush.bf16.msra.mxu0 %v1304
  %2051 = vmatpush.bf16.msra.mxu0 %v1300
  %2052 = vmatpush.bf16.msra.mxu0 %v1296
  %2053 = vmatmul.bf16.gmra.mxu0 %v339
  %v2054 = vpop.f32.mrf.mxu0
  %v2055 = vadd.f32 %v2036, %v2054
  %v2056 = vpop.f32.mrf.mxu0
  %v2057 = vadd.f32 %v2038, %v2056
  %2058 = vmatmul.bf16.gmra.mxu0 %v347
  %v2059 = vpop.f32.mrf.mxu0
  %v2060 = vadd.f32 %v2041, %v2059
  %v2061 = vpop.f32.mrf.mxu0
  %v2062 = vadd.f32 %v2043, %v2061
  %2063 = vdwg.mxu0
  %2064 = vmatpush.bf16.msra.mxu0 %v1356
  %2065 = vmatpush.bf16.msra.mxu0 %v1352
  %2066 = vmatpush.bf16.msra.mxu0 %v1348
  %2067 = vmatpush.bf16.msra.mxu0 %v1344
  %2068 = vmatpush.bf16.msra.mxu0 %v1340
  %2069 = vmatpush.bf16.msra.mxu0 %v1336
  %2070 = vmatpush.bf16.msra.mxu0 %v1332
  %2071 = vmatpush.bf16.msra.mxu0 %v1328
  %2072 = vmatmul.bf16.gmra.mxu0 %v340
  %v2073 = vpop.f32.mrf.mxu0
  %v2074 = vadd.f32 %v2055, %v2073
  %v2075 = vpop.f32.mrf.mxu0
  %v2076 = vadd.f32 %v2057, %v2075
  %2077 = vmatmul.bf16.gmra.mxu0 %v348
  %v2078 = vpop.f32.mrf.mxu0
  %v2079 = vadd.f32 %v2060, %v2078
  %v2080 = vpop.f32.mrf.mxu0
  %v2081 = vadd.f32 %v2062, %v2080
  %2082 = vdwg.mxu0
  %2083 = vmatpush.bf16.msra.mxu0 %v1388
  %2084 = vmatpush.bf16.msra.mxu0 %v1384
  %2085 = vmatpush.bf16.msra.mxu0 %v1380
  %2086 = vmatpush.bf16.msra.mxu0 %v1376
  %2087 = vmatpush.bf16.msra.mxu0 %v1372
  %2088 = vmatpush.bf16.msra.mxu0 %v1368
  %2089 = vmatpush.bf16.msra.mxu0 %v1364
  %2090 = vmatpush.bf16.msra.mxu0 %v1360
  %2091 = vmatmul.bf16.gmra.mxu0 %v341
  %v2092 = vpop.f32.mrf.mxu0
  %v2093 = vadd.f32 %v2074, %v2092
  %v2094 = vpop.f32.mrf.mxu0
  %v2095 = vadd.f32 %v2076, %v2094
  %2096 = vmatmul.bf16.gmra.mxu0 %v349
  %v2097 = vpop.f32.mrf.mxu0
  %v2098 = vadd.f32 %v2079, %v2097
  %v2099 = vpop.f32.mrf.mxu0
  %v2100 = vadd.f32 %v2081, %v2099
  %2101 = vdwg.mxu0
  %2102 = vmatpush.bf16.msra.mxu0 %v1165
  %2103 = vmatpush.bf16.msra.mxu0 %v1161
  %2104 = vmatpush.bf16.msra.mxu0 %v1157
  %2105 = vmatpush.bf16.msra.mxu0 %v1153
  %2106 = vmatpush.bf16.msra.mxu0 %v1149
  %2107 = vmatpush.bf16.msra.mxu0 %v1145
  %2108 = vmatpush.bf16.msra.mxu0 %v1141
  %2109 = vmatpush.bf16.msra.mxu0 %v1137
  %2110 = vmatmul.bf16.gmra.mxu0 %v334
  %v2111 = vpop.f32.mrf.mxu0
  %v2112 = vadd.f32 0.0, %v2111
  %v2113 = vpop.f32.mrf.mxu0
  %v2114 = vadd.f32 0.0, %v2113
  %2115 = vmatmul.bf16.gmra.mxu0 %v342
  %v2116 = vpop.f32.mrf.mxu0
  %v2117 = vadd.f32 0.0, %v2116
  %v2118 = vpop.f32.mrf.mxu0
  %v2119 = vadd.f32 0.0, %v2118
  %2120 = vdwg.mxu0
  %2121 = vmatpush.bf16.msra.mxu0 %v1197
  %2122 = vmatpush.bf16.msra.mxu0 %v1193
  %2123 = vmatpush.bf16.msra.mxu0 %v1189
  %2124 = vmatpush.bf16.msra.mxu0 %v1185
  %2125 = vmatpush.bf16.msra.mxu0 %v1181
  %2126 = vmatpush.bf16.msra.mxu0 %v1177
  %2127 = vmatpush.bf16.msra.mxu0 %v1173
  %2128 = vmatpush.bf16.msra.mxu0 %v1169
  %2129 = vmatmul.bf16.gmra.mxu0 %v335
  %v2130 = vpop.f32.mrf.mxu0
  %v2131 = vadd.f32 %v2112, %v2130
  %v2132 = vpop.f32.mrf.mxu0
  %v2133 = vadd.f32 %v2114, %v2132
  %2134 = vmatmul.bf16.gmra.mxu0 %v343
  %v2135 = vpop.f32.mrf.mxu0
  %v2136 = vadd.f32 %v2117, %v2135
  %v2137 = vpop.f32.mrf.mxu0
  %v2138 = vadd.f32 %v2119, %v2137
  %2139 = vdwg.mxu0
  %2140 = vmatpush.bf16.msra.mxu0 %v1229
  %2141 = vmatpush.bf16.msra.mxu0 %v1225
  %2142 = vmatpush.bf16.msra.mxu0 %v1221
  %2143 = vmatpush.bf16.msra.mxu0 %v1217
  %2144 = vmatpush.bf16.msra.mxu0 %v1213
  %2145 = vmatpush.bf16.msra.mxu0 %v1209
  %2146 = vmatpush.bf16.msra.mxu0 %v1205
  %2147 = vmatpush.bf16.msra.mxu0 %v1201
  %2148 = vmatmul.bf16.gmra.mxu0 %v336
  %v2149 = vpop.f32.mrf.mxu0
  %v2150 = vadd.f32 %v2131, %v2149
  %v2151 = vpop.f32.mrf.mxu0
  %v2152 = vadd.f32 %v2133, %v2151
  %2153 = vmatmul.bf16.gmra.mxu0 %v344
  %v2154 = vpop.f32.mrf.mxu0
  %v2155 = vadd.f32 %v2136, %v2154
  %v2156 = vpop.f32.mrf.mxu0
  %v2157 = vadd.f32 %v2138, %v2156
  %2158 = vdwg.mxu0
  %2159 = vmatpush.bf16.msra.mxu0 %v1261
  %2160 = vmatpush.bf16.msra.mxu0 %v1257
  %2161 = vmatpush.bf16.msra.mxu0 %v1253
  %2162 = vmatpush.bf16.msra.mxu0 %v1249
  %2163 = vmatpush.bf16.msra.mxu0 %v1245
  %2164 = vmatpush.bf16.msra.mxu0 %v1241
  %2165 = vmatpush.bf16.msra.mxu0 %v1237
  %2166 = vmatpush.bf16.msra.mxu0 %v1233
  %2167 = vmatmul.bf16.gmra.mxu0 %v337
  %v2168 = vpop.f32.mrf.mxu0
  %v2169 = vadd.f32 %v2150, %v2168
  %v2170 = vpop.f32.mrf.mxu0
  %v2171 = vadd.f32 %v2152, %v2170
  %2172 = vmatmul.bf16.gmra.mxu0 %v345
  %v2173 = vpop.f32.mrf.mxu0
  %v2174 = vadd.f32 %v2155, %v2173
  %v2175 = vpop.f32.mrf.mxu0
  %v2176 = vadd.f32 %v2157, %v2175
  %2177 = vdwg.mxu0
  %2178 = vmatpush.bf16.msra.mxu0 %v1293
  %2179 = vmatpush.bf16.msra.mxu0 %v1289
  %2180 = vmatpush.bf16.msra.mxu0 %v1285
  %2181 = vmatpush.bf16.msra.mxu0 %v1281
  %2182 = vmatpush.bf16.msra.mxu0 %v1277
  %2183 = vmatpush.bf16.msra.mxu0 %v1273
  %2184 = vmatpush.bf16.msra.mxu0 %v1269
  %2185 = vmatpush.bf16.msra.mxu0 %v1265
  %2186 = vmatmul.bf16.gmra.mxu0 %v338
  %v2187 = vpop.f32.mrf.mxu0
  %v2188 = vadd.f32 %v2169, %v2187
  %v2189 = vpop.f32.mrf.mxu0
  %v2190 = vadd.f32 %v2171, %v2189
  %2191 = vmatmul.bf16.gmra.mxu0 %v346
  %v2192 = vpop.f32.mrf.mxu0
  %v2193 = vadd.f32 %v2174, %v2192
  %v2194 = vpop.f32.mrf.mxu0
  %v2195 = vadd.f32 %v2176, %v2194
  %2196 = vdwg.mxu0
  %2197 = vmatpush.bf16.msra.mxu0 %v1325
  %2198 = vmatpush.bf16.msra.mxu0 %v1321
  %2199 = vmatpush.bf16.msra.mxu0 %v1317
  %2200 = vmatpush.bf16.msra.mxu0 %v1313
  %2201 = vmatpush.bf16.msra.mxu0 %v1309
  %2202 = vmatpush.bf16.msra.mxu0 %v1305
  %2203 = vmatpush.bf16.msra.mxu0 %v1301
  %2204 = vmatpush.bf16.msra.mxu0 %v1297
  %2205 = vmatmul.bf16.gmra.mxu0 %v339
  %v2206 = vpop.f32.mrf.mxu0
  %v2207 = vadd.f32 %v2188, %v2206
  %v2208 = vpop.f32.mrf.mxu0
  %v2209 = vadd.f32 %v2190, %v2208
  %2210 = vmatmul.bf16.gmra.mxu0 %v347
  %v2211 = vpop.f32.mrf.mxu0
  %v2212 = vadd.f32 %v2193, %v2211
  %v2213 = vpop.f32.mrf.mxu0
  %v2214 = vadd.f32 %v2195, %v2213
  %2215 = vdwg.mxu0
  %2216 = vmatpush.bf16.msra.mxu0 %v1357
  %2217 = vmatpush.bf16.msra.mxu0 %v1353
  %2218 = vmatpush.bf16.msra.mxu0 %v1349
  %2219 = vmatpush.bf16.msra.mxu0 %v1345
  %2220 = vmatpush.bf16.msra.mxu0 %v1341
  %2221 = vmatpush.bf16.msra.mxu0 %v1337
  %2222 = vmatpush.bf16.msra.mxu0 %v1333
  %2223 = vmatpush.bf16.msra.mxu0 %v1329
  %2224 = vmatmul.bf16.gmra.mxu0 %v340
  %v2225 = vpop.f32.mrf.mxu0
  %v2226 = vadd.f32 %v2207, %v2225
  %v2227 = vpop.f32.mrf.mxu0
  %v2228 = vadd.f32 %v2209, %v2227
  %2229 = vmatmul.bf16.gmra.mxu0 %v348
  %v2230 = vpop.f32.mrf.mxu0
  %v2231 = vadd.f32 %v2212, %v2230
  %v2232 = vpop.f32.mrf.mxu0
  %v2233 = vadd.f32 %v2214, %v2232
  %2234 = vdwg.mxu0
  %2235 = vmatpush.bf16.msra.mxu0 %v1389
  %2236 = vmatpush.bf16.msra.mxu0 %v1385
  %2237 = vmatpush.bf16.msra.mxu0 %v1381
  %2238 = vmatpush.bf16.msra.mxu0 %v1377
  %2239 = vmatpush.bf16.msra.mxu0 %v1373
  %2240 = vmatpush.bf16.msra.mxu0 %v1369
  %2241 = vmatpush.bf16.msra.mxu0 %v1365
  %2242 = vmatpush.bf16.msra.mxu0 %v1361
  %2243 = vmatmul.bf16.gmra.mxu0 %v341
  %v2244 = vpop.f32.mrf.mxu0
  %v2245 = vadd.f32 %v2226, %v2244
  %v2246 = vpop.f32.mrf.mxu0
  %v2247 = vadd.f32 %v2228, %v2246
  %2248 = vmatmul.bf16.gmra.mxu0 %v349
  %v2249 = vpop.f32.mrf.mxu0
  %v2250 = vadd.f32 %v2231, %v2249
  %v2251 = vpop.f32.mrf.mxu0
  %v2252 = vadd.f32 %v2233, %v2251
  %2253 = vdwg.mxu0
  %2254 = vst [vmem:[%s2] sm:$0xff] %v1789
  %2255 = vst [vmem:[%s2 + $0x8] sm:$0xff] %v1941
  %2256 = vst [vmem:[%s2 + $0x10] sm:$0xff] %v2093
  %2257 = vst [vmem:[%s2 + $0x18] sm:$0xff] %v2245
  %2258 = vst [vmem:[%s2 + $0x20] sm:$0xff] %v1791
  %2259 = vst [vmem:[%s2 + $0x28] sm:$0xff] %v1943
  %2260 = vst [vmem:[%s2 + $0x30] sm:$0xff] %v2095
  %2261 = vst [vmem:[%s2 + $0x38] sm:$0xff] %v2247
  %2262 = vst [vmem:[%s2 + $0x40] sm:$0xff] %v1794
  %2263 = vst [vmem:[%s2 + $0x48] sm:$0xff] %v1946
  %2264 = vst [vmem:[%s2 + $0x50] sm:$0xff] %v2098
  %2265 = vst [vmem:[%s2 + $0x58] sm:$0xff] %v2250
  %2266 = vst [vmem:[%s2 + $0x60] sm:$0xff] %v1796
  %2267 = vst [vmem:[%s2 + $0x68] sm:$0xff] %v1948
  %2268 = vst [vmem:[%s2 + $0x70] sm:$0xff] %v2100
  %2269 = vst [vmem:[%s2 + $0x78] sm:$0xff] %v2252
  %v2270 = vadd.f32 %v1789, %v1941
  %v2271 = vadd.f32 %v2270, %v2093
  %v2272 = vadd.f32 %v2271, %v2245
  %2273 = vadd.xlane.f32.xlu0 %v2272
  %v2274 = vpop.xlane.xlu0 %2273
  %v2275 = vadd.f32 %v1791, %v1943
  %v2276 = vadd.f32 %v2275, %v2095
  %v2277 = vadd.f32 %v2276, %v2247
  %2278 = vadd.xlane.f32.xlu0 %v2277
  %v2279 = vpop.xlane.xlu0 %2278
  %v2280 = vadd.f32 %v1794, %v1946
  %v2281 = vadd.f32 %v2280, %v2098
  %v2282 = vadd.f32 %v2281, %v2250
  %2283 = vadd.xlane.f32.xlu0 %v2282
  %v2284 = vpop.xlane.xlu0 %2283
  %v2285 = vadd.f32 %v1796, %v1948
  %v2286 = vadd.f32 %v2285, %v2100
  %v2287 = vadd.f32 %v2286, %v2252
  %2288 = vadd.xlane.f32.xlu0 %v2287
  %v2289 = vpop.xlane.xlu0 %2288
  %vm2290 = vcmask 7168
  %2291 = vst.msk [vmem:[%s3] sm:$0xff] %vm2290, %v2274
  %2292 = vst.msk [vmem:[%s3 + $0x8] sm:$0xff] %vm2290, %v2279
  %2293 = vst.msk [vmem:[%s3 + $0x10] sm:$0xff] %vm2290, %v2284
  %2294 = vst.msk [vmem:[%s3 + $0x18] sm:$0xff] %vm2290, %v2289
  %v2295 = vmul.f32 %v1789, %v1789
  %v2296 = vmul.f32 %v1941, %v1941
  %v2297 = vmul.f32 %v2093, %v2093
  %v2298 = vmul.f32 %v2245, %v2245
  %v2299 = vmul.f32 %v1791, %v1791
  %v2300 = vmul.f32 %v1943, %v1943
  %v2301 = vmul.f32 %v2095, %v2095
  %v2302 = vmul.f32 %v2247, %v2247
  %v2303 = vmul.f32 %v1794, %v1794
  %v2304 = vmul.f32 %v1946, %v1946
  %v2305 = vmul.f32 %v2098, %v2098
  %v2306 = vmul.f32 %v2250, %v2250
  %v2307 = vmul.f32 %v1796, %v1796
  %v2308 = vmul.f32 %v1948, %v1948
  %v2309 = vmul.f32 %v2100, %v2100
  %v2310 = vmul.f32 %v2252, %v2252
  %v2311 = vadd.f32 %v2295, %v2296
  %v2312 = vadd.f32 %v2311, %v2297
  %v2313 = vadd.f32 %v2312, %v2298
  %2314 = vadd.xlane.f32.xlu0 %v2313
  %v2315 = vpop.xlane.xlu0 %2314
  %v2316 = vadd.f32 %v2299, %v2300
  %v2317 = vadd.f32 %v2316, %v2301
  %v2318 = vadd.f32 %v2317, %v2302
  %2319 = vadd.xlane.f32.xlu0 %v2318
  %v2320 = vpop.xlane.xlu0 %2319
  %v2321 = vadd.f32 %v2303, %v2304
  %v2322 = vadd.f32 %v2321, %v2305
  %v2323 = vadd.f32 %v2322, %v2306
  %2324 = vadd.xlane.f32.xlu0 %v2323
  %v2325 = vpop.xlane.xlu0 %2324
  %v2326 = vadd.f32 %v2307, %v2308
  %v2327 = vadd.f32 %v2326, %v2309
  %v2328 = vadd.f32 %v2327, %v2310
  %2329 = vadd.xlane.f32.xlu0 %v2328
  %v2330 = vpop.xlane.xlu0 %2329
  %2331 = vst.msk [vmem:[%s4] sm:$0xff] %vm2290, %v2315
  %2332 = vst.msk [vmem:[%s4 + $0x8] sm:$0xff] %vm2290, %v2320
  %2333 = vst.msk [vmem:[%s4 + $0x10] sm:$0xff] %vm2290, %v2325
  %2334 = vst.msk [vmem:[%s4 + $0x18] sm:$0xff] %vm2290, %v2330
  // Predicated region
  $region10: #{flow_encoder_forward.12} parent=0 // pred_check
    _
  $region11: #{flow_encoder_forward.12} parent=0 // pred_check_branch
    %2336 = sbr.rel (0) target = $region13
  $region12: #{flow_encoder_forward.12} parent=0 // pred_region
    _
  $region13: #{flow_encoder_forward.12} parent=0 // pred_fallthru
    _
  // Predicated region
  $region14: #{flow_encoder_forward.12} parent=0 // pred_check
    _
  $region15: #{flow_encoder_forward.12} parent=0 // pred_check_branch
    %2338 = sbr.rel (0) target = $region17
  $region16: #{flow_encoder_forward.12} parent=0 // pred_region
    _
  $region17: #{flow_encoder_forward.12} parent=0 // pred_fallthru
    _
  // Predicated region
  $region18: #{flow_encoder_forward.12} parent=0 // pred_check
    _
  $region19: #{flow_encoder_forward.12} parent=0 // pred_check_branch
    %2340 = sbr.rel (0) target = $region21
  $region20: #{flow_encoder_forward.12} parent=0 // pred_region
    _
  $region21: #{flow_encoder_forward.12} parent=0 // pred_fallthru
    _
  // Predicated region
  $region22: #{flow_encoder_forward.12} parent=0 // pred_check
    _
  $region23: #{flow_encoder_forward.12} parent=0 // pred_check_branch
    %2342 = sbr.rel (0) target = $region25
  $region24: #{flow_encoder_forward.12} parent=0 // pred_region
    _
  $region25: #{flow_encoder_forward.12} parent=0 // pred_fallthru
    _
  // Predicated region
  $region26: #{flow_encoder_forward.12} parent=0 // pred_check
    _
  $region27: #{flow_encoder_forward.12} parent=0 // pred_check_branch
    %2344 = sbr.rel (0) target = $region29
  $region28: #{flow_encoder_forward.12} parent=0 // pred_region
    _
  $region29: #{flow_encoder_forward.12} parent=0 // pred_fallthru
    _
  // Predicated region
  $region30: #{flow_encoder_forward.12} parent=0 // pred_check
    _
  $region31: #{flow_encoder_forward.12} parent=0 // pred_check_branch
    %2346 = sbr.rel (0) target = $region33
  $region32: #{flow_encoder_forward.12} parent=0 // pred_region
    _
  $region33: #{flow_encoder_forward.12} parent=0 // pred_fallthru
    _

// kernel: flow_encoder_forward.15
$region0: #{flow_encoder_forward.15}
  #allocation0 [shape = 'u32[]', space=smem, size = 0x4, offset = 0x4, fixed_abs, tag = 'smem constant byte address 0x4 - core index']
  #allocation1 [shape = 'u32[72,128]{1,0:T(1,128)}', space=vmem, size = 0x9000, scoped, tag = 'internal scratch']
  %s0 = inlined_call_operand.vmem [shape: f32[64,128], index: 0, kind: input, shape index: {}]
  %s1 = inlined_call_operand.vmem [shape: f32[64,1], index: 1, kind: input, shape index: {}]
  %s2 = inlined_call_operand.vmem [shape: f32[64,1], index: 2, kind: input, shape index: {}]
  %s3 = inlined_call_operand.vmem [shape: bf16[64,128], index: 3, kind: output, shape index: {}]
  %s4 = sld [smem:[#allocation0]]
  $region22: #{flow_encoder_forward.15} parent=0
    _
  %s6 = ssub.s32 1, %s4
  %s7 = scalar_select 0, %s6, %s4
  // Predicated region
  $region2: #{flow_encoder_forward.15} parent=0 // pred_check
    _
  $region3: #{flow_encoder_forward.15} parent=0 // pred_check_branch
    %9 = sbr.rel (0) target = $region5
  $region4: #{flow_encoder_forward.15} parent=0 // pred_region
    _
  $region5: #{flow_encoder_forward.15} parent=0 // pred_fallthru
    _
  // Predicated region
  $region6: #{flow_encoder_forward.15} parent=0 // pred_check
    _
  $region7: #{flow_encoder_forward.15} parent=0 // pred_check_branch
    %11 = sbr.rel (0) target = $region9
  $region8: #{flow_encoder_forward.15} parent=0 // pred_region
    _
  $region9: #{flow_encoder_forward.15} parent=0 // pred_fallthru
    _
  // Predicated region
  $region10: #{flow_encoder_forward.15} parent=0 // pred_check
    _
  $region11: #{flow_encoder_forward.15} parent=0 // pred_check_branch
    %13 = sbr.rel (0) target = $region13
  $region12: #{flow_encoder_forward.15} parent=0 // pred_region
    _
  $region13: #{flow_encoder_forward.15} parent=0 // pred_fallthru
    _
  %v14 = vld [vmem:[%s0] sm:$0xff]
  %v15 = vld [vmem:[%s0 + $0x8] sm:$0xff]
  %v16 = vld [vmem:[%s0 + $0x10] sm:$0xff]
  %v17 = vld [vmem:[%s0 + $0x18] sm:$0xff]
  %v18 = vld [vmem:[%s0 + $0x20] sm:$0xff]
  %v19 = vld [vmem:[%s0 + $0x28] sm:$0xff]
  %v20 = vld [vmem:[%s0 + $0x30] sm:$0xff]
  %v21 = vld [vmem:[%s0 + $0x38] sm:$0xff]
  %v22 = vld [vmem:[%s1] sm:$0xff]
  %v23 = vld [vmem:[%s1 + $0x8] sm:$0xff]
  %v24 = vld [vmem:[%s1 + $0x10] sm:$0xff]
  %v25 = vld [vmem:[%s1 + $0x18] sm:$0xff]
  %v26 = vld [vmem:[%s1 + $0x20] sm:$0xff]
  %v27 = vld [vmem:[%s1 + $0x28] sm:$0xff]
  %v28 = vld [vmem:[%s1 + $0x30] sm:$0xff]
  %v29 = vld [vmem:[%s1 + $0x38] sm:$0xff]
  %31 = vset.pattern.permute.xlu0 0
  %32 = vperm.xlu0 %31, %v22
  %v33 = vpop.permute.xlu0 %32
  %36 = vset.pattern.permute.xlu0 0
  %37 = vperm.xlu0 %36, %v23
  %v38 = vpop.permute.xlu0 %37
  %41 = vset.pattern.permute.xlu0 0
  %42 = vperm.xlu0 %41, %v24
  %v43 = vpop.permute.xlu0 %42
  %46 = vset.pattern.permute.xlu0 0
  %47 = vperm.xlu0 %46, %v25
  %v48 = vpop.permute.xlu0 %47
  %51 = vset.pattern.permute.xlu0 0
  %52 = vperm.xlu0 %51, %v26
  %v53 = vpop.permute.xlu0 %52
  %56 = vset.pattern.permute.xlu0 0
  %57 = vperm.xlu0 %56, %v27
  %v58 = vpop.permute.xlu0 %57
  %61 = vset.pattern.permute.xlu0 0
  %62 = vperm.xlu0 %61, %v28
  %v63 = vpop.permute.xlu0 %62
  %66 = vset.pattern.permute.xlu0 0
  %67 = vperm.xlu0 %66, %v29
  %v68 = vpop.permute.xlu0 %67
  %v70 = vmul.f32 %v14, %v33
  %v71 = vmul.f32 %v15, %v38
  %v72 = vmul.f32 %v16, %v43
  %v73 = vmul.f32 %v17, %v48
  %v74 = vmul.f32 %v18, %v53
  %v75 = vmul.f32 %v19, %v58
  %v76 = vmul.f32 %v20, %v63
  %v77 = vmul.f32 %v21, %v68
  %v78 = vld [vmem:[%s2] sm:$0xff]
  %v79 = vld [vmem:[%s2 + $0x8] sm:$0xff]
  %v80 = vld [vmem:[%s2 + $0x10] sm:$0xff]
  %v81 = vld [vmem:[%s2 + $0x18] sm:$0xff]
  %v82 = vld [vmem:[%s2 + $0x20] sm:$0xff]
  %v83 = vld [vmem:[%s2 + $0x28] sm:$0xff]
  %v84 = vld [vmem:[%s2 + $0x30] sm:$0xff]
  %v85 = vld [vmem:[%s2 + $0x38] sm:$0xff]
  %87 = vset.pattern.permute.xlu0 0
  %88 = vperm.xlu0 %87, %v78
  %v89 = vpop.permute.xlu0 %88
  %92 = vset.pattern.permute.xlu0 0
  %93 = vperm.xlu0 %92, %v79
  %v94 = vpop.permute.xlu0 %93
  %97 = vset.pattern.permute.xlu0 0
  %98 = vperm.xlu0 %97, %v80
  %v99 = vpop.permute.xlu0 %98
  %102 = vset.pattern.permute.xlu0 0
  %103 = vperm.xlu0 %102, %v81
  %v104 = vpop.permute.xlu0 %103
  %107 = vset.pattern.permute.xlu0 0
  %108 = vperm.xlu0 %107, %v82
  %v109 = vpop.permute.xlu0 %108
  %112 = vset.pattern.permute.xlu0 0
  %113 = vperm.xlu0 %112, %v83
  %v114 = vpop.permute.xlu0 %113
  %117 = vset.pattern.permute.xlu0 0
  %118 = vperm.xlu0 %117, %v84
  %v119 = vpop.permute.xlu0 %118
  %122 = vset.pattern.permute.xlu0 0
  %123 = vperm.xlu0 %122, %v85
  %v124 = vpop.permute.xlu0 %123
  %v126 = vadd.f32 %v70, %v89
  %v127 = vadd.f32 %v71, %v94
  %v128 = vadd.f32 %v72, %v99
  %v129 = vadd.f32 %v73, %v104
  %v130 = vadd.f32 %v74, %v109
  %v131 = vadd.f32 %v75, %v114
  %v132 = vadd.f32 %v76, %v119
  %v133 = vadd.f32 %v77, %v124
  %vm134 = vcmp.ge.f32.partialorder %v126, 0.0
  %vm135 = vcmp.ge.f32.partialorder %v127, 0.0
  %vm136 = vcmp.ge.f32.partialorder %v128, 0.0
  %vm137 = vcmp.ge.f32.partialorder %v129, 0.0
  %vm138 = vcmp.ge.f32.partialorder %v130, 0.0
  %vm139 = vcmp.ge.f32.partialorder %v131, 0.0
  %vm140 = vcmp.ge.f32.partialorder %v132, 0.0
  %vm141 = vcmp.ge.f32.partialorder %v133, 0.0
  %v142 = vmul.f32 %v126, 0.2
  %v143 = vmul.f32 %v127, 0.2
  %v144 = vmul.f32 %v128, 0.2
  %v145 = vmul.f32 %v129, 0.2
  %v146 = vmul.f32 %v130, 0.2
  %v147 = vmul.f32 %v131, 0.2
  %v148 = vmul.f32 %v132, 0.2
  %v149 = vmul.f32 %v133, 0.2
  %v150 = vsel %vm134, %v126, %v142
  %v151 = vsel %vm135, %v127, %v143
  %v152 = vsel %vm136, %v128, %v144
  %v153 = vsel %vm137, %v129, %v145
  %v154 = vsel %vm138, %v130, %v146
  %v155 = vsel %vm139, %v131, %v147
  %v156 = vsel %vm140, %v132, %v148
  %v157 = vsel %vm141, %v133, %v149
  %v158 = vpack.c.bf16 %v150, %v150
  %v159 = vpack.c.bf16 %v151, %v151
  %v160 = vpack.c.bf16 %v152, %v152
  %v161 = vpack.c.bf16 %v153, %v153
  %v162 = vpack.c.bf16 %v154, %v154
  %v163 = vpack.c.bf16 %v155, %v155
  %v164 = vpack.c.bf16 %v156, %v156
  %v165 = vpack.c.bf16 %v157, %v157
  %166 = vst [vmem:[%s3] sm:$0xf] %v158
  %167 = vst [vmem:[%s3 + $0x4] sm:$0xf] %v159
  %168 = vst [vmem:[%s3 + $0x8] sm:$0xf] %v160
  %169 = vst [vmem:[%s3 + $0xc] sm:$0xf] %v161
  %170 = vst [vmem:[%s3 + $0x10] sm:$0xf] %v162
  %171 = vst [vmem:[%s3 + $0x14] sm:$0xf] %v163
  %172 = vst [vmem:[%s3 + $0x18] sm:$0xf] %v164
  %173 = vst [vmem:[%s3 + $0x1c] sm:$0xf] %v165
  // Predicated region
  $region14: #{flow_encoder_forward.15} parent=0 // pred_check
    _
  $region15: #{flow_encoder_forward.15} parent=0 // pred_check_branch
    %175 = sbr.rel (0) target = $region17
  $region16: #{flow_encoder_forward.15} parent=0 // pred_region
    _
  $region17: #{flow_encoder_forward.15} parent=0 // pred_fallthru
    _
  // Predicated region
  $region18: #{flow_encoder_forward.15} parent=0 // pred_check
    _
  $region19: #{flow_encoder_forward.15} parent=0 // pred_check_branch
    %177 = sbr.rel (0) target = $region21
  $region20: #{flow_encoder_forward.15} parent=0 // pred_region
    _
  $region21: #{flow_encoder_forward.15} parent=0 // pred_fallthru
    _

// kernel: flow_encoder_forward.14
$region0: #{flow_encoder_forward.14}
  #allocation0 [shape = 'u32[]', space=smem, size = 0x4, offset = 0x4, fixed_abs, tag = 'smem constant byte address 0x4 - core index']
  #allocation1 [shape = 'u32[72,128]{1,0:T(1,128)}', space=vmem, size = 0x9000, scoped, tag = 'internal scratch']
  %s0 = inlined_call_operand.vmem [shape: bf16[64,2048], index: 0, kind: input, shape index: {}]
  %s1 = inlined_call_operand.vmem [shape: bf16[2048,128], index: 1, kind: input, shape index: {}]
  %s2 = inlined_call_operand.vmem [shape: f32[64,128], index: 2, kind: output, shape index: {0}]
  %s3 = inlined_call_operand.vmem [shape: f32[1,64,1], index: 3, kind: output, shape index: {1}]
  %s4 = inlined_call_operand.vmem [shape: f32[1,64,1], index: 4, kind: output, shape index: {2}]
  %5 = xla_tuple %s2, %s3, %s4
  %s6 = sld [smem:[#allocation0]]
  $region34: #{flow_encoder_forward.14} parent=0
    _
  %s8 = ssub.s32 1, %s6
  %s9 = scalar_select 0, %s8, %s6
  // Predicated region
  $region2: #{flow_encoder_forward.14} parent=0 // pred_check
    _
  $region3: #{flow_encoder_forward.14} parent=0 // pred_check_branch
    %11 = sbr.rel (0) target = $region5
  $region4: #{flow_encoder_forward.14} parent=0 // pred_region
    _
  $region5: #{flow_encoder_forward.14} parent=0 // pred_fallthru
    _
  // Predicated region
  $region6: #{flow_encoder_forward.14} parent=0 // pred_check
    _
  $region7: #{flow_encoder_forward.14} parent=0 // pred_check_branch
    %13 = sbr.rel (0) target = $region9
  $region8: #{flow_encoder_forward.14} parent=0 // pred_region
    _
  $region9: #{flow_encoder_forward.14} parent=0 // pred_fallthru
    _
  %v14 = vld [vmem:[%s0] sm:$0xff]
  %v15 = vld [vmem:[%s0 + $0x8] sm:$0xff]
  %v16 = vld [vmem:[%s0 + $0x10] sm:$0xff]
  %v17 = vld [vmem:[%s0 + $0x18] sm:$0xff]
  %v18 = vld [vmem:[%s0 + $0x20] sm:$0xff]
  %v19 = vld [vmem:[%s0 + $0x28] sm:$0xff]
  %v20 = vld [vmem:[%s0 + $0x30] sm:$0xff]
  %v21 = vld [vmem:[%s0 + $0x38] sm:$0xff]
  %v22 = vld [vmem:[%s0 + $0x40] sm:$0xff]
  %v23 = vld [vmem:[%s0 + $0x48] sm:$0xff]
  %v24 = vld [vmem:[%s0 + $0x50] sm:$0xff]
  %v25 = vld [vmem:[%s0 + $0x58] sm:$0xff]
  %v26 = vld [vmem:[%s0 + $0x60] sm:$0xff]
  %v27 = vld [vmem:[%s0 + $0x68] sm:$0xff]
  %v28 = vld [vmem:[%s0 + $0x70] sm:$0xff]
  %v29 = vld [vmem:[%s0 + $0x78] sm:$0xff]
  %v30 = vld [vmem:[%s0 + $0x80] sm:$0xff]
  %v31 = vld [vmem:[%s0 + $0x88] sm:$0xff]
  %v32 = vld [vmem:[%s0 + $0x90] sm:$0xff]
  %v33 = vld [vmem:[%s0 + $0x98] sm:$0xff]
  %v34 = vld [vmem:[%s0 + $0xa0] sm:$0xff]
  %v35 = vld [vmem:[%s0 + $0xa8] sm:$0xff]
  %v36 = vld [vmem:[%s0 + $0xb0] sm:$0xff]
  %v37 = vld [vmem:[%s0 + $0xb8] sm:$0xff]
  %v38 = vld [vmem:[%s0 + $0xc0] sm:$0xff]
  %v39 = vld [vmem:[%s0 + $0xc8] sm:$0xff]
  %v40 = vld [vmem:[%s0 + $0xd0] sm:$0xff]
  %v41 = vld [vmem:[%s0 + $0xd8] sm:$0xff]
  %v42 = vld [vmem:[%s0 + $0xe0] sm:$0xff]
  %v43 = vld [vmem:[%s0 + $0xe8] sm:$0xff]
  %v44 = vld [vmem:[%s0 + $0xf0] sm:$0xff]
  %v45 = vld [vmem:[%s0 + $0xf8] sm:$0xff]
  %v46 = vld [vmem:[%s0 + $0x100] sm:$0xff]
  %v47 = vld [vmem:[%s0 + $0x108] sm:$0xff]
  %v48 = vld [vmem:[%s0 + $0x110] sm:$0xff]
  %v49 = vld [vmem:[%s0 + $0x118] sm:$0xff]
  %v50 = vld [vmem:[%s0 + $0x120] sm:$0xff]
  %v51 = vld [vmem:[%s0 + $0x128] sm:$0xff]
  %v52 = vld [vmem:[%s0 + $0x130] sm:$0xff]
  %v53 = vld [vmem:[%s0 + $0x138] sm:$0xff]
  %v54 = vld [vmem:[%s0 + $0x140] sm:$0xff]
  %v55 = vld [vmem:[%s0 + $0x148] sm:$0xff]
  %v56 = vld [vmem:[%s0 + $0x150] sm:$0xff]
  %v57 = vld [vmem:[%s0 + $0x158] sm:$0xff]
  %v58 = vld [vmem:[%s0 + $0x160] sm:$0xff]
  %v59 = vld [vmem:[%s0 + $0x168] sm:$0xff]
  %v60 = vld [vmem:[%s0 + $0x170] sm:$0xff]
  %v61 = vld [vmem:[%s0 + $0x178] sm:$0xff]
  %v62 = vld [vmem:[%s0 + $0x180] sm:$0xff]
  %v63 = vld [vmem:[%s0 + $0x188] sm:$0xff]
  %v64 = vld [vmem:[%s0 + $0x190] sm:$0xff]
  %v65 = vld [vmem:[%s0 + $0x198] sm:$0xff]
  %v66 = vld [vmem:[%s0 + $0x1a0] sm:$0xff]
  %v67 = vld [vmem:[%s0 + $0x1a8] sm:$0xff]
  %v68 = vld [vmem:[%s0 + $0x1b0] sm:$0xff]
  %v69 = vld [vmem:[%s0 + $0x1b8] sm:$0xff]
  %v70 = vld [vmem:[%s0 + $0x1c0] sm:$0xff]
  %v71 = vld [vmem:[%s0 + $0x1c8] sm:$0xff]
  %v72 = vld [vmem:[%s0 + $0x1d0] sm:$0xff]
  %v73 = vld [vmem:[%s0 + $0x1d8] sm:$0xff]
  %v74 = vld [vmem:[%s0 + $0x1e0] sm:$0xff]
  %v75 = vld [vmem:[%s0 + $0x1e8] sm:$0xff]
  %v76 = vld [vmem:[%s0 + $0x1f0] sm:$0xff]
  %v77 = vld [vmem:[%s0 + $0x1f8] sm:$0xff]
  %v78 = vld [vmem:[%s1] sm:$0xf]
  %v79 = vld [vmem:[%s1 + $0x4] sm:$0xf]
  %v80 = vld [vmem:[%s1 + $0x8] sm:$0xf]
  %v81 = vld [vmem:[%s1 + $0xc] sm:$0xf]
  %v82 = vld [vmem:[%s1 + $0x10] sm:$0xf]
  %v83 = vld [vmem:[%s1 + $0x14] sm:$0xf]
  %v84 = vld [vmem:[%s1 + $0x18] sm:$0xf]
  %v85 = vld [vmem:[%s1 + $0x1c] sm:$0xf]
  %v86 = vld [vmem:[%s1 + $0x20] sm:$0xf]
  %v87 = vld [vmem:[%s1 + $0x24] sm:$0xf]
  %v88 = vld [vmem:[%s1 + $0x28] sm:$0xf]
  %v89 = vld [vmem:[%s1 + $0x2c] sm:$0xf]
  %v90 = vld [vmem:[%s1 + $0x30] sm:$0xf]
  %v91 = vld [vmem:[%s1 + $0x34] sm:$0xf]
  %v92 = vld [vmem:[%s1 + $0x38] sm:$0xf]
  %v93 = vld [vmem:[%s1 + $0x3c] sm:$0xf]
  %v94 = vld [vmem:[%s1 + $0x40] sm:$0xf]
  %v95 = vld [vmem:[%s1 + $0x44] sm:$0xf]
  %v96 = vld [vmem:[%s1 + $0x48] sm:$0xf]
  %v97 = vld [vmem:[%s1 + $0x4c] sm:$0xf]
  %v98 = vld [vmem:[%s1 + $0x50] sm:$0xf]
  %v99 = vld [vmem:[%s1 + $0x54] sm:$0xf]
  %v100 = vld [vmem:[%s1 + $0x58] sm:$0xf]
  %v101 = vld [vmem:[%s1 + $0x5c] sm:$0xf]
  %v102 = vld [vmem:[%s1 + $0x60] sm:$0xf]
  %v103 = vld [vmem:[%s1 + $0x64] sm:$0xf]
  %v104 = vld [vmem:[%s1 + $0x68] sm:$0xf]
  %v105 = vld [vmem:[%s1 + $0x6c] sm:$0xf]
  %v106 = vld [vmem:[%s1 + $0x70] sm:$0xf]
  %v107 = vld [vmem:[%s1 + $0x74] sm:$0xf]
  %v108 = vld [vmem:[%s1 + $0x78] sm:$0xf]
  %v109 = vld [vmem:[%s1 + $0x7c] sm:$0xf]
  %v110 = vld [vmem:[%s1 + $0x80] sm:$0xf]
  %v111 = vld [vmem:[%s1 + $0x84] sm:$0xf]
  %v112 = vld [vmem:[%s1 + $0x88] sm:$0xf]
  %v113 = vld [vmem:[%s1 + $0x8c] sm:$0xf]
  %v114 = vld [vmem:[%s1 + $0x90] sm:$0xf]
  %v115 = vld [vmem:[%s1 + $0x94] sm:$0xf]
  %v116 = vld [vmem:[%s1 + $0x98] sm:$0xf]
  %v117 = vld [vmem:[%s1 + $0x9c] sm:$0xf]
  %v118 = vld [vmem:[%s1 + $0xa0] sm:$0xf]
  %v119 = vld [vmem:[%s1 + $0xa4] sm:$0xf]
  %v120 = vld [vmem:[%s1 + $0xa8] sm:$0xf]
  %v121 = vld [vmem:[%s1 + $0xac] sm:$0xf]
  %v122 = vld [vmem:[%s1 + $0xb0] sm:$0xf]
  %v123 = vld [vmem:[%s1 + $0xb4] sm:$0xf]
  %v124 = vld [vmem:[%s1 + $0xb8] sm:$0xf]
  %v125 = vld [vmem:[%s1 + $0xbc] sm:$0xf]
  %v126 = vld [vmem:[%s1 + $0xc0] sm:$0xf]
  %v127 = vld [vmem:[%s1 + $0xc4] sm:$0xf]
  %v128 = vld [vmem:[%s1 + $0xc8] sm:$0xf]
  %v129 = vld [vmem:[%s1 + $0xcc] sm:$0xf]
  %v130 = vld [vmem:[%s1 + $0xd0] sm:$0xf]
  %v131 = vld [vmem:[%s1 + $0xd4] sm:$0xf]
  %v132 = vld [vmem:[%s1 + $0xd8] sm:$0xf]
  %v133 = vld [vmem:[%s1 + $0xdc] sm:$0xf]
  %v134 = vld [vmem:[%s1 + $0xe0] sm:$0xf]
  %v135 = vld [vmem:[%s1 + $0xe4] sm:$0xf]
  %v136 = vld [vmem:[%s1 + $0xe8] sm:$0xf]
  %v137 = vld [vmem:[%s1 + $0xec] sm:$0xf]
  %v138 = vld [vmem:[%s1 + $0xf0] sm:$0xf]
  %v139 = vld [vmem:[%s1 + $0xf4] sm:$0xf]
  %v140 = vld [vmem:[%s1 + $0xf8] sm:$0xf]
  %v141 = vld [vmem:[%s1 + $0xfc] sm:$0xf]
  %v142 = vld [vmem:[%s1 + $0x100] sm:$0xf]
  %v143 = vld [vmem:[%s1 + $0x104] sm:$0xf]
  %v144 = vld [vmem:[%s1 + $0x108] sm:$0xf]
  %v145 = vld [vmem:[%s1 + $0x10c] sm:$0xf]
  %v146 = vld [vmem:[%s1 + $0x110] sm:$0xf]
  %v147 = vld [vmem:[%s1 + $0x114] sm:$0xf]
  %v148 = vld [vmem:[%s1 + $0x118] sm:$0xf]
  %v149 = vld [vmem:[%s1 + $0x11c] sm:$0xf]
  %v150 = vld [vmem:[%s1 + $0x120] sm:$0xf]
  %v151 = vld [vmem:[%s1 + $0x124] sm:$0xf]
  %v152 = vld [vmem:[%s1 + $0x128] sm:$0xf]
  %v153 = vld [vmem:[%s1 + $0x12c] sm:$0xf]
  %v154 = vld [vmem:[%s1 + $0x130] sm:$0xf]
  %v155 = vld [vmem:[%s1 + $0x134] sm:$0xf]
  %v156 = vld [vmem:[%s1 + $0x138] sm:$0xf]
  %v157 = vld [vmem:[%s1 + $0x13c] sm:$0xf]
  %v158 = vld [vmem:[%s1 + $0x140] sm:$0xf]
  %v159 = vld [vmem:[%s1 + $0x144] sm:$0xf]
  %v160 = vld [vmem:[%s1 + $0x148] sm:$0xf]
  %v161 = vld [vmem:[%s1 + $0x14c] sm:$0xf]
  %v162 = vld [vmem:[%s1 + $0x150] sm:$0xf]
  %v163 = vld [vmem:[%s1 + $0x154] sm:$0xf]
  %v164 = vld [vmem:[%s1 + $0x158] sm:$0xf]
  %v165 = vld [vmem:[%s1 + $0x15c] sm:$0xf]
  %v166 = vld [vmem:[%s1 + $0x160] sm:$0xf]
  %v167 = vld [vmem:[%s1 + $0x164] sm:$0xf]
  %v168 = vld [vmem:[%s1 + $0x168] sm:$0xf]
  %v169 = vld [vmem:[%s1 + $0x16c] sm:$0xf]
  %v170 = vld [vmem:[%s1 + $0x170] sm:$0xf]
  %v171 = vld [vmem:[%s1 + $0x174] sm:$0xf]
  %v172 = vld [vmem:[%s1 + $0x178] sm:$0xf]
  %v173 = vld [vmem:[%s1 + $0x17c] sm:$0xf]
  %v174 = vld [vmem:[%s1 + $0x180] sm:$0xf]
  %v175 = vld [vmem:[%s1 + $0x184] sm:$0xf]
  %v176 = vld [vmem:[%s1 + $0x188] sm:$0xf]
  %v177 = vld [vmem:[%s1 + $0x18c] sm:$0xf]
  %v178 = vld [vmem:[%s1 + $0x190] sm:$0xf]
  %v179 = vld [vmem:[%s1 + $0x194] sm:$0xf]
  %v180 = vld [vmem:[%s1 + $0x198] sm:$0xf]
  %v181 = vld [vmem:[%s1 + $0x19c] sm:$0xf]
  %v182 = vld [vmem:[%s1 + $0x1a0] sm:$0xf]
  %v183 = vld [vmem:[%s1 + $0x1a4] sm:$0xf]
  %v184 = vld [vmem:[%s1 + $0x1a8] sm:$0xf]
  %v185 = vld [vmem:[%s1 + $0x1ac] sm:$0xf]
  %v186 = vld [vmem:[%s1 + $0x1b0] sm:$0xf]
  %v187 = vld [vmem:[%s1 + $0x1b4] sm:$0xf]
  %v188 = vld [vmem:[%s1 + $0x1b8] sm:$0xf]
  %v189 = vld [vmem:[%s1 + $0x1bc] sm:$0xf]
  %v190 = vld [vmem:[%s1 + $0x1c0] sm:$0xf]
  %v191 = vld [vmem:[%s1 + $0x1c4] sm:$0xf]
  %v192 = vld [vmem:[%s1 + $0x1c8] sm:$0xf]
  %v193 = vld [vmem:[%s1 + $0x1cc] sm:$0xf]
  %v194 = vld [vmem:[%s1 + $0x1d0] sm:$0xf]
  %v195 = vld [vmem:[%s1 + $0x1d4] sm:$0xf]
  %v196 = vld [vmem:[%s1 + $0x1d8] sm:$0xf]
  %v197 = vld [vmem:[%s1 + $0x1dc] sm:$0xf]
  %v198 = vld [vmem:[%s1 + $0x1e0] sm:$0xf]
  %v199 = vld [vmem:[%s1 + $0x1e4] sm:$0xf]
  %v200 = vld [vmem:[%s1 + $0x1e8] sm:$0xf]
  %v201 = vld [vmem:[%s1 + $0x1ec] sm:$0xf]
  %v202 = vld [vmem:[%s1 + $0x1f0] sm:$0xf]
  %v203 = vld [vmem:[%s1 + $0x1f4] sm:$0xf]
  %v204 = vld [vmem:[%s1 + $0x1f8] sm:$0xf]
  %v205 = vld [vmem:[%s1 + $0x1fc] sm:$0xf]
  %v206 = vld [vmem:[%s1 + $0x200] sm:$0xf]
  %v207 = vld [vmem:[%s1 + $0x204] sm:$0xf]
  %v208 = vld [vmem:[%s1 + $0x208] sm:$0xf]
  %v209 = vld [vmem:[%s1 + $0x20c] sm:$0xf]
  %v210 = vld [vmem:[%s1 + $0x210] sm:$0xf]
  %v211 = vld [vmem:[%s1 + $0x214] sm:$0xf]
  %v212 = vld [vmem:[%s1 + $0x218] sm:$0xf]
  %v213 = vld [vmem:[%s1 + $0x21c] sm:$0xf]
  %v214 = vld [vmem:[%s1 + $0x220] sm:$0xf]
  %v215 = vld [vmem:[%s1 + $0x224] sm:$0xf]
  %v216 = vld [vmem:[%s1 + $0x228] sm:$0xf]
  %v217 = vld [vmem:[%s1 + $0x22c] sm:$0xf]
  %v218 = vld [vmem:[%s1 + $0x230] sm:$0xf]
  %v219 = vld [vmem:[%s1 + $0x234] sm:$0xf]
  %v220 = vld [vmem:[%s1 + $0x238] sm:$0xf]
  %v221 = vld [vmem:[%s1 + $0x23c] sm:$0xf]
  %v222 = vld [vmem:[%s1 + $0x240] sm:$0xf]
  %v223 = vld [vmem:[%s1 + $0x244] sm:$0xf]
  %v224 = vld [vmem:[%s1 + $0x248] sm:$0xf]
  %v225 = vld [vmem:[%s1 + $0x24c] sm:$0xf]
  %v226 = vld [vmem:[%s1 + $0x250] sm:$0xf]
  %v227 = vld [vmem:[%s1 + $0x254] sm:$0xf]
  %v228 = vld [vmem:[%s1 + $0x258] sm:$0xf]
  %v229 = vld [vmem:[%s1 + $0x25c] sm:$0xf]
  %v230 = vld [vmem:[%s1 + $0x260] sm:$0xf]
  %v231 = vld [vmem:[%s1 + $0x264] sm:$0xf]
  %v232 = vld [vmem:[%s1 + $0x268] sm:$0xf]
  %v233 = vld [vmem:[%s1 + $0x26c] sm:$0xf]
  %v234 = vld [vmem:[%s1 + $0x270] sm:$0xf]
  %v235 = vld [vmem:[%s1 + $0x274] sm:$0xf]
  %v236 = vld [vmem:[%s1 + $0x278] sm:$0xf]
  %v237 = vld [vmem:[%s1 + $0x27c] sm:$0xf]
  %v238 = vld [vmem:[%s1 + $0x280] sm:$0xf]
  %v239 = vld [vmem:[%s1 + $0x284] sm:$0xf]
  %v240 = vld [vmem:[%s1 + $0x288] sm:$0xf]
  %v241 = vld [vmem:[%s1 + $0x28c] sm:$0xf]
  %v242 = vld [vmem:[%s1 + $0x290] sm:$0xf]
  %v243 = vld [vmem:[%s1 + $0x294] sm:$0xf]
  %v244 = vld [vmem:[%s1 + $0x298] sm:$0xf]
  %v245 = vld [vmem:[%s1 + $0x29c] sm:$0xf]
  %v246 = vld [vmem:[%s1 + $0x2a0] sm:$0xf]
  %v247 = vld [vmem:[%s1 + $0x2a4] sm:$0xf]
  %v248 = vld [vmem:[%s1 + $0x2a8] sm:$0xf]
  %v249 = vld [vmem:[%s1 + $0x2ac] sm:$0xf]
  %v250 = vld [vmem:[%s1 + $0x2b0] sm:$0xf]
  %v251 = vld [vmem:[%s1 + $0x2b4] sm:$0xf]
  %v252 = vld [vmem:[%s1 + $0x2b8] sm:$0xf]
  %v253 = vld [vmem:[%s1 + $0x2bc] sm:$0xf]
  %v254 = vld [vmem:[%s1 + $0x2c0] sm:$0xf]
  %v255 = vld [vmem:[%s1 + $0x2c4] sm:$0xf]
  %v256 = vld [vmem:[%s1 + $0x2c8] sm:$0xf]
  %v257 = vld [vmem:[%s1 + $0x2cc] sm:$0xf]
  %v258 = vld [vmem:[%s1 + $0x2d0] sm:$0xf]
  %v259 = vld [vmem:[%s1 + $0x2d4] sm:$0xf]
  %v260 = vld [vmem:[%s1 + $0x2d8] sm:$0xf]
  %v261 = vld [vmem:[%s1 + $0x2dc] sm:$0xf]
  %v262 = vld [vmem:[%s1 + $0x2e0] sm:$0xf]
  %v263 = vld [vmem:[%s1 + $0x2e4] sm:$0xf]
  %v264 = vld [vmem:[%s1 + $0x2e8] sm:$0xf]
  %v265 = vld [vmem:[%s1 + $0x2ec] sm:$0xf]
  %v266 = vld [vmem:[%s1 + $0x2f0] sm:$0xf]
  %v267 = vld [vmem:[%s1 + $0x2f4] sm:$0xf]
  %v268 = vld [vmem:[%s1 + $0x2f8] sm:$0xf]
  %v269 = vld [vmem:[%s1 + $0x2fc] sm:$0xf]
  %v270 = vld [vmem:[%s1 + $0x300] sm:$0xf]
  %v271 = vld [vmem:[%s1 + $0x304] sm:$0xf]
  %v272 = vld [vmem:[%s1 + $0x308] sm:$0xf]
  %v273 = vld [vmem:[%s1 + $0x30c] sm:$0xf]
  %v274 = vld [vmem:[%s1 + $0x310] sm:$0xf]
  %v275 = vld [vmem:[%s1 + $0x314] sm:$0xf]
  %v276 = vld [vmem:[%s1 + $0x318] sm:$0xf]
  %v277 = vld [vmem:[%s1 + $0x31c] sm:$0xf]
  %v278 = vld [vmem:[%s1 + $0x320] sm:$0xf]
  %v279 = vld [vmem:[%s1 + $0x324] sm:$0xf]
  %v280 = vld [vmem:[%s1 + $0x328] sm:$0xf]
  %v281 = vld [vmem:[%s1 + $0x32c] sm:$0xf]
  %v282 = vld [vmem:[%s1 + $0x330] sm:$0xf]
  %v283 = vld [vmem:[%s1 + $0x334] sm:$0xf]
  %v284 = vld [vmem:[%s1 + $0x338] sm:$0xf]
  %v285 = vld [vmem:[%s1 + $0x33c] sm:$0xf]
  %v286 = vld [vmem:[%s1 + $0x340] sm:$0xf]
  %v287 = vld [vmem:[%s1 + $0x344] sm:$0xf]
  %v288 = vld [vmem:[%s1 + $0x348] sm:$0xf]
  %v289 = vld [vmem:[%s1 + $0x34c] sm:$0xf]
  %v290 = vld [vmem:[%s1 + $0x350] sm:$0xf]
  %v291 = vld [vmem:[%s1 + $0x354] sm:$0xf]
  %v292 = vld [vmem:[%s1 + $0x358] sm:$0xf]
  %v293 = vld [vmem:[%s1 + $0x35c] sm:$0xf]
  %v294 = vld [vmem:[%s1 + $0x360] sm:$0xf]
  %v295 = vld [vmem:[%s1 + $0x364] sm:$0xf]
  %v296 = vld [vmem:[%s1 + $0x368] sm:$0xf]
  %v297 = vld [vmem:[%s1 + $0x36c] sm:$0xf]
  %v298 = vld [vmem:[%s1 + $0x370] sm:$0xf]
  %v299 = vld [vmem:[%s1 + $0x374] sm:$0xf]
  %v300 = vld [vmem:[%s1 + $0x378] sm:$0xf]
  %v301 = vld [vmem:[%s1 + $0x37c] sm:$0xf]
  %v302 = vld [vmem:[%s1 + $0x380] sm:$0xf]
  %v303 = vld [vmem:[%s1 + $0x384] sm:$0xf]
  %v304 = vld [vmem:[%s1 + $0x388] sm:$0xf]
  %v305 = vld [vmem:[%s1 + $0x38c] sm:$0xf]
  %v306 = vld [vmem:[%s1 + $0x390] sm:$0xf]
  %v307 = vld [vmem:[%s1 + $0x394] sm:$0xf]
  %v308 = vld [vmem:[%s1 + $0x398] sm:$0xf]
  %v309 = vld [vmem:[%s1 + $0x39c] sm:$0xf]
  %v310 = vld [vmem:[%s1 + $0x3a0] sm:$0xf]
  %v311 = vld [vmem:[%s1 + $0x3a4] sm:$0xf]
  %v312 = vld [vmem:[%s1 + $0x3a8] sm:$0xf]
  %v313 = vld [vmem:[%s1 + $0x3ac] sm:$0xf]
  %v314 = vld [vmem:[%s1 + $0x3b0] sm:$0xf]
  %v315 = vld [vmem:[%s1 + $0x3b4] sm:$0xf]
  %v316 = vld [vmem:[%s1 + $0x3b8] sm:$0xf]
  %v317 = vld [vmem:[%s1 + $0x3bc] sm:$0xf]
  %v318 = vld [vmem:[%s1 + $0x3c0] sm:$0xf]
  %v319 = vld [vmem:[%s1 + $0x3c4] sm:$0xf]
  %v320 = vld [vmem:[%s1 + $0x3c8] sm:$0xf]
  %v321 = vld [vmem:[%s1 + $0x3cc] sm:$0xf]
  %v322 = vld [vmem:[%s1 + $0x3d0] sm:$0xf]
  %v323 = vld [vmem:[%s1 + $0x3d4] sm:$0xf]
  %v324 = vld [vmem:[%s1 + $0x3d8] sm:$0xf]
  %v325 = vld [vmem:[%s1 + $0x3dc] sm:$0xf]
  %v326 = vld [vmem:[%s1 + $0x3e0] sm:$0xf]
  %v327 = vld [vmem:[%s1 + $0x3e4] sm:$0xf]
  %v328 = vld [vmem:[%s1 + $0x3e8] sm:$0xf]
  %v329 = vld [vmem:[%s1 + $0x3ec] sm:$0xf]
  %v330 = vld [vmem:[%s1 + $0x3f0] sm:$0xf]
  %v331 = vld [vmem:[%s1 + $0x3f4] sm:$0xf]
  %v332 = vld [vmem:[%s1 + $0x3f8] sm:$0xf]
  %v333 = vld [vmem:[%s1 + $0x3fc] sm:$0xf]
  %v398 = vunpack.c.l.b16 %v14
  %v399 = vunpack.c.h.b16 %v14
  %v400 = vunpack.c.l.b16 %v15
  %v401 = vunpack.c.h.b16 %v15
  %v402 = vunpack.c.l.b16 %v16
  %v403 = vunpack.c.h.b16 %v16
  %v404 = vunpack.c.l.b16 %v17
  %v405 = vunpack.c.h.b16 %v17
  %v406 = vunpack.c.l.b16 %v18
  %v407 = vunpack.c.h.b16 %v18
  %v408 = vunpack.c.l.b16 %v19
  %v409 = vunpack.c.h.b16 %v19
  %v410 = vunpack.c.l.b16 %v20
  %v411 = vunpack.c.h.b16 %v20
  %v412 = vunpack.c.l.b16 %v21
  %v413 = vunpack.c.h.b16 %v21
  %v414 = vunpack.c.l.b16 %v22
  %v415 = vunpack.c.h.b16 %v22
  %v416 = vunpack.c.l.b16 %v23
  %v417 = vunpack.c.h.b16 %v23
  %v418 = vunpack.c.l.b16 %v24
  %v419 = vunpack.c.h.b16 %v24
  %v420 = vunpack.c.l.b16 %v25
  %v421 = vunpack.c.h.b16 %v25
  %v422 = vunpack.c.l.b16 %v26
  %v423 = vunpack.c.h.b16 %v26
  %v424 = vunpack.c.l.b16 %v27
  %v425 = vunpack.c.h.b16 %v27
  %v426 = vunpack.c.l.b16 %v28
  %v427 = vunpack.c.h.b16 %v28
  %v428 = vunpack.c.l.b16 %v29
  %v429 = vunpack.c.h.b16 %v29
  %v430 = vunpack.c.l.b16 %v30
  %v431 = vunpack.c.h.b16 %v30
  %v432 = vunpack.c.l.b16 %v31
  %v433 = vunpack.c.h.b16 %v31
  %v434 = vunpack.c.l.b16 %v32
  %v435 = vunpack.c.h.b16 %v32
  %v436 = vunpack.c.l.b16 %v33
  %v437 = vunpack.c.h.b16 %v33
  %v438 = vunpack.c.l.b16 %v34
  %v439 = vunpack.c.h.b16 %v34
  %v440 = vunpack.c.l.b16 %v35
  %v441 = vunpack.c.h.b16 %v35
  %v442 = vunpack.c.l.b16 %v36
  %v443 = vunpack.c.h.b16 %v36
  %v444 = vunpack.c.l.b16 %v37
  %v445 = vunpack.c.h.b16 %v37
  %v446 = vunpack.c.l.b16 %v38
  %v447 = vunpack.c.h.b16 %v38
  %v448 = vunpack.c.l.b16 %v39
  %v449 = vunpack.c.h.b16 %v39
  %v450 = vunpack.c.l.b16 %v40
  %v451 = vunpack.c.h.b16 %v40
  %v452 = vunpack.c.l.b16 %v41
  %v453 = vunpack.c.h.b16 %v41
  %v454 = vunpack.c.l.b16 %v42
  %v455 = vunpack.c.h.b16 %v42
  %v456 = vunpack.c.l.b16 %v43
  %v457 = vunpack.c.h.b16 %v43
  %v458 = vunpack.c.l.b16 %v44
  %v459 = vunpack.c.h.b16 %v44
  %v460 = vunpack.c.l.b16 %v45
  %v461 = vunpack.c.h.b16 %v45
  %v462 = vunpack.c.l.b16 %v46
  %v463 = vunpack.c.h.b16 %v46
  %v464 = vunpack.c.l.b16 %v47
  %v465 = vunpack.c.h.b16 %v47
  %v466 = vunpack.c.l.b16 %v48
  %v467 = vunpack.c.h.b16 %v48
  %v468 = vunpack.c.l.b16 %v49
  %v469 = vunpack.c.h.b16 %v49
  %v470 = vunpack.c.l.b16 %v50
  %v471 = vunpack.c.h.b16 %v50
  %v472 = vunpack.c.l.b16 %v51
  %v473 = vunpack.c.h.b16 %v51
  %v474 = vunpack.c.l.b16 %v52
  %v475 = vunpack.c.h.b16 %v52
  %v476 = vunpack.c.l.b16 %v53
  %v477 = vunpack.c.h.b16 %v53
  %v478 = vunpack.c.l.b16 %v54
  %v479 = vunpack.c.h.b16 %v54
  %v480 = vunpack.c.l.b16 %v55
  %v481 = vunpack.c.h.b16 %v55
  %v482 = vunpack.c.l.b16 %v56
  %v483 = vunpack.c.h.b16 %v56
  %v484 = vunpack.c.l.b16 %v57
  %v485 = vunpack.c.h.b16 %v57
  %v486 = vunpack.c.l.b16 %v58
  %v487 = vunpack.c.h.b16 %v58
  %v488 = vunpack.c.l.b16 %v59
  %v489 = vunpack.c.h.b16 %v59
  %v490 = vunpack.c.l.b16 %v60
  %v491 = vunpack.c.h.b16 %v60
  %v492 = vunpack.c.l.b16 %v61
  %v493 = vunpack.c.h.b16 %v61
  %v494 = vunpack.c.l.b16 %v62
  %v495 = vunpack.c.h.b16 %v62
  %v496 = vunpack.c.l.b16 %v63
  %v497 = vunpack.c.h.b16 %v63
  %v498 = vunpack.c.l.b16 %v64
  %v499 = vunpack.c.h.b16 %v64
  %v500 = vunpack.c.l.b16 %v65
  %v501 = vunpack.c.h.b16 %v65
  %v502 = vunpack.c.l.b16 %v66
  %v503 = vunpack.c.h.b16 %v66
  %v504 = vunpack.c.l.b16 %v67
  %v505 = vunpack.c.h.b16 %v67
  %v506 = vunpack.c.l.b16 %v68
  %v507 = vunpack.c.h.b16 %v68
  %v508 = vunpack.c.l.b16 %v69
  %v509 = vunpack.c.h.b16 %v69
  %v510 = vunpack.c.l.b16 %v70
  %v511 = vunpack.c.h.b16 %v70
  %v512 = vunpack.c.l.b16 %v71
  %v513 = vunpack.c.h.b16 %v71
  %v514 = vunpack.c.l.b16 %v72
  %v515 = vunpack.c.h.b16 %v72
  %v516 = vunpack.c.l.b16 %v73
  %v517 = vunpack.c.h.b16 %v73
  %v518 = vunpack.c.l.b16 %v74
  %v519 = vunpack.c.h.b16 %v74
  %v520 = vunpack.c.l.b16 %v75
  %v521 = vunpack.c.h.b16 %v75
  %v522 = vunpack.c.l.b16 %v76
  %v523 = vunpack.c.h.b16 %v76
  %v524 = vunpack.c.l.b16 %v77
  %v525 = vunpack.c.h.b16 %v77
  %v526 = vpack.c.b16 %v414, %v398
  %v527 = vpack.c.b16 %v415, %v399
  %v528 = vpack.c.b16 %v416, %v400
  %v529 = vpack.c.b16 %v417, %v401
  %v530 = vpack.c.b16 %v418, %v402
  %v531 = vpack.c.b16 %v419, %v403
  %v532 = vpack.c.b16 %v420, %v404
  %v533 = vpack.c.b16 %v421, %v405
  %v534 = vpack.c.b16 %v422, %v406
  %v535 = vpack.c.b16 %v423, %v407
  %v536 = vpack.c.b16 %v424, %v408
  %v537 = vpack.c.b16 %v425, %v409
  %v538 = vpack.c.b16 %v426, %v410
  %v539 = vpack.c.b16 %v427, %v411
  %v540 = vpack.c.b16 %v428, %v412
  %v541 = vpack.c.b16 %v429, %v413
  %v542 = vpack.c.b16 %v446, %v430
  %v543 = vpack.c.b16 %v447, %v431
  %v544 = vpack.c.b16 %v448, %v432
  %v545 = vpack.c.b16 %v449, %v433
  %v546 = vpack.c.b16 %v450, %v434
  %v547 = vpack.c.b16 %v451, %v435
  %v548 = vpack.c.b16 %v452, %v436
  %v549 = vpack.c.b16 %v453, %v437
  %v550 = vpack.c.b16 %v454, %v438
  %v551 = vpack.c.b16 %v455, %v439
  %v552 = vpack.c.b16 %v456, %v440
  %v553 = vpack.c.b16 %v457, %v441
  %v554 = vpack.c.b16 %v458, %v442
  %v555 = vpack.c.b16 %v459, %v443
  %v556 = vpack.c.b16 %v460, %v444
  %v557 = vpack.c.b16 %v461, %v445
  %v558 = vpack.c.b16 %v478, %v462
  %v559 = vpack.c.b16 %v479, %v463
  %v560 = vpack.c.b16 %v480, %v464
  %v561 = vpack.c.b16 %v481, %v465
  %v562 = vpack.c.b16 %v482, %v466
  %v563 = vpack.c.b16 %v483, %v467
  %v564 = vpack.c.b16 %v484, %v468
  %v565 = vpack.c.b16 %v485, %v469
  %v566 = vpack.c.b16 %v486, %v470
  %v567 = vpack.c.b16 %v487, %v471
  %v568 = vpack.c.b16 %v488, %v472
  %v569 = vpack.c.b16 %v489, %v473
  %v570 = vpack.c.b16 %v490, %v474
  %v571 = vpack.c.b16 %v491, %v475
  %v572 = vpack.c.b16 %v492, %v476
  %v573 = vpack.c.b16 %v493, %v477
  %v574 = vpack.c.b16 %v510, %v494
  %v575 = vpack.c.b16 %v511, %v495
  %v576 = vpack.c.b16 %v512, %v496
  %v577 = vpack.c.b16 %v513, %v497
  %v578 = vpack.c.b16 %v514, %v498
  %v579 = vpack.c.b16 %v515, %v499
  %v580 = vpack.c.b16 %v516, %v500
  %v581 = vpack.c.b16 %v517, %v501
  %v582 = vpack.c.b16 %v518, %v502
  %v583 = vpack.c.b16 %v519, %v503
  %v584 = vpack.c.b16 %v520, %v504
  %v585 = vpack.c.b16 %v521, %v505
  %v586 = vpack.c.b16 %v522, %v506
  %v587 = vpack.c.b16 %v523, %v507
  %v588 = vpack.c.b16 %v524, %v508
  %v589 = vpack.c.b16 %v525, %v509
  %v910 = vunpack.c.l.b16 %v78
  %v911 = vunpack.c.l.b16 %v79
  %v912 = vunpack.c.l.b16 %v80
  %v913 = vunpack.c.l.b16 %v81
  %v914 = vunpack.c.l.b16 %v82
  %v915 = vunpack.c.l.b16 %v83
  %v916 = vunpack.c.l.b16 %v84
  %v917 = vunpack.c.l.b16 %v85
  %v918 = vunpack.c.l.b16 %v86
  %v919 = vunpack.c.l.b16 %v87
  %v920 = vunpack.c.l.b16 %v88
  %v921 = vunpack.c.l.b16 %v89
  %v922 = vunpack.c.l.b16 %v90
  %v923 = vunpack.c.l.b16 %v91
  %v924 = vunpack.c.l.b16 %v92
  %v925 = vunpack.c.l.b16 %v93
  %v926 = vunpack.c.l.b16 %v94
  %v927 = vunpack.c.l.b16 %v95
  %v928 = vunpack.c.l.b16 %v96
  %v929 = vunpack.c.l.b16 %v97
  %v930 = vunpack.c.l.b16 %v98
  %v931 = vunpack.c.l.b16 %v99
  %v932 = vunpack.c.l.b16 %v100
  %v933 = vunpack.c.l.b16 %v101
  %v934 = vunpack.c.l.b16 %v102
  %v935 = vunpack.c.l.b16 %v103
  %v936 = vunpack.c.l.b16 %v104
  %v937 = vunpack.c.l.b16 %v105
  %v938 = vunpack.c.l.b16 %v106
  %v939 = vunpack.c.l.b16 %v107
  %v940 = vunpack.c.l.b16 %v108
  %v941 = vunpack.c.l.b16 %v109
  %v942 = vunpack.c.l.b16 %v110
  %v943 = vunpack.c.l.b16 %v111
  %v944 = vunpack.c.l.b16 %v112
  %v945 = vunpack.c.l.b16 %v113
  %v946 = vunpack.c.l.b16 %v114
  %v947 = vunpack.c.l.b16 %v115
  %v948 = vunpack.c.l.b16 %v116
  %v949 = vunpack.c.l.b16 %v117
  %v950 = vunpack.c.l.b16 %v118
  %v951 = vunpack.c.l.b16 %v119
  %v952 = vunpack.c.l.b16 %v120
  %v953 = vunpack.c.l.b16 %v121
  %v954 = vunpack.c.l.b16 %v122
  %v955 = vunpack.c.l.b16 %v123
  %v956 = vunpack.c.l.b16 %v124
  %v957 = vunpack.c.l.b16 %v125
  %v958 = vunpack.c.l.b16 %v126
  %v959 = vunpack.c.l.b16 %v127
  %v960 = vunpack.c.l.b16 %v128
  %v961 = vunpack.c.l.b16 %v129
  %v962 = vunpack.c.l.b16 %v130
  %v963 = vunpack.c.l.b16 %v131
  %v964 = vunpack.c.l.b16 %v132
  %v965 = vunpack.c.l.b16 %v133
  %v966 = vunpack.c.l.b16 %v134
  %v967 = vunpack.c.l.b16 %v135
  %v968 = vunpack.c.l.b16 %v136
  %v969 = vunpack.c.l.b16 %v137
  %v970 = vunpack.c.l.b16 %v138
  %v971 = vunpack.c.l.b16 %v139
  %v972 = vunpack.c.l.b16 %v140
  %v973 = vunpack.c.l.b16 %v141
  %v974 = vunpack.c.l.b16 %v142
  %v975 = vunpack.c.l.b16 %v143
  %v976 = vunpack.c.l.b16 %v144
  %v977 = vunpack.c.l.b16 %v145
  %v978 = vunpack.c.l.b16 %v146
  %v979 = vunpack.c.l.b16 %v147
  %v980 = vunpack.c.l.b16 %v148
  %v981 = vunpack.c.l.b16 %v149
  %v982 = vunpack.c.l.b16 %v150
  %v983 = vunpack.c.l.b16 %v151
  %v984 = vunpack.c.l.b16 %v152
  %v985 = vunpack.c.l.b16 %v153
  %v986 = vunpack.c.l.b16 %v154
  %v987 = vunpack.c.l.b16 %v155
  %v988 = vunpack.c.l.b16 %v156
  %v989 = vunpack.c.l.b16 %v157
  %v990 = vunpack.c.l.b16 %v158
  %v991 = vunpack.c.l.b16 %v159
  %v992 = vunpack.c.l.b16 %v160
  %v993 = vunpack.c.l.b16 %v161
  %v994 = vunpack.c.l.b16 %v162
  %v995 = vunpack.c.l.b16 %v163
  %v996 = vunpack.c.l.b16 %v164
  %v997 = vunpack.c.l.b16 %v165
  %v998 = vunpack.c.l.b16 %v166
  %v999 = vunpack.c.l.b16 %v167
  %v1000 = vunpack.c.l.b16 %v168
  %v1001 = vunpack.c.l.b16 %v169
  %v1002 = vunpack.c.l.b16 %v170
  %v1003 = vunpack.c.l.b16 %v171
  %v1004 = vunpack.c.l.b16 %v172
  %v1005 = vunpack.c.l.b16 %v173
  %v1006 = vunpack.c.l.b16 %v174
  %v1007 = vunpack.c.l.b16 %v175
  %v1008 = vunpack.c.l.b16 %v176
  %v1009 = vunpack.c.l.b16 %v177
  %v1010 = vunpack.c.l.b16 %v178
  %v1011 = vunpack.c.l.b16 %v179
  %v1012 = vunpack.c.l.b16 %v180
  %v1013 = vunpack.c.l.b16 %v181
  %v1014 = vunpack.c.l.b16 %v182
  %v1015 = vunpack.c.l.b16 %v183
  %v1016 = vunpack.c.l.b16 %v184
  %v1017 = vunpack.c.l.b16 %v185
  %v1018 = vunpack.c.l.b16 %v186
  %v1019 = vunpack.c.l.b16 %v187
  %v1020 = vunpack.c.l.b16 %v188
  %v1021 = vunpack.c.l.b16 %v189
  %v1022 = vunpack.c.l.b16 %v190
  %v1023 = vunpack.c.l.b16 %v191
  %v1024 = vunpack.c.l.b16 %v192
  %v1025 = vunpack.c.l.b16 %v193
  %v1026 = vunpack.c.l.b16 %v194
  %v1027 = vunpack.c.l.b16 %v195
  %v1028 = vunpack.c.l.b16 %v196
  %v1029 = vunpack.c.l.b16 %v197
  %v1030 = vunpack.c.l.b16 %v198
  %v1031 = vunpack.c.l.b16 %v199
  %v1032 = vunpack.c.l.b16 %v200
  %v1033 = vunpack.c.l.b16 %v201
  %v1034 = vunpack.c.l.b16 %v202
  %v1035 = vunpack.c.l.b16 %v203
  %v1036 = vunpack.c.l.b16 %v204
  %v1037 = vunpack.c.l.b16 %v205
  %v1038 = vunpack.c.l.b16 %v206
  %v1039 = vunpack.c.l.b16 %v207
  %v1040 = vunpack.c.l.b16 %v208
  %v1041 = vunpack.c.l.b16 %v209
  %v1042 = vunpack.c.l.b16 %v210
  %v1043 = vunpack.c.l.b16 %v211
  %v1044 = vunpack.c.l.b16 %v212
  %v1045 = vunpack.c.l.b16 %v213
  %v1046 = vunpack.c.l.b16 %v214
  %v1047 = vunpack.c.l.b16 %v215
  %v1048 = vunpack.c.l.b16 %v216
  %v1049 = vunpack.c.l.b16 %v217
  %v1050 = vunpack.c.l.b16 %v218
  %v1051 = vunpack.c.l.b16 %v219
  %v1052 = vunpack.c.l.b16 %v220
  %v1053 = vunpack.c.l.b16 %v221
  %v1054 = vunpack.c.l.b16 %v222
  %v1055 = vunpack.c.l.b16 %v223
  %v1056 = vunpack.c.l.b16 %v224
  %v1057 = vunpack.c.l.b16 %v225
  %v1058 = vunpack.c.l.b16 %v226
  %v1059 = vunpack.c.l.b16 %v227
  %v1060 = vunpack.c.l.b16 %v228
  %v1061 = vunpack.c.l.b16 %v229
  %v1062 = vunpack.c.l.b16 %v230
  %v1063 = vunpack.c.l.b16 %v231
  %v1064 = vunpack.c.l.b16 %v232
  %v1065 = vunpack.c.l.b16 %v233
  %v1066 = vunpack.c.l.b16 %v234
  %v1067 = vunpack.c.l.b16 %v235
  %v1068 = vunpack.c.l.b16 %v236
  %v1069 = vunpack.c.l.b16 %v237
  %v1070 = vunpack.c.l.b16 %v238
  %v1071 = vunpack.c.l.b16 %v239
  %v1072 = vunpack.c.l.b16 %v240
  %v1073 = vunpack.c.l.b16 %v241
  %v1074 = vunpack.c.l.b16 %v242
  %v1075 = vunpack.c.l.b16 %v243
  %v1076 = vunpack.c.l.b16 %v244
  %v1077 = vunpack.c.l.b16 %v245
  %v1078 = vunpack.c.l.b16 %v246
  %v1079 = vunpack.c.l.b16 %v247
  %v1080 = vunpack.c.l.b16 %v248
  %v1081 = vunpack.c.l.b16 %v249
  %v1082 = vunpack.c.l.b16 %v250
  %v1083 = vunpack.c.l.b16 %v251
  %v1084 = vunpack.c.l.b16 %v252
  %v1085 = vunpack.c.l.b16 %v253
  %v1086 = vunpack.c.l.b16 %v254
  %v1087 = vunpack.c.l.b16 %v255
  %v1088 = vunpack.c.l.b16 %v256
  %v1089 = vunpack.c.l.b16 %v257
  %v1090 = vunpack.c.l.b16 %v258
  %v1091 = vunpack.c.l.b16 %v259
  %v1092 = vunpack.c.l.b16 %v260
  %v1093 = vunpack.c.l.b16 %v261
  %v1094 = vunpack.c.l.b16 %v262
  %v1095 = vunpack.c.l.b16 %v263
  %v1096 = vunpack.c.l.b16 %v264
  %v1097 = vunpack.c.l.b16 %v265
  %v1098 = vunpack.c.l.b16 %v266
  %v1099 = vunpack.c.l.b16 %v267
  %v1100 = vunpack.c.l.b16 %v268
  %v1101 = vunpack.c.l.b16 %v269
  %v1102 = vunpack.c.l.b16 %v270
  %v1103 = vunpack.c.l.b16 %v271
  %v1104 = vunpack.c.l.b16 %v272
  %v1105 = vunpack.c.l.b16 %v273
  %v1106 = vunpack.c.l.b16 %v274
  %v1107 = vunpack.c.l.b16 %v275
  %v1108 = vunpack.c.l.b16 %v276
  %v1109 = vunpack.c.l.b16 %v277
  %v1110 = vunpack.c.l.b16 %v278
  %v1111 = vunpack.c.l.b16 %v279
  %v1112 = vunpack.c.l.b16 %v280
  %v1113 = vunpack.c.l.b16 %v281
  %v1114 = vunpack.c.l.b16 %v282
  %v1115 = vunpack.c.l.b16 %v283
  %v1116 = vunpack.c.l.b16 %v284
  %v1117 = vunpack.c.l.b16 %v285
  %v1118 = vunpack.c.l.b16 %v286
  %v1119 = vunpack.c.l.b16 %v287
  %v1120 = vunpack.c.l.b16 %v288
  %v1121 = vunpack.c.l.b16 %v289
  %v1122 = vunpack.c.l.b16 %v290
  %v1123 = vunpack.c.l.b16 %v291
  %v1124 = vunpack.c.l.b16 %v292
  %v1125 = vunpack.c.l.b16 %v293
  %v1126 = vunpack.c.l.b16 %v294
  %v1127 = vunpack.c.l.b16 %v295
  %v1128 = vunpack.c.l.b16 %v296
  %v1129 = vunpack.c.l.b16 %v297
  %v1130 = vunpack.c.l.b16 %v298
  %v1131 = vunpack.c.l.b16 %v299
  %v1132 = vunpack.c.l.b16 %v300
  %v1133 = vunpack.c.l.b16 %v301
  %v1134 = vunpack.c.l.b16 %v302
  %v1135 = vunpack.c.l.b16 %v303
  %v1136 = vunpack.c.l.b16 %v304
  %v1137 = vunpack.c.l.b16 %v305
  %v1138 = vunpack.c.l.b16 %v306
  %v1139 = vunpack.c.l.b16 %v307
  %v1140 = vunpack.c.l.b16 %v308
  %v1141 = vunpack.c.l.b16 %v309
  %v1142 = vunpack.c.l.b16 %v310
  %v1143 = vunpack.c.l.b16 %v311
  %v1144 = vunpack.c.l.b16 %v312
  %v1145 = vunpack.c.l.b16 %v313
  %v1146 = vunpack.c.l.b16 %v314
  %v1147 = vunpack.c.l.b16 %v315
  %v1148 = vunpack.c.l.b16 %v316
  %v1149 = vunpack.c.l.b16 %v317
  %v1150 = vunpack.c.l.b16 %v318
  %v1151 = vunpack.c.l.b16 %v319
  %v1152 = vunpack.c.l.b16 %v320
  %v1153 = vunpack.c.l.b16 %v321
  %v1154 = vunpack.c.l.b16 %v322
  %v1155 = vunpack.c.l.b16 %v323
  %v1156 = vunpack.c.l.b16 %v324
  %v1157 = vunpack.c.l.b16 %v325
  %v1158 = vunpack.c.l.b16 %v326
  %v1159 = vunpack.c.l.b16 %v327
  %v1160 = vunpack.c.l.b16 %v328
  %v1161 = vunpack.c.l.b16 %v329
  %v1162 = vunpack.c.l.b16 %v330
  %v1163 = vunpack.c.l.b16 %v331
  %v1164 = vunpack.c.l.b16 %v332
  %v1165 = vunpack.c.l.b16 %v333
  %v1166 = vpack.c.b16 %v911, %v910
  %v1167 = vpack.c.b16 %v913, %v912
  %v1168 = vpack.c.b16 %v915, %v914
  %v1169 = vpack.c.b16 %v917, %v916
  %v1170 = vpack.c.b16 %v919, %v918
  %v1171 = vpack.c.b16 %v921, %v920
  %v1172 = vpack.c.b16 %v923, %v922
  %v1173 = vpack.c.b16 %v925, %v924
  %v1174 = vpack.c.b16 %v927, %v926
  %v1175 = vpack.c.b16 %v929, %v928
  %v1176 = vpack.c.b16 %v931, %v930
  %v1177 = vpack.c.b16 %v933, %v932
  %v1178 = vpack.c.b16 %v935, %v934
  %v1179 = vpack.c.b16 %v937, %v936
  %v1180 = vpack.c.b16 %v939, %v938
  %v1181 = vpack.c.b16 %v941, %v940
  %v1182 = vpack.c.b16 %v943, %v942
  %v1183 = vpack.c.b16 %v945, %v944
  %v1184 = vpack.c.b16 %v947, %v946
  %v1185 = vpack.c.b16 %v949, %v948
  %v1186 = vpack.c.b16 %v951, %v950
  %v1187 = vpack.c.b16 %v953, %v952
  %v1188 = vpack.c.b16 %v955, %v954
  %v1189 = vpack.c.b16 %v957, %v956
  %v1190 = vpack.c.b16 %v959, %v958
  %v1191 = vpack.c.b16 %v961, %v960
  %v1192 = vpack.c.b16 %v963, %v962
  %v1193 = vpack.c.b16 %v965, %v964
  %v1194 = vpack.c.b16 %v967, %v966
  %v1195 = vpack.c.b16 %v969, %v968
  %v1196 = vpack.c.b16 %v971, %v970
  %v1197 = vpack.c.b16 %v973, %v972
  %v1198 = vpack.c.b16 %v975, %v974
  %v1199 = vpack.c.b16 %v977, %v976
  %v1200 = vpack.c.b16 %v979, %v978
  %v1201 = vpack.c.b16 %v981, %v980
  %v1202 = vpack.c.b16 %v983, %v982
  %v1203 = vpack.c.b16 %v985, %v984
  %v1204 = vpack.c.b16 %v987, %v986
  %v1205 = vpack.c.b16 %v989, %v988
  %v1206 = vpack.c.b16 %v991, %v990
  %v1207 = vpack.c.b16 %v993, %v992
  %v1208 = vpack.c.b16 %v995, %v994
  %v1209 = vpack.c.b16 %v997, %v996
  %v1210 = vpack.c.b16 %v999, %v998
  %v1211 = vpack.c.b16 %v1001, %v1000
  %v1212 = vpack.c.b16 %v1003, %v1002
  %v1213 = vpack.c.b16 %v1005, %v1004
  %v1214 = vpack.c.b16 %v1007, %v1006
  %v1215 = vpack.c.b16 %v1009, %v1008
  %v1216 = vpack.c.b16 %v1011, %v1010
  %v1217 = vpack.c.b16 %v1013, %v1012
  %v1218 = vpack.c.b16 %v1015, %v1014
  %v1219 = vpack.c.b16 %v1017, %v1016
  %v1220 = vpack.c.b16 %v1019, %v1018
  %v1221 = vpack.c.b16 %v1021, %v1020
  %v1222 = vpack.c.b16 %v1023, %v1022
  %v1223 = vpack.c.b16 %v1025, %v1024
  %v1224 = vpack.c.b16 %v1027, %v1026
  %v1225 = vpack.c.b16 %v1029, %v1028
  %v1226 = vpack.c.b16 %v1031, %v1030
  %v1227 = vpack.c.b16 %v1033, %v1032
  %v1228 = vpack.c.b16 %v1035, %v1034
  %v1229 = vpack.c.b16 %v1037, %v1036
  %v1230 = vpack.c.b16 %v1039, %v1038
  %v1231 = vpack.c.b16 %v1041, %v1040
  %v1232 = vpack.c.b16 %v1043, %v1042
  %v1233 = vpack.c.b16 %v1045, %v1044
  %v1234 = vpack.c.b16 %v1047, %v1046
  %v1235 = vpack.c.b16 %v1049, %v1048
  %v1236 = vpack.c.b16 %v1051, %v1050
  %v1237 = vpack.c.b16 %v1053, %v1052
  %v1238 = vpack.c.b16 %v1055, %v1054
  %v1239 = vpack.c.b16 %v1057, %v1056
  %v1240 = vpack.c.b16 %v1059, %v1058
  %v1241 = vpack.c.b16 %v1061, %v1060
  %v1242 = vpack.c.b16 %v1063, %v1062
  %v1243 = vpack.c.b16 %v1065, %v1064
  %v1244 = vpack.c.b16 %v1067, %v1066
  %v1245 = vpack.c.b16 %v1069, %v1068
  %v1246 = vpack.c.b16 %v1071, %v1070
  %v1247 = vpack.c.b16 %v1073, %v1072
  %v1248 = vpack.c.b16 %v1075, %v1074
  %v1249 = vpack.c.b16 %v1077, %v1076
  %v1250 = vpack.c.b16 %v1079, %v1078
  %v1251 = vpack.c.b16 %v1081, %v1080
  %v1252 = vpack.c.b16 %v1083, %v1082
  %v1253 = vpack.c.b16 %v1085, %v1084
  %v1254 = vpack.c.b16 %v1087, %v1086
  %v1255 = vpack.c.b16 %v1089, %v1088
  %v1256 = vpack.c.b16 %v1091, %v1090
  %v1257 = vpack.c.b16 %v1093, %v1092
  %v1258 = vpack.c.b16 %v1095, %v1094
  %v1259 = vpack.c.b16 %v1097, %v1096
  %v1260 = vpack.c.b16 %v1099, %v1098
  %v1261 = vpack.c.b16 %v1101, %v1100
  %v1262 = vpack.c.b16 %v1103, %v1102
  %v1263 = vpack.c.b16 %v1105, %v1104
  %v1264 = vpack.c.b16 %v1107, %v1106
  %v1265 = vpack.c.b16 %v1109, %v1108
  %v1266 = vpack.c.b16 %v1111, %v1110
  %v1267 = vpack.c.b16 %v1113, %v1112
  %v1268 = vpack.c.b16 %v1115, %v1114
  %v1269 = vpack.c.b16 %v1117, %v1116
  %v1270 = vpack.c.b16 %v1119, %v1118
  %v1271 = vpack.c.b16 %v1121, %v1120
  %v1272 = vpack.c.b16 %v1123, %v1122
  %v1273 = vpack.c.b16 %v1125, %v1124
  %v1274 = vpack.c.b16 %v1127, %v1126
  %v1275 = vpack.c.b16 %v1129, %v1128
  %v1276 = vpack.c.b16 %v1131, %v1130
  %v1277 = vpack.c.b16 %v1133, %v1132
  %v1278 = vpack.c.b16 %v1135, %v1134
  %v1279 = vpack.c.b16 %v1137, %v1136
  %v1280 = vpack.c.b16 %v1139, %v1138
  %v1281 = vpack.c.b16 %v1141, %v1140
  %v1282 = vpack.c.b16 %v1143, %v1142
  %v1283 = vpack.c.b16 %v1145, %v1144
  %v1284 = vpack.c.b16 %v1147, %v1146
  %v1285 = vpack.c.b16 %v1149, %v1148
  %v1286 = vpack.c.b16 %v1151, %v1150
  %v1287 = vpack.c.b16 %v1153, %v1152
  %v1288 = vpack.c.b16 %v1155, %v1154
  %v1289 = vpack.c.b16 %v1157, %v1156
  %v1290 = vpack.c.b16 %v1159, %v1158
  %v1291 = vpack.c.b16 %v1161, %v1160
  %v1292 = vpack.c.b16 %v1163, %v1162
  %v1293 = vpack.c.b16 %v1165, %v1164
  %1422 = vmatpush.bf16.msra.mxu0 %v1173
  %1423 = vmatpush.bf16.msra.mxu0 %v1172
  %1424 = vmatpush.bf16.msra.mxu0 %v1171
  %1425 = vmatpush.bf16.msra.mxu0 %v1170
  %1426 = vmatpush.bf16.msra.mxu0 %v1169
  %1427 = vmatpush.bf16.msra.mxu0 %v1168
  %1428 = vmatpush.bf16.msra.mxu0 %v1167
  %1429 = vmatpush.bf16.msra.mxu0 %v1166
  %1430 = vmatmul.bf16.gmra.mxu0 %v526
  %v1431 = vpop.f32.mrf.mxu0
  %v1432 = vadd.f32 0.0, %v1431
  %v1433 = vpop.f32.mrf.mxu0
  %v1434 = vadd.f32 0.0, %v1433
  %1435 = vmatmul.bf16.gmra.mxu0 %v542
  %v1436 = vpop.f32.mrf.mxu0
  %v1437 = vadd.f32 0.0, %v1436
  %v1438 = vpop.f32.mrf.mxu0
  %v1439 = vadd.f32 0.0, %v1438
  %1440 = vmatmul.bf16.gmra.mxu0 %v558
  %v1441 = vpop.f32.mrf.mxu0
  %v1442 = vadd.f32 0.0, %v1441
  %v1443 = vpop.f32.mrf.mxu0
  %v1444 = vadd.f32 0.0, %v1443
  %1445 = vmatmul.bf16.gmra.mxu0 %v574
  %v1446 = vpop.f32.mrf.mxu0
  %v1447 = vadd.f32 0.0, %v1446
  %v1448 = vpop.f32.mrf.mxu0
  %v1449 = vadd.f32 0.0, %v1448
  %1450 = vdwg.mxu0
  %1451 = vmatpush.bf16.msra.mxu0 %v1181
  %1452 = vmatpush.bf16.msra.mxu0 %v1180
  %1453 = vmatpush.bf16.msra.mxu0 %v1179
  %1454 = vmatpush.bf16.msra.mxu0 %v1178
  %1455 = vmatpush.bf16.msra.mxu0 %v1177
  %1456 = vmatpush.bf16.msra.mxu0 %v1176
  %1457 = vmatpush.bf16.msra.mxu0 %v1175
  %1458 = vmatpush.bf16.msra.mxu0 %v1174
  %1459 = vmatmul.bf16.gmra.mxu0 %v527
  %v1460 = vpop.f32.mrf.mxu0
  %v1461 = vadd.f32 %v1432, %v1460
  %v1462 = vpop.f32.mrf.mxu0
  %v1463 = vadd.f32 %v1434, %v1462
  %1464 = vmatmul.bf16.gmra.mxu0 %v543
  %v1465 = vpop.f32.mrf.mxu0
  %v1466 = vadd.f32 %v1437, %v1465
  %v1467 = vpop.f32.mrf.mxu0
  %v1468 = vadd.f32 %v1439, %v1467
  %1469 = vmatmul.bf16.gmra.mxu0 %v559
  %v1470 = vpop.f32.mrf.mxu0
  %v1471 = vadd.f32 %v1442, %v1470
  %v1472 = vpop.f32.mrf.mxu0
  %v1473 = vadd.f32 %v1444, %v1472
  %1474 = vmatmul.bf16.gmra.mxu0 %v575
  %v1475 = vpop.f32.mrf.mxu0
  %v1476 = vadd.f32 %v1447, %v1475
  %v1477 = vpop.f32.mrf.mxu0
  %v1478 = vadd.f32 %v1449, %v1477
  %1479 = vdwg.mxu0
  %1480 = vmatpush.bf16.msra.mxu0 %v1189
  %1481 = vmatpush.bf16.msra.mxu0 %v1188
  %1482 = vmatpush.bf16.msra.mxu0 %v1187
  %1483 = vmatpush.bf16.msra.mxu0 %v1186
  %1484 = vmatpush.bf16.msra.mxu0 %v1185
  %1485 = vmatpush.bf16.msra.mxu0 %v1184
  %1486 = vmatpush.bf16.msra.mxu0 %v1183
  %1487 = vmatpush.bf16.msra.mxu0 %v1182
  %1488 = vmatmul.bf16.gmra.mxu0 %v528
  %v1489 = vpop.f32.mrf.mxu0
  %v1490 = vadd.f32 %v1461, %v1489
  %v1491 = vpop.f32.mrf.mxu0
  %v1492 = vadd.f32 %v1463, %v1491
  %1493 = vmatmul.bf16.gmra.mxu0 %v544
  %v1494 = vpop.f32.mrf.mxu0
  %v1495 = vadd.f32 %v1466, %v1494
  %v1496 = vpop.f32.mrf.mxu0
  %v1497 = vadd.f32 %v1468, %v1496
  %1498 = vmatmul.bf16.gmra.mxu0 %v560
  %v1499 = vpop.f32.mrf.mxu0
  %v1500 = vadd.f32 %v1471, %v1499
  %v1501 = vpop.f32.mrf.mxu0
  %v1502 = vadd.f32 %v1473, %v1501
  %1503 = vmatmul.bf16.gmra.mxu0 %v576
  %v1504 = vpop.f32.mrf.mxu0
  %v1505 = vadd.f32 %v1476, %v1504
  %v1506 = vpop.f32.mrf.mxu0
  %v1507 = vadd.f32 %v1478, %v1506
  %1508 = vdwg.mxu0
  %1509 = vmatpush.bf16.msra.mxu0 %v1197
  %1510 = vmatpush.bf16.msra.mxu0 %v1196
  %1511 = vmatpush.bf16.msra.mxu0 %v1195
  %1512 = vmatpush.bf16.msra.mxu0 %v1194
  %1513 = vmatpush.bf16.msra.mxu0 %v1193
  %1514 = vmatpush.bf16.msra.mxu0 %v1192
  %1515 = vmatpush.bf16.msra.mxu0 %v1191
  %1516 = vmatpush.bf16.msra.mxu0 %v1190
  %1517 = vmatmul.bf16.gmra.mxu0 %v529
  %v1518 = vpop.f32.mrf.mxu0
  %v1519 = vadd.f32 %v1490, %v1518
  %v1520 = vpop.f32.mrf.mxu0
  %v1521 = vadd.f32 %v1492, %v1520
  %1522 = vmatmul.bf16.gmra.mxu0 %v545
  %v1523 = vpop.f32.mrf.mxu0
  %v1524 = vadd.f32 %v1495, %v1523
  %v1525 = vpop.f32.mrf.mxu0
  %v1526 = vadd.f32 %v1497, %v1525
  %1527 = vmatmul.bf16.gmra.mxu0 %v561
  %v1528 = vpop.f32.mrf.mxu0
  %v1529 = vadd.f32 %v1500, %v1528
  %v1530 = vpop.f32.mrf.mxu0
  %v1531 = vadd.f32 %v1502, %v1530
  %1532 = vmatmul.bf16.gmra.mxu0 %v577
  %v1533 = vpop.f32.mrf.mxu0
  %v1534 = vadd.f32 %v1505, %v1533
  %v1535 = vpop.f32.mrf.mxu0
  %v1536 = vadd.f32 %v1507, %v1535
  %1537 = vdwg.mxu0
  %1538 = vmatpush.bf16.msra.mxu0 %v1205
  %1539 = vmatpush.bf16.msra.mxu0 %v1204
  %1540 = vmatpush.bf16.msra.mxu0 %v1203
  %1541 = vmatpush.bf16.msra.mxu0 %v1202
  %1542 = vmatpush.bf16.msra.mxu0 %v1201
  %1543 = vmatpush.bf16.msra.mxu0 %v1200
  %1544 = vmatpush.bf16.msra.mxu0 %v1199
  %1545 = vmatpush.bf16.msra.mxu0 %v1198
  %1546 = vmatmul.bf16.gmra.mxu0 %v530
  %v1547 = vpop.f32.mrf.mxu0
  %v1548 = vadd.f32 %v1519, %v1547
  %v1549 = vpop.f32.mrf.mxu0
  %v1550 = vadd.f32 %v1521, %v1549
  %1551 = vmatmul.bf16.gmra.mxu0 %v546
  %v1552 = vpop.f32.mrf.mxu0
  %v1553 = vadd.f32 %v1524, %v1552
  %v1554 = vpop.f32.mrf.mxu0
  %v1555 = vadd.f32 %v1526, %v1554
  %1556 = vmatmul.bf16.gmra.mxu0 %v562
  %v1557 = vpop.f32.mrf.mxu0
  %v1558 = vadd.f32 %v1529, %v1557
  %v1559 = vpop.f32.mrf.mxu0
  %v1560 = vadd.f32 %v1531, %v1559
  %1561 = vmatmul.bf16.gmra.mxu0 %v578
  %v1562 = vpop.f32.mrf.mxu0
  %v1563 = vadd.f32 %v1534, %v1562
  %v1564 = vpop.f32.mrf.mxu0
  %v1565 = vadd.f32 %v1536, %v1564
  %1566 = vdwg.mxu0
  %1567 = vmatpush.bf16.msra.mxu0 %v1213
  %1568 = vmatpush.bf16.msra.mxu0 %v1212
  %1569 = vmatpush.bf16.msra.mxu0 %v1211
  %1570 = vmatpush.bf16.msra.mxu0 %v1210
  %1571 = vmatpush.bf16.msra.mxu0 %v1209
  %1572 = vmatpush.bf16.msra.mxu0 %v1208
  %1573 = vmatpush.bf16.msra.mxu0 %v1207
  %1574 = vmatpush.bf16.msra.mxu0 %v1206
  %1575 = vmatmul.bf16.gmra.mxu0 %v531
  %v1576 = vpop.f32.mrf.mxu0
  %v1577 = vadd.f32 %v1548, %v1576
  %v1578 = vpop.f32.mrf.mxu0
  %v1579 = vadd.f32 %v1550, %v1578
  %1580 = vmatmul.bf16.gmra.mxu0 %v547
  %v1581 = vpop.f32.mrf.mxu0
  %v1582 = vadd.f32 %v1553, %v1581
  %v1583 = vpop.f32.mrf.mxu0
  %v1584 = vadd.f32 %v1555, %v1583
  %1585 = vmatmul.bf16.gmra.mxu0 %v563
  %v1586 = vpop.f32.mrf.mxu0
  %v1587 = vadd.f32 %v1558, %v1586
  %v1588 = vpop.f32.mrf.mxu0
  %v1589 = vadd.f32 %v1560, %v1588
  %1590 = vmatmul.bf16.gmra.mxu0 %v579
  %v1591 = vpop.f32.mrf.mxu0
  %v1592 = vadd.f32 %v1563, %v1591
  %v1593 = vpop.f32.mrf.mxu0
  %v1594 = vadd.f32 %v1565, %v1593
  %1595 = vdwg.mxu0
  %1596 = vmatpush.bf16.msra.mxu0 %v1221
  %1597 = vmatpush.bf16.msra.mxu0 %v1220
  %1598 = vmatpush.bf16.msra.mxu0 %v1219
  %1599 = vmatpush.bf16.msra.mxu0 %v1218
  %1600 = vmatpush.bf16.msra.mxu0 %v1217
  %1601 = vmatpush.bf16.msra.mxu0 %v1216
  %1602 = vmatpush.bf16.msra.mxu0 %v1215
  %1603 = vmatpush.bf16.msra.mxu0 %v1214
  %1604 = vmatmul.bf16.gmra.mxu0 %v532
  %v1605 = vpop.f32.mrf.mxu0
  %v1606 = vadd.f32 %v1577, %v1605
  %v1607 = vpop.f32.mrf.mxu0
  %v1608 = vadd.f32 %v1579, %v1607
  %1609 = vmatmul.bf16.gmra.mxu0 %v548
  %v1610 = vpop.f32.mrf.mxu0
  %v1611 = vadd.f32 %v1582, %v1610
  %v1612 = vpop.f32.mrf.mxu0
  %v1613 = vadd.f32 %v1584, %v1612
  %1614 = vmatmul.bf16.gmra.mxu0 %v564
  %v1615 = vpop.f32.mrf.mxu0
  %v1616 = vadd.f32 %v1587, %v1615
  %v1617 = vpop.f32.mrf.mxu0
  %v1618 = vadd.f32 %v1589, %v1617
  %1619 = vmatmul.bf16.gmra.mxu0 %v580
  %v1620 = vpop.f32.mrf.mxu0
  %v1621 = vadd.f32 %v1592, %v1620
  %v1622 = vpop.f32.mrf.mxu0
  %v1623 = vadd.f32 %v1594, %v1622
  %1624 = vdwg.mxu0
  %1625 = vmatpush.bf16.msra.mxu0 %v1229
  %1626 = vmatpush.bf16.msra.mxu0 %v1228
  %1627 = vmatpush.bf16.msra.mxu0 %v1227
  %1628 = vmatpush.bf16.msra.mxu0 %v1226
  %1629 = vmatpush.bf16.msra.mxu0 %v1225
  %1630 = vmatpush.bf16.msra.mxu0 %v1224
  %1631 = vmatpush.bf16.msra.mxu0 %v1223
  %1632 = vmatpush.bf16.msra.mxu0 %v1222
  %1633 = vmatmul.bf16.gmra.mxu0 %v533
  %v1634 = vpop.f32.mrf.mxu0
  %v1635 = vadd.f32 %v1606, %v1634
  %v1636 = vpop.f32.mrf.mxu0
  %v1637 = vadd.f32 %v1608, %v1636
  %1638 = vmatmul.bf16.gmra.mxu0 %v549
  %v1639 = vpop.f32.mrf.mxu0
  %v1640 = vadd.f32 %v1611, %v1639
  %v1641 = vpop.f32.mrf.mxu0
  %v1642 = vadd.f32 %v1613, %v1641
  %1643 = vmatmul.bf16.gmra.mxu0 %v565
  %v1644 = vpop.f32.mrf.mxu0
  %v1645 = vadd.f32 %v1616, %v1644
  %v1646 = vpop.f32.mrf.mxu0
  %v1647 = vadd.f32 %v1618, %v1646
  %1648 = vmatmul.bf16.gmra.mxu0 %v581
  %v1649 = vpop.f32.mrf.mxu0
  %v1650 = vadd.f32 %v1621, %v1649
  %v1651 = vpop.f32.mrf.mxu0
  %v1652 = vadd.f32 %v1623, %v1651
  %1653 = vdwg.mxu0
  %1654 = vmatpush.bf16.msra.mxu0 %v1237
  %1655 = vmatpush.bf16.msra.mxu0 %v1236
  %1656 = vmatpush.bf16.msra.mxu0 %v1235
  %1657 = vmatpush.bf16.msra.mxu0 %v1234
  %1658 = vmatpush.bf16.msra.mxu0 %v1233
  %1659 = vmatpush.bf16.msra.mxu0 %v1232
  %1660 = vmatpush.bf16.msra.mxu0 %v1231
  %1661 = vmatpush.bf16.msra.mxu0 %v1230
  %1662 = vmatmul.bf16.gmra.mxu0 %v534
  %v1663 = vpop.f32.mrf.mxu0
  %v1664 = vadd.f32 %v1635, %v1663
  %v1665 = vpop.f32.mrf.mxu0
  %v1666 = vadd.f32 %v1637, %v1665
  %1667 = vmatmul.bf16.gmra.mxu0 %v550
  %v1668 = vpop.f32.mrf.mxu0
  %v1669 = vadd.f32 %v1640, %v1668
  %v1670 = vpop.f32.mrf.mxu0
  %v1671 = vadd.f32 %v1642, %v1670
  %1672 = vmatmul.bf16.gmra.mxu0 %v566
  %v1673 = vpop.f32.mrf.mxu0
  %v1674 = vadd.f32 %v1645, %v1673
  %v1675 = vpop.f32.mrf.mxu0
  %v1676 = vadd.f32 %v1647, %v1675
  %1677 = vmatmul.bf16.gmra.mxu0 %v582
  %v1678 = vpop.f32.mrf.mxu0
  %v1679 = vadd.f32 %v1650, %v1678
  %v1680 = vpop.f32.mrf.mxu0
  %v1681 = vadd.f32 %v1652, %v1680
  %1682 = vdwg.mxu0
  %1683 = vmatpush.bf16.msra.mxu0 %v1245
  %1684 = vmatpush.bf16.msra.mxu0 %v1244
  %1685 = vmatpush.bf16.msra.mxu0 %v1243
  %1686 = vmatpush.bf16.msra.mxu0 %v1242
  %1687 = vmatpush.bf16.msra.mxu0 %v1241
  %1688 = vmatpush.bf16.msra.mxu0 %v1240
  %1689 = vmatpush.bf16.msra.mxu0 %v1239
  %1690 = vmatpush.bf16.msra.mxu0 %v1238
  %1691 = vmatmul.bf16.gmra.mxu0 %v535
  %v1692 = vpop.f32.mrf.mxu0
  %v1693 = vadd.f32 %v1664, %v1692
  %v1694 = vpop.f32.mrf.mxu0
  %v1695 = vadd.f32 %v1666, %v1694
  %1696 = vmatmul.bf16.gmra.mxu0 %v551
  %v1697 = vpop.f32.mrf.mxu0
  %v1698 = vadd.f32 %v1669, %v1697
  %v1699 = vpop.f32.mrf.mxu0
  %v1700 = vadd.f32 %v1671, %v1699
  %1701 = vmatmul.bf16.gmra.mxu0 %v567
  %v1702 = vpop.f32.mrf.mxu0
  %v1703 = vadd.f32 %v1674, %v1702
  %v1704 = vpop.f32.mrf.mxu0
  %v1705 = vadd.f32 %v1676, %v1704
  %1706 = vmatmul.bf16.gmra.mxu0 %v583
  %v1707 = vpop.f32.mrf.mxu0
  %v1708 = vadd.f32 %v1679, %v1707
  %v1709 = vpop.f32.mrf.mxu0
  %v1710 = vadd.f32 %v1681, %v1709
  %1711 = vdwg.mxu0
  %1712 = vmatpush.bf16.msra.mxu0 %v1253
  %1713 = vmatpush.bf16.msra.mxu0 %v1252
  %1714 = vmatpush.bf16.msra.mxu0 %v1251
  %1715 = vmatpush.bf16.msra.mxu0 %v1250
  %1716 = vmatpush.bf16.msra.mxu0 %v1249
  %1717 = vmatpush.bf16.msra.mxu0 %v1248
  %1718 = vmatpush.bf16.msra.mxu0 %v1247
  %1719 = vmatpush.bf16.msra.mxu0 %v1246
  %1720 = vmatmul.bf16.gmra.mxu0 %v536
  %v1721 = vpop.f32.mrf.mxu0
  %v1722 = vadd.f32 %v1693, %v1721
  %v1723 = vpop.f32.mrf.mxu0
  %v1724 = vadd.f32 %v1695, %v1723
  %1725 = vmatmul.bf16.gmra.mxu0 %v552
  %v1726 = vpop.f32.mrf.mxu0
  %v1727 = vadd.f32 %v1698, %v1726
  %v1728 = vpop.f32.mrf.mxu0
  %v1729 = vadd.f32 %v1700, %v1728
  %1730 = vmatmul.bf16.gmra.mxu0 %v568
  %v1731 = vpop.f32.mrf.mxu0
  %v1732 = vadd.f32 %v1703, %v1731
  %v1733 = vpop.f32.mrf.mxu0
  %v1734 = vadd.f32 %v1705, %v1733
  %1735 = vmatmul.bf16.gmra.mxu0 %v584
  %v1736 = vpop.f32.mrf.mxu0
  %v1737 = vadd.f32 %v1708, %v1736
  %v1738 = vpop.f32.mrf.mxu0
  %v1739 = vadd.f32 %v1710, %v1738
  %1740 = vdwg.mxu0
  %1741 = vmatpush.bf16.msra.mxu0 %v1261
  %1742 = vmatpush.bf16.msra.mxu0 %v1260
  %1743 = vmatpush.bf16.msra.mxu0 %v1259
  %1744 = vmatpush.bf16.msra.mxu0 %v1258
  %1745 = vmatpush.bf16.msra.mxu0 %v1257
  %1746 = vmatpush.bf16.msra.mxu0 %v1256
  %1747 = vmatpush.bf16.msra.mxu0 %v1255
  %1748 = vmatpush.bf16.msra.mxu0 %v1254
  %1749 = vmatmul.bf16.gmra.mxu0 %v537
  %v1750 = vpop.f32.mrf.mxu0
  %v1751 = vadd.f32 %v1722, %v1750
  %v1752 = vpop.f32.mrf.mxu0
  %v1753 = vadd.f32 %v1724, %v1752
  %1754 = vmatmul.bf16.gmra.mxu0 %v553
  %v1755 = vpop.f32.mrf.mxu0
  %v1756 = vadd.f32 %v1727, %v1755
  %v1757 = vpop.f32.mrf.mxu0
  %v1758 = vadd.f32 %v1729, %v1757
  %1759 = vmatmul.bf16.gmra.mxu0 %v569
  %v1760 = vpop.f32.mrf.mxu0
  %v1761 = vadd.f32 %v1732, %v1760
  %v1762 = vpop.f32.mrf.mxu0
  %v1763 = vadd.f32 %v1734, %v1762
  %1764 = vmatmul.bf16.gmra.mxu0 %v585
  %v1765 = vpop.f32.mrf.mxu0
  %v1766 = vadd.f32 %v1737, %v1765
  %v1767 = vpop.f32.mrf.mxu0
  %v1768 = vadd.f32 %v1739, %v1767
  %1769 = vdwg.mxu0
  %1770 = vmatpush.bf16.msra.mxu0 %v1269
  %1771 = vmatpush.bf16.msra.mxu0 %v1268
  %1772 = vmatpush.bf16.msra.mxu0 %v1267
  %1773 = vmatpush.bf16.msra.mxu0 %v1266
  %1774 = vmatpush.bf16.msra.mxu0 %v1265
  %1775 = vmatpush.bf16.msra.mxu0 %v1264
  %1776 = vmatpush.bf16.msra.mxu0 %v1263
  %1777 = vmatpush.bf16.msra.mxu0 %v1262
  %1778 = vmatmul.bf16.gmra.mxu0 %v538
  %v1779 = vpop.f32.mrf.mxu0
  %v1780 = vadd.f32 %v1751, %v1779
  %v1781 = vpop.f32.mrf.mxu0
  %v1782 = vadd.f32 %v1753, %v1781
  %1783 = vmatmul.bf16.gmra.mxu0 %v554
  %v1784 = vpop.f32.mrf.mxu0
  %v1785 = vadd.f32 %v1756, %v1784
  %v1786 = vpop.f32.mrf.mxu0
  %v1787 = vadd.f32 %v1758, %v1786
  %1788 = vmatmul.bf16.gmra.mxu0 %v570
  %v1789 = vpop.f32.mrf.mxu0
  %v1790 = vadd.f32 %v1761, %v1789
  %v1791 = vpop.f32.mrf.mxu0
  %v1792 = vadd.f32 %v1763, %v1791
  %1793 = vmatmul.bf16.gmra.mxu0 %v586
  %v1794 = vpop.f32.mrf.mxu0
  %v1795 = vadd.f32 %v1766, %v1794
  %v1796 = vpop.f32.mrf.mxu0
  %v1797 = vadd.f32 %v1768, %v1796
  %1798 = vdwg.mxu0
  %1799 = vmatpush.bf16.msra.mxu0 %v1277
  %1800 = vmatpush.bf16.msra.mxu0 %v1276
  %1801 = vmatpush.bf16.msra.mxu0 %v1275
  %1802 = vmatpush.bf16.msra.mxu0 %v1274
  %1803 = vmatpush.bf16.msra.mxu0 %v1273
  %1804 = vmatpush.bf16.msra.mxu0 %v1272
  %1805 = vmatpush.bf16.msra.mxu0 %v1271
  %1806 = vmatpush.bf16.msra.mxu0 %v1270
  %1807 = vmatmul.bf16.gmra.mxu0 %v539
  %v1808 = vpop.f32.mrf.mxu0
  %v1809 = vadd.f32 %v1780, %v1808
  %v1810 = vpop.f32.mrf.mxu0
  %v1811 = vadd.f32 %v1782, %v1810
  %1812 = vmatmul.bf16.gmra.mxu0 %v555
  %v1813 = vpop.f32.mrf.mxu0
  %v1814 = vadd.f32 %v1785, %v1813
  %v1815 = vpop.f32.mrf.mxu0
  %v1816 = vadd.f32 %v1787, %v1815
  %1817 = vmatmul.bf16.gmra.mxu0 %v571
  %v1818 = vpop.f32.mrf.mxu0
  %v1819 = vadd.f32 %v1790, %v1818
  %v1820 = vpop.f32.mrf.mxu0
  %v1821 = vadd.f32 %v1792, %v1820
  %1822 = vmatmul.bf16.gmra.mxu0 %v587
  %v1823 = vpop.f32.mrf.mxu0
  %v1824 = vadd.f32 %v1795, %v1823
  %v1825 = vpop.f32.mrf.mxu0
  %v1826 = vadd.f32 %v1797, %v1825
  %1827 = vdwg.mxu0
  %1828 = vmatpush.bf16.msra.mxu0 %v1285
  %1829 = vmatpush.bf16.msra.mxu0 %v1284
  %1830 = vmatpush.bf16.msra.mxu0 %v1283
  %1831 = vmatpush.bf16.msra.mxu0 %v1282
  %1832 = vmatpush.bf16.msra.mxu0 %v1281
  %1833 = vmatpush.bf16.msra.mxu0 %v1280
  %1834 = vmatpush.bf16.msra.mxu0 %v1279
  %1835 = vmatpush.bf16.msra.mxu0 %v1278
  %1836 = vmatmul.bf16.gmra.mxu0 %v540
  %v1837 = vpop.f32.mrf.mxu0
  %v1838 = vadd.f32 %v1809, %v1837
  %v1839 = vpop.f32.mrf.mxu0
  %v1840 = vadd.f32 %v1811, %v1839
  %1841 = vmatmul.bf16.gmra.mxu0 %v556
  %v1842 = vpop.f32.mrf.mxu0
  %v1843 = vadd.f32 %v1814, %v1842
  %v1844 = vpop.f32.mrf.mxu0
  %v1845 = vadd.f32 %v1816, %v1844
  %1846 = vmatmul.bf16.gmra.mxu0 %v572
  %v1847 = vpop.f32.mrf.mxu0
  %v1848 = vadd.f32 %v1819, %v1847
  %v1849 = vpop.f32.mrf.mxu0
  %v1850 = vadd.f32 %v1821, %v1849
  %1851 = vmatmul.bf16.gmra.mxu0 %v588
  %v1852 = vpop.f32.mrf.mxu0
  %v1853 = vadd.f32 %v1824, %v1852
  %v1854 = vpop.f32.mrf.mxu0
  %v1855 = vadd.f32 %v1826, %v1854
  %1856 = vdwg.mxu0
  %1857 = vmatpush.bf16.msra.mxu0 %v1293
  %1858 = vmatpush.bf16.msra.mxu0 %v1292
  %1859 = vmatpush.bf16.msra.mxu0 %v1291
  %1860 = vmatpush.bf16.msra.mxu0 %v1290
  %1861 = vmatpush.bf16.msra.mxu0 %v1289
  %1862 = vmatpush.bf16.msra.mxu0 %v1288
  %1863 = vmatpush.bf16.msra.mxu0 %v1287
  %1864 = vmatpush.bf16.msra.mxu0 %v1286
  %1865 = vmatmul.bf16.gmra.mxu0 %v541
  %v1866 = vpop.f32.mrf.mxu0
  %v1867 = vadd.f32 %v1838, %v1866
  %v1868 = vpop.f32.mrf.mxu0
  %v1869 = vadd.f32 %v1840, %v1868
  %1870 = vmatmul.bf16.gmra.mxu0 %v557
  %v1871 = vpop.f32.mrf.mxu0
  %v1872 = vadd.f32 %v1843, %v1871
  %v1873 = vpop.f32.mrf.mxu0
  %v1874 = vadd.f32 %v1845, %v1873
  %1875 = vmatmul.bf16.gmra.mxu0 %v573
  %v1876 = vpop.f32.mrf.mxu0
  %v1877 = vadd.f32 %v1848, %v1876
  %v1878 = vpop.f32.mrf.mxu0
  %v1879 = vadd.f32 %v1850, %v1878
  %1880 = vmatmul.bf16.gmra.mxu0 %v589
  %v1881 = vpop.f32.mrf.mxu0
  %v1882 = vadd.f32 %v1853, %v1881
  %v1883 = vpop.f32.mrf.mxu0
  %v1884 = vadd.f32 %v1855, %v1883
  %1885 = vdwg.mxu0
  %1886 = vst [vmem:[%s2] sm:$0xff] %v1867
  %1887 = vst [vmem:[%s2 + $0x8] sm:$0xff] %v1869
  %1888 = vst [vmem:[%s2 + $0x10] sm:$0xff] %v1872
  %1889 = vst [vmem:[%s2 + $0x18] sm:$0xff] %v1874
  %1890 = vst [vmem:[%s2 + $0x20] sm:$0xff] %v1877
  %1891 = vst [vmem:[%s2 + $0x28] sm:$0xff] %v1879
  %1892 = vst [vmem:[%s2 + $0x30] sm:$0xff] %v1882
  %1893 = vst [vmem:[%s2 + $0x38] sm:$0xff] %v1884
  %1894 = vadd.xlane.f32.xlu0 %v1867
  %v1895 = vpop.xlane.xlu0 %1894
  %1896 = vadd.xlane.f32.xlu0 %v1869
  %v1897 = vpop.xlane.xlu0 %1896
  %1898 = vadd.xlane.f32.xlu0 %v1872
  %v1899 = vpop.xlane.xlu0 %1898
  %1900 = vadd.xlane.f32.xlu0 %v1874
  %v1901 = vpop.xlane.xlu0 %1900
  %1902 = vadd.xlane.f32.xlu0 %v1877
  %v1903 = vpop.xlane.xlu0 %1902
  %1904 = vadd.xlane.f32.xlu0 %v1879
  %v1905 = vpop.xlane.xlu0 %1904
  %1906 = vadd.xlane.f32.xlu0 %v1882
  %v1907 = vpop.xlane.xlu0 %1906
  %1908 = vadd.xlane.f32.xlu0 %v1884
  %v1909 = vpop.xlane.xlu0 %1908
  %vm1910 = vcmask 7168
  %1911 = vst.msk [vmem:[%s3] sm:$0xff] %vm1910, %v1895
  %1912 = vst.msk [vmem:[%s3 + $0x8] sm:$0xff] %vm1910, %v1897
  %1913 = vst.msk [vmem:[%s3 + $0x10] sm:$0xff] %vm1910, %v1899
  %1914 = vst.msk [vmem:[%s3 + $0x18] sm:$0xff] %vm1910, %v1901
  %1915 = vst.msk [vmem:[%s3 + $0x20] sm:$0xff] %vm1910, %v1903
  %1916 = vst.msk [vmem:[%s3 + $0x28] sm:$0xff] %vm1910, %v1905
  %1917 = vst.msk [vmem:[%s3 + $0x30] sm:$0xff] %vm1910, %v1907
  %1918 = vst.msk [vmem:[%s3 + $0x38] sm:$0xff] %vm1910, %v1909
  %v1919 = vmul.f32 %v1867, %v1867
  %v1920 = vmul.f32 %v1869, %v1869
  %v1921 = vmul.f32 %v1872, %v1872
  %v1922 = vmul.f32 %v1874, %v1874
  %v1923 = vmul.f32 %v1877, %v1877
  %v1924 = vmul.f32 %v1879, %v1879
  %v1925 = vmul.f32 %v1882, %v1882
  %v1926 = vmul.f32 %v1884, %v1884
  %1927 = vadd.xlane.f32.xlu0 %v1919
  %v1928 = vpop.xlane.xlu0 %1927
  %1929 = vadd.xlane.f32.xlu0 %v1920
  %v1930 = vpop.xlane.xlu0 %1929
  %1931 = vadd.xlane.f32.xlu0 %v1921
  %v1932 = vpop.xlane.xlu0 %1931
  %1933 = vadd.xlane.f32.xlu0 %v1922
  %v1934 = vpop.xlane.xlu0 %1933
  %1935 = vadd.xlane.f32.xlu0 %v1923
  %v1936 = vpop.xlane.xlu0 %1935
  %1937 = vadd.xlane.f32.xlu0 %v1924
  %v1938 = vpop.xlane.xlu0 %1937
  %1939 = vadd.xlane.f32.xlu0 %v1925
  %v1940 = vpop.xlane.xlu0 %1939
  %1941 = vadd.xlane.f32.xlu0 %v1926
  %v1942 = vpop.xlane.xlu0 %1941
  %1943 = vst.msk [vmem:[%s4] sm:$0xff] %vm1910, %v1928
  %1944 = vst.msk [vmem:[%s4 + $0x8] sm:$0xff] %vm1910, %v1930
  %1945 = vst.msk [vmem:[%s4 + $0x10] sm:$0xff] %vm1910, %v1932
  %1946 = vst.msk [vmem:[%s4 + $0x18] sm:$0xff] %vm1910, %v1934
  %1947 = vst.msk [vmem:[%s4 + $0x20] sm:$0xff] %vm1910, %v1936
  %1948 = vst.msk [vmem:[%s4 + $0x28] sm:$0xff] %vm1910, %v1938
  %1949 = vst.msk [vmem:[%s4 + $0x30] sm:$0xff] %vm1910, %v1940
  %1950 = vst.msk [vmem:[%s4 + $0x38] sm:$0xff] %vm1910, %v1942
  // Predicated region
  $region10: #{flow_encoder_forward.14} parent=0 // pred_check
    _
  $region11: #{flow_encoder_forward.14} parent=0 // pred_check_branch
    %1952 = sbr.rel (0) target = $region13
  $region12: #{flow_encoder_forward.14} parent=0 // pred_region
    _
  $region13: #{flow_encoder_forward.14} parent=0 // pred_fallthru
    _
  // Predicated region
  $region14: #{flow_encoder_forward.14} parent=0 // pred_check
    _
  $region15: #{flow_encoder_forward.14} parent=0 // pred_check_branch
    %1954 = sbr.rel (0) target = $region17
  $region16: #{flow_encoder_forward.14} parent=0 // pred_region
    _
  $region17: #{flow_encoder_forward.14} parent=0 // pred_fallthru
    _
  // Predicated region
  $region18: #{flow_encoder_forward.14} parent=0 // pred_check
    _
  $region19: #{flow_encoder_forward.14} parent=0 // pred_check_branch
    %1956 = sbr.rel (0) target = $region21
  $region20: #{flow_encoder_forward.14} parent=0 // pred_region
    _
  $region21: #{flow_encoder_forward.14} parent=0 // pred_fallthru
    _
  // Predicated region
  $region22: #{flow_encoder_forward.14} parent=0 // pred_check
    _
  $region23: #{flow_encoder_forward.14} parent=0 // pred_check_branch
    %1958 = sbr.rel (0) target = $region25
  $region24: #{flow_encoder_forward.14} parent=0 // pred_region
    _
  $region25: #{flow_encoder_forward.14} parent=0 // pred_fallthru
    _
  // Predicated region
  $region26: #{flow_encoder_forward.14} parent=0 // pred_check
    _
  $region27: #{flow_encoder_forward.14} parent=0 // pred_check_branch
    %1960 = sbr.rel (0) target = $region29
  $region28: #{flow_encoder_forward.14} parent=0 // pred_region
    _
  $region29: #{flow_encoder_forward.14} parent=0 // pred_fallthru
    _
  // Predicated region
  $region30: #{flow_encoder_forward.14} parent=0 // pred_check
    _
  $region31: #{flow_encoder_forward.14} parent=0 // pred_check_branch
    %1962 = sbr.rel (0) target = $region33
  $region32: #{flow_encoder_forward.14} parent=0 // pred_region
    _
  $region33: #{flow_encoder_forward.14} parent=0 // pred_fallthru
    _

</llo_original>
